<compile_context>
chip_gen: v7x
topology: tpu7x:2x2x1
jax: 0.10.0
libtpu: 0.0.40
codegen_flags: <defaults>
</compile_context>

<pallas_src>
import functools

import jax
import jax.numpy as jnp
import numpy as np
from jax.experimental import pallas as pl
from jax.experimental.pallas import tpu as pltpu


# ----------------------------------------------------------------------------
# In-kernel helpers
# ----------------------------------------------------------------------------
def _pool2x2(src_ref, Hh, Wh, C, W_in):
    """2x2 / stride-2 maxpool read from a (Hh, 2, Wh, 2, C) VMEM window view.

    Returns (values, flat PyTorch indices h*W_in + w).  First-max-wins on ties
    in window scan order (di, dj) — matches the jnp.argmax reference (PyTorch's
    tie order is backend-dependent).
    """
    best_v = src_ref[:, 0, :, 0, :]                       # tap (0, 0), (Hh,Wh,C)
    best_o = jnp.zeros((Hh, Wh, C), jnp.int32)            # winning tap offset
    for di in range(2):
        for dj in range(2):
            if di == 0 and dj == 0:
                continue
            v = src_ref[:, di, :, dj, :]
            take = v > best_v                              # first-max-wins
            best_v = jnp.where(take, v, best_v)
            best_o = jnp.where(take, di * W_in + dj, best_o)
    row = jax.lax.broadcasted_iota(jnp.int32, (Hh, Wh, C), 0)
    col = jax.lax.broadcasted_iota(jnp.int32, (Hh, Wh, C), 1)
    idx = (2 * row) * W_in + 2 * col + best_o
    return best_v, idx


# ----------------------------------------------------------------------------
# Fused PatchEmbed kernel: conv1+relu -> pool1 -> conv2+relu -> pool2 -> conv3
#                          -> LayerNorm, one image per grid step.
# ----------------------------------------------------------------------------
def _patch_embed_kernel(
    patches_ref, w1_ref, b1_ref, w2_ref, b2_ref, w3_ref, b3_ref, g_ref, bt_ref,
    out_ref, idx1_ref, idx2_ref, fea1_ref, fea2_ref,
    psrc1, psrc2, xpad2, xpad3,
    *, H, W, C1, C2, C3, eps,
):
    f32 = jnp.float32
    H1, W1 = H, W                  # conv1 / fea1 resolution
    H2, W2 = H1 // 2, W1 // 2      # pool1 / conv2 / fea2 resolution
    H3, W3 = H2 // 2, W2 // 2      # pool2 / conv3 resolution

    # ---- conv1 (+ReLU): single im2col matmul, K = 9*Cin, bf16 -> f32 --------
    y1 = jnp.dot(patches_ref[0], w1_ref[...], preferred_element_type=f32)
    y1 = jnp.maximum(y1 + b1_ref[...], 0.0)                # (H1*W1, C1) f32
    fea1_ref[0] = y1.reshape(H1, W1, C1)
    psrc1[...] = y1.reshape(H2, 2, W2, 2, C1)              # pooling window view

    # ---- maxpool1 (2x2, stride 2) with PyTorch flat indices ------------------
    p1, idx1 = _pool2x2(psrc1, H2, W2, C1, W1)
    idx1_ref[0] = idx1

    # ---- conv2 (+ReLU): 9-tap bf16 MXU accumulation in f32 -------------------
    xpad2[...] = jnp.zeros((H2 + 2, W2 + 2, 1, C1), f32)   # zero halo
    xpad2[pl.ds(1, H2), pl.ds(1, W2), :, :] = p1.reshape(H2, W2, 1, C1)
    acc2 = jnp.zeros((H2 * W2, C2), f32)
    for k in range(9):
        dh, dw = k // 3, k % 3
        xs = xpad2[pl.ds(dh, H2), pl.ds(dw, W2), 0, :]
        xs = xs.reshape(H2 * W2, C1).astype(jnp.bfloat16)
        acc2 = acc2 + jnp.dot(xs, w2_ref[k], preferred_element_type=f32)
    y2 = jnp.maximum(acc2 + b2_ref[...], 0.0)              # (H2*W2, C2) f32
    fea2_ref[0] = y2.reshape(H2, W2, C2)
    psrc2[...] = y2.reshape(H3, 2, W3, 2, C2)

    # ---- maxpool2 ------------------------------------------------------------
    p2, idx2 = _pool2x2(psrc2, H3, W3, C2, W2)
    idx2_ref[0] = idx2

    # ---- conv3 (no ReLU) ------------------------------------------------------
    xpad3[...] = jnp.zeros((H3 + 2, W3 + 2, 1, C2), f32)
    xpad3[pl.ds(1, H3), pl.ds(1, W3), :, :] = p2.reshape(H3, W3, 1, C2)
    acc3 = jnp.zeros((H3 * W3, C3), f32)
    for k in range(9):
        dh, dw = k // 3, k % 3
        xs = xpad3[pl.ds(dh, H3), pl.ds(dw, W3), 0, :]
        xs = xs.reshape(H3 * W3, C2).astype(jnp.bfloat16)
        acc3 = acc3 + jnp.dot(xs, w3_ref[k], preferred_element_type=f32)
    y3 = acc3 + b3_ref[...]                                # (L, C3), L = H3*W3

    # ---- LayerNorm over channels (PatchEmbed.norm) ----------------------------
    mu = jnp.mean(y3, axis=-1, keepdims=True)
    xc = y3 - mu
    var = jnp.mean(xc * xc, axis=-1, keepdims=True)
    out_ref[0] = (xc * jax.lax.rsqrt(var + eps)) * g_ref[...] + bt_ref[...]


# ----------------------------------------------------------------------------
# BasicLayer forward (RC = PatchEmbed since downsample_ratios=4)
# ----------------------------------------------------------------------------
def basic_layer_forward(x_nchw, params):
    x = jnp.transpose(x_nchw, (0, 2, 3, 1)).astype(jnp.float32)   # NCHW -> NHWC
    B, H, W, C0 = x.shape
    C1 = params["w1"].shape[0]
    C2 = params["w2"].shape[0]
    C3 = params["w3"].shape[0]
    H2, W2 = H // 2, W // 2
    H3, W3 = H2 // 2, W2 // 2
    L = H3 * W3

    # conv1 im2col (input-side glue only): (B, H*W, 9*C0), bf16 MXU operands.
    xp = jnp.pad(x, ((0, 0), (1, 1), (1, 1), (0, 0)))
    taps = [
        xp[:, dh:dh + H, dw:dw + W, :].reshape(B, H * W, C0)
        for dh in range(3) for dw in range(3)
    ]
    patches1 = jnp.concatenate(taps, axis=-1).astype(jnp.bfloat16)

    # Weights (Cout, Cin, 3, 3) -> (kh, kw, cin[, cout]) ordering, bf16.
    w1f = jnp.transpose(params["w1"], (2, 3, 1, 0)).reshape(9 * C0, C1)
    w1f = w1f.astype(jnp.bfloat16)
    w2f = jnp.transpose(params["w2"], (2, 3, 1, 0)).reshape(9, C1, C2)
    w2f = w2f.astype(jnp.bfloat16)
    w3f = jnp.transpose(params["w3"], (2, 3, 1, 0)).reshape(9, C2, C3)
    w3f = w3f.astype(jnp.bfloat16)
    b1 = params["b1"].reshape(1, C1).astype(jnp.float32)
    b2 = params["b2"].reshape(1, C2).astype(jnp.float32)
    b3 = params["b3"].reshape(1, C3).astype(jnp.float32)
    g = params["ln_g"].reshape(1, C3).astype(jnp.float32)
    bt = params["ln_b"].reshape(1, C3).astype(jnp.float32)

    kern = functools.partial(
        _patch_embed_kernel, H=H, W=W, C1=C1, C2=C2, C3=C3, eps=1e-5)

    grid_spec = pltpu.PrefetchScalarGridSpec(
        num_scalar_prefetch=0,
        grid=(B,),
        in_specs=[
            pl.BlockSpec((1, H * W, 9 * C0), lambda b: (b, 0, 0)),   # im2col(x)
            pl.BlockSpec((9 * C0, C1), lambda b: (0, 0)),            # w1
            pl.BlockSpec((1, C1), lambda b: (0, 0)),                 # b1
            pl.BlockSpec((9, C1, C2), lambda b: (0, 0, 0)),          # w2
            pl.BlockSpec((1, C2), lambda b: (0, 0)),                 # b2
            pl.BlockSpec((9, C2, C3), lambda b: (0, 0, 0)),          # w3
            pl.BlockSpec((1, C3), lambda b: (0, 0)),                 # b3
            pl.BlockSpec((1, C3), lambda b: (0, 0)),                 # ln gamma
            pl.BlockSpec((1, C3), lambda b: (0, 0)),                 # ln beta
        ],
        out_specs=[
            pl.BlockSpec((1, L, C3), lambda b: (b, 0, 0)),           # tokens
            pl.BlockSpec((1, H2, W2, C1), lambda b: (b, 0, 0, 0)),   # idx1
            pl.BlockSpec((1, H3, W3, C2), lambda b: (b, 0, 0, 0)),   # idx2
            pl.BlockSpec((1, H, W, C1), lambda b: (b, 0, 0, 0)),     # fea1
            pl.BlockSpec((1, H2, W2, C2), lambda b: (b, 0, 0, 0)),   # fea2
        ],
        scratch_shapes=[
            pltpu.VMEM((H2, 2, W2, 2, C1), jnp.float32),        # pool1 window view
            pltpu.VMEM((H3, 2, W3, 2, C2), jnp.float32),        # pool2 window view
            pltpu.VMEM((H2 + 2, W2 + 2, 1, C1), jnp.float32),   # conv2 halo buffer
            pltpu.VMEM((H3 + 2, W3 + 2, 1, C2), jnp.float32),   # conv3 halo buffer
        ],
    )

    out_shape = (
        jax.ShapeDtypeStruct((B, L, C3), jnp.float32),
        jax.ShapeDtypeStruct((B, H2, W2, C1), jnp.int32),
        jax.ShapeDtypeStruct((B, H3, W3, C2), jnp.int32),
        jax.ShapeDtypeStruct((B, H, W, C1), jnp.float32),
        jax.ShapeDtypeStruct((B, H2, W2, C2), jnp.float32),
    )

    x_tok, idx1, idx2, fea1, fea2 = pl.pallas_call(
        kern,
        out_shape=out_shape,
        grid_spec=grid_spec,
        compiler_params=pltpu.CompilerParams(
            dimension_semantics=("parallel",)),   # v7x: shard batch over 2 TCs
    )(patches1, w1f, b1, w2f, b2, w3f, b3, g, bt)

    # TODO(synk): NC NormalCell blocks (definition not supplied) -> identity.

    to_nchw = lambda t: jnp.transpose(t, (0, 3, 1, 2))
    return x_tok, [to_nchw(idx1), to_nchw(idx2)], [to_nchw(fea1), to_nchw(fea2)]


# ----------------------------------------------------------------------------
# Pure-JAX reference (bf16 matmul operands, f32 accumulation — same as kernel)
# ----------------------------------------------------------------------------
def _ref_forward(x_nchw, p):
    x = jnp.transpose(x_nchw, (0, 2, 3, 1)).astype(jnp.float32)

    def conv(x, w_oihw, b, relu):
        y = jax.lax.conv_general_dilated(
            x.astype(jnp.bfloat16),
            jnp.transpose(w_oihw, (2, 3, 1, 0)).astype(jnp.bfloat16),
            window_strides=(1, 1), padding="SAME",
            dimension_numbers=("NHWC", "HWIO", "NHWC"),
            preferred_element_type=jnp.float32,
        ) + b[None, None, None, :]
        return jnp.maximum(y, 0.0) if relu else y

    def pool(x):
        B, H, W, C = x.shape
        Hh, Wh = H // 2, W // 2
        xr = (x.reshape(B, Hh, 2, Wh, 2, C)
               .transpose(0, 1, 3, 5, 2, 4)
               .reshape(B, Hh, Wh, C, 4))
        k = jnp.argmax(xr, axis=-1).astype(jnp.int32)
        di, dj = k // 2, k % 2
        i = jnp.arange(Hh, dtype=jnp.int32)[None, :, None, None]
        j = jnp.arange(Wh, dtype=jnp.int32)[None, None, :, None]
        idx = (2 * i + di) * W + (2 * j + dj)
        return jnp.max(xr, axis=-1), idx

    x = conv(x, p["w1"], p["b1"], True)
    f1 = x
    x, i1 = pool(x)
    x = conv(x, p["w2"], p["b2"], True)
    f2 = x
    x, i2 = pool(x)
    x = conv(x, p["w3"], p["b3"], False)
    B, Hq, Wq, C = x.shape
    x = x.reshape(B, Hq * Wq, C)
    mu = jnp.mean(x, -1, keepdims=True)
    var = jnp.mean((x - mu) ** 2, -1, keepdims=True)
    x = (x - mu) * jax.lax.rsqrt(var + 1e-5) * p["ln_g"] + p["ln_b"]
    t = lambda a: jnp.transpose(a, (0, 3, 1, 2))
    return x, [t(i1), t(i2)], [t(f1), t(f2)]


# ----------------------------------------------------------------------------
if __name__ == "__main__":
    # Small shapes consistent with BasicLayer: img_size=16, in_chans=4,
    # token_dims=32 (-> PatchEmbed inter_chans=16), downsample_ratios=4, B=2.
    B, Cin, H, W = 2, 4, 16, 16
    token_dims = 32
    inter = token_dims // 2

    key = jax.random.PRNGKey(0)
    ks = jax.random.split(key, 8)
    params = {
        "w1": jax.random.normal(ks[0], (inter, Cin, 3, 3), jnp.float32) * 0.1,
        "b1": jax.random.normal(ks[1], (inter,), jnp.float32) * 0.1,
        "w2": jax.random.normal(ks[2], (token_dims, inter, 3, 3), jnp.float32) * 0.1,
        "b2": jax.random.normal(ks[3], (token_dims,), jnp.float32) * 0.1,
        "w3": jax.random.normal(ks[4], (token_dims, token_dims, 3, 3), jnp.float32) * 0.1,
        "b3": jax.random.normal(ks[5], (token_dims,), jnp.float32) * 0.1,
        "ln_g": jnp.ones((token_dims,), jnp.float32),   # nn.LayerNorm default init
        "ln_b": jnp.zeros((token_dims,), jnp.float32),
    }
    x = jax.random.normal(ks[6], (B, Cin, H, W), jnp.float32)

    fwd = jax.jit(basic_layer_forward)
    out, indices, feas = fwd(x, params)
    jax.block_until_ready(out)
    jax.block_until_ready(indices)
    jax.block_until_ready(feas)

    # self-check against the pure-JAX reference (bf16 operands in both paths)
    ro, ri, rf = _ref_forward(x, params)
    np.testing.assert_allclose(np.asarray(out), np.asarray(ro), atol=2e-3, rtol=2e-3)
    for a, b in zip(indices, ri):
        np.testing.assert_array_equal(np.asarray(a), np.asarray(b))
    for a, b in zip(feas, rf):
        np.testing.assert_allclose(np.asarray(a), np.asarray(b), atol=2e-3, rtol=2e-3)

    print("KERNEL_OK")
</pallas_src>

<mosaic_0001>
module attributes {stable_mosaic.version = 11 : i64} {
  func.func @_patch_embed_kernel(%arg0: i32, %arg1: memref<1x256x36xbf16, #tpu.memory_space<vmem>>, %arg2: memref<36x16xbf16, #tpu.memory_space<vmem>>, %arg3: memref<1x16xf32, #tpu.memory_space<vmem>>, %arg4: memref<9x16x32xbf16, #tpu.memory_space<vmem>>, %arg5: memref<1x32xf32, #tpu.memory_space<vmem>>, %arg6: memref<9x32x32xbf16, #tpu.memory_space<vmem>>, %arg7: memref<1x32xf32, #tpu.memory_space<vmem>>, %arg8: memref<1x32xf32, #tpu.memory_space<vmem>>, %arg9: memref<1x32xf32, #tpu.memory_space<vmem>>, %arg10: memref<1x16x32xf32, #tpu.memory_space<vmem>>, %arg11: memref<1x8x8x16xi32, #tpu.memory_space<vmem>>, %arg12: memref<1x4x4x32xi32, #tpu.memory_space<vmem>>, %arg13: memref<1x16x16x16xf32, #tpu.memory_space<vmem>>, %arg14: memref<1x8x8x32xf32, #tpu.memory_space<vmem>>, %arg15: memref<8x2x8x2x16xf32, #tpu.memory_space<vmem>>, %arg16: memref<4x2x4x2x32xf32, #tpu.memory_space<vmem>>, %arg17: memref<10x10x1x16xf32, #tpu.memory_space<vmem>>, %arg18: memref<6x6x1x32xf32, #tpu.memory_space<vmem>>) attributes {dimension_semantics = [#tpu.dimension_semantics<parallel>], iteration_bounds = array<i64: 2>, scalar_prefetch = 0 : i64, scratch_operands = 4 : i64, tpu.core_type = #tpu.core_type<tc>, window_params = [{transform_indices = @transform_0, window_bounds = array<i64: 1, 256, 36>}, {pipeline_mode = #tpu.pipeline_mode<synchronous>, transform_indices = @transform_1, window_bounds = array<i64: 36, 16>}, {pipeline_mode = #tpu.pipeline_mode<synchronous>, transform_indices = @transform_2, window_bounds = array<i64: 1, 16>}, {pipeline_mode = #tpu.pipeline_mode<synchronous>, transform_indices = @transform_3, window_bounds = array<i64: 9, 16, 32>}, {pipeline_mode = #tpu.pipeline_mode<synchronous>, transform_indices = @transform_4, window_bounds = array<i64: 1, 32>}, {pipeline_mode = #tpu.pipeline_mode<synchronous>, transform_indices = @transform_5, window_bounds = array<i64: 9, 32, 32>}, {pipeline_mode = #tpu.pipeline_mode<synchronous>, transform_indices = @transform_6, window_bounds = array<i64: 1, 32>}, {pipeline_mode = #tpu.pipeline_mode<synchronous>, transform_indices = @transform_7, window_bounds = array<i64: 1, 32>}, {pipeline_mode = #tpu.pipeline_mode<synchronous>, transform_indices = @transform_8, window_bounds = array<i64: 1, 32>}, {transform_indices = @transform_9, window_bounds = array<i64: 1, 16, 32>}, {transform_indices = @transform_10, window_bounds = array<i64: 1, 8, 8, 16>}, {transform_indices = @transform_11, window_bounds = array<i64: 1, 4, 4, 32>}, {transform_indices = @transform_12, window_bounds = array<i64: 1, 16, 16, 16>}, {transform_indices = @transform_13, window_bounds = array<i64: 1, 8, 8, 32>}]} {
    %c0 = arith.constant 0 : index
    %c0_0 = arith.constant 0 : index
    %c0_1 = arith.constant 0 : index
    %0 = vector.load %arg1[%c0, %c0_0, %c0_1] : memref<1x256x36xbf16, #tpu.memory_space<vmem>>, vector<1x256x36xbf16>
    %1 = vector.shape_cast %0 : vector<1x256x36xbf16> to vector<256x36xbf16>
    %c0_2 = arith.constant 0 : index
    %c0_3 = arith.constant 0 : index
    %2 = vector.load %arg2[%c0_2, %c0_3] : memref<36x16xbf16, #tpu.memory_space<vmem>>, vector<36x16xbf16>
    %cst = arith.constant dense<0.000000e+00> : vector<256x16xf32>
    %3 = tpu.matmul %1, %2, %cst {dimension_numbers = #tpu.dot_dimension_numbers<[1], [0], [0], [1], [0, 0, 1, 1], [], []>} : vector<256x36xbf16>, vector<36x16xbf16>, vector<256x16xf32> -> vector<256x16xf32>
    %c0_4 = arith.constant 0 : index
    %c0_5 = arith.constant 0 : index
    %4 = vector.load %arg3[%c0_4, %c0_5] : memref<1x16xf32, #tpu.memory_space<vmem>>, vector<1x16xf32>
    %5 = vector.broadcast %4 : vector<1x16xf32> to vector<256x16xf32>
    %6 = arith.addf %3, %5 : vector<256x16xf32>
    %cst_6 = arith.constant 0.000000e+00 : f32
    %7 = vector.broadcast %cst_6 : f32 to vector<256x16xf32>
    %8 = arith.maximumf %6, %7 : vector<256x16xf32>
    %9 = vector.shape_cast %8 : vector<256x16xf32> to vector<16x16x16xf32>
    %c0_7 = arith.constant 0 : index
    %c0_8 = arith.constant 0 : index
    %c0_9 = arith.constant 0 : index
    %c0_10 = arith.constant 0 : index
    %10 = vector.load %arg13[%c0_7, %c0_8, %c0_9, %c0_10] : memref<1x16x16x16xf32, #tpu.memory_space<vmem>>, vector<1x16x16x16xf32>
    %11 = vector.shape_cast %10 : vector<1x16x16x16xf32> to vector<16x16x16xf32>
    %12 = vector.shape_cast %9 : vector<16x16x16xf32> to vector<1x16x16x16xf32>
    tpu.vector_store %arg13[%c0_7, %c0_8, %c0_9, %c0_10], %12 {strides = array<i32>} : memref<1x16x16x16xf32, #tpu.memory_space<vmem>>, vector<1x16x16x16xf32>,
    %13 = vector.shape_cast %8 : vector<256x16xf32> to vector<8x2x8x2x16xf32>
    %c0_11 = arith.constant 0 : index
    %c0_12 = arith.constant 0 : index
    %c0_13 = arith.constant 0 : index
    %c0_14 = arith.constant 0 : index
    %c0_15 = arith.constant 0 : index
    %14 = vector.load %arg15[%c0_11, %c0_12, %c0_13, %c0_14, %c0_15] : memref<8x2x8x2x16xf32, #tpu.memory_space<vmem>>, vector<8x2x8x2x16xf32>
    tpu.vector_store %arg15[%c0_11, %c0_12, %c0_13, %c0_14, %c0_15], %13 {strides = array<i32>} : memref<8x2x8x2x16xf32, #tpu.memory_space<vmem>>, vector<8x2x8x2x16xf32>,
    %c0_16 = arith.constant 0 : index
    %c0_17 = arith.constant 0 : index
    %c0_18 = arith.constant 0 : index
    %c0_19 = arith.constant 0 : index
    %c0_20 = arith.constant 0 : index
    %15 = vector.load %arg15[%c0_16, %c0_17, %c0_18, %c0_19, %c0_20] : memref<8x2x8x2x16xf32, #tpu.memory_space<vmem>>, vector<8x1x8x1x16xf32>
    %16 = vector.shape_cast %15 : vector<8x1x8x1x16xf32> to vector<8x8x16xf32>
    %c0_i32 = arith.constant 0 : i32
    %17 = vector.broadcast %c0_i32 : i32 to vector<8x8x16xi32>
    %c0_21 = arith.constant 0 : index
    %c0_22 = arith.constant 0 : index
    %c0_23 = arith.constant 0 : index
    %c1 = arith.constant 1 : index
    %c0_24 = arith.constant 0 : index
    %18 = vector.load %arg15[%c0_21, %c0_22, %c0_23, %c1, %c0_24] : memref<8x2x8x2x16xf32, #tpu.memory_space<vmem>>, vector<8x1x8x1x16xf32>
    %19 = vector.shape_cast %18 : vector<8x1x8x1x16xf32> to vector<8x8x16xf32>
    %20 = arith.cmpf ogt, %19, %16 : vector<8x8x16xf32>
    %21 = arith.select %20, %19, %16 : vector<8x8x16xi1>, vector<8x8x16xf32>
    %c1_i32 = arith.constant 1 : i32
    %22 = vector.broadcast %c1_i32 : i32 to vector<8x8x16xi32>
    %23 = arith.select %20, %22, %17 : vector<8x8x16xi1>, vector<8x8x16xi32>
    %c0_25 = arith.constant 0 : index
    %c1_26 = arith.constant 1 : index
    %c0_27 = arith.constant 0 : index
    %c0_28 = arith.constant 0 : index
    %c0_29 = arith.constant 0 : index
    %24 = vector.load %arg15[%c0_25, %c1_26, %c0_27, %c0_28, %c0_29] : memref<8x2x8x2x16xf32, #tpu.memory_space<vmem>>, vector<8x1x8x1x16xf32>
    %25 = vector.shape_cast %24 : vector<8x1x8x1x16xf32> to vector<8x8x16xf32>
    %26 = arith.cmpf ogt, %25, %21 : vector<8x8x16xf32>
    %27 = arith.select %26, %25, %21 : vector<8x8x16xi1>, vector<8x8x16xf32>
    %c16_i32 = arith.constant 16 : i32
    %28 = vector.broadcast %c16_i32 : i32 to vector<8x8x16xi32>
    %29 = arith.select %26, %28, %23 : vector<8x8x16xi1>, vector<8x8x16xi32>
    %c0_30 = arith.constant 0 : index
    %c1_31 = arith.constant 1 : index
    %c0_32 = arith.constant 0 : index
    %c1_33 = arith.constant 1 : index
    %c0_34 = arith.constant 0 : index
    %30 = vector.load %arg15[%c0_30, %c1_31, %c0_32, %c1_33, %c0_34] : memref<8x2x8x2x16xf32, #tpu.memory_space<vmem>>, vector<8x1x8x1x16xf32>
    %31 = vector.shape_cast %30 : vector<8x1x8x1x16xf32> to vector<8x8x16xf32>
    %32 = arith.cmpf ogt, %31, %27 : vector<8x8x16xf32>
    %33 = arith.select %32, %31, %27 : vector<8x8x16xi1>, vector<8x8x16xf32>
    %c17_i32 = arith.constant 17 : i32
    %34 = vector.broadcast %c17_i32 : i32 to vector<8x8x16xi32>
    %35 = arith.select %32, %34, %29 : vector<8x8x16xi1>, vector<8x8x16xi32>
    %36 = tpu.iota {dimensions = array<i32: 0>} : vector<8x8x16xi32>
    %37 = tpu.iota {dimensions = array<i32: 1>} : vector<8x8x16xi32>
    %c2_i32 = arith.constant 2 : i32
    %38 = vector.broadcast %c2_i32 : i32 to vector<8x8x16xi32>
    %39 = arith.muli %38, %36 : vector<8x8x16xi32>
    %c16_i32_35 = arith.constant 16 : i32
    %40 = vector.broadcast %c16_i32_35 : i32 to vector<8x8x16xi32>
    %41 = arith.muli %39, %40 : vector<8x8x16xi32>
    %c2_i32_36 = arith.constant 2 : i32
    %42 = vector.broadcast %c2_i32_36 : i32 to vector<8x8x16xi32>
    %43 = arith.muli %42, %37 : vector<8x8x16xi32>
    %44 = arith.addi %41, %43 : vector<8x8x16xi32>
    %45 = arith.addi %44, %35 : vector<8x8x16xi32>
    %c0_37 = arith.constant 0 : index
    %c0_38 = arith.constant 0 : index
    %c0_39 = arith.constant 0 : index
    %c0_40 = arith.constant 0 : index
    %46 = vector.load %arg11[%c0_37, %c0_38, %c0_39, %c0_40] : memref<1x8x8x16xi32, #tpu.memory_space<vmem>>, vector<1x8x8x16xi32>
    %47 = vector.shape_cast %46 : vector<1x8x8x16xi32> to vector<8x8x16xi32>
    %48 = vector.shape_cast %45 : vector<8x8x16xi32> to vector<1x8x8x16xi32>
    tpu.vector_store %arg11[%c0_37, %c0_38, %c0_39, %c0_40], %48 {strides = array<i32>} : memref<1x8x8x16xi32, #tpu.memory_space<vmem>>, vector<1x8x8x16xi32>,
    %cst_41 = arith.constant 0.000000e+00 : f32
    %49 = vector.broadcast %cst_41 : f32 to vector<10x10x1x16xf32>
    %c0_42 = arith.constant 0 : index
    %c0_43 = arith.constant 0 : index
    %c0_44 = arith.constant 0 : index
    %c0_45 = arith.constant 0 : index
    %50 = vector.load %arg17[%c0_42, %c0_43, %c0_44, %c0_45] : memref<10x10x1x16xf32, #tpu.memory_space<vmem>>, vector<10x10x1x16xf32>
    tpu.vector_store %arg17[%c0_42, %c0_43, %c0_44, %c0_45], %49 {strides = array<i32>} : memref<10x10x1x16xf32, #tpu.memory_space<vmem>>, vector<10x10x1x16xf32>,
    %51 = vector.shape_cast %33 : vector<8x8x16xf32> to vector<8x8x1x16xf32>
    %c1_46 = arith.constant 1 : index
    %c1_47 = arith.constant 1 : index
    %c0_48 = arith.constant 0 : index
    %c0_49 = arith.constant 0 : index
    %52 = vector.load %arg17[%c1_46, %c1_47, %c0_48, %c0_49] : memref<10x10x1x16xf32, #tpu.memory_space<vmem>>, vector<8x8x1x16xf32>
    tpu.vector_store %arg17[%c1_46, %c1_47, %c0_48, %c0_49], %51 {strides = array<i32>} : memref<10x10x1x16xf32, #tpu.memory_space<vmem>>, vector<8x8x1x16xf32>,
    %cst_50 = arith.constant 0.000000e+00 : f32
    %53 = vector.broadcast %cst_50 : f32 to vector<64x32xf32>
    %c0_51 = arith.constant 0 : index
    %c0_52 = arith.constant 0 : index
    %c0_53 = arith.constant 0 : index
    %c0_54 = arith.constant 0 : index
    %54 = vector.load %arg17[%c0_51, %c0_52, %c0_53, %c0_54] : memref<10x10x1x16xf32, #tpu.memory_space<vmem>>, vector<8x8x1x16xf32>
    %55 = vector.shape_cast %54 : vector<8x8x1x16xf32> to vector<8x8x16xf32>
    %56 = vector.shape_cast %55 : vector<8x8x16xf32> to vector<64x16xf32>
    %57 = arith.truncf %56 : vector<64x16xf32> to vector<64x16xbf16>
    %c0_55 = arith.constant 0 : index
    %c0_56 = arith.constant 0 : index
    %c0_57 = arith.constant 0 : index
    %58 = vector.load %arg4[%c0_55, %c0_56, %c0_57] : memref<9x16x32xbf16, #tpu.memory_space<vmem>>, vector<1x16x32xbf16>
    %59 = vector.shape_cast %58 : vector<1x16x32xbf16> to vector<16x32xbf16>
    %cst_58 = arith.constant dense<0.000000e+00> : vector<64x32xf32>
    %60 = tpu.matmul %57, %59, %cst_58 {dimension_numbers = #tpu.dot_dimension_numbers<[1], [0], [0], [1], [0, 0, 1, 1], [], []>} : vector<64x16xbf16>, vector<16x32xbf16>, vector<64x32xf32> -> vector<64x32xf32>
    %61 = arith.addf %53, %60 : vector<64x32xf32>
    %c0_59 = arith.constant 0 : index
    %c1_60 = arith.constant 1 : index
    %c0_61 = arith.constant 0 : index
    %c0_62 = arith.constant 0 : index
    %62 = vector.load %arg17[%c0_59, %c1_60, %c0_61, %c0_62] : memref<10x10x1x16xf32, #tpu.memory_space<vmem>>, vector<8x8x1x16xf32>
    %63 = vector.shape_cast %62 : vector<8x8x1x16xf32> to vector<8x8x16xf32>
    %64 = vector.shape_cast %63 : vector<8x8x16xf32> to vector<64x16xf32>
    %65 = arith.truncf %64 : vector<64x16xf32> to vector<64x16xbf16>
    %c1_63 = arith.constant 1 : index
    %c0_64 = arith.constant 0 : index
    %c0_65 = arith.constant 0 : index
    %66 = vector.load %arg4[%c1_63, %c0_64, %c0_65] : memref<9x16x32xbf16, #tpu.memory_space<vmem>>, vector<1x16x32xbf16>
    %67 = vector.shape_cast %66 : vector<1x16x32xbf16> to vector<16x32xbf16>
    %cst_66 = arith.constant dense<0.000000e+00> : vector<64x32xf32>
    %68 = tpu.matmul %65, %67, %cst_66 {dimension_numbers = #tpu.dot_dimension_numbers<[1], [0], [0], [1], [0, 0, 1, 1], [], []>} : vector<64x16xbf16>, vector<16x32xbf16>, vector<64x32xf32> -> vector<64x32xf32>
    %69 = arith.addf %61, %68 : vector<64x32xf32>
    %c0_67 = arith.constant 0 : index
    %c2 = arith.constant 2 : index
    %c0_68 = arith.constant 0 : index
    %c0_69 = arith.constant 0 : index
    %70 = vector.load %arg17[%c0_67, %c2, %c0_68, %c0_69] : memref<10x10x1x16xf32, #tpu.memory_space<vmem>>, vector<8x8x1x16xf32>
    %71 = vector.shape_cast %70 : vector<8x8x1x16xf32> to vector<8x8x16xf32>
    %72 = vector.shape_cast %71 : vector<8x8x16xf32> to vector<64x16xf32>
    %73 = arith.truncf %72 : vector<64x16xf32> to vector<64x16xbf16>
    %c2_70 = arith.constant 2 : index
    %c0_71 = arith.constant 0 : index
    %c0_72 = arith.constant 0 : index
    %74 = vector.load %arg4[%c2_70, %c0_71, %c0_72] : memref<9x16x32xbf16, #tpu.memory_space<vmem>>, vector<1x16x32xbf16>
    %75 = vector.shape_cast %74 : vector<1x16x32xbf16> to vector<16x32xbf16>
    %cst_73 = arith.constant dense<0.000000e+00> : vector<64x32xf32>
    %76 = tpu.matmul %73, %75, %cst_73 {dimension_numbers = #tpu.dot_dimension_numbers<[1], [0], [0], [1], [0, 0, 1, 1], [], []>} : vector<64x16xbf16>, vector<16x32xbf16>, vector<64x32xf32> -> vector<64x32xf32>
    %77 = arith.addf %69, %76 : vector<64x32xf32>
    %c1_74 = arith.constant 1 : index
    %c0_75 = arith.constant 0 : index
    %c0_76 = arith.constant 0 : index
    %c0_77 = arith.constant 0 : index
    %78 = vector.load %arg17[%c1_74, %c0_75, %c0_76, %c0_77] : memref<10x10x1x16xf32, #tpu.memory_space<vmem>>, vector<8x8x1x16xf32>
    %79 = vector.shape_cast %78 : vector<8x8x1x16xf32> to vector<8x8x16xf32>
    %80 = vector.shape_cast %79 : vector<8x8x16xf32> to vector<64x16xf32>
    %81 = arith.truncf %80 : vector<64x16xf32> to vector<64x16xbf16>
    %c3 = arith.constant 3 : index
    %c0_78 = arith.constant 0 : index
    %c0_79 = arith.constant 0 : index
    %82 = vector.load %arg4[%c3, %c0_78, %c0_79] : memref<9x16x32xbf16, #tpu.memory_space<vmem>>, vector<1x16x32xbf16>
    %83 = vector.shape_cast %82 : vector<1x16x32xbf16> to vector<16x32xbf16>
    %cst_80 = arith.constant dense<0.000000e+00> : vector<64x32xf32>
    %84 = tpu.matmul %81, %83, %cst_80 {dimension_numbers = #tpu.dot_dimension_numbers<[1], [0], [0], [1], [0, 0, 1, 1], [], []>} : vector<64x16xbf16>, vector<16x32xbf16>, vector<64x32xf32> -> vector<64x32xf32>
    %85 = arith.addf %77, %84 : vector<64x32xf32>
    %c1_81 = arith.constant 1 : index
    %c1_82 = arith.constant 1 : index
    %c0_83 = arith.constant 0 : index
    %c0_84 = arith.constant 0 : index
    %86 = vector.load %arg17[%c1_81, %c1_82, %c0_83, %c0_84] : memref<10x10x1x16xf32, #tpu.memory_space<vmem>>, vector<8x8x1x16xf32>
    %87 = vector.shape_cast %86 : vector<8x8x1x16xf32> to vector<8x8x16xf32>
    %88 = vector.shape_cast %87 : vector<8x8x16xf32> to vector<64x16xf32>
    %89 = arith.truncf %88 : vector<64x16xf32> to vector<64x16xbf16>
    %c4 = arith.constant 4 : index
    %c0_85 = arith.constant 0 : index
    %c0_86 = arith.constant 0 : index
    %90 = vector.load %arg4[%c4, %c0_85, %c0_86] : memref<9x16x32xbf16, #tpu.memory_space<vmem>>, vector<1x16x32xbf16>
    %91 = vector.shape_cast %90 : vector<1x16x32xbf16> to vector<16x32xbf16>
    %cst_87 = arith.constant dense<0.000000e+00> : vector<64x32xf32>
    %92 = tpu.matmul %89, %91, %cst_87 {dimension_numbers = #tpu.dot_dimension_numbers<[1], [0], [0], [1], [0, 0, 1, 1], [], []>} : vector<64x16xbf16>, vector<16x32xbf16>, vector<64x32xf32> -> vector<64x32xf32>
    %93 = arith.addf %85, %92 : vector<64x32xf32>
    %c1_88 = arith.constant 1 : index
    %c2_89 = arith.constant 2 : index
    %c0_90 = arith.constant 0 : index
    %c0_91 = arith.constant 0 : index
    %94 = vector.load %arg17[%c1_88, %c2_89, %c0_90, %c0_91] : memref<10x10x1x16xf32, #tpu.memory_space<vmem>>, vector<8x8x1x16xf32>
    %95 = vector.shape_cast %94 : vector<8x8x1x16xf32> to vector<8x8x16xf32>
    %96 = vector.shape_cast %95 : vector<8x8x16xf32> to vector<64x16xf32>
    %97 = arith.truncf %96 : vector<64x16xf32> to vector<64x16xbf16>
    %c5 = arith.constant 5 : index
    %c0_92 = arith.constant 0 : index
    %c0_93 = arith.constant 0 : index
    %98 = vector.load %arg4[%c5, %c0_92, %c0_93] : memref<9x16x32xbf16, #tpu.memory_space<vmem>>, vector<1x16x32xbf16>
    %99 = vector.shape_cast %98 : vector<1x16x32xbf16> to vector<16x32xbf16>
    %cst_94 = arith.constant dense<0.000000e+00> : vector<64x32xf32>
    %100 = tpu.matmul %97, %99, %cst_94 {dimension_numbers = #tpu.dot_dimension_numbers<[1], [0], [0], [1], [0, 0, 1, 1], [], []>} : vector<64x16xbf16>, vector<16x32xbf16>, vector<64x32xf32> -> vector<64x32xf32>
    %101 = arith.addf %93, %100 : vector<64x32xf32>
    %c2_95 = arith.constant 2 : index
    %c0_96 = arith.constant 0 : index
    %c0_97 = arith.constant 0 : index
    %c0_98 = arith.constant 0 : index
    %102 = vector.load %arg17[%c2_95, %c0_96, %c0_97, %c0_98] : memref<10x10x1x16xf32, #tpu.memory_space<vmem>>, vector<8x8x1x16xf32>
    %103 = vector.shape_cast %102 : vector<8x8x1x16xf32> to vector<8x8x16xf32>
    %104 = vector.shape_cast %103 : vector<8x8x16xf32> to vector<64x16xf32>
    %105 = arith.truncf %104 : vector<64x16xf32> to vector<64x16xbf16>
    %c6 = arith.constant 6 : index
    %c0_99 = arith.constant 0 : index
    %c0_100 = arith.constant 0 : index
    %106 = vector.load %arg4[%c6, %c0_99, %c0_100] : memref<9x16x32xbf16, #tpu.memory_space<vmem>>, vector<1x16x32xbf16>
    %107 = vector.shape_cast %106 : vector<1x16x32xbf16> to vector<16x32xbf16>
    %cst_101 = arith.constant dense<0.000000e+00> : vector<64x32xf32>
    %108 = tpu.matmul %105, %107, %cst_101 {dimension_numbers = #tpu.dot_dimension_numbers<[1], [0], [0], [1], [0, 0, 1, 1], [], []>} : vector<64x16xbf16>, vector<16x32xbf16>, vector<64x32xf32> -> vector<64x32xf32>
    %109 = arith.addf %101, %108 : vector<64x32xf32>
    %c2_102 = arith.constant 2 : index
    %c1_103 = arith.constant 1 : index
    %c0_104 = arith.constant 0 : index
    %c0_105 = arith.constant 0 : index
    %110 = vector.load %arg17[%c2_102, %c1_103, %c0_104, %c0_105] : memref<10x10x1x16xf32, #tpu.memory_space<vmem>>, vector<8x8x1x16xf32>
    %111 = vector.shape_cast %110 : vector<8x8x1x16xf32> to vector<8x8x16xf32>
    %112 = vector.shape_cast %111 : vector<8x8x16xf32> to vector<64x16xf32>
    %113 = arith.truncf %112 : vector<64x16xf32> to vector<64x16xbf16>
    %c7 = arith.constant 7 : index
    %c0_106 = arith.constant 0 : index
    %c0_107 = arith.constant 0 : index
    %114 = vector.load %arg4[%c7, %c0_106, %c0_107] : memref<9x16x32xbf16, #tpu.memory_space<vmem>>, vector<1x16x32xbf16>
    %115 = vector.shape_cast %114 : vector<1x16x32xbf16> to vector<16x32xbf16>
    %cst_108 = arith.constant dense<0.000000e+00> : vector<64x32xf32>
    %116 = tpu.matmul %113, %115, %cst_108 {dimension_numbers = #tpu.dot_dimension_numbers<[1], [0], [0], [1], [0, 0, 1, 1], [], []>} : vector<64x16xbf16>, vector<16x32xbf16>, vector<64x32xf32> -> vector<64x32xf32>
    %117 = arith.addf %109, %116 : vector<64x32xf32>
    %c2_109 = arith.constant 2 : index
    %c2_110 = arith.constant 2 : index
    %c0_111 = arith.constant 0 : index
    %c0_112 = arith.constant 0 : index
    %118 = vector.load %arg17[%c2_109, %c2_110, %c0_111, %c0_112] : memref<10x10x1x16xf32, #tpu.memory_space<vmem>>, vector<8x8x1x16xf32>
    %119 = vector.shape_cast %118 : vector<8x8x1x16xf32> to vector<8x8x16xf32>
    %120 = vector.shape_cast %119 : vector<8x8x16xf32> to vector<64x16xf32>
    %121 = arith.truncf %120 : vector<64x16xf32> to vector<64x16xbf16>
    %c8 = arith.constant 8 : index
    %c0_113 = arith.constant 0 : index
    %c0_114 = arith.constant 0 : index
    %122 = vector.load %arg4[%c8, %c0_113, %c0_114] : memref<9x16x32xbf16, #tpu.memory_space<vmem>>, vector<1x16x32xbf16>
    %123 = vector.shape_cast %122 : vector<1x16x32xbf16> to vector<16x32xbf16>
    %cst_115 = arith.constant dense<0.000000e+00> : vector<64x32xf32>
    %124 = tpu.matmul %121, %123, %cst_115 {dimension_numbers = #tpu.dot_dimension_numbers<[1], [0], [0], [1], [0, 0, 1, 1], [], []>} : vector<64x16xbf16>, vector<16x32xbf16>, vector<64x32xf32> -> vector<64x32xf32>
    %125 = arith.addf %117, %124 : vector<64x32xf32>
    %c0_116 = arith.constant 0 : index
    %c0_117 = arith.constant 0 : index
    %126 = vector.load %arg5[%c0_116, %c0_117] : memref<1x32xf32, #tpu.memory_space<vmem>>, vector<1x32xf32>
    %127 = vector.broadcast %126 : vector<1x32xf32> to vector<64x32xf32>
    %128 = arith.addf %125, %127 : vector<64x32xf32>
    %cst_118 = arith.constant 0.000000e+00 : f32
    %129 = vector.broadcast %cst_118 : f32 to vector<64x32xf32>
    %130 = arith.maximumf %128, %129 : vector<64x32xf32>
    %131 = vector.shape_cast %130 : vector<64x32xf32> to vector<8x8x32xf32>
    %c0_119 = arith.constant 0 : index
    %c0_120 = arith.constant 0 : index
    %c0_121 = arith.constant 0 : index
    %c0_122 = arith.constant 0 : index
    %132 = vector.load %arg14[%c0_119, %c0_120, %c0_121, %c0_122] : memref<1x8x8x32xf32, #tpu.memory_space<vmem>>, vector<1x8x8x32xf32>
    %133 = vector.shape_cast %132 : vector<1x8x8x32xf32> to vector<8x8x32xf32>
    %134 = vector.shape_cast %131 : vector<8x8x32xf32> to vector<1x8x8x32xf32>
    tpu.vector_store %arg14[%c0_119, %c0_120, %c0_121, %c0_122], %134 {strides = array<i32>} : memref<1x8x8x32xf32, #tpu.memory_space<vmem>>, vector<1x8x8x32xf32>,
    %135 = vector.shape_cast %130 : vector<64x32xf32> to vector<4x2x4x2x32xf32>
    %c0_123 = arith.constant 0 : index
    %c0_124 = arith.constant 0 : index
    %c0_125 = arith.constant 0 : index
    %c0_126 = arith.constant 0 : index
    %c0_127 = arith.constant 0 : index
    %136 = vector.load %arg16[%c0_123, %c0_124, %c0_125, %c0_126, %c0_127] : memref<4x2x4x2x32xf32, #tpu.memory_space<vmem>>, vector<4x2x4x2x32xf32>
    tpu.vector_store %arg16[%c0_123, %c0_124, %c0_125, %c0_126, %c0_127], %135 {strides = array<i32>} : memref<4x2x4x2x32xf32, #tpu.memory_space<vmem>>, vector<4x2x4x2x32xf32>,
    %c0_128 = arith.constant 0 : index
    %c0_129 = arith.constant 0 : index
    %c0_130 = arith.constant 0 : index
    %c0_131 = arith.constant 0 : index
    %c0_132 = arith.constant 0 : index
    %137 = vector.load %arg16[%c0_128, %c0_129, %c0_130, %c0_131, %c0_132] : memref<4x2x4x2x32xf32, #tpu.memory_space<vmem>>, vector<4x1x4x1x32xf32>
    %138 = vector.shape_cast %137 : vector<4x1x4x1x32xf32> to vector<4x4x32xf32>
    %c0_i32_133 = arith.constant 0 : i32
    %139 = vector.broadcast %c0_i32_133 : i32 to vector<4x4x32xi32>
    %c0_134 = arith.constant 0 : index
    %c0_135 = arith.constant 0 : index
    %c0_136 = arith.constant 0 : index
    %c1_137 = arith.constant 1 : index
    %c0_138 = arith.constant 0 : index
    %140 = vector.load %arg16[%c0_134, %c0_135, %c0_136, %c1_137, %c0_138] : memref<4x2x4x2x32xf32, #tpu.memory_space<vmem>>, vector<4x1x4x1x32xf32>
    %141 = vector.shape_cast %140 : vector<4x1x4x1x32xf32> to vector<4x4x32xf32>
    %142 = arith.cmpf ogt, %141, %138 : vector<4x4x32xf32>
    %143 = arith.select %142, %141, %138 : vector<4x4x32xi1>, vector<4x4x32xf32>
    %c1_i32_139 = arith.constant 1 : i32
    %144 = vector.broadcast %c1_i32_139 : i32 to vector<4x4x32xi32>
    %145 = arith.select %142, %144, %139 : vector<4x4x32xi1>, vector<4x4x32xi32>
    %c0_140 = arith.constant 0 : index
    %c1_141 = arith.constant 1 : index
    %c0_142 = arith.constant 0 : index
    %c0_143 = arith.constant 0 : index
    %c0_144 = arith.constant 0 : index
    %146 = vector.load %arg16[%c0_140, %c1_141, %c0_142, %c0_143, %c0_144] : memref<4x2x4x2x32xf32, #tpu.memory_space<vmem>>, vector<4x1x4x1x32xf32>
    %147 = vector.shape_cast %146 : vector<4x1x4x1x32xf32> to vector<4x4x32xf32>
    %148 = arith.cmpf ogt, %147, %143 : vector<4x4x32xf32>
    %149 = arith.select %148, %147, %143 : vector<4x4x32xi1>, vector<4x4x32xf32>
    %c8_i32 = arith.constant 8 : i32
    %150 = vector.broadcast %c8_i32 : i32 to vector<4x4x32xi32>
    %151 = arith.select %148, %150, %145 : vector<4x4x32xi1>, vector<4x4x32xi32>
    %c0_145 = arith.constant 0 : index
    %c1_146 = arith.constant 1 : index
    %c0_147 = arith.constant 0 : index
    %c1_148 = arith.constant 1 : index
    %c0_149 = arith.constant 0 : index
    %152 = vector.load %arg16[%c0_145, %c1_146, %c0_147, %c1_148, %c0_149] : memref<4x2x4x2x32xf32, #tpu.memory_space<vmem>>, vector<4x1x4x1x32xf32>
    %153 = vector.shape_cast %152 : vector<4x1x4x1x32xf32> to vector<4x4x32xf32>
    %154 = arith.cmpf ogt, %153, %149 : vector<4x4x32xf32>
    %155 = arith.select %154, %153, %149 : vector<4x4x32xi1>, vector<4x4x32xf32>
    %c9_i32 = arith.constant 9 : i32
    %156 = vector.broadcast %c9_i32 : i32 to vector<4x4x32xi32>
    %157 = arith.select %154, %156, %151 : vector<4x4x32xi1>, vector<4x4x32xi32>
    %158 = tpu.iota {dimensions = array<i32: 0>} : vector<4x4x32xi32>
    %159 = tpu.iota {dimensions = array<i32: 1>} : vector<4x4x32xi32>
    %c2_i32_150 = arith.constant 2 : i32
    %160 = vector.broadcast %c2_i32_150 : i32 to vector<4x4x32xi32>
    %161 = arith.muli %160, %158 : vector<4x4x32xi32>
    %c8_i32_151 = arith.constant 8 : i32
    %162 = vector.broadcast %c8_i32_151 : i32 to vector<4x4x32xi32>
    %163 = arith.muli %161, %162 : vector<4x4x32xi32>
    %c2_i32_152 = arith.constant 2 : i32
    %164 = vector.broadcast %c2_i32_152 : i32 to vector<4x4x32xi32>
    %165 = arith.muli %164, %159 : vector<4x4x32xi32>
    %166 = arith.addi %163, %165 : vector<4x4x32xi32>
    %167 = arith.addi %166, %157 : vector<4x4x32xi32>
    %c0_153 = arith.constant 0 : index
    %c0_154 = arith.constant 0 : index
    %c0_155 = arith.constant 0 : index
    %c0_156 = arith.constant 0 : index
    %168 = vector.load %arg12[%c0_153, %c0_154, %c0_155, %c0_156] : memref<1x4x4x32xi32, #tpu.memory_space<vmem>>, vector<1x4x4x32xi32>
    %169 = vector.shape_cast %168 : vector<1x4x4x32xi32> to vector<4x4x32xi32>
    %170 = vector.shape_cast %167 : vector<4x4x32xi32> to vector<1x4x4x32xi32>
    tpu.vector_store %arg12[%c0_153, %c0_154, %c0_155, %c0_156], %170 {strides = array<i32>} : memref<1x4x4x32xi32, #tpu.memory_space<vmem>>, vector<1x4x4x32xi32>,
    %cst_157 = arith.constant 0.000000e+00 : f32
    %171 = vector.broadcast %cst_157 : f32 to vector<6x6x1x32xf32>
    %c0_158 = arith.constant 0 : index
    %c0_159 = arith.constant 0 : index
    %c0_160 = arith.constant 0 : index
    %c0_161 = arith.constant 0 : index
    %172 = vector.load %arg18[%c0_158, %c0_159, %c0_160, %c0_161] : memref<6x6x1x32xf32, #tpu.memory_space<vmem>>, vector<6x6x1x32xf32>
    tpu.vector_store %arg18[%c0_158, %c0_159, %c0_160, %c0_161], %171 {strides = array<i32>} : memref<6x6x1x32xf32, #tpu.memory_space<vmem>>, vector<6x6x1x32xf32>,
    %173 = vector.shape_cast %155 : vector<4x4x32xf32> to vector<4x4x1x32xf32>
    %c1_162 = arith.constant 1 : index
    %c1_163 = arith.constant 1 : index
    %c0_164 = arith.constant 0 : index
    %c0_165 = arith.constant 0 : index
    %174 = vector.load %arg18[%c1_162, %c1_163, %c0_164, %c0_165] : memref<6x6x1x32xf32, #tpu.memory_space<vmem>>, vector<4x4x1x32xf32>
    tpu.vector_store %arg18[%c1_162, %c1_163, %c0_164, %c0_165], %173 {strides = array<i32>} : memref<6x6x1x32xf32, #tpu.memory_space<vmem>>, vector<4x4x1x32xf32>,
    %cst_166 = arith.constant 0.000000e+00 : f32
    %175 = vector.broadcast %cst_166 : f32 to vector<16x32xf32>
    %c0_167 = arith.constant 0 : index
    %c0_168 = arith.constant 0 : index
    %c0_169 = arith.constant 0 : index
    %c0_170 = arith.constant 0 : index
    %176 = vector.load %arg18[%c0_167, %c0_168, %c0_169, %c0_170] : memref<6x6x1x32xf32, #tpu.memory_space<vmem>>, vector<4x4x1x32xf32>
    %177 = vector.shape_cast %176 : vector<4x4x1x32xf32> to vector<4x4x32xf32>
    %178 = vector.shape_cast %177 : vector<4x4x32xf32> to vector<16x32xf32>
    %179 = arith.truncf %178 : vector<16x32xf32> to vector<16x32xbf16>
    %c0_171 = arith.constant 0 : index
    %c0_172 = arith.constant 0 : index
    %c0_173 = arith.constant 0 : index
    %180 = vector.load %arg6[%c0_171, %c0_172, %c0_173] : memref<9x32x32xbf16, #tpu.memory_space<vmem>>, vector<1x32x32xbf16>
    %181 = vector.shape_cast %180 : vector<1x32x32xbf16> to vector<32x32xbf16>
    %cst_174 = arith.constant dense<0.000000e+00> : vector<16x32xf32>
    %182 = tpu.matmul %179, %181, %cst_174 {dimension_numbers = #tpu.dot_dimension_numbers<[1], [0], [0], [1], [0, 0, 1, 1], [], []>} : vector<16x32xbf16>, vector<32x32xbf16>, vector<16x32xf32> -> vector<16x32xf32>
    %183 = arith.addf %175, %182 : vector<16x32xf32>
    %c0_175 = arith.constant 0 : index
    %c1_176 = arith.constant 1 : index
    %c0_177 = arith.constant 0 : index
    %c0_178 = arith.constant 0 : index
    %184 = vector.load %arg18[%c0_175, %c1_176, %c0_177, %c0_178] : memref<6x6x1x32xf32, #tpu.memory_space<vmem>>, vector<4x4x1x32xf32>
    %185 = vector.shape_cast %184 : vector<4x4x1x32xf32> to vector<4x4x32xf32>
    %186 = vector.shape_cast %185 : vector<4x4x32xf32> to vector<16x32xf32>
    %187 = arith.truncf %186 : vector<16x32xf32> to vector<16x32xbf16>
    %c1_179 = arith.constant 1 : index
    %c0_180 = arith.constant 0 : index
    %c0_181 = arith.constant 0 : index
    %188 = vector.load %arg6[%c1_179, %c0_180, %c0_181] : memref<9x32x32xbf16, #tpu.memory_space<vmem>>, vector<1x32x32xbf16>
    %189 = vector.shape_cast %188 : vector<1x32x32xbf16> to vector<32x32xbf16>
    %cst_182 = arith.constant dense<0.000000e+00> : vector<16x32xf32>
    %190 = tpu.matmul %187, %189, %cst_182 {dimension_numbers = #tpu.dot_dimension_numbers<[1], [0], [0], [1], [0, 0, 1, 1], [], []>} : vector<16x32xbf16>, vector<32x32xbf16>, vector<16x32xf32> -> vector<16x32xf32>
    %191 = arith.addf %183, %190 : vector<16x32xf32>
    %c0_183 = arith.constant 0 : index
    %c2_184 = arith.constant 2 : index
    %c0_185 = arith.constant 0 : index
    %c0_186 = arith.constant 0 : index
    %192 = vector.load %arg18[%c0_183, %c2_184, %c0_185, %c0_186] : memref<6x6x1x32xf32, #tpu.memory_space<vmem>>, vector<4x4x1x32xf32>
    %193 = vector.shape_cast %192 : vector<4x4x1x32xf32> to vector<4x4x32xf32>
    %194 = vector.shape_cast %193 : vector<4x4x32xf32> to vector<16x32xf32>
    %195 = arith.truncf %194 : vector<16x32xf32> to vector<16x32xbf16>
    %c2_187 = arith.constant 2 : index
    %c0_188 = arith.constant 0 : index
    %c0_189 = arith.constant 0 : index
    %196 = vector.load %arg6[%c2_187, %c0_188, %c0_189] : memref<9x32x32xbf16, #tpu.memory_space<vmem>>, vector<1x32x32xbf16>
    %197 = vector.shape_cast %196 : vector<1x32x32xbf16> to vector<32x32xbf16>
    %cst_190 = arith.constant dense<0.000000e+00> : vector<16x32xf32>
    %198 = tpu.matmul %195, %197, %cst_190 {dimension_numbers = #tpu.dot_dimension_numbers<[1], [0], [0], [1], [0, 0, 1, 1], [], []>} : vector<16x32xbf16>, vector<32x32xbf16>, vector<16x32xf32> -> vector<16x32xf32>
    %199 = arith.addf %191, %198 : vector<16x32xf32>
    %c1_191 = arith.constant 1 : index
    %c0_192 = arith.constant 0 : index
    %c0_193 = arith.constant 0 : index
    %c0_194 = arith.constant 0 : index
    %200 = vector.load %arg18[%c1_191, %c0_192, %c0_193, %c0_194] : memref<6x6x1x32xf32, #tpu.memory_space<vmem>>, vector<4x4x1x32xf32>
    %201 = vector.shape_cast %200 : vector<4x4x1x32xf32> to vector<4x4x32xf32>
    %202 = vector.shape_cast %201 : vector<4x4x32xf32> to vector<16x32xf32>
    %203 = arith.truncf %202 : vector<16x32xf32> to vector<16x32xbf16>
    %c3_195 = arith.constant 3 : index
    %c0_196 = arith.constant 0 : index
    %c0_197 = arith.constant 0 : index
    %204 = vector.load %arg6[%c3_195, %c0_196, %c0_197] : memref<9x32x32xbf16, #tpu.memory_space<vmem>>, vector<1x32x32xbf16>
    %205 = vector.shape_cast %204 : vector<1x32x32xbf16> to vector<32x32xbf16>
    %cst_198 = arith.constant dense<0.000000e+00> : vector<16x32xf32>
    %206 = tpu.matmul %203, %205, %cst_198 {dimension_numbers = #tpu.dot_dimension_numbers<[1], [0], [0], [1], [0, 0, 1, 1], [], []>} : vector<16x32xbf16>, vector<32x32xbf16>, vector<16x32xf32> -> vector<16x32xf32>
    %207 = arith.addf %199, %206 : vector<16x32xf32>
    %c1_199 = arith.constant 1 : index
    %c1_200 = arith.constant 1 : index
    %c0_201 = arith.constant 0 : index
    %c0_202 = arith.constant 0 : index
    %208 = vector.load %arg18[%c1_199, %c1_200, %c0_201, %c0_202] : memref<6x6x1x32xf32, #tpu.memory_space<vmem>>, vector<4x4x1x32xf32>
    %209 = vector.shape_cast %208 : vector<4x4x1x32xf32> to vector<4x4x32xf32>
    %210 = vector.shape_cast %209 : vector<4x4x32xf32> to vector<16x32xf32>
    %211 = arith.truncf %210 : vector<16x32xf32> to vector<16x32xbf16>
    %c4_203 = arith.constant 4 : index
    %c0_204 = arith.constant 0 : index
    %c0_205 = arith.constant 0 : index
    %212 = vector.load %arg6[%c4_203, %c0_204, %c0_205] : memref<9x32x32xbf16, #tpu.memory_space<vmem>>, vector<1x32x32xbf16>
    %213 = vector.shape_cast %212 : vector<1x32x32xbf16> to vector<32x32xbf16>
    %cst_206 = arith.constant dense<0.000000e+00> : vector<16x32xf32>
    %214 = tpu.matmul %211, %213, %cst_206 {dimension_numbers = #tpu.dot_dimension_numbers<[1], [0], [0], [1], [0, 0, 1, 1], [], []>} : vector<16x32xbf16>, vector<32x32xbf16>, vector<16x32xf32> -> vector<16x32xf32>
    %215 = arith.addf %207, %214 : vector<16x32xf32>
    %c1_207 = arith.constant 1 : index
    %c2_208 = arith.constant 2 : index
    %c0_209 = arith.constant 0 : index
    %c0_210 = arith.constant 0 : index
    %216 = vector.load %arg18[%c1_207, %c2_208, %c0_209, %c0_210] : memref<6x6x1x32xf32, #tpu.memory_space<vmem>>, vector<4x4x1x32xf32>
    %217 = vector.shape_cast %216 : vector<4x4x1x32xf32> to vector<4x4x32xf32>
    %218 = vector.shape_cast %217 : vector<4x4x32xf32> to vector<16x32xf32>
    %219 = arith.truncf %218 : vector<16x32xf32> to vector<16x32xbf16>
    %c5_211 = arith.constant 5 : index
    %c0_212 = arith.constant 0 : index
    %c0_213 = arith.constant 0 : index
    %220 = vector.load %arg6[%c5_211, %c0_212, %c0_213] : memref<9x32x32xbf16, #tpu.memory_space<vmem>>, vector<1x32x32xbf16>
    %221 = vector.shape_cast %220 : vector<1x32x32xbf16> to vector<32x32xbf16>
    %cst_214 = arith.constant dense<0.000000e+00> : vector<16x32xf32>
    %222 = tpu.matmul %219, %221, %cst_214 {dimension_numbers = #tpu.dot_dimension_numbers<[1], [0], [0], [1], [0, 0, 1, 1], [], []>} : vector<16x32xbf16>, vector<32x32xbf16>, vector<16x32xf32> -> vector<16x32xf32>
    %223 = arith.addf %215, %222 : vector<16x32xf32>
    %c2_215 = arith.constant 2 : index
    %c0_216 = arith.constant 0 : index
    %c0_217 = arith.constant 0 : index
    %c0_218 = arith.constant 0 : index
    %224 = vector.load %arg18[%c2_215, %c0_216, %c0_217, %c0_218] : memref<6x6x1x32xf32, #tpu.memory_space<vmem>>, vector<4x4x1x32xf32>
    %225 = vector.shape_cast %224 : vector<4x4x1x32xf32> to vector<4x4x32xf32>
    %226 = vector.shape_cast %225 : vector<4x4x32xf32> to vector<16x32xf32>
    %227 = arith.truncf %226 : vector<16x32xf32> to vector<16x32xbf16>
    %c6_219 = arith.constant 6 : index
    %c0_220 = arith.constant 0 : index
    %c0_221 = arith.constant 0 : index
    %228 = vector.load %arg6[%c6_219, %c0_220, %c0_221] : memref<9x32x32xbf16, #tpu.memory_space<vmem>>, vector<1x32x32xbf16>
    %229 = vector.shape_cast %228 : vector<1x32x32xbf16> to vector<32x32xbf16>
    %cst_222 = arith.constant dense<0.000000e+00> : vector<16x32xf32>
    %230 = tpu.matmul %227, %229, %cst_222 {dimension_numbers = #tpu.dot_dimension_numbers<[1], [0], [0], [1], [0, 0, 1, 1], [], []>} : vector<16x32xbf16>, vector<32x32xbf16>, vector<16x32xf32> -> vector<16x32xf32>
    %231 = arith.addf %223, %230 : vector<16x32xf32>
    %c2_223 = arith.constant 2 : index
    %c1_224 = arith.constant 1 : index
    %c0_225 = arith.constant 0 : index
    %c0_226 = arith.constant 0 : index
    %232 = vector.load %arg18[%c2_223, %c1_224, %c0_225, %c0_226] : memref<6x6x1x32xf32, #tpu.memory_space<vmem>>, vector<4x4x1x32xf32>
    %233 = vector.shape_cast %232 : vector<4x4x1x32xf32> to vector<4x4x32xf32>
    %234 = vector.shape_cast %233 : vector<4x4x32xf32> to vector<16x32xf32>
    %235 = arith.truncf %234 : vector<16x32xf32> to vector<16x32xbf16>
    %c7_227 = arith.constant 7 : index
    %c0_228 = arith.constant 0 : index
    %c0_229 = arith.constant 0 : index
    %236 = vector.load %arg6[%c7_227, %c0_228, %c0_229] : memref<9x32x32xbf16, #tpu.memory_space<vmem>>, vector<1x32x32xbf16>
    %237 = vector.shape_cast %236 : vector<1x32x32xbf16> to vector<32x32xbf16>
    %cst_230 = arith.constant dense<0.000000e+00> : vector<16x32xf32>
    %238 = tpu.matmul %235, %237, %cst_230 {dimension_numbers = #tpu.dot_dimension_numbers<[1], [0], [0], [1], [0, 0, 1, 1], [], []>} : vector<16x32xbf16>, vector<32x32xbf16>, vector<16x32xf32> -> vector<16x32xf32>
    %239 = arith.addf %231, %238 : vector<16x32xf32>
    %c2_231 = arith.constant 2 : index
    %c2_232 = arith.constant 2 : index
    %c0_233 = arith.constant 0 : index
    %c0_234 = arith.constant 0 : index
    %240 = vector.load %arg18[%c2_231, %c2_232, %c0_233, %c0_234] : memref<6x6x1x32xf32, #tpu.memory_space<vmem>>, vector<4x4x1x32xf32>
    %241 = vector.shape_cast %240 : vector<4x4x1x32xf32> to vector<4x4x32xf32>
    %242 = vector.shape_cast %241 : vector<4x4x32xf32> to vector<16x32xf32>
    %243 = arith.truncf %242 : vector<16x32xf32> to vector<16x32xbf16>
    %c8_235 = arith.constant 8 : index
    %c0_236 = arith.constant 0 : index
    %c0_237 = arith.constant 0 : index
    %244 = vector.load %arg6[%c8_235, %c0_236, %c0_237] : memref<9x32x32xbf16, #tpu.memory_space<vmem>>, vector<1x32x32xbf16>
    %245 = vector.shape_cast %244 : vector<1x32x32xbf16> to vector<32x32xbf16>
    %cst_238 = arith.constant dense<0.000000e+00> : vector<16x32xf32>
    %246 = tpu.matmul %243, %245, %cst_238 {dimension_numbers = #tpu.dot_dimension_numbers<[1], [0], [0], [1], [0, 0, 1, 1], [], []>} : vector<16x32xbf16>, vector<32x32xbf16>, vector<16x32xf32> -> vector<16x32xf32>
    %247 = arith.addf %239, %246 : vector<16x32xf32>
    %c0_239 = arith.constant 0 : index
    %c0_240 = arith.constant 0 : index
    %248 = vector.load %arg7[%c0_239, %c0_240] : memref<1x32xf32, #tpu.memory_space<vmem>>, vector<1x32xf32>
    %249 = vector.broadcast %248 : vector<1x32xf32> to vector<16x32xf32>
    %250 = arith.addf %247, %249 : vector<16x32xf32>
    %cst_241 = arith.constant dense<0.000000e+00> : vector<16xf32>
    %251 = vector.multi_reduction <add>, %250, %cst_241 [1] : vector<16x32xf32> to vector<16xf32>
    %252 = vector.shape_cast %251 : vector<16xf32> to vector<16x1xf32>
    %cst_242 = arith.constant 3.200000e+01 : f32
    %253 = vector.broadcast %cst_242 : f32 to vector<16x1xf32>
    %254 = arith.divf %252, %253 : vector<16x1xf32>
    %255 = vector.broadcast %254 : vector<16x1xf32> to vector<16x32xf32>
    %256 = arith.subf %250, %255 : vector<16x32xf32>
    %257 = arith.mulf %256, %256 : vector<16x32xf32>
    %cst_243 = arith.constant dense<0.000000e+00> : vector<16xf32>
    %258 = vector.multi_reduction <add>, %257, %cst_243 [1] : vector<16x32xf32> to vector<16xf32>
    %259 = vector.shape_cast %258 : vector<16xf32> to vector<16x1xf32>
    %cst_244 = arith.constant 3.200000e+01 : f32
    %260 = vector.broadcast %cst_244 : f32 to vector<16x1xf32>
    %261 = arith.divf %259, %260 : vector<16x1xf32>
    %cst_245 = arith.constant 9.99999974E-6 : f32
    %262 = vector.broadcast %cst_245 : f32 to vector<16x1xf32>
    %263 = arith.addf %261, %262 : vector<16x1xf32>
    %264 = math.rsqrt %263 : vector<16x1xf32>
    %265 = vector.broadcast %264 : vector<16x1xf32> to vector<16x32xf32>
    %266 = arith.mulf %256, %265 : vector<16x32xf32>
    %c0_246 = arith.constant 0 : index
    %c0_247 = arith.constant 0 : index
    %267 = vector.load %arg8[%c0_246, %c0_247] : memref<1x32xf32, #tpu.memory_space<vmem>>, vector<1x32xf32>
    %268 = vector.broadcast %267 : vector<1x32xf32> to vector<16x32xf32>
    %269 = arith.mulf %266, %268 : vector<16x32xf32>
    %c0_248 = arith.constant 0 : index
    %c0_249 = arith.constant 0 : index
    %270 = vector.load %arg9[%c0_248, %c0_249] : memref<1x32xf32, #tpu.memory_space<vmem>>, vector<1x32xf32>
    %271 = vector.broadcast %270 : vector<1x32xf32> to vector<16x32xf32>
    %272 = arith.addf %269, %271 : vector<16x32xf32>
    %c0_250 = arith.constant 0 : index
    %c0_251 = arith.constant 0 : index
    %c0_252 = arith.constant 0 : index
    %273 = vector.load %arg10[%c0_250, %c0_251, %c0_252] : memref<1x16x32xf32, #tpu.memory_space<vmem>>, vector<1x16x32xf32>
    %274 = vector.shape_cast %273 : vector<1x16x32xf32> to vector<16x32xf32>
    %275 = vector.shape_cast %272 : vector<16x32xf32> to vector<1x16x32xf32>
    tpu.vector_store %arg10[%c0_250, %c0_251, %c0_252], %275 {strides = array<i32>} : memref<1x16x32xf32, #tpu.memory_space<vmem>>, vector<1x16x32xf32>,
    return
  }
  func.func @transform_0(%arg0: i32) -> (i32, i32, i32) {
    %c0_i32 = arith.constant 0 : i32
    %c0_i32_0 = arith.constant 0 : i32
    %c0_i32_1 = arith.constant 0 : i32
    return %arg0, %c0_i32, %c0_i32_0 : i32, i32, i32
  }
  func.func @transform_1(%arg0: i32) -> (i32, i32) {
    %c0_i32 = arith.constant 0 : i32
    %c0_i32_0 = arith.constant 0 : i32
    %c0_i32_1 = arith.constant 0 : i32
    return %c0_i32, %c0_i32_0 : i32, i32
  }
  func.func @transform_2(%arg0: i32) -> (i32, i32) {
    %c0_i32 = arith.constant 0 : i32
    %c0_i32_0 = arith.constant 0 : i32
    %c0_i32_1 = arith.constant 0 : i32
    return %c0_i32, %c0_i32_0 : i32, i32
  }
  func.func @transform_3(%arg0: i32) -> (i32, i32, i32) {
    %c0_i32 = arith.constant 0 : i32
    %c0_i32_0 = arith.constant 0 : i32
    %c0_i32_1 = arith.constant 0 : i32
    %c0_i32_2 = arith.constant 0 : i32
    return %c0_i32, %c0_i32_0, %c0_i32_1 : i32, i32, i32
  }
  func.func @transform_4(%arg0: i32) -> (i32, i32) {
    %c0_i32 = arith.constant 0 : i32
    %c0_i32_0 = arith.constant 0 : i32
    %c0_i32_1 = arith.constant 0 : i32
    return %c0_i32, %c0_i32_0 : i32, i32
  }
  func.func @transform_5(%arg0: i32) -> (i32, i32, i32) {
    %c0_i32 = arith.constant 0 : i32
    %c0_i32_0 = arith.constant 0 : i32
    %c0_i32_1 = arith.constant 0 : i32
    %c0_i32_2 = arith.constant 0 : i32
    return %c0_i32, %c0_i32_0, %c0_i32_1 : i32, i32, i32
  }
  func.func @transform_6(%arg0: i32) -> (i32, i32) {
    %c0_i32 = arith.constant 0 : i32
    %c0_i32_0 = arith.constant 0 : i32
    %c0_i32_1 = arith.constant 0 : i32
    return %c0_i32, %c0_i32_0 : i32, i32
  }
  func.func @transform_7(%arg0: i32) -> (i32, i32) {
    %c0_i32 = arith.constant 0 : i32
    %c0_i32_0 = arith.constant 0 : i32
    %c0_i32_1 = arith.constant 0 : i32
    return %c0_i32, %c0_i32_0 : i32, i32
  }
  func.func @transform_8(%arg0: i32) -> (i32, i32) {
    %c0_i32 = arith.constant 0 : i32
    %c0_i32_0 = arith.constant 0 : i32
    %c0_i32_1 = arith.constant 0 : i32
    return %c0_i32, %c0_i32_0 : i32, i32
  }
  func.func @transform_9(%arg0: i32) -> (i32, i32, i32) {
    %c0_i32 = arith.constant 0 : i32
    %c0_i32_0 = arith.constant 0 : i32
    %c0_i32_1 = arith.constant 0 : i32
    return %arg0, %c0_i32, %c0_i32_0 : i32, i32, i32
  }
  func.func @transform_10(%arg0: i32) -> (i32, i32, i32, i32) {
    %c0_i32 = arith.constant 0 : i32
    %c0_i32_0 = arith.constant 0 : i32
    %c0_i32_1 = arith.constant 0 : i32
    %c0_i32_2 = arith.constant 0 : i32
    return %arg0, %c0_i32, %c0_i32_0, %c0_i32_1 : i32, i32, i32, i32
  }
  func.func @transform_11(%arg0: i32) -> (i32, i32, i32, i32) {
    %c0_i32 = arith.constant 0 : i32
    %c0_i32_0 = arith.constant 0 : i32
    %c0_i32_1 = arith.constant 0 : i32
    %c0_i32_2 = arith.constant 0 : i32
    return %arg0, %c0_i32, %c0_i32_0, %c0_i32_1 : i32, i32, i32, i32
  }
  func.func @transform_12(%arg0: i32) -> (i32, i32, i32, i32) {
    %c0_i32 = arith.constant 0 : i32
    %c0_i32_0 = arith.constant 0 : i32
    %c0_i32_1 = arith.constant 0 : i32
    %c0_i32_2 = arith.constant 0 : i32
    return %arg0, %c0_i32, %c0_i32_0, %c0_i32_1 : i32, i32, i32, i32
  }
  func.func @transform_13(%arg0: i32) -> (i32, i32, i32, i32) {
    %c0_i32 = arith.constant 0 : i32
    %c0_i32_0 = arith.constant 0 : i32
    %c0_i32_1 = arith.constant 0 : i32
    %c0_i32_2 = arith.constant 0 : i32
    return %arg0, %c0_i32, %c0_i32_0, %c0_i32_1 : i32, i32, i32, i32
  }
}

</mosaic_0001>

<llo_original>
// kernel: basic_layer_forward.1
$region0: #{basic_layer_forward.1}
  #allocation0 [shape = 'u32[]', space=smem, size = 0x4, offset = 0x4, fixed_abs, tag = 'smem constant byte address 0x4 - core index']
  #allocation1 [shape = 'u32[144,128]{1,0:T(1,128)}', space=vmem, size = 0x12000, scoped, tag = 'internal scratch']
  #allocation2 [shape = 'f32[8,2,8,2,16]{4,3,2,1,0:T(2,128)}', space=vmem, size = 0x20000, scoped, tag = 'scratch operand']
  #allocation3 [shape = 'f32[4,2,4,2,32]{4,3,2,1,0:T(2,128)}', space=vmem, size = 0x8000, scoped, tag = 'scratch operand']
  #allocation4 [shape = 'f32[10,10,1,16]{3,2,1,0:T(1,128)}', space=vmem, size = 0xc800, scoped, tag = 'scratch operand']
  #allocation5 [shape = 'f32[6,6,1,32]{3,2,1,0:T(1,128)}', space=vmem, size = 0x4800, scoped, tag = 'scratch operand']
  %s0 = inlined_call_operand.vmem [shape: bf16[2,256,36], index: 0, kind: input, shape index: {}]
  %s1 = inlined_call_operand.vmem [shape: bf16[36,16], index: 1, kind: input, shape index: {}]
  %s2 = inlined_call_operand.vmem [shape: f32[1,16], index: 2, kind: input, shape index: {}]
  %s3 = inlined_call_operand.vmem [shape: bf16[9,16,32], index: 3, kind: input, shape index: {}]
  %s4 = inlined_call_operand.vmem [shape: f32[1,32], index: 4, kind: input, shape index: {}]
  %s5 = inlined_call_operand.vmem [shape: bf16[9,32,32], index: 5, kind: input, shape index: {}]
  %s6 = inlined_call_operand.vmem [shape: f32[1,32], index: 6, kind: input, shape index: {}]
  %s7 = inlined_call_operand.vmem [shape: f32[1,32], index: 7, kind: input, shape index: {}]
  %s8 = inlined_call_operand.vmem [shape: f32[1,32], index: 8, kind: input, shape index: {}]
  %s9 = inlined_call_operand.hbm [shape: f32[2,16,32], index: 9, kind: output, shape index: {0}]
  %s10 = inlined_call_operand.hbm [shape: s32[2,8,8,16], index: 10, kind: output, shape index: {1}]
  %s11 = inlined_call_operand.hbm [shape: s32[2,4,4,32], index: 11, kind: output, shape index: {2}]
  %s12 = inlined_call_operand.vmem [shape: f32[2,16,16,16], index: 12, kind: output, shape index: {3}]
  %s13 = inlined_call_operand.hbm [shape: f32[2,8,8,32], index: 13, kind: output, shape index: {4}]
  %14 = xla_tuple %s9, %s10, %s11, %s12, %s13
  %s15 = sld [smem:[#allocation0]]
  $region101: #{basic_layer_forward.1} parent=0
    _
  %s17 = ssub.s32 1, %s15
  %s18 = scalar_select 0, %s17, %s15
  $region1: #{basic_layer_forward.1} parent=0
    #allocation6 [shape = 'u8[16384]{0}', space=vmem, size = 0x4000, scoped, tag = 'output window, operand 0']
    #allocation7 [shape = 's32[2]{0}', space=sflag, size = 0x8, scoped, tag = 'scoped memory for basic_layer_forward.1']
    #allocation8 [shape = 'u8[65536]{0}', space=vmem, size = 0x10000, scoped, tag = 'output window, operand 1']
    #allocation9 [shape = 's32[2]{0}', space=sflag, size = 0x8, scoped, tag = 'scoped memory for basic_layer_forward.1']
    #allocation10 [shape = 'u8[16384]{0}', space=vmem, size = 0x4000, scoped, tag = 'output window, operand 2']
    #allocation11 [shape = 'u8[65536]{0}', space=vmem, size = 0x10000, scoped, tag = 'output window, operand 4']
    #allocation12 [shape = 's32[2]{0}', space=sflag, size = 0x8, scoped, tag = 'scoped memory for basic_layer_forward.1']
    %19 = vsyncpa [#allocation7], 0
    %s20 = scalar_lea.sflag [#allocation7], 1
    %21 = vsyncpa %s20, 0
    %22 = vsyncpa [#allocation9], 0
    %s23 = scalar_lea.sflag [#allocation9], 1
    %24 = vsyncpa %s23, 0
    %25 = vsyncpa [#allocation12], 0
    %s26 = scalar_lea.sflag [#allocation12], 1
    %27 = vsyncpa %s26, 0
    loop: start=0, step=1, limit=4
    $region2: #{basic_layer_forward.1} parent=1 // loop_pre_header
      _
    $region3: #{basic_layer_forward.1} parent=1 // loop_header
      %s29 = sphi 0, %s33
      %p30 = scmp.ge.s32.totalorder %s29, 4
      %s39 = sphi 0, %s41
      %s42 = sphi 0, %s39
      %s43 = sphi 0, %s42
      %s59 = sphi 0, %s43
      %s63 = sphi 0, %s63
      %s65 = sphi 0, %s63
      %s66 = sphi 0, %s65
      %s80 = sphi 0, %s66
      %s84 = sphi 0, %s84
      %s86 = sphi 0, %s84
      %s87 = sphi 0, %s86
      %s101 = sphi 0, %s87
      %s105 = sphi 0, %s105
      %s107 = sphi 0, %s105
      %s108 = sphi 0, %s107
      %s122 = sphi 0, %s108
      %s126 = sphi 0, %s126
      %s128 = sphi 0, %s126
      %s129 = sphi 0, %s128
      %s143 = sphi 0, %s129
      %s147 = sphi 0, %s147
      %s149 = sphi 0, %s147
      %s150 = sphi 0, %s149
      %s164 = sphi 0, %s150
      %s168 = sphi 0, %s168
      %s170 = sphi 0, %s168
      %s171 = sphi 0, %s170
      %s185 = sphi 0, %s171
      %s189 = sphi 0, %s189
      %s191 = sphi 0, %s189
      %s192 = sphi 0, %s191
      %s206 = sphi 0, %s192
      %s210 = sphi 0, %s210
      %s212 = sphi 0, %s210
      %s213 = sphi 0, %s212
      %s227 = sphi 0, %s213
      %s233 = sphi 0, %s235
      %s236 = sphi 0, %s233
      %s237 = sphi 0, %s236
      %s253 = sphi 0, %s237
      %s259 = sphi 0, %s261
      %s262 = sphi 0, %s259
      %s263 = sphi 0, %s262
      %s279 = sphi 0, %s263
      %s285 = sphi 0, %s287
      %s288 = sphi 0, %s285
      %s289 = sphi 0, %s288
      %s305 = sphi 0, %s289
      %s311 = sphi 0, %s313
      %s314 = sphi 0, %s311
      %s315 = sphi 0, %s314
      %s331 = sphi 0, %s315
      %s337 = sphi 0, %s339
      %s340 = sphi 0, %s337
      %s341 = sphi 0, %s340
      %s357 = sphi 0, %s341
    $region4: #{basic_layer_forward.1} parent=1 // loop_header_branch
      %32 = sbr.rel (%p30) target = $region8
    $region5: #{basic_layer_forward.1} parent=1 // loop_body
      %s34 = ssub.s32 %s29, 1
      %s35 = ssub.s32 %s29, 2
      %s36 = sadd.s32 %s29, 1
      %s37 = ssub.s32 %s29, %s36
      %p38 = scmp.eq.s32.totalorder %s37, 0
      %s40 = sadd.s32 %s39, 1
      %s41 = scalar_select %p38, %s39, %s40
      %p44 = pneg %p38
      %p45 = scmp.eq.s32.totalorder %s29, 1
      %p46 = por %p44, %p45
      %p47 = scmp.ne.s32.totalorder %s39, %s42
      %p48 = scmp.eq.s32.totalorder %s29, 0
      %p49 = por %p47, %p48
      %p50 = scmp.ne.s32.totalorder %s39, %s42
      %p51 = scmp.eq.s32.totalorder %s34, 1
      %p52 = por %p50, %p51
      %p53 = scmp.ne.s32.totalorder %s42, %s43
      %p54 = scmp.eq.s32.totalorder %s34, 0
      %p55 = por %p53, %p54
      %p56 = scmp.ne.s32.totalorder %s42, %s43
      %p57 = scmp.eq.s32.totalorder %s35, 1
      %p58 = por %p56, %p57
      %p60 = scmp.ne.s32.totalorder %s43, %s59
      %p61 = scmp.eq.s32.totalorder %s35, 0
      %p62 = por %p60, %p61
      %s64 = sadd.s32 %s63, 1
      %p67 = scmp.eq.s32.totalorder %s29, 1
      %p68 = scmp.ne.s32.totalorder %s63, %s65
      %p69 = scmp.eq.s32.totalorder %s29, 0
      %p70 = por %p68, %p69
      %p71 = scmp.ne.s32.totalorder %s63, %s65
      %p72 = scmp.eq.s32.totalorder %s34, 1
      %p73 = por %p71, %p72
      %p74 = scmp.ne.s32.totalorder %s65, %s66
      %p75 = scmp.eq.s32.totalorder %s34, 0
      %p76 = por %p74, %p75
      %p77 = scmp.ne.s32.totalorder %s65, %s66
      %p78 = scmp.eq.s32.totalorder %s35, 1
      %p79 = por %p77, %p78
      %p81 = scmp.ne.s32.totalorder %s66, %s80
      %p82 = scmp.eq.s32.totalorder %s35, 0
      %p83 = por %p81, %p82
      %s85 = sadd.s32 %s84, 1
      %p88 = scmp.eq.s32.totalorder %s29, 1
      %p89 = scmp.ne.s32.totalorder %s84, %s86
      %p90 = scmp.eq.s32.totalorder %s29, 0
      %p91 = por %p89, %p90
      %p92 = scmp.ne.s32.totalorder %s84, %s86
      %p93 = scmp.eq.s32.totalorder %s34, 1
      %p94 = por %p92, %p93
      %p95 = scmp.ne.s32.totalorder %s86, %s87
      %p96 = scmp.eq.s32.totalorder %s34, 0
      %p97 = por %p95, %p96
      %p98 = scmp.ne.s32.totalorder %s86, %s87
      %p99 = scmp.eq.s32.totalorder %s35, 1
      %p100 = por %p98, %p99
      %p102 = scmp.ne.s32.totalorder %s87, %s101
      %p103 = scmp.eq.s32.totalorder %s35, 0
      %p104 = por %p102, %p103
      %s106 = sadd.s32 %s105, 1
      %p109 = scmp.eq.s32.totalorder %s29, 1
      %p110 = scmp.ne.s32.totalorder %s105, %s107
      %p111 = scmp.eq.s32.totalorder %s29, 0
      %p112 = por %p110, %p111
      %p113 = scmp.ne.s32.totalorder %s105, %s107
      %p114 = scmp.eq.s32.totalorder %s34, 1
      %p115 = por %p113, %p114
      %p116 = scmp.ne.s32.totalorder %s107, %s108
      %p117 = scmp.eq.s32.totalorder %s34, 0
      %p118 = por %p116, %p117
      %p119 = scmp.ne.s32.totalorder %s107, %s108
      %p120 = scmp.eq.s32.totalorder %s35, 1
      %p121 = por %p119, %p120
      %p123 = scmp.ne.s32.totalorder %s108, %s122
      %p124 = scmp.eq.s32.totalorder %s35, 0
      %p125 = por %p123, %p124
      %s127 = sadd.s32 %s126, 1
      %p130 = scmp.eq.s32.totalorder %s29, 1
      %p131 = scmp.ne.s32.totalorder %s126, %s128
      %p132 = scmp.eq.s32.totalorder %s29, 0
      %p133 = por %p131, %p132
      %p134 = scmp.ne.s32.totalorder %s126, %s128
      %p135 = scmp.eq.s32.totalorder %s34, 1
      %p136 = por %p134, %p135
      %p137 = scmp.ne.s32.totalorder %s128, %s129
      %p138 = scmp.eq.s32.totalorder %s34, 0
      %p139 = por %p137, %p138
      %p140 = scmp.ne.s32.totalorder %s128, %s129
      %p141 = scmp.eq.s32.totalorder %s35, 1
      %p142 = por %p140, %p141
      %p144 = scmp.ne.s32.totalorder %s129, %s143
      %p145 = scmp.eq.s32.totalorder %s35, 0
      %p146 = por %p144, %p145
      %s148 = sadd.s32 %s147, 1
      %p151 = scmp.eq.s32.totalorder %s29, 1
      %p152 = scmp.ne.s32.totalorder %s147, %s149
      %p153 = scmp.eq.s32.totalorder %s29, 0
      %p154 = por %p152, %p153
      %p155 = scmp.ne.s32.totalorder %s147, %s149
      %p156 = scmp.eq.s32.totalorder %s34, 1
      %p157 = por %p155, %p156
      %p158 = scmp.ne.s32.totalorder %s149, %s150
      %p159 = scmp.eq.s32.totalorder %s34, 0
      %p160 = por %p158, %p159
      %p161 = scmp.ne.s32.totalorder %s149, %s150
      %p162 = scmp.eq.s32.totalorder %s35, 1
      %p163 = por %p161, %p162
      %p165 = scmp.ne.s32.totalorder %s150, %s164
      %p166 = scmp.eq.s32.totalorder %s35, 0
      %p167 = por %p165, %p166
      %s169 = sadd.s32 %s168, 1
      %p172 = scmp.eq.s32.totalorder %s29, 1
      %p173 = scmp.ne.s32.totalorder %s168, %s170
      %p174 = scmp.eq.s32.totalorder %s29, 0
      %p175 = por %p173, %p174
      %p176 = scmp.ne.s32.totalorder %s168, %s170
      %p177 = scmp.eq.s32.totalorder %s34, 1
      %p178 = por %p176, %p177
      %p179 = scmp.ne.s32.totalorder %s170, %s171
      %p180 = scmp.eq.s32.totalorder %s34, 0
      %p181 = por %p179, %p180
      %p182 = scmp.ne.s32.totalorder %s170, %s171
      %p183 = scmp.eq.s32.totalorder %s35, 1
      %p184 = por %p182, %p183
      %p186 = scmp.ne.s32.totalorder %s171, %s185
      %p187 = scmp.eq.s32.totalorder %s35, 0
      %p188 = por %p186, %p187
      %s190 = sadd.s32 %s189, 1
      %p193 = scmp.eq.s32.totalorder %s29, 1
      %p194 = scmp.ne.s32.totalorder %s189, %s191
      %p195 = scmp.eq.s32.totalorder %s29, 0
      %p196 = por %p194, %p195
      %p197 = scmp.ne.s32.totalorder %s189, %s191
      %p198 = scmp.eq.s32.totalorder %s34, 1
      %p199 = por %p197, %p198
      %p200 = scmp.ne.s32.totalorder %s191, %s192
      %p201 = scmp.eq.s32.totalorder %s34, 0
      %p202 = por %p200, %p201
      %p203 = scmp.ne.s32.totalorder %s191, %s192
      %p204 = scmp.eq.s32.totalorder %s35, 1
      %p205 = por %p203, %p204
      %p207 = scmp.ne.s32.totalorder %s192, %s206
      %p208 = scmp.eq.s32.totalorder %s35, 0
      %p209 = por %p207, %p208
      %s211 = sadd.s32 %s210, 1
      %p214 = scmp.eq.s32.totalorder %s29, 1
      %p215 = scmp.ne.s32.totalorder %s210, %s212
      %p216 = scmp.eq.s32.totalorder %s29, 0
      %p217 = por %p215, %p216
      %p218 = scmp.ne.s32.totalorder %s210, %s212
      %p219 = scmp.eq.s32.totalorder %s34, 1
      %p220 = por %p218, %p219
      %p221 = scmp.ne.s32.totalorder %s212, %s213
      %p222 = scmp.eq.s32.totalorder %s34, 0
      %p223 = por %p221, %p222
      %p224 = scmp.ne.s32.totalorder %s212, %s213
      %p225 = scmp.eq.s32.totalorder %s35, 1
      %p226 = por %p224, %p225
      %p228 = scmp.ne.s32.totalorder %s213, %s227
      %p229 = scmp.eq.s32.totalorder %s35, 0
      %p230 = por %p228, %p229
      %s231 = ssub.s32 %s29, %s36
      %p232 = scmp.eq.s32.totalorder %s231, 0
      %s234 = sadd.s32 %s233, 1
      %s235 = scalar_select %p232, %s233, %s234
      %p238 = pneg %p232
      %p239 = scmp.eq.s32.totalorder %s29, 1
      %p240 = por %p238, %p239
      %p241 = scmp.ne.s32.totalorder %s233, %s236
      %p242 = scmp.eq.s32.totalorder %s29, 0
      %p243 = por %p241, %p242
      %p244 = scmp.ne.s32.totalorder %s233, %s236
      %p245 = scmp.eq.s32.totalorder %s34, 1
      %p246 = por %p244, %p245
      %p247 = scmp.ne.s32.totalorder %s236, %s237
      %p248 = scmp.eq.s32.totalorder %s34, 0
      %p249 = por %p247, %p248
      %p250 = scmp.ne.s32.totalorder %s236, %s237
      %p251 = scmp.eq.s32.totalorder %s35, 1
      %p252 = por %p250, %p251
      %p254 = scmp.ne.s32.totalorder %s237, %s253
      %p255 = scmp.eq.s32.totalorder %s35, 0
      %p256 = por %p254, %p255
      %s257 = ssub.s32 %s29, %s36
      %p258 = scmp.eq.s32.totalorder %s257, 0
      %s260 = sadd.s32 %s259, 1
      %s261 = scalar_select %p258, %s259, %s260
      %p264 = pneg %p258
      %p265 = scmp.eq.s32.totalorder %s29, 1
      %p266 = por %p264, %p265
      %p267 = scmp.ne.s32.totalorder %s259, %s262
      %p268 = scmp.eq.s32.totalorder %s29, 0
      %p269 = por %p267, %p268
      %p270 = scmp.ne.s32.totalorder %s259, %s262
      %p271 = scmp.eq.s32.totalorder %s34, 1
      %p272 = por %p270, %p271
      %p273 = scmp.ne.s32.totalorder %s262, %s263
      %p274 = scmp.eq.s32.totalorder %s34, 0
      %p275 = por %p273, %p274
      %p276 = scmp.ne.s32.totalorder %s262, %s263
      %p277 = scmp.eq.s32.totalorder %s35, 1
      %p278 = por %p276, %p277
      %p280 = scmp.ne.s32.totalorder %s263, %s279
      %p281 = scmp.eq.s32.totalorder %s35, 0
      %p282 = por %p280, %p281
      %s283 = ssub.s32 %s29, %s36
      %p284 = scmp.eq.s32.totalorder %s283, 0
      %s286 = sadd.s32 %s285, 1
      %s287 = scalar_select %p284, %s285, %s286
      %p290 = pneg %p284
      %p291 = scmp.eq.s32.totalorder %s29, 1
      %p292 = por %p290, %p291
      %p293 = scmp.ne.s32.totalorder %s285, %s288
      %p294 = scmp.eq.s32.totalorder %s29, 0
      %p295 = por %p293, %p294
      %p296 = scmp.ne.s32.totalorder %s285, %s288
      %p297 = scmp.eq.s32.totalorder %s34, 1
      %p298 = por %p296, %p297
      %p299 = scmp.ne.s32.totalorder %s288, %s289
      %p300 = scmp.eq.s32.totalorder %s34, 0
      %p301 = por %p299, %p300
      %p302 = scmp.ne.s32.totalorder %s288, %s289
      %p303 = scmp.eq.s32.totalorder %s35, 1
      %p304 = por %p302, %p303
      %p306 = scmp.ne.s32.totalorder %s289, %s305
      %p307 = scmp.eq.s32.totalorder %s35, 0
      %p308 = por %p306, %p307
      %s309 = ssub.s32 %s29, %s36
      %p310 = scmp.eq.s32.totalorder %s309, 0
      %s312 = sadd.s32 %s311, 1
      %s313 = scalar_select %p310, %s311, %s312
      %p316 = pneg %p310
      %p317 = scmp.eq.s32.totalorder %s29, 1
      %p318 = por %p316, %p317
      %p319 = scmp.ne.s32.totalorder %s311, %s314
      %p320 = scmp.eq.s32.totalorder %s29, 0
      %p321 = por %p319, %p320
      %p322 = scmp.ne.s32.totalorder %s311, %s314
      %p323 = scmp.eq.s32.totalorder %s34, 1
      %p324 = por %p322, %p323
      %p325 = scmp.ne.s32.totalorder %s314, %s315
      %p326 = scmp.eq.s32.totalorder %s34, 0
      %p327 = por %p325, %p326
      %p328 = scmp.ne.s32.totalorder %s314, %s315
      %p329 = scmp.eq.s32.totalorder %s35, 1
      %p330 = por %p328, %p329
      %p332 = scmp.ne.s32.totalorder %s315, %s331
      %p333 = scmp.eq.s32.totalorder %s35, 0
      %p334 = por %p332, %p333
      %s335 = ssub.s32 %s29, %s36
      %p336 = scmp.eq.s32.totalorder %s335, 0
      %s338 = sadd.s32 %s337, 1
      %s339 = scalar_select %p336, %s337, %s338
      %p342 = pneg %p336
      %p343 = scmp.eq.s32.totalorder %s29, 1
      %p344 = por %p342, %p343
      %p345 = scmp.ne.s32.totalorder %s337, %s340
      %p346 = scmp.eq.s32.totalorder %s29, 0
      %p347 = por %p345, %p346
      %p348 = scmp.ne.s32.totalorder %s337, %s340
      %p349 = scmp.eq.s32.totalorder %s34, 1
      %p350 = por %p348, %p349
      %p351 = scmp.ne.s32.totalorder %s340, %s341
      %p352 = scmp.eq.s32.totalorder %s34, 0
      %p353 = por %p351, %p352
      %p354 = scmp.ne.s32.totalorder %s340, %s341
      %p355 = scmp.eq.s32.totalorder %s35, 1
      %p356 = por %p354, %p355
      %p358 = scmp.ne.s32.totalorder %s341, %s357
      %p359 = scmp.eq.s32.totalorder %s35, 0
      %p360 = por %p358, %p359
      %p361 = scmp.le.s32.totalorder 1, %s29
      %p362 = scmp.lt.s32.totalorder %s29, 3
      %p363 = pnand %p361, %p362
      %p364 = pneg %p363
      // Predicated region
      $region9: #{basic_layer_forward.1} parent=5 // pred_check
        _
      $region10: #{basic_layer_forward.1} parent=5 // pred_check_branch
        %366 = sbr.rel (%p363) target = $region12
      $region11: #{basic_layer_forward.1} parent=5 // pred_region
        %s367 = ssub.s32 %s29, 1
        // Predicated region
        $region13: #{basic_layer_forward.1} parent=11 // pred_check
          %p368 = pneg %p76
        $region14: #{basic_layer_forward.1} parent=11 // pred_check_branch
          %370 = sbr.rel (%p368) target = $region16
        $region15: #{basic_layer_forward.1} parent=11 // pred_region
          _
        $region16: #{basic_layer_forward.1} parent=11 // pred_fallthru
          _
        // Predicated region
        $region17: #{basic_layer_forward.1} parent=11 // pred_check
          %p371 = pneg %p97
        $region18: #{basic_layer_forward.1} parent=11 // pred_check_branch
          %373 = sbr.rel (%p371) target = $region20
        $region19: #{basic_layer_forward.1} parent=11 // pred_region
          _
        $region20: #{basic_layer_forward.1} parent=11 // pred_fallthru
          _
        // Predicated region
        $region21: #{basic_layer_forward.1} parent=11 // pred_check
          %p374 = pneg %p118
        $region22: #{basic_layer_forward.1} parent=11 // pred_check_branch
          %376 = sbr.rel (%p374) target = $region24
        $region23: #{basic_layer_forward.1} parent=11 // pred_region
          _
        $region24: #{basic_layer_forward.1} parent=11 // pred_fallthru
          _
        // Predicated region
        $region25: #{basic_layer_forward.1} parent=11 // pred_check
          %p377 = pneg %p139
        $region26: #{basic_layer_forward.1} parent=11 // pred_check_branch
          %379 = sbr.rel (%p377) target = $region28
        $region27: #{basic_layer_forward.1} parent=11 // pred_region
          _
        $region28: #{basic_layer_forward.1} parent=11 // pred_fallthru
          _
        // Predicated region
        $region29: #{basic_layer_forward.1} parent=11 // pred_check
          %p380 = pneg %p160
        $region30: #{basic_layer_forward.1} parent=11 // pred_check_branch
          %382 = sbr.rel (%p380) target = $region32
        $region31: #{basic_layer_forward.1} parent=11 // pred_region
          _
        $region32: #{basic_layer_forward.1} parent=11 // pred_fallthru
          _
        // Predicated region
        $region33: #{basic_layer_forward.1} parent=11 // pred_check
          %p383 = pneg %p181
        $region34: #{basic_layer_forward.1} parent=11 // pred_check_branch
          %385 = sbr.rel (%p383) target = $region36
        $region35: #{basic_layer_forward.1} parent=11 // pred_region
          _
        $region36: #{basic_layer_forward.1} parent=11 // pred_fallthru
          _
        // Predicated region
        $region37: #{basic_layer_forward.1} parent=11 // pred_check
          %p386 = pneg %p202
        $region38: #{basic_layer_forward.1} parent=11 // pred_check_branch
          %388 = sbr.rel (%p386) target = $region40
        $region39: #{basic_layer_forward.1} parent=11 // pred_region
          _
        $region40: #{basic_layer_forward.1} parent=11 // pred_fallthru
          _
        // Predicated region
        $region41: #{basic_layer_forward.1} parent=11 // pred_check
          %p389 = pneg %p223
        $region42: #{basic_layer_forward.1} parent=11 // pred_check_branch
          %391 = sbr.rel (%p389) target = $region44
        $region43: #{basic_layer_forward.1} parent=11 // pred_region
          _
        $region44: #{basic_layer_forward.1} parent=11 // pred_fallthru
          _
      $region12: #{basic_layer_forward.1} parent=5 // pred_fallthru
        _
      %p392 = scmp.lt.s32.totalorder %s29, 2
      // Predicated region
      $region45: #{basic_layer_forward.1} parent=5 // pred_check
        %p393 = pneg %p392
      $region46: #{basic_layer_forward.1} parent=5 // pred_check_branch
        %395 = sbr.rel (%p393) target = $region48
      $region47: #{basic_layer_forward.1} parent=5 // pred_region
        // Predicated region
        $region49: #{basic_layer_forward.1} parent=47 // pred_check
          %p396 = pneg %p49
        $region50: #{basic_layer_forward.1} parent=47 // pred_check_branch
          %398 = sbr.rel (%p396) target = $region52
        $region51: #{basic_layer_forward.1} parent=47 // pred_region
          %p399 = scmp.lt.s32.totalorder %s29, 1
          %s400 = scalar_select %p399, %s29, 1
          %s401 = smul.addr %s400, 32
          %s402 = smul.addr %s401, 4
          %s403 = scalar_lea.vmem %s0, %s402
        $region52: #{basic_layer_forward.1} parent=47 // pred_fallthru
          _
      $region48: #{basic_layer_forward.1} parent=5 // pred_fallthru
        _
      %p404 = scmp.le.s32.totalorder 1, %s29
      %p405 = scmp.lt.s32.totalorder %s29, 3
      %p406 = pnand %p404, %p405
      %p407 = pneg %p406
      // Predicated region
      $region53: #{basic_layer_forward.1} parent=5 // pred_check
        _
      $region54: #{basic_layer_forward.1} parent=5 // pred_check_branch
        %409 = sbr.rel (%p406) target = $region56
      $region55: #{basic_layer_forward.1} parent=5 // pred_region
        %s410 = ssub.s32 %s29, 1
        %p411 = scmp.lt.s32.totalorder %s34, 1
        %s412 = scalar_select %p411, %s34, 1
        %s413 = smul.addr %s412, 32
        %s414 = smul.addr %s413, 4
        %s415 = scalar_lea.vmem %s0, %s414
        %p416 = pneg %p55
        %p417 = pneg %p52
        %p418 = pneg %p76
        %p419 = pneg %p73
        %p420 = pneg %p97
        %p421 = pneg %p94
        %p422 = pneg %p118
        %p423 = pneg %p115
        %p424 = pneg %p139
        %p425 = pneg %p136
        %p426 = pneg %p160
        %p427 = pneg %p157
        %p428 = pneg %p181
        %p429 = pneg %p178
        %p430 = pneg %p202
        %p431 = pneg %p199
        %p432 = pneg %p223
        %p433 = pneg %p220
        %p434 = pneg %p249
        %p435 = pneg %p246
        %s436 = sand.u32 %s236, 1
        %s437 = scalar_lea.sflag [#allocation7], %s436
        %s438 = sand.u32 %s236, 1
        %s439 = smul.addr %s438, 16
        %s440 = scalar_lea.vmem [#allocation6], %s439
        %p441 = pneg %p275
        %p442 = pneg %p272
        %s443 = sand.u32 %s34, 1
        %s444 = scalar_lea.sflag [#allocation9], %s443
        %s445 = sand.u32 %s262, 1
        %s446 = smul.addr %s445, 64
        %s447 = scalar_lea.vmem [#allocation8], %s446
        %p448 = pneg %p301
        %p449 = pneg %p298
        %s450 = sand.u32 %s34, 1
        %s451 = scalar_lea.sflag [#allocation9], %s450
        %s452 = sand.u32 %s288, 1
        %s453 = smul.addr %s452, 16
        %s454 = scalar_lea.vmem [#allocation10], %s453
        %p455 = pneg %p327
        %p456 = pneg %p324
        %p457 = scmp.lt.s32.totalorder %s34, 1
        %s458 = scalar_select %p457, %s34, 1
        %s459 = smul.addr %s458, 32
        %s460 = smul.addr %s459, 8
        %s461 = scalar_lea.vmem %s12, %s460
        %p462 = pneg %p353
        %p463 = pneg %p350
        %s464 = sand.u32 %s340, 1
        %s465 = scalar_lea.sflag [#allocation12], %s464
        %s466 = sand.u32 %s340, 1
        %s467 = smul.addr %s466, 64
        %s468 = scalar_lea.vmem [#allocation11], %s467
        %p469 = scmp.lt.s32.totalorder %s34, 1
        %s470 = scalar_select %p469, %s34, 1
        %s471 = smul.addr %s470, 32
        %s472 = smul.addr %s471, 4
        %s473 = scalar_lea.vmem %s0, %s472
        %p474 = scmp.lt.s32.totalorder %s34, 1
        %s475 = scalar_select %p474, %s34, 1
        %s476 = smul.addr %s475, 32
        %s477 = smul.addr %s476, 8
        %s478 = scalar_lea.vmem %s12, %s477
        %v480 = vld [vmem:[%s473] sm:$0xf]
        %v481 = vld [vmem:[%s473 + $0x4] sm:$0xf]
        %v482 = vld [vmem:[%s473 + $0x8] sm:$0xf]
        %v483 = vld [vmem:[%s473 + $0xc] sm:$0xf]
        %v484 = vld [vmem:[%s473 + $0x10] sm:$0xf]
        %v485 = vld [vmem:[%s473 + $0x14] sm:$0xf]
        %v486 = vld [vmem:[%s473 + $0x18] sm:$0xf]
        %v487 = vld [vmem:[%s473 + $0x1c] sm:$0xf]
        %v488 = vld [vmem:[%s473 + $0x20] sm:$0xf]
        %v489 = vld [vmem:[%s473 + $0x24] sm:$0xf]
        %v490 = vld [vmem:[%s473 + $0x28] sm:$0xf]
        %v491 = vld [vmem:[%s473 + $0x2c] sm:$0xf]
        %v492 = vld [vmem:[%s473 + $0x30] sm:$0xf]
        %v493 = vld [vmem:[%s473 + $0x34] sm:$0xf]
        %v494 = vld [vmem:[%s473 + $0x38] sm:$0xf]
        %v495 = vld [vmem:[%s473 + $0x3c] sm:$0xf]
        %v496 = vld [vmem:[%s473 + $0x40] sm:$0xf]
        %v497 = vld [vmem:[%s473 + $0x44] sm:$0xf]
        %v498 = vld [vmem:[%s473 + $0x48] sm:$0xf]
        %v499 = vld [vmem:[%s473 + $0x4c] sm:$0xf]
        %v500 = vld [vmem:[%s473 + $0x50] sm:$0xf]
        %v501 = vld [vmem:[%s473 + $0x54] sm:$0xf]
        %v502 = vld [vmem:[%s473 + $0x58] sm:$0xf]
        %v503 = vld [vmem:[%s473 + $0x5c] sm:$0xf]
        %v504 = vld [vmem:[%s473 + $0x60] sm:$0xf]
        %v505 = vld [vmem:[%s473 + $0x64] sm:$0xf]
        %v506 = vld [vmem:[%s473 + $0x68] sm:$0xf]
        %v507 = vld [vmem:[%s473 + $0x6c] sm:$0xf]
        %v508 = vld [vmem:[%s473 + $0x70] sm:$0xf]
        %v509 = vld [vmem:[%s473 + $0x74] sm:$0xf]
        %v510 = vld [vmem:[%s473 + $0x78] sm:$0xf]
        %v511 = vld [vmem:[%s473 + $0x7c] sm:$0xf]
        %v512 = vld [vmem:[%s1] sm:$0xf]
        %v513 = vld [vmem:[%s1 + $0x4] sm:$0xf]
        %v514 = vld [vmem:[%s1 + $0x8] sm:$0xf]
        %v515 = vld [vmem:[%s1 + $0xc] sm:$0xf]
        %v516 = vld [vmem:[%s1 + $0x10] sm:$0x3]
        %v517 = vld [vmem:[%s2] sm:$0x1]
        %v519 = vlaneseq
        %v520 = vshrl.u32 %v519, 7
        %v521 = vsub.s32 0, %v520
        %v522 = vrot.slane %v517, %v521
        %v556 = vunpack.c.l.b16 %v480
        %v557 = vunpack.c.l.b16 %v481
        %v558 = vunpack.c.l.b16 %v482
        %v559 = vunpack.c.l.b16 %v483
        %v560 = vunpack.c.l.b16 %v484
        %v561 = vunpack.c.l.b16 %v485
        %v562 = vunpack.c.l.b16 %v486
        %v563 = vunpack.c.l.b16 %v487
        %v564 = vunpack.c.l.b16 %v488
        %v565 = vunpack.c.l.b16 %v489
        %v566 = vunpack.c.l.b16 %v490
        %v567 = vunpack.c.l.b16 %v491
        %v568 = vunpack.c.l.b16 %v492
        %v569 = vunpack.c.l.b16 %v493
        %v570 = vunpack.c.l.b16 %v494
        %v571 = vunpack.c.l.b16 %v495
        %v572 = vunpack.c.l.b16 %v496
        %v573 = vunpack.c.l.b16 %v497
        %v574 = vunpack.c.l.b16 %v498
        %v575 = vunpack.c.l.b16 %v499
        %v576 = vunpack.c.l.b16 %v500
        %v577 = vunpack.c.l.b16 %v501
        %v578 = vunpack.c.l.b16 %v502
        %v579 = vunpack.c.l.b16 %v503
        %v580 = vunpack.c.l.b16 %v504
        %v581 = vunpack.c.l.b16 %v505
        %v582 = vunpack.c.l.b16 %v506
        %v583 = vunpack.c.l.b16 %v507
        %v584 = vunpack.c.l.b16 %v508
        %v585 = vunpack.c.l.b16 %v509
        %v586 = vunpack.c.l.b16 %v510
        %v587 = vunpack.c.l.b16 %v511
        %v588 = vpack.c.b16 %v557, %v556
        %v589 = vpack.c.b16 %v559, %v558
        %v590 = vpack.c.b16 %v561, %v560
        %v591 = vpack.c.b16 %v563, %v562
        %v592 = vpack.c.b16 %v565, %v564
        %v593 = vpack.c.b16 %v567, %v566
        %v594 = vpack.c.b16 %v569, %v568
        %v595 = vpack.c.b16 %v571, %v570
        %v596 = vpack.c.b16 %v573, %v572
        %v597 = vpack.c.b16 %v575, %v574
        %v598 = vpack.c.b16 %v577, %v576
        %v599 = vpack.c.b16 %v579, %v578
        %v600 = vpack.c.b16 %v581, %v580
        %v601 = vpack.c.b16 %v583, %v582
        %v602 = vpack.c.b16 %v585, %v584
        %v603 = vpack.c.b16 %v587, %v586
        %v609 = vunpack.c.l.b16 %v512
        %v610 = vunpack.c.l.b16 %v513
        %v611 = vunpack.c.l.b16 %v514
        %v612 = vunpack.c.l.b16 %v515
        %v613 = vunpack.c.l.b16 %v516
        %v614 = vpack.c.b16 %v610, %v609
        %v615 = vpack.c.b16 %v612, %v611
        %v616 = vpack.c.b16 %v613, %v613
        %vm619 = vcmask 293888
        %v621 = vsel %vm619, %v588, 0
        %v624 = vsel %vm619, %v589, 0
        %v627 = vsel %vm619, %v590, 0
        %v630 = vsel %vm619, %v591, 0
        %v633 = vsel %vm619, %v592, 0
        %v636 = vsel %vm619, %v593, 0
        %v639 = vsel %vm619, %v594, 0
        %v642 = vsel %vm619, %v595, 0
        %v645 = vsel %vm619, %v596, 0
        %v648 = vsel %vm619, %v597, 0
        %v651 = vsel %vm619, %v598, 0
        %v654 = vsel %vm619, %v599, 0
        %v657 = vsel %vm619, %v600, 0
        %v660 = vsel %vm619, %v601, 0
        %v663 = vsel %vm619, %v602, 0
        %v666 = vsel %vm619, %v603, 0
        %vm668 = vcmask 1041408
        %v670 = vsel %vm668, %v616, 0
        %672 = vmatprep.subr.bf16.mxu0 0
        %673 = vmatpush1.bf16.msra.mxu0 %v614
        %674 = vmatprep.subr.bf16.mxu0 0
        %675 = vmatpush1.bf16.msra.mxu0 %v615
        %676 = vmatprep.subr.bf16.mxu0 0
        %677 = vmatpush1.bf16.msra.mxu0 %v670
        %678 = vmatprep.subr.bf16.mxu0 0
        %679 = vmatpush1.bf16.msra.mxu0 0
        %680 = vmatprep.subr.bf16.mxu0 0
        %681 = vmatpush1.bf16.msra.mxu0 0
        %682 = vmatprep.subr.bf16.mxu0 0
        %683 = vmatpush1.bf16.msra.mxu0 0
        %684 = vmatprep.subr.bf16.mxu0 0
        %685 = vmatpush1.bf16.msra.mxu0 0
        %686 = vmatprep.subr.bf16.mxu0 0
        %687 = vmatpush1.bf16.msra.mxu0 0
        %688 = vmatprep.subr.bf16.mxu0 0
        %689 = vmatpush1.bf16.msra.mxu0 0
        %690 = vmatprep.subr.bf16.mxu0 0
        %691 = vmatpush1.bf16.msra.mxu0 0
        %692 = vmatprep.subr.bf16.mxu0 0
        %693 = vmatpush1.bf16.msra.mxu0 0
        %694 = vmatprep.subr.bf16.mxu0 0
        %695 = vmatpush1.bf16.msra.mxu0 0
        %696 = vmatprep.subr.bf16.mxu0 0
        %697 = vmatpush1.bf16.msra.mxu0 0
        %698 = vmatprep.subr.bf16.mxu0 0
        %699 = vmatpush1.bf16.msra.mxu0 0
        %700 = vmatprep.subr.bf16.mxu0 0
        %701 = vmatpush1.bf16.msra.mxu0 0
        %702 = vmatprep.subr.bf16.mxu0 0
        %703 = vmatpush1.bf16.msra.mxu0 0
        %704 = vmatprep.mubr.bf16.mxu0 0
        %705 = vmatmul.mubr.bf16.gmra.mrb[0].mxu0 %v621
        %v706 = vpop.f32.mrb[0].mxu0
        %v707 = vadd.f32 %v522, %v706
        %v708 = vpop.f32.mrb[0].mxu0
        %v709 = vpop.f32.mrb[0].mxu0
        %v710 = vadd.f32 %v522, %v709
        %v711 = vpop.f32.mrb[0].mxu0
        %712 = vmatprep.mubr.bf16.mxu0 0
        %713 = vmatmul.mubr.bf16.gmra.mrb[0].mxu0 %v624
        %v714 = vpop.f32.mrb[0].mxu0
        %v715 = vadd.f32 %v522, %v714
        %v716 = vpop.f32.mrb[0].mxu0
        %v717 = vpop.f32.mrb[0].mxu0
        %v718 = vadd.f32 %v522, %v717
        %v719 = vpop.f32.mrb[0].mxu0
        %720 = vmatprep.mubr.bf16.mxu0 0
        %721 = vmatmul.mubr.bf16.gmra.mrb[0].mxu0 %v627
        %v722 = vpop.f32.mrb[0].mxu0
        %v723 = vadd.f32 %v522, %v722
        %v724 = vpop.f32.mrb[0].mxu0
        %v725 = vpop.f32.mrb[0].mxu0
        %v726 = vadd.f32 %v522, %v725
        %v727 = vpop.f32.mrb[0].mxu0
        %728 = vmatprep.mubr.bf16.mxu0 0
        %729 = vmatmul.mubr.bf16.gmra.mrb[0].mxu0 %v630
        %v730 = vpop.f32.mrb[0].mxu0
        %v731 = vadd.f32 %v522, %v730
        %v732 = vpop.f32.mrb[0].mxu0
        %v733 = vpop.f32.mrb[0].mxu0
        %v734 = vadd.f32 %v522, %v733
        %v735 = vpop.f32.mrb[0].mxu0
        %736 = vmatprep.mubr.bf16.mxu0 0
        %737 = vmatmul.mubr.bf16.gmra.mrb[0].mxu0 %v633
        %v738 = vpop.f32.mrb[0].mxu0
        %v739 = vadd.f32 %v522, %v738
        %v740 = vpop.f32.mrb[0].mxu0
        %v741 = vpop.f32.mrb[0].mxu0
        %v742 = vadd.f32 %v522, %v741
        %v743 = vpop.f32.mrb[0].mxu0
        %744 = vmatprep.mubr.bf16.mxu0 0
        %745 = vmatmul.mubr.bf16.gmra.mrb[0].mxu0 %v636
        %v746 = vpop.f32.mrb[0].mxu0
        %v747 = vadd.f32 %v522, %v746
        %v748 = vpop.f32.mrb[0].mxu0
        %v749 = vpop.f32.mrb[0].mxu0
        %v750 = vadd.f32 %v522, %v749
        %v751 = vpop.f32.mrb[0].mxu0
        %752 = vmatprep.mubr.bf16.mxu0 0
        %753 = vmatmul.mubr.bf16.gmra.mrb[0].mxu0 %v639
        %v754 = vpop.f32.mrb[0].mxu0
        %v755 = vadd.f32 %v522, %v754
        %v756 = vpop.f32.mrb[0].mxu0
        %v757 = vpop.f32.mrb[0].mxu0
        %v758 = vadd.f32 %v522, %v757
        %v759 = vpop.f32.mrb[0].mxu0
        %760 = vmatprep.mubr.bf16.mxu0 0
        %761 = vmatmul.mubr.bf16.gmra.mrb[0].mxu0 %v642
        %v762 = vpop.f32.mrb[0].mxu0
        %v763 = vadd.f32 %v522, %v762
        %v764 = vpop.f32.mrb[0].mxu0
        %v765 = vpop.f32.mrb[0].mxu0
        %v766 = vadd.f32 %v522, %v765
        %v767 = vpop.f32.mrb[0].mxu0
        %768 = vmatprep.mubr.bf16.mxu0 0
        %769 = vmatmul.mubr.bf16.gmra.mrb[0].mxu0 %v645
        %v770 = vpop.f32.mrb[0].mxu0
        %v771 = vadd.f32 %v522, %v770
        %v772 = vpop.f32.mrb[0].mxu0
        %v773 = vpop.f32.mrb[0].mxu0
        %v774 = vadd.f32 %v522, %v773
        %v775 = vpop.f32.mrb[0].mxu0
        %776 = vmatprep.mubr.bf16.mxu0 0
        %777 = vmatmul.mubr.bf16.gmra.mrb[0].mxu0 %v648
        %v778 = vpop.f32.mrb[0].mxu0
        %v779 = vadd.f32 %v522, %v778
        %v780 = vpop.f32.mrb[0].mxu0
        %v781 = vpop.f32.mrb[0].mxu0
        %v782 = vadd.f32 %v522, %v781
        %v783 = vpop.f32.mrb[0].mxu0
        %784 = vmatprep.mubr.bf16.mxu0 0
        %785 = vmatmul.mubr.bf16.gmra.mrb[0].mxu0 %v651
        %v786 = vpop.f32.mrb[0].mxu0
        %v787 = vadd.f32 %v522, %v786
        %v788 = vpop.f32.mrb[0].mxu0
        %v789 = vpop.f32.mrb[0].mxu0
        %v790 = vadd.f32 %v522, %v789
        %v791 = vpop.f32.mrb[0].mxu0
        %792 = vmatprep.mubr.bf16.mxu0 0
        %793 = vmatmul.mubr.bf16.gmra.mrb[0].mxu0 %v654
        %v794 = vpop.f32.mrb[0].mxu0
        %v795 = vadd.f32 %v522, %v794
        %v796 = vpop.f32.mrb[0].mxu0
        %v797 = vpop.f32.mrb[0].mxu0
        %v798 = vadd.f32 %v522, %v797
        %v799 = vpop.f32.mrb[0].mxu0
        %800 = vmatprep.mubr.bf16.mxu0 0
        %801 = vmatmul.mubr.bf16.gmra.mrb[0].mxu0 %v657
        %v802 = vpop.f32.mrb[0].mxu0
        %v803 = vadd.f32 %v522, %v802
        %v804 = vpop.f32.mrb[0].mxu0
        %v805 = vpop.f32.mrb[0].mxu0
        %v806 = vadd.f32 %v522, %v805
        %v807 = vpop.f32.mrb[0].mxu0
        %808 = vmatprep.mubr.bf16.mxu0 0
        %809 = vmatmul.mubr.bf16.gmra.mrb[0].mxu0 %v660
        %v810 = vpop.f32.mrb[0].mxu0
        %v811 = vadd.f32 %v522, %v810
        %v812 = vpop.f32.mrb[0].mxu0
        %v813 = vpop.f32.mrb[0].mxu0
        %v814 = vadd.f32 %v522, %v813
        %v815 = vpop.f32.mrb[0].mxu0
        %816 = vmatprep.mubr.bf16.mxu0 0
        %817 = vmatmul.mubr.bf16.gmra.mrb[0].mxu0 %v663
        %v818 = vpop.f32.mrb[0].mxu0
        %v819 = vadd.f32 %v522, %v818
        %v820 = vpop.f32.mrb[0].mxu0
        %v821 = vpop.f32.mrb[0].mxu0
        %v822 = vadd.f32 %v522, %v821
        %v823 = vpop.f32.mrb[0].mxu0
        %824 = vmatprep.mubr.bf16.mxu0 0
        %825 = vmatmul.mubr.bf16.gmra.mrb[0].mxu0 %v666
        %v826 = vpop.f32.mrb[0].mxu0
        %v827 = vadd.f32 %v522, %v826
        %v828 = vpop.f32.mrb[0].mxu0
        %v829 = vpop.f32.mrb[0].mxu0
        %v830 = vadd.f32 %v522, %v829
        %v831 = vpop.f32.mrb[0].mxu0
        %832 = vdwg.mxu0
        %v833 = vmax.f32 %v707, 0.0
        %v834 = vmax.f32 %v710, 0.0
        %v835 = vmax.f32 %v715, 0.0
        %v836 = vmax.f32 %v718, 0.0
        %v837 = vmax.f32 %v723, 0.0
        %v838 = vmax.f32 %v726, 0.0
        %v839 = vmax.f32 %v731, 0.0
        %v840 = vmax.f32 %v734, 0.0
        %v841 = vmax.f32 %v739, 0.0
        %v842 = vmax.f32 %v742, 0.0
        %v843 = vmax.f32 %v747, 0.0
        %v844 = vmax.f32 %v750, 0.0
        %v845 = vmax.f32 %v755, 0.0
        %v846 = vmax.f32 %v758, 0.0
        %v847 = vmax.f32 %v763, 0.0
        %v848 = vmax.f32 %v766, 0.0
        %v849 = vmax.f32 %v771, 0.0
        %v850 = vmax.f32 %v774, 0.0
        %v851 = vmax.f32 %v779, 0.0
        %v852 = vmax.f32 %v782, 0.0
        %v853 = vmax.f32 %v787, 0.0
        %v854 = vmax.f32 %v790, 0.0
        %v855 = vmax.f32 %v795, 0.0
        %v856 = vmax.f32 %v798, 0.0
        %v857 = vmax.f32 %v803, 0.0
        %v858 = vmax.f32 %v806, 0.0
        %v859 = vmax.f32 %v811, 0.0
        %v860 = vmax.f32 %v814, 0.0
        %v861 = vmax.f32 %v819, 0.0
        %v862 = vmax.f32 %v822, 0.0
        %v863 = vmax.f32 %v827, 0.0
        %v864 = vmax.f32 %v830, 0.0
        %vm865 = vcmask 130048
        %866 = vst.msk [vmem:[%s478] sm:$0xff] %vm865, %v833
        %867 = vst.msk [vmem:[%s478 + $0x8] sm:$0xff] %vm865, %v834
        %868 = vst.msk [vmem:[%s478 + $0x10] sm:$0xff] %vm865, %v835
        %869 = vst.msk [vmem:[%s478 + $0x18] sm:$0xff] %vm865, %v836
        %870 = vst.msk [vmem:[%s478 + $0x20] sm:$0xff] %vm865, %v837
        %871 = vst.msk [vmem:[%s478 + $0x28] sm:$0xff] %vm865, %v838
        %872 = vst.msk [vmem:[%s478 + $0x30] sm:$0xff] %vm865, %v839
        %873 = vst.msk [vmem:[%s478 + $0x38] sm:$0xff] %vm865, %v840
        %874 = vst.msk [vmem:[%s478 + $0x40] sm:$0xff] %vm865, %v841
        %875 = vst.msk [vmem:[%s478 + $0x48] sm:$0xff] %vm865, %v842
        %876 = vst.msk [vmem:[%s478 + $0x50] sm:$0xff] %vm865, %v843
        %877 = vst.msk [vmem:[%s478 + $0x58] sm:$0xff] %vm865, %v844
        %878 = vst.msk [vmem:[%s478 + $0x60] sm:$0xff] %vm865, %v845
        %879 = vst.msk [vmem:[%s478 + $0x68] sm:$0xff] %vm865, %v846
        %880 = vst.msk [vmem:[%s478 + $0x70] sm:$0xff] %vm865, %v847
        %881 = vst.msk [vmem:[%s478 + $0x78] sm:$0xff] %vm865, %v848
        %882 = vst.msk [vmem:[%s478 + $0x80] sm:$0xff] %vm865, %v849
        %883 = vst.msk [vmem:[%s478 + $0x88] sm:$0xff] %vm865, %v850
        %884 = vst.msk [vmem:[%s478 + $0x90] sm:$0xff] %vm865, %v851
        %885 = vst.msk [vmem:[%s478 + $0x98] sm:$0xff] %vm865, %v852
        %886 = vst.msk [vmem:[%s478 + $0xa0] sm:$0xff] %vm865, %v853
        %887 = vst.msk [vmem:[%s478 + $0xa8] sm:$0xff] %vm865, %v854
        %888 = vst.msk [vmem:[%s478 + $0xb0] sm:$0xff] %vm865, %v855
        %889 = vst.msk [vmem:[%s478 + $0xb8] sm:$0xff] %vm865, %v856
        %890 = vst.msk [vmem:[%s478 + $0xc0] sm:$0xff] %vm865, %v857
        %891 = vst.msk [vmem:[%s478 + $0xc8] sm:$0xff] %vm865, %v858
        %892 = vst.msk [vmem:[%s478 + $0xd0] sm:$0xff] %vm865, %v859
        %893 = vst.msk [vmem:[%s478 + $0xd8] sm:$0xff] %vm865, %v860
        %894 = vst.msk [vmem:[%s478 + $0xe0] sm:$0xff] %vm865, %v861
        %895 = vst.msk [vmem:[%s478 + $0xe8] sm:$0xff] %vm865, %v862
        %896 = vst.msk [vmem:[%s478 + $0xf0] sm:$0xff] %vm865, %v863
        %897 = vst.msk [vmem:[%s478 + $0xf8] sm:$0xff] %vm865, %v864
        %v930 = vcombine.high %v833, %v833
        %v932 = vunpack.c.l.s4 1983009808
        %v933 = vunpack.c.0.s8 %v932
        %v934 = vlaneseq
        %v935 = vshrl.u32 %v934, 7
        %v936 = vsub.s32 %v933, %v935
        %v937 = vrot.slane %v833, %v936
        %v939 = vunpack.c.l.s4 1983009808
        %v940 = vunpack.c.0.s8 %v939
        %v941 = vlaneseq
        %v942 = vshrl.u32 %v941, 7
        %v943 = vsub.s32 %v940, %v942
        %v944 = vrot.slane %v930, %v943
        %v945 = vcombine.high %v937, %v937
        %v946 = vcombine.high %v944, %v944
        %v947 = vcombine.high %v834, %v834
        %v949 = vunpack.c.l.s4 1983009808
        %v950 = vunpack.c.0.s8 %v949
        %v951 = vlaneseq
        %v952 = vshrl.u32 %v951, 7
        %v953 = vsub.s32 %v950, %v952
        %v954 = vrot.slane %v834, %v953
        %v956 = vunpack.c.l.s4 1983009808
        %v957 = vunpack.c.0.s8 %v956
        %v958 = vlaneseq
        %v959 = vshrl.u32 %v958, 7
        %v960 = vsub.s32 %v957, %v959
        %v961 = vrot.slane %v947, %v960
        %v962 = vcombine.high %v954, %v954
        %v963 = vcombine.high %v961, %v961
        %v964 = vcombine.high %v835, %v835
        %v966 = vunpack.c.l.s4 1983009808
        %v967 = vunpack.c.0.s8 %v966
        %v968 = vlaneseq
        %v969 = vshrl.u32 %v968, 7
        %v970 = vsub.s32 %v967, %v969
        %v971 = vrot.slane %v835, %v970
        %v973 = vunpack.c.l.s4 1983009808
        %v974 = vunpack.c.0.s8 %v973
        %v975 = vlaneseq
        %v976 = vshrl.u32 %v975, 7
        %v977 = vsub.s32 %v974, %v976
        %v978 = vrot.slane %v964, %v977
        %v979 = vcombine.high %v971, %v971
        %v980 = vcombine.high %v978, %v978
        %v981 = vcombine.high %v836, %v836
        %v983 = vunpack.c.l.s4 1983009808
        %v984 = vunpack.c.0.s8 %v983
        %v985 = vlaneseq
        %v986 = vshrl.u32 %v985, 7
        %v987 = vsub.s32 %v984, %v986
        %v988 = vrot.slane %v836, %v987
        %v990 = vunpack.c.l.s4 1983009808
        %v991 = vunpack.c.0.s8 %v990
        %v992 = vlaneseq
        %v993 = vshrl.u32 %v992, 7
        %v994 = vsub.s32 %v991, %v993
        %v995 = vrot.slane %v981, %v994
        %v996 = vcombine.high %v988, %v988
        %v997 = vcombine.high %v995, %v995
        %v998 = vcombine.high %v837, %v837
        %v1000 = vunpack.c.l.s4 1983009808
        %v1001 = vunpack.c.0.s8 %v1000
        %v1002 = vlaneseq
        %v1003 = vshrl.u32 %v1002, 7
        %v1004 = vsub.s32 %v1001, %v1003
        %v1005 = vrot.slane %v837, %v1004
        %v1007 = vunpack.c.l.s4 1983009808
        %v1008 = vunpack.c.0.s8 %v1007
        %v1009 = vlaneseq
        %v1010 = vshrl.u32 %v1009, 7
        %v1011 = vsub.s32 %v1008, %v1010
        %v1012 = vrot.slane %v998, %v1011
        %v1013 = vcombine.high %v1005, %v1005
        %v1014 = vcombine.high %v1012, %v1012
        %v1015 = vcombine.high %v838, %v838
        %v1017 = vunpack.c.l.s4 1983009808
        %v1018 = vunpack.c.0.s8 %v1017
        %v1019 = vlaneseq
        %v1020 = vshrl.u32 %v1019, 7
        %v1021 = vsub.s32 %v1018, %v1020
        %v1022 = vrot.slane %v838, %v1021
        %v1024 = vunpack.c.l.s4 1983009808
        %v1025 = vunpack.c.0.s8 %v1024
        %v1026 = vlaneseq
        %v1027 = vshrl.u32 %v1026, 7
        %v1028 = vsub.s32 %v1025, %v1027
        %v1029 = vrot.slane %v1015, %v1028
        %v1030 = vcombine.high %v1022, %v1022
        %v1031 = vcombine.high %v1029, %v1029
        %v1032 = vcombine.high %v839, %v839
        %v1034 = vunpack.c.l.s4 1983009808
        %v1035 = vunpack.c.0.s8 %v1034
        %v1036 = vlaneseq
        %v1037 = vshrl.u32 %v1036, 7
        %v1038 = vsub.s32 %v1035, %v1037
        %v1039 = vrot.slane %v839, %v1038
        %v1041 = vunpack.c.l.s4 1983009808
        %v1042 = vunpack.c.0.s8 %v1041
        %v1043 = vlaneseq
        %v1044 = vshrl.u32 %v1043, 7
        %v1045 = vsub.s32 %v1042, %v1044
        %v1046 = vrot.slane %v1032, %v1045
        %v1047 = vcombine.high %v1039, %v1039
        %v1048 = vcombine.high %v1046, %v1046
        %v1049 = vcombine.high %v840, %v840
        %v1051 = vunpack.c.l.s4 1983009808
        %v1052 = vunpack.c.0.s8 %v1051
        %v1053 = vlaneseq
        %v1054 = vshrl.u32 %v1053, 7
        %v1055 = vsub.s32 %v1052, %v1054
        %v1056 = vrot.slane %v840, %v1055
        %v1058 = vunpack.c.l.s4 1983009808
        %v1059 = vunpack.c.0.s8 %v1058
        %v1060 = vlaneseq
        %v1061 = vshrl.u32 %v1060, 7
        %v1062 = vsub.s32 %v1059, %v1061
        %v1063 = vrot.slane %v1049, %v1062
        %v1064 = vcombine.high %v1056, %v1056
        %v1065 = vcombine.high %v1063, %v1063
        %v1066 = vcombine.high %v841, %v841
        %v1068 = vunpack.c.l.s4 1983009808
        %v1069 = vunpack.c.0.s8 %v1068
        %v1070 = vlaneseq
        %v1071 = vshrl.u32 %v1070, 7
        %v1072 = vsub.s32 %v1069, %v1071
        %v1073 = vrot.slane %v841, %v1072
        %v1075 = vunpack.c.l.s4 1983009808
        %v1076 = vunpack.c.0.s8 %v1075
        %v1077 = vlaneseq
        %v1078 = vshrl.u32 %v1077, 7
        %v1079 = vsub.s32 %v1076, %v1078
        %v1080 = vrot.slane %v1066, %v1079
        %v1081 = vcombine.high %v1073, %v1073
        %v1082 = vcombine.high %v1080, %v1080
        %v1083 = vcombine.high %v842, %v842
        %v1085 = vunpack.c.l.s4 1983009808
        %v1086 = vunpack.c.0.s8 %v1085
        %v1087 = vlaneseq
        %v1088 = vshrl.u32 %v1087, 7
        %v1089 = vsub.s32 %v1086, %v1088
        %v1090 = vrot.slane %v842, %v1089
        %v1092 = vunpack.c.l.s4 1983009808
        %v1093 = vunpack.c.0.s8 %v1092
        %v1094 = vlaneseq
        %v1095 = vshrl.u32 %v1094, 7
        %v1096 = vsub.s32 %v1093, %v1095
        %v1097 = vrot.slane %v1083, %v1096
        %v1098 = vcombine.high %v1090, %v1090
        %v1099 = vcombine.high %v1097, %v1097
        %v1100 = vcombine.high %v843, %v843
        %v1102 = vunpack.c.l.s4 1983009808
        %v1103 = vunpack.c.0.s8 %v1102
        %v1104 = vlaneseq
        %v1105 = vshrl.u32 %v1104, 7
        %v1106 = vsub.s32 %v1103, %v1105
        %v1107 = vrot.slane %v843, %v1106
        %v1109 = vunpack.c.l.s4 1983009808
        %v1110 = vunpack.c.0.s8 %v1109
        %v1111 = vlaneseq
        %v1112 = vshrl.u32 %v1111, 7
        %v1113 = vsub.s32 %v1110, %v1112
        %v1114 = vrot.slane %v1100, %v1113
        %v1115 = vcombine.high %v1107, %v1107
        %v1116 = vcombine.high %v1114, %v1114
        %v1117 = vcombine.high %v844, %v844
        %v1119 = vunpack.c.l.s4 1983009808
        %v1120 = vunpack.c.0.s8 %v1119
        %v1121 = vlaneseq
        %v1122 = vshrl.u32 %v1121, 7
        %v1123 = vsub.s32 %v1120, %v1122
        %v1124 = vrot.slane %v844, %v1123
        %v1126 = vunpack.c.l.s4 1983009808
        %v1127 = vunpack.c.0.s8 %v1126
        %v1128 = vlaneseq
        %v1129 = vshrl.u32 %v1128, 7
        %v1130 = vsub.s32 %v1127, %v1129
        %v1131 = vrot.slane %v1117, %v1130
        %v1132 = vcombine.high %v1124, %v1124
        %v1133 = vcombine.high %v1131, %v1131
        %v1134 = vcombine.high %v845, %v845
        %v1136 = vunpack.c.l.s4 1983009808
        %v1137 = vunpack.c.0.s8 %v1136
        %v1138 = vlaneseq
        %v1139 = vshrl.u32 %v1138, 7
        %v1140 = vsub.s32 %v1137, %v1139
        %v1141 = vrot.slane %v845, %v1140
        %v1143 = vunpack.c.l.s4 1983009808
        %v1144 = vunpack.c.0.s8 %v1143
        %v1145 = vlaneseq
        %v1146 = vshrl.u32 %v1145, 7
        %v1147 = vsub.s32 %v1144, %v1146
        %v1148 = vrot.slane %v1134, %v1147
        %v1149 = vcombine.high %v1141, %v1141
        %v1150 = vcombine.high %v1148, %v1148
        %v1151 = vcombine.high %v846, %v846
        %v1153 = vunpack.c.l.s4 1983009808
        %v1154 = vunpack.c.0.s8 %v1153
        %v1155 = vlaneseq
        %v1156 = vshrl.u32 %v1155, 7
        %v1157 = vsub.s32 %v1154, %v1156
        %v1158 = vrot.slane %v846, %v1157
        %v1160 = vunpack.c.l.s4 1983009808
        %v1161 = vunpack.c.0.s8 %v1160
        %v1162 = vlaneseq
        %v1163 = vshrl.u32 %v1162, 7
        %v1164 = vsub.s32 %v1161, %v1163
        %v1165 = vrot.slane %v1151, %v1164
        %v1166 = vcombine.high %v1158, %v1158
        %v1167 = vcombine.high %v1165, %v1165
        %v1168 = vcombine.high %v847, %v847
        %v1170 = vunpack.c.l.s4 1983009808
        %v1171 = vunpack.c.0.s8 %v1170
        %v1172 = vlaneseq
        %v1173 = vshrl.u32 %v1172, 7
        %v1174 = vsub.s32 %v1171, %v1173
        %v1175 = vrot.slane %v847, %v1174
        %v1177 = vunpack.c.l.s4 1983009808
        %v1178 = vunpack.c.0.s8 %v1177
        %v1179 = vlaneseq
        %v1180 = vshrl.u32 %v1179, 7
        %v1181 = vsub.s32 %v1178, %v1180
        %v1182 = vrot.slane %v1168, %v1181
        %v1183 = vcombine.high %v1175, %v1175
        %v1184 = vcombine.high %v1182, %v1182
        %v1185 = vcombine.high %v848, %v848
        %v1187 = vunpack.c.l.s4 1983009808
        %v1188 = vunpack.c.0.s8 %v1187
        %v1189 = vlaneseq
        %v1190 = vshrl.u32 %v1189, 7
        %v1191 = vsub.s32 %v1188, %v1190
        %v1192 = vrot.slane %v848, %v1191
        %v1194 = vunpack.c.l.s4 1983009808
        %v1195 = vunpack.c.0.s8 %v1194
        %v1196 = vlaneseq
        %v1197 = vshrl.u32 %v1196, 7
        %v1198 = vsub.s32 %v1195, %v1197
        %v1199 = vrot.slane %v1185, %v1198
        %v1200 = vcombine.high %v1192, %v1192
        %v1201 = vcombine.high %v1199, %v1199
        %v1202 = vcombine.high %v849, %v849
        %v1204 = vunpack.c.l.s4 1983009808
        %v1205 = vunpack.c.0.s8 %v1204
        %v1206 = vlaneseq
        %v1207 = vshrl.u32 %v1206, 7
        %v1208 = vsub.s32 %v1205, %v1207
        %v1209 = vrot.slane %v849, %v1208
        %v1211 = vunpack.c.l.s4 1983009808
        %v1212 = vunpack.c.0.s8 %v1211
        %v1213 = vlaneseq
        %v1214 = vshrl.u32 %v1213, 7
        %v1215 = vsub.s32 %v1212, %v1214
        %v1216 = vrot.slane %v1202, %v1215
        %v1217 = vcombine.high %v1209, %v1209
        %v1218 = vcombine.high %v1216, %v1216
        %v1219 = vcombine.high %v850, %v850
        %v1221 = vunpack.c.l.s4 1983009808
        %v1222 = vunpack.c.0.s8 %v1221
        %v1223 = vlaneseq
        %v1224 = vshrl.u32 %v1223, 7
        %v1225 = vsub.s32 %v1222, %v1224
        %v1226 = vrot.slane %v850, %v1225
        %v1228 = vunpack.c.l.s4 1983009808
        %v1229 = vunpack.c.0.s8 %v1228
        %v1230 = vlaneseq
        %v1231 = vshrl.u32 %v1230, 7
        %v1232 = vsub.s32 %v1229, %v1231
        %v1233 = vrot.slane %v1219, %v1232
        %v1234 = vcombine.high %v1226, %v1226
        %v1235 = vcombine.high %v1233, %v1233
        %v1236 = vcombine.high %v851, %v851
        %v1238 = vunpack.c.l.s4 1983009808
        %v1239 = vunpack.c.0.s8 %v1238
        %v1240 = vlaneseq
        %v1241 = vshrl.u32 %v1240, 7
        %v1242 = vsub.s32 %v1239, %v1241
        %v1243 = vrot.slane %v851, %v1242
        %v1245 = vunpack.c.l.s4 1983009808
        %v1246 = vunpack.c.0.s8 %v1245
        %v1247 = vlaneseq
        %v1248 = vshrl.u32 %v1247, 7
        %v1249 = vsub.s32 %v1246, %v1248
        %v1250 = vrot.slane %v1236, %v1249
        %v1251 = vcombine.high %v1243, %v1243
        %v1252 = vcombine.high %v1250, %v1250
        %v1253 = vcombine.high %v852, %v852
        %v1255 = vunpack.c.l.s4 1983009808
        %v1256 = vunpack.c.0.s8 %v1255
        %v1257 = vlaneseq
        %v1258 = vshrl.u32 %v1257, 7
        %v1259 = vsub.s32 %v1256, %v1258
        %v1260 = vrot.slane %v852, %v1259
        %v1262 = vunpack.c.l.s4 1983009808
        %v1263 = vunpack.c.0.s8 %v1262
        %v1264 = vlaneseq
        %v1265 = vshrl.u32 %v1264, 7
        %v1266 = vsub.s32 %v1263, %v1265
        %v1267 = vrot.slane %v1253, %v1266
        %v1268 = vcombine.high %v1260, %v1260
        %v1269 = vcombine.high %v1267, %v1267
        %v1270 = vcombine.high %v853, %v853
        %v1272 = vunpack.c.l.s4 1983009808
        %v1273 = vunpack.c.0.s8 %v1272
        %v1274 = vlaneseq
        %v1275 = vshrl.u32 %v1274, 7
        %v1276 = vsub.s32 %v1273, %v1275
        %v1277 = vrot.slane %v853, %v1276
        %v1279 = vunpack.c.l.s4 1983009808
        %v1280 = vunpack.c.0.s8 %v1279
        %v1281 = vlaneseq
        %v1282 = vshrl.u32 %v1281, 7
        %v1283 = vsub.s32 %v1280, %v1282
        %v1284 = vrot.slane %v1270, %v1283
        %v1285 = vcombine.high %v1277, %v1277
        %v1286 = vcombine.high %v1284, %v1284
        %v1287 = vcombine.high %v854, %v854
        %v1289 = vunpack.c.l.s4 1983009808
        %v1290 = vunpack.c.0.s8 %v1289
        %v1291 = vlaneseq
        %v1292 = vshrl.u32 %v1291, 7
        %v1293 = vsub.s32 %v1290, %v1292
        %v1294 = vrot.slane %v854, %v1293
        %v1296 = vunpack.c.l.s4 1983009808
        %v1297 = vunpack.c.0.s8 %v1296
        %v1298 = vlaneseq
        %v1299 = vshrl.u32 %v1298, 7
        %v1300 = vsub.s32 %v1297, %v1299
        %v1301 = vrot.slane %v1287, %v1300
        %v1302 = vcombine.high %v1294, %v1294
        %v1303 = vcombine.high %v1301, %v1301
        %v1304 = vcombine.high %v855, %v855
        %v1306 = vunpack.c.l.s4 1983009808
        %v1307 = vunpack.c.0.s8 %v1306
        %v1308 = vlaneseq
        %v1309 = vshrl.u32 %v1308, 7
        %v1310 = vsub.s32 %v1307, %v1309
        %v1311 = vrot.slane %v855, %v1310
        %v1313 = vunpack.c.l.s4 1983009808
        %v1314 = vunpack.c.0.s8 %v1313
        %v1315 = vlaneseq
        %v1316 = vshrl.u32 %v1315, 7
        %v1317 = vsub.s32 %v1314, %v1316
        %v1318 = vrot.slane %v1304, %v1317
        %v1319 = vcombine.high %v1311, %v1311
        %v1320 = vcombine.high %v1318, %v1318
        %v1321 = vcombine.high %v856, %v856
        %v1323 = vunpack.c.l.s4 1983009808
        %v1324 = vunpack.c.0.s8 %v1323
        %v1325 = vlaneseq
        %v1326 = vshrl.u32 %v1325, 7
        %v1327 = vsub.s32 %v1324, %v1326
        %v1328 = vrot.slane %v856, %v1327
        %v1330 = vunpack.c.l.s4 1983009808
        %v1331 = vunpack.c.0.s8 %v1330
        %v1332 = vlaneseq
        %v1333 = vshrl.u32 %v1332, 7
        %v1334 = vsub.s32 %v1331, %v1333
        %v1335 = vrot.slane %v1321, %v1334
        %v1336 = vcombine.high %v1328, %v1328
        %v1337 = vcombine.high %v1335, %v1335
        %v1338 = vcombine.high %v857, %v857
        %v1340 = vunpack.c.l.s4 1983009808
        %v1341 = vunpack.c.0.s8 %v1340
        %v1342 = vlaneseq
        %v1343 = vshrl.u32 %v1342, 7
        %v1344 = vsub.s32 %v1341, %v1343
        %v1345 = vrot.slane %v857, %v1344
        %v1347 = vunpack.c.l.s4 1983009808
        %v1348 = vunpack.c.0.s8 %v1347
        %v1349 = vlaneseq
        %v1350 = vshrl.u32 %v1349, 7
        %v1351 = vsub.s32 %v1348, %v1350
        %v1352 = vrot.slane %v1338, %v1351
        %v1353 = vcombine.high %v1345, %v1345
        %v1354 = vcombine.high %v1352, %v1352
        %v1355 = vcombine.high %v858, %v858
        %v1357 = vunpack.c.l.s4 1983009808
        %v1358 = vunpack.c.0.s8 %v1357
        %v1359 = vlaneseq
        %v1360 = vshrl.u32 %v1359, 7
        %v1361 = vsub.s32 %v1358, %v1360
        %v1362 = vrot.slane %v858, %v1361
        %v1364 = vunpack.c.l.s4 1983009808
        %v1365 = vunpack.c.0.s8 %v1364
        %v1366 = vlaneseq
        %v1367 = vshrl.u32 %v1366, 7
        %v1368 = vsub.s32 %v1365, %v1367
        %v1369 = vrot.slane %v1355, %v1368
        %v1370 = vcombine.high %v1362, %v1362
        %v1371 = vcombine.high %v1369, %v1369
        %v1372 = vcombine.high %v859, %v859
        %v1374 = vunpack.c.l.s4 1983009808
        %v1375 = vunpack.c.0.s8 %v1374
        %v1376 = vlaneseq
        %v1377 = vshrl.u32 %v1376, 7
        %v1378 = vsub.s32 %v1375, %v1377
        %v1379 = vrot.slane %v859, %v1378
        %v1381 = vunpack.c.l.s4 1983009808
        %v1382 = vunpack.c.0.s8 %v1381
        %v1383 = vlaneseq
        %v1384 = vshrl.u32 %v1383, 7
        %v1385 = vsub.s32 %v1382, %v1384
        %v1386 = vrot.slane %v1372, %v1385
        %v1387 = vcombine.high %v1379, %v1379
        %v1388 = vcombine.high %v1386, %v1386
        %v1389 = vcombine.high %v860, %v860
        %v1391 = vunpack.c.l.s4 1983009808
        %v1392 = vunpack.c.0.s8 %v1391
        %v1393 = vlaneseq
        %v1394 = vshrl.u32 %v1393, 7
        %v1395 = vsub.s32 %v1392, %v1394
        %v1396 = vrot.slane %v860, %v1395
        %v1398 = vunpack.c.l.s4 1983009808
        %v1399 = vunpack.c.0.s8 %v1398
        %v1400 = vlaneseq
        %v1401 = vshrl.u32 %v1400, 7
        %v1402 = vsub.s32 %v1399, %v1401
        %v1403 = vrot.slane %v1389, %v1402
        %v1404 = vcombine.high %v1396, %v1396
        %v1405 = vcombine.high %v1403, %v1403
        %v1406 = vcombine.high %v861, %v861
        %v1408 = vunpack.c.l.s4 1983009808
        %v1409 = vunpack.c.0.s8 %v1408
        %v1410 = vlaneseq
        %v1411 = vshrl.u32 %v1410, 7
        %v1412 = vsub.s32 %v1409, %v1411
        %v1413 = vrot.slane %v861, %v1412
        %v1415 = vunpack.c.l.s4 1983009808
        %v1416 = vunpack.c.0.s8 %v1415
        %v1417 = vlaneseq
        %v1418 = vshrl.u32 %v1417, 7
        %v1419 = vsub.s32 %v1416, %v1418
        %v1420 = vrot.slane %v1406, %v1419
        %v1421 = vcombine.high %v1413, %v1413
        %v1422 = vcombine.high %v1420, %v1420
        %v1423 = vcombine.high %v862, %v862
        %v1425 = vunpack.c.l.s4 1983009808
        %v1426 = vunpack.c.0.s8 %v1425
        %v1427 = vlaneseq
        %v1428 = vshrl.u32 %v1427, 7
        %v1429 = vsub.s32 %v1426, %v1428
        %v1430 = vrot.slane %v862, %v1429
        %v1432 = vunpack.c.l.s4 1983009808
        %v1433 = vunpack.c.0.s8 %v1432
        %v1434 = vlaneseq
        %v1435 = vshrl.u32 %v1434, 7
        %v1436 = vsub.s32 %v1433, %v1435
        %v1437 = vrot.slane %v1423, %v1436
        %v1438 = vcombine.high %v1430, %v1430
        %v1439 = vcombine.high %v1437, %v1437
        %v1440 = vcombine.high %v863, %v863
        %v1442 = vunpack.c.l.s4 1983009808
        %v1443 = vunpack.c.0.s8 %v1442
        %v1444 = vlaneseq
        %v1445 = vshrl.u32 %v1444, 7
        %v1446 = vsub.s32 %v1443, %v1445
        %v1447 = vrot.slane %v863, %v1446
        %v1449 = vunpack.c.l.s4 1983009808
        %v1450 = vunpack.c.0.s8 %v1449
        %v1451 = vlaneseq
        %v1452 = vshrl.u32 %v1451, 7
        %v1453 = vsub.s32 %v1450, %v1452
        %v1454 = vrot.slane %v1440, %v1453
        %v1455 = vcombine.high %v1447, %v1447
        %v1456 = vcombine.high %v1454, %v1454
        %v1457 = vcombine.high %v864, %v864
        %v1459 = vunpack.c.l.s4 1983009808
        %v1460 = vunpack.c.0.s8 %v1459
        %v1461 = vlaneseq
        %v1462 = vshrl.u32 %v1461, 7
        %v1463 = vsub.s32 %v1460, %v1462
        %v1464 = vrot.slane %v864, %v1463
        %v1466 = vunpack.c.l.s4 1983009808
        %v1467 = vunpack.c.0.s8 %v1466
        %v1468 = vlaneseq
        %v1469 = vshrl.u32 %v1468, 7
        %v1470 = vsub.s32 %v1467, %v1469
        %v1471 = vrot.slane %v1457, %v1470
        %v1472 = vcombine.high %v1464, %v1464
        %v1473 = vcombine.high %v1471, %v1471
        %vm1602 = vcmask 123904
        %1603 = vst.msk [vmem:[#allocation2] sm:$0x3] %vm1602, %v937
        %1604 = vst.msk [vmem:[#allocation2 + $0x2] sm:$0x3] %vm1602, %v945
        %1605 = vst.msk [vmem:[#allocation2 + $0x4] sm:$0x3] %vm1602, %v944
        %1606 = vst.msk [vmem:[#allocation2 + $0x6] sm:$0x3] %vm1602, %v946
        %1607 = vst.msk [vmem:[#allocation2 + $0x8] sm:$0x3] %vm1602, %v954
        %1608 = vst.msk [vmem:[#allocation2 + $0xa] sm:$0x3] %vm1602, %v962
        %1609 = vst.msk [vmem:[#allocation2 + $0xc] sm:$0x3] %vm1602, %v961
        %1610 = vst.msk [vmem:[#allocation2 + $0xe] sm:$0x3] %vm1602, %v963
        %1611 = vst.msk [vmem:[#allocation2 + $0x10] sm:$0x3] %vm1602, %v971
        %1612 = vst.msk [vmem:[#allocation2 + $0x12] sm:$0x3] %vm1602, %v979
        %1613 = vst.msk [vmem:[#allocation2 + $0x14] sm:$0x3] %vm1602, %v978
        %1614 = vst.msk [vmem:[#allocation2 + $0x16] sm:$0x3] %vm1602, %v980
        %1615 = vst.msk [vmem:[#allocation2 + $0x18] sm:$0x3] %vm1602, %v988
        %1616 = vst.msk [vmem:[#allocation2 + $0x1a] sm:$0x3] %vm1602, %v996
        %1617 = vst.msk [vmem:[#allocation2 + $0x1c] sm:$0x3] %vm1602, %v995
        %1618 = vst.msk [vmem:[#allocation2 + $0x1e] sm:$0x3] %vm1602, %v997
        %1619 = vst.msk [vmem:[#allocation2 + $0x20] sm:$0x3] %vm1602, %v1005
        %1620 = vst.msk [vmem:[#allocation2 + $0x22] sm:$0x3] %vm1602, %v1013
        %1621 = vst.msk [vmem:[#allocation2 + $0x24] sm:$0x3] %vm1602, %v1012
        %1622 = vst.msk [vmem:[#allocation2 + $0x26] sm:$0x3] %vm1602, %v1014
        %1623 = vst.msk [vmem:[#allocation2 + $0x28] sm:$0x3] %vm1602, %v1022
        %1624 = vst.msk [vmem:[#allocation2 + $0x2a] sm:$0x3] %vm1602, %v1030
        %1625 = vst.msk [vmem:[#allocation2 + $0x2c] sm:$0x3] %vm1602, %v1029
        %1626 = vst.msk [vmem:[#allocation2 + $0x2e] sm:$0x3] %vm1602, %v1031
        %1627 = vst.msk [vmem:[#allocation2 + $0x30] sm:$0x3] %vm1602, %v1039
        %1628 = vst.msk [vmem:[#allocation2 + $0x32] sm:$0x3] %vm1602, %v1047
        %1629 = vst.msk [vmem:[#allocation2 + $0x34] sm:$0x3] %vm1602, %v1046
        %1630 = vst.msk [vmem:[#allocation2 + $0x36] sm:$0x3] %vm1602, %v1048
        %1631 = vst.msk [vmem:[#allocation2 + $0x38] sm:$0x3] %vm1602, %v1056
        %1632 = vst.msk [vmem:[#allocation2 + $0x3a] sm:$0x3] %vm1602, %v1064
        %1633 = vst.msk [vmem:[#allocation2 + $0x3c] sm:$0x3] %vm1602, %v1063
        %1634 = vst.msk [vmem:[#allocation2 + $0x3e] sm:$0x3] %vm1602, %v1065
        %1635 = vst.msk [vmem:[#allocation2 + $0x40] sm:$0x3] %vm1602, %v1073
        %1636 = vst.msk [vmem:[#allocation2 + $0x42] sm:$0x3] %vm1602, %v1081
        %1637 = vst.msk [vmem:[#allocation2 + $0x44] sm:$0x3] %vm1602, %v1080
        %1638 = vst.msk [vmem:[#allocation2 + $0x46] sm:$0x3] %vm1602, %v1082
        %1639 = vst.msk [vmem:[#allocation2 + $0x48] sm:$0x3] %vm1602, %v1090
        %1640 = vst.msk [vmem:[#allocation2 + $0x4a] sm:$0x3] %vm1602, %v1098
        %1641 = vst.msk [vmem:[#allocation2 + $0x4c] sm:$0x3] %vm1602, %v1097
        %1642 = vst.msk [vmem:[#allocation2 + $0x4e] sm:$0x3] %vm1602, %v1099
        %1643 = vst.msk [vmem:[#allocation2 + $0x50] sm:$0x3] %vm1602, %v1107
        %1644 = vst.msk [vmem:[#allocation2 + $0x52] sm:$0x3] %vm1602, %v1115
        %1645 = vst.msk [vmem:[#allocation2 + $0x54] sm:$0x3] %vm1602, %v1114
        %1646 = vst.msk [vmem:[#allocation2 + $0x56] sm:$0x3] %vm1602, %v1116
        %1647 = vst.msk [vmem:[#allocation2 + $0x58] sm:$0x3] %vm1602, %v1124
        %1648 = vst.msk [vmem:[#allocation2 + $0x5a] sm:$0x3] %vm1602, %v1132
        %1649 = vst.msk [vmem:[#allocation2 + $0x5c] sm:$0x3] %vm1602, %v1131
        %1650 = vst.msk [vmem:[#allocation2 + $0x5e] sm:$0x3] %vm1602, %v1133
        %1651 = vst.msk [vmem:[#allocation2 + $0x60] sm:$0x3] %vm1602, %v1141
        %1652 = vst.msk [vmem:[#allocation2 + $0x62] sm:$0x3] %vm1602, %v1149
        %1653 = vst.msk [vmem:[#allocation2 + $0x64] sm:$0x3] %vm1602, %v1148
        %1654 = vst.msk [vmem:[#allocation2 + $0x66] sm:$0x3] %vm1602, %v1150
        %1655 = vst.msk [vmem:[#allocation2 + $0x68] sm:$0x3] %vm1602, %v1158
        %1656 = vst.msk [vmem:[#allocation2 + $0x6a] sm:$0x3] %vm1602, %v1166
        %1657 = vst.msk [vmem:[#allocation2 + $0x6c] sm:$0x3] %vm1602, %v1165
        %1658 = vst.msk [vmem:[#allocation2 + $0x6e] sm:$0x3] %vm1602, %v1167
        %1659 = vst.msk [vmem:[#allocation2 + $0x70] sm:$0x3] %vm1602, %v1175
        %1660 = vst.msk [vmem:[#allocation2 + $0x72] sm:$0x3] %vm1602, %v1183
        %1661 = vst.msk [vmem:[#allocation2 + $0x74] sm:$0x3] %vm1602, %v1182
        %1662 = vst.msk [vmem:[#allocation2 + $0x76] sm:$0x3] %vm1602, %v1184
        %1663 = vst.msk [vmem:[#allocation2 + $0x78] sm:$0x3] %vm1602, %v1192
        %1664 = vst.msk [vmem:[#allocation2 + $0x7a] sm:$0x3] %vm1602, %v1200
        %1665 = vst.msk [vmem:[#allocation2 + $0x7c] sm:$0x3] %vm1602, %v1199
        %1666 = vst.msk [vmem:[#allocation2 + $0x7e] sm:$0x3] %vm1602, %v1201
        %1667 = vst.msk [vmem:[#allocation2 + $0x80] sm:$0x3] %vm1602, %v1209
        %1668 = vst.msk [vmem:[#allocation2 + $0x82] sm:$0x3] %vm1602, %v1217
        %1669 = vst.msk [vmem:[#allocation2 + $0x84] sm:$0x3] %vm1602, %v1216
        %1670 = vst.msk [vmem:[#allocation2 + $0x86] sm:$0x3] %vm1602, %v1218
        %1671 = vst.msk [vmem:[#allocation2 + $0x88] sm:$0x3] %vm1602, %v1226
        %1672 = vst.msk [vmem:[#allocation2 + $0x8a] sm:$0x3] %vm1602, %v1234
        %1673 = vst.msk [vmem:[#allocation2 + $0x8c] sm:$0x3] %vm1602, %v1233
        %1674 = vst.msk [vmem:[#allocation2 + $0x8e] sm:$0x3] %vm1602, %v1235
        %1675 = vst.msk [vmem:[#allocation2 + $0x90] sm:$0x3] %vm1602, %v1243
        %1676 = vst.msk [vmem:[#allocation2 + $0x92] sm:$0x3] %vm1602, %v1251
        %1677 = vst.msk [vmem:[#allocation2 + $0x94] sm:$0x3] %vm1602, %v1250
        %1678 = vst.msk [vmem:[#allocation2 + $0x96] sm:$0x3] %vm1602, %v1252
        %1679 = vst.msk [vmem:[#allocation2 + $0x98] sm:$0x3] %vm1602, %v1260
        %1680 = vst.msk [vmem:[#allocation2 + $0x9a] sm:$0x3] %vm1602, %v1268
        %1681 = vst.msk [vmem:[#allocation2 + $0x9c] sm:$0x3] %vm1602, %v1267
        %1682 = vst.msk [vmem:[#allocation2 + $0x9e] sm:$0x3] %vm1602, %v1269
        %1683 = vst.msk [vmem:[#allocation2 + $0xa0] sm:$0x3] %vm1602, %v1277
        %1684 = vst.msk [vmem:[#allocation2 + $0xa2] sm:$0x3] %vm1602, %v1285
        %1685 = vst.msk [vmem:[#allocation2 + $0xa4] sm:$0x3] %vm1602, %v1284
        %1686 = vst.msk [vmem:[#allocation2 + $0xa6] sm:$0x3] %vm1602, %v1286
        %1687 = vst.msk [vmem:[#allocation2 + $0xa8] sm:$0x3] %vm1602, %v1294
        %1688 = vst.msk [vmem:[#allocation2 + $0xaa] sm:$0x3] %vm1602, %v1302
        %1689 = vst.msk [vmem:[#allocation2 + $0xac] sm:$0x3] %vm1602, %v1301
        %1690 = vst.msk [vmem:[#allocation2 + $0xae] sm:$0x3] %vm1602, %v1303
        %1691 = vst.msk [vmem:[#allocation2 + $0xb0] sm:$0x3] %vm1602, %v1311
        %1692 = vst.msk [vmem:[#allocation2 + $0xb2] sm:$0x3] %vm1602, %v1319
        %1693 = vst.msk [vmem:[#allocation2 + $0xb4] sm:$0x3] %vm1602, %v1318
        %1694 = vst.msk [vmem:[#allocation2 + $0xb6] sm:$0x3] %vm1602, %v1320
        %1695 = vst.msk [vmem:[#allocation2 + $0xb8] sm:$0x3] %vm1602, %v1328
        %1696 = vst.msk [vmem:[#allocation2 + $0xba] sm:$0x3] %vm1602, %v1336
        %1697 = vst.msk [vmem:[#allocation2 + $0xbc] sm:$0x3] %vm1602, %v1335
        %1698 = vst.msk [vmem:[#allocation2 + $0xbe] sm:$0x3] %vm1602, %v1337
        %1699 = vst.msk [vmem:[#allocation2 + $0xc0] sm:$0x3] %vm1602, %v1345
        %1700 = vst.msk [vmem:[#allocation2 + $0xc2] sm:$0x3] %vm1602, %v1353
        %1701 = vst.msk [vmem:[#allocation2 + $0xc4] sm:$0x3] %vm1602, %v1352
        %1702 = vst.msk [vmem:[#allocation2 + $0xc6] sm:$0x3] %vm1602, %v1354
        %1703 = vst.msk [vmem:[#allocation2 + $0xc8] sm:$0x3] %vm1602, %v1362
        %1704 = vst.msk [vmem:[#allocation2 + $0xca] sm:$0x3] %vm1602, %v1370
        %1705 = vst.msk [vmem:[#allocation2 + $0xcc] sm:$0x3] %vm1602, %v1369
        %1706 = vst.msk [vmem:[#allocation2 + $0xce] sm:$0x3] %vm1602, %v1371
        %1707 = vst.msk [vmem:[#allocation2 + $0xd0] sm:$0x3] %vm1602, %v1379
        %1708 = vst.msk [vmem:[#allocation2 + $0xd2] sm:$0x3] %vm1602, %v1387
        %1709 = vst.msk [vmem:[#allocation2 + $0xd4] sm:$0x3] %vm1602, %v1386
        %1710 = vst.msk [vmem:[#allocation2 + $0xd6] sm:$0x3] %vm1602, %v1388
        %1711 = vst.msk [vmem:[#allocation2 + $0xd8] sm:$0x3] %vm1602, %v1396
        %1712 = vst.msk [vmem:[#allocation2 + $0xda] sm:$0x3] %vm1602, %v1404
        %1713 = vst.msk [vmem:[#allocation2 + $0xdc] sm:$0x3] %vm1602, %v1403
        %1714 = vst.msk [vmem:[#allocation2 + $0xde] sm:$0x3] %vm1602, %v1405
        %1715 = vst.msk [vmem:[#allocation2 + $0xe0] sm:$0x3] %vm1602, %v1413
        %1716 = vst.msk [vmem:[#allocation2 + $0xe2] sm:$0x3] %vm1602, %v1421
        %1717 = vst.msk [vmem:[#allocation2 + $0xe4] sm:$0x3] %vm1602, %v1420
        %1718 = vst.msk [vmem:[#allocation2 + $0xe6] sm:$0x3] %vm1602, %v1422
        %1719 = vst.msk [vmem:[#allocation2 + $0xe8] sm:$0x3] %vm1602, %v1430
        %1720 = vst.msk [vmem:[#allocation2 + $0xea] sm:$0x3] %vm1602, %v1438
        %1721 = vst.msk [vmem:[#allocation2 + $0xec] sm:$0x3] %vm1602, %v1437
        %1722 = vst.msk [vmem:[#allocation2 + $0xee] sm:$0x3] %vm1602, %v1439
        %1723 = vst.msk [vmem:[#allocation2 + $0xf0] sm:$0x3] %vm1602, %v1447
        %1724 = vst.msk [vmem:[#allocation2 + $0xf2] sm:$0x3] %vm1602, %v1455
        %1725 = vst.msk [vmem:[#allocation2 + $0xf4] sm:$0x3] %vm1602, %v1454
        %1726 = vst.msk [vmem:[#allocation2 + $0xf6] sm:$0x3] %vm1602, %v1456
        %1727 = vst.msk [vmem:[#allocation2 + $0xf8] sm:$0x3] %vm1602, %v1464
        %1728 = vst.msk [vmem:[#allocation2 + $0xfa] sm:$0x3] %vm1602, %v1472
        %1729 = vst.msk [vmem:[#allocation2 + $0xfc] sm:$0x3] %vm1602, %v1471
        %1730 = vst.msk [vmem:[#allocation2 + $0xfe] sm:$0x3] %vm1602, %v1473
        %v1731 = vld [vmem:[#allocation2] sm:$0x1]
        %v1732 = vld [vmem:[#allocation2 + $0x2] sm:$0x1]
        %v1733 = vld [vmem:[#allocation2 + $0x4] sm:$0x1]
        %v1734 = vld [vmem:[#allocation2 + $0x6] sm:$0x1]
        %v1735 = vld [vmem:[#allocation2 + $0x8] sm:$0x1]
        %v1736 = vld [vmem:[#allocation2 + $0xa] sm:$0x1]
        %v1737 = vld [vmem:[#allocation2 + $0xc] sm:$0x1]
        %v1738 = vld [vmem:[#allocation2 + $0xe] sm:$0x1]
        %v1739 = vld [vmem:[#allocation2 + $0x20] sm:$0x1]
        %v1740 = vld [vmem:[#allocation2 + $0x22] sm:$0x1]
        %v1741 = vld [vmem:[#allocation2 + $0x24] sm:$0x1]
        %v1742 = vld [vmem:[#allocation2 + $0x26] sm:$0x1]
        %v1743 = vld [vmem:[#allocation2 + $0x28] sm:$0x1]
        %v1744 = vld [vmem:[#allocation2 + $0x2a] sm:$0x1]
        %v1745 = vld [vmem:[#allocation2 + $0x2c] sm:$0x1]
        %v1746 = vld [vmem:[#allocation2 + $0x2e] sm:$0x1]
        %v1747 = vld [vmem:[#allocation2 + $0x40] sm:$0x1]
        %v1748 = vld [vmem:[#allocation2 + $0x42] sm:$0x1]
        %v1749 = vld [vmem:[#allocation2 + $0x44] sm:$0x1]
        %v1750 = vld [vmem:[#allocation2 + $0x46] sm:$0x1]
        %v1751 = vld [vmem:[#allocation2 + $0x48] sm:$0x1]
        %v1752 = vld [vmem:[#allocation2 + $0x4a] sm:$0x1]
        %v1753 = vld [vmem:[#allocation2 + $0x4c] sm:$0x1]
        %v1754 = vld [vmem:[#allocation2 + $0x4e] sm:$0x1]
        %v1755 = vld [vmem:[#allocation2 + $0x60] sm:$0x1]
        %v1756 = vld [vmem:[#allocation2 + $0x62] sm:$0x1]
        %v1757 = vld [vmem:[#allocation2 + $0x64] sm:$0x1]
        %v1758 = vld [vmem:[#allocation2 + $0x66] sm:$0x1]
        %v1759 = vld [vmem:[#allocation2 + $0x68] sm:$0x1]
        %v1760 = vld [vmem:[#allocation2 + $0x6a] sm:$0x1]
        %v1761 = vld [vmem:[#allocation2 + $0x6c] sm:$0x1]
        %v1762 = vld [vmem:[#allocation2 + $0x6e] sm:$0x1]
        %v1763 = vld [vmem:[#allocation2 + $0x80] sm:$0x1]
        %v1764 = vld [vmem:[#allocation2 + $0x82] sm:$0x1]
        %v1765 = vld [vmem:[#allocation2 + $0x84] sm:$0x1]
        %v1766 = vld [vmem:[#allocation2 + $0x86] sm:$0x1]
        %v1767 = vld [vmem:[#allocation2 + $0x88] sm:$0x1]
        %v1768 = vld [vmem:[#allocation2 + $0x8a] sm:$0x1]
        %v1769 = vld [vmem:[#allocation2 + $0x8c] sm:$0x1]
        %v1770 = vld [vmem:[#allocation2 + $0x8e] sm:$0x1]
        %v1771 = vld [vmem:[#allocation2 + $0xa0] sm:$0x1]
        %v1772 = vld [vmem:[#allocation2 + $0xa2] sm:$0x1]
        %v1773 = vld [vmem:[#allocation2 + $0xa4] sm:$0x1]
        %v1774 = vld [vmem:[#allocation2 + $0xa6] sm:$0x1]
        %v1775 = vld [vmem:[#allocation2 + $0xa8] sm:$0x1]
        %v1776 = vld [vmem:[#allocation2 + $0xaa] sm:$0x1]
        %v1777 = vld [vmem:[#allocation2 + $0xac] sm:$0x1]
        %v1778 = vld [vmem:[#allocation2 + $0xae] sm:$0x1]
        %v1779 = vld [vmem:[#allocation2 + $0xc0] sm:$0x1]
        %v1780 = vld [vmem:[#allocation2 + $0xc2] sm:$0x1]
        %v1781 = vld [vmem:[#allocation2 + $0xc4] sm:$0x1]
        %v1782 = vld [vmem:[#allocation2 + $0xc6] sm:$0x1]
        %v1783 = vld [vmem:[#allocation2 + $0xc8] sm:$0x1]
        %v1784 = vld [vmem:[#allocation2 + $0xca] sm:$0x1]
        %v1785 = vld [vmem:[#allocation2 + $0xcc] sm:$0x1]
        %v1786 = vld [vmem:[#allocation2 + $0xce] sm:$0x1]
        %v1787 = vld [vmem:[#allocation2 + $0xe0] sm:$0x1]
        %v1788 = vld [vmem:[#allocation2 + $0xe2] sm:$0x1]
        %v1789 = vld [vmem:[#allocation2 + $0xe4] sm:$0x1]
        %v1790 = vld [vmem:[#allocation2 + $0xe6] sm:$0x1]
        %v1791 = vld [vmem:[#allocation2 + $0xe8] sm:$0x1]
        %v1792 = vld [vmem:[#allocation2 + $0xea] sm:$0x1]
        %v1793 = vld [vmem:[#allocation2 + $0xec] sm:$0x1]
        %v1794 = vld [vmem:[#allocation2 + $0xee] sm:$0x1]
        %v1795 = vld [vmem:[#allocation2 + $0x1] sm:$0x1]
        %v1796 = vld [vmem:[#allocation2 + $0x3] sm:$0x1]
        %v1797 = vld [vmem:[#allocation2 + $0x5] sm:$0x1]
        %v1798 = vld [vmem:[#allocation2 + $0x7] sm:$0x1]
        %v1799 = vld [vmem:[#allocation2 + $0x9] sm:$0x1]
        %v1800 = vld [vmem:[#allocation2 + $0xb] sm:$0x1]
        %v1801 = vld [vmem:[#allocation2 + $0xd] sm:$0x1]
        %v1802 = vld [vmem:[#allocation2 + $0xf] sm:$0x1]
        %v1803 = vld [vmem:[#allocation2 + $0x21] sm:$0x1]
        %v1804 = vld [vmem:[#allocation2 + $0x23] sm:$0x1]
        %v1805 = vld [vmem:[#allocation2 + $0x25] sm:$0x1]
        %v1806 = vld [vmem:[#allocation2 + $0x27] sm:$0x1]
        %v1807 = vld [vmem:[#allocation2 + $0x29] sm:$0x1]
        %v1808 = vld [vmem:[#allocation2 + $0x2b] sm:$0x1]
        %v1809 = vld [vmem:[#allocation2 + $0x2d] sm:$0x1]
        %v1810 = vld [vmem:[#allocation2 + $0x2f] sm:$0x1]
        %v1811 = vld [vmem:[#allocation2 + $0x41] sm:$0x1]
        %v1812 = vld [vmem:[#allocation2 + $0x43] sm:$0x1]
        %v1813 = vld [vmem:[#allocation2 + $0x45] sm:$0x1]
        %v1814 = vld [vmem:[#allocation2 + $0x47] sm:$0x1]
        %v1815 = vld [vmem:[#allocation2 + $0x49] sm:$0x1]
        %v1816 = vld [vmem:[#allocation2 + $0x4b] sm:$0x1]
        %v1817 = vld [vmem:[#allocation2 + $0x4d] sm:$0x1]
        %v1818 = vld [vmem:[#allocation2 + $0x4f] sm:$0x1]
        %v1819 = vld [vmem:[#allocation2 + $0x61] sm:$0x1]
        %v1820 = vld [vmem:[#allocation2 + $0x63] sm:$0x1]
        %v1821 = vld [vmem:[#allocation2 + $0x65] sm:$0x1]
        %v1822 = vld [vmem:[#allocation2 + $0x67] sm:$0x1]
        %v1823 = vld [vmem:[#allocation2 + $0x69] sm:$0x1]
        %v1824 = vld [vmem:[#allocation2 + $0x6b] sm:$0x1]
        %v1825 = vld [vmem:[#allocation2 + $0x6d] sm:$0x1]
        %v1826 = vld [vmem:[#allocation2 + $0x6f] sm:$0x1]
        %v1827 = vld [vmem:[#allocation2 + $0x81] sm:$0x1]
        %v1828 = vld [vmem:[#allocation2 + $0x83] sm:$0x1]
        %v1829 = vld [vmem:[#allocation2 + $0x85] sm:$0x1]
        %v1830 = vld [vmem:[#allocation2 + $0x87] sm:$0x1]
        %v1831 = vld [vmem:[#allocation2 + $0x89] sm:$0x1]
        %v1832 = vld [vmem:[#allocation2 + $0x8b] sm:$0x1]
        %v1833 = vld [vmem:[#allocation2 + $0x8d] sm:$0x1]
        %v1834 = vld [vmem:[#allocation2 + $0x8f] sm:$0x1]
        %v1835 = vld [vmem:[#allocation2 + $0xa1] sm:$0x1]
        %v1836 = vld [vmem:[#allocation2 + $0xa3] sm:$0x1]
        %v1837 = vld [vmem:[#allocation2 + $0xa5] sm:$0x1]
        %v1838 = vld [vmem:[#allocation2 + $0xa7] sm:$0x1]
        %v1839 = vld [vmem:[#allocation2 + $0xa9] sm:$0x1]
        %v1840 = vld [vmem:[#allocation2 + $0xab] sm:$0x1]
        %v1841 = vld [vmem:[#allocation2 + $0xad] sm:$0x1]
        %v1842 = vld [vmem:[#allocation2 + $0xaf] sm:$0x1]
        %v1843 = vld [vmem:[#allocation2 + $0xc1] sm:$0x1]
        %v1844 = vld [vmem:[#allocation2 + $0xc3] sm:$0x1]
        %v1845 = vld [vmem:[#allocation2 + $0xc5] sm:$0x1]
        %v1846 = vld [vmem:[#allocation2 + $0xc7] sm:$0x1]
        %v1847 = vld [vmem:[#allocation2 + $0xc9] sm:$0x1]
        %v1848 = vld [vmem:[#allocation2 + $0xcb] sm:$0x1]
        %v1849 = vld [vmem:[#allocation2 + $0xcd] sm:$0x1]
        %v1850 = vld [vmem:[#allocation2 + $0xcf] sm:$0x1]
        %v1851 = vld [vmem:[#allocation2 + $0xe1] sm:$0x1]
        %v1852 = vld [vmem:[#allocation2 + $0xe3] sm:$0x1]
        %v1853 = vld [vmem:[#allocation2 + $0xe5] sm:$0x1]
        %v1854 = vld [vmem:[#allocation2 + $0xe7] sm:$0x1]
        %v1855 = vld [vmem:[#allocation2 + $0xe9] sm:$0x1]
        %v1856 = vld [vmem:[#allocation2 + $0xeb] sm:$0x1]
        %v1857 = vld [vmem:[#allocation2 + $0xed] sm:$0x1]
        %v1858 = vld [vmem:[#allocation2 + $0xef] sm:$0x1]
        %vm1859 = vcmp.gt.f32.partialorder %v1795, %v1731
        %vm1860 = vcmp.gt.f32.partialorder %v1796, %v1732
        %vm1861 = vcmp.gt.f32.partialorder %v1797, %v1733
        %vm1862 = vcmp.gt.f32.partialorder %v1798, %v1734
        %vm1863 = vcmp.gt.f32.partialorder %v1799, %v1735
        %vm1864 = vcmp.gt.f32.partialorder %v1800, %v1736
        %vm1865 = vcmp.gt.f32.partialorder %v1801, %v1737
        %vm1866 = vcmp.gt.f32.partialorder %v1802, %v1738
        %vm1867 = vcmp.gt.f32.partialorder %v1803, %v1739
        %vm1868 = vcmp.gt.f32.partialorder %v1804, %v1740
        %vm1869 = vcmp.gt.f32.partialorder %v1805, %v1741
        %vm1870 = vcmp.gt.f32.partialorder %v1806, %v1742
        %vm1871 = vcmp.gt.f32.partialorder %v1807, %v1743
        %vm1872 = vcmp.gt.f32.partialorder %v1808, %v1744
        %vm1873 = vcmp.gt.f32.partialorder %v1809, %v1745
        %vm1874 = vcmp.gt.f32.partialorder %v1810, %v1746
        %vm1875 = vcmp.gt.f32.partialorder %v1811, %v1747
        %vm1876 = vcmp.gt.f32.partialorder %v1812, %v1748
        %vm1877 = vcmp.gt.f32.partialorder %v1813, %v1749
        %vm1878 = vcmp.gt.f32.partialorder %v1814, %v1750
        %vm1879 = vcmp.gt.f32.partialorder %v1815, %v1751
        %vm1880 = vcmp.gt.f32.partialorder %v1816, %v1752
        %vm1881 = vcmp.gt.f32.partialorder %v1817, %v1753
        %vm1882 = vcmp.gt.f32.partialorder %v1818, %v1754
        %vm1883 = vcmp.gt.f32.partialorder %v1819, %v1755
        %vm1884 = vcmp.gt.f32.partialorder %v1820, %v1756
        %vm1885 = vcmp.gt.f32.partialorder %v1821, %v1757
        %vm1886 = vcmp.gt.f32.partialorder %v1822, %v1758
        %vm1887 = vcmp.gt.f32.partialorder %v1823, %v1759
        %vm1888 = vcmp.gt.f32.partialorder %v1824, %v1760
        %vm1889 = vcmp.gt.f32.partialorder %v1825, %v1761
        %vm1890 = vcmp.gt.f32.partialorder %v1826, %v1762
        %vm1891 = vcmp.gt.f32.partialorder %v1827, %v1763
        %vm1892 = vcmp.gt.f32.partialorder %v1828, %v1764
        %vm1893 = vcmp.gt.f32.partialorder %v1829, %v1765
        %vm1894 = vcmp.gt.f32.partialorder %v1830, %v1766
        %vm1895 = vcmp.gt.f32.partialorder %v1831, %v1767
        %vm1896 = vcmp.gt.f32.partialorder %v1832, %v1768
        %vm1897 = vcmp.gt.f32.partialorder %v1833, %v1769
        %vm1898 = vcmp.gt.f32.partialorder %v1834, %v1770
        %vm1899 = vcmp.gt.f32.partialorder %v1835, %v1771
        %vm1900 = vcmp.gt.f32.partialorder %v1836, %v1772
        %vm1901 = vcmp.gt.f32.partialorder %v1837, %v1773
        %vm1902 = vcmp.gt.f32.partialorder %v1838, %v1774
        %vm1903 = vcmp.gt.f32.partialorder %v1839, %v1775
        %vm1904 = vcmp.gt.f32.partialorder %v1840, %v1776
        %vm1905 = vcmp.gt.f32.partialorder %v1841, %v1777
        %vm1906 = vcmp.gt.f32.partialorder %v1842, %v1778
        %vm1907 = vcmp.gt.f32.partialorder %v1843, %v1779
        %vm1908 = vcmp.gt.f32.partialorder %v1844, %v1780
        %vm1909 = vcmp.gt.f32.partialorder %v1845, %v1781
        %vm1910 = vcmp.gt.f32.partialorder %v1846, %v1782
        %vm1911 = vcmp.gt.f32.partialorder %v1847, %v1783
        %vm1912 = vcmp.gt.f32.partialorder %v1848, %v1784
        %vm1913 = vcmp.gt.f32.partialorder %v1849, %v1785
        %vm1914 = vcmp.gt.f32.partialorder %v1850, %v1786
        %vm1915 = vcmp.gt.f32.partialorder %v1851, %v1787
        %vm1916 = vcmp.gt.f32.partialorder %v1852, %v1788
        %vm1917 = vcmp.gt.f32.partialorder %v1853, %v1789
        %vm1918 = vcmp.gt.f32.partialorder %v1854, %v1790
        %vm1919 = vcmp.gt.f32.partialorder %v1855, %v1791
        %vm1920 = vcmp.gt.f32.partialorder %v1856, %v1792
        %vm1921 = vcmp.gt.f32.partialorder %v1857, %v1793
        %vm1922 = vcmp.gt.f32.partialorder %v1858, %v1794
        %v1923 = vsel %vm1859, %v1795, %v1731
        %v1924 = vsel %vm1860, %v1796, %v1732
        %v1925 = vsel %vm1861, %v1797, %v1733
        %v1926 = vsel %vm1862, %v1798, %v1734
        %v1927 = vsel %vm1863, %v1799, %v1735
        %v1928 = vsel %vm1864, %v1800, %v1736
        %v1929 = vsel %vm1865, %v1801, %v1737
        %v1930 = vsel %vm1866, %v1802, %v1738
        %v1931 = vsel %vm1867, %v1803, %v1739
        %v1932 = vsel %vm1868, %v1804, %v1740
        %v1933 = vsel %vm1869, %v1805, %v1741
        %v1934 = vsel %vm1870, %v1806, %v1742
        %v1935 = vsel %vm1871, %v1807, %v1743
        %v1936 = vsel %vm1872, %v1808, %v1744
        %v1937 = vsel %vm1873, %v1809, %v1745
        %v1938 = vsel %vm1874, %v1810, %v1746
        %v1939 = vsel %vm1875, %v1811, %v1747
        %v1940 = vsel %vm1876, %v1812, %v1748
        %v1941 = vsel %vm1877, %v1813, %v1749
        %v1942 = vsel %vm1878, %v1814, %v1750
        %v1943 = vsel %vm1879, %v1815, %v1751
        %v1944 = vsel %vm1880, %v1816, %v1752
        %v1945 = vsel %vm1881, %v1817, %v1753
        %v1946 = vsel %vm1882, %v1818, %v1754
        %v1947 = vsel %vm1883, %v1819, %v1755
        %v1948 = vsel %vm1884, %v1820, %v1756
        %v1949 = vsel %vm1885, %v1821, %v1757
        %v1950 = vsel %vm1886, %v1822, %v1758
        %v1951 = vsel %vm1887, %v1823, %v1759
        %v1952 = vsel %vm1888, %v1824, %v1760
        %v1953 = vsel %vm1889, %v1825, %v1761
        %v1954 = vsel %vm1890, %v1826, %v1762
        %v1955 = vsel %vm1891, %v1827, %v1763
        %v1956 = vsel %vm1892, %v1828, %v1764
        %v1957 = vsel %vm1893, %v1829, %v1765
        %v1958 = vsel %vm1894, %v1830, %v1766
        %v1959 = vsel %vm1895, %v1831, %v1767
        %v1960 = vsel %vm1896, %v1832, %v1768
        %v1961 = vsel %vm1897, %v1833, %v1769
        %v1962 = vsel %vm1898, %v1834, %v1770
        %v1963 = vsel %vm1899, %v1835, %v1771
        %v1964 = vsel %vm1900, %v1836, %v1772
        %v1965 = vsel %vm1901, %v1837, %v1773
        %v1966 = vsel %vm1902, %v1838, %v1774
        %v1967 = vsel %vm1903, %v1839, %v1775
        %v1968 = vsel %vm1904, %v1840, %v1776
        %v1969 = vsel %vm1905, %v1841, %v1777
        %v1970 = vsel %vm1906, %v1842, %v1778
        %v1971 = vsel %vm1907, %v1843, %v1779
        %v1972 = vsel %vm1908, %v1844, %v1780
        %v1973 = vsel %vm1909, %v1845, %v1781
        %v1974 = vsel %vm1910, %v1846, %v1782
        %v1975 = vsel %vm1911, %v1847, %v1783
        %v1976 = vsel %vm1912, %v1848, %v1784
        %v1977 = vsel %vm1913, %v1849, %v1785
        %v1978 = vsel %vm1914, %v1850, %v1786
        %v1979 = vsel %vm1915, %v1851, %v1787
        %v1980 = vsel %vm1916, %v1852, %v1788
        %v1981 = vsel %vm1917, %v1853, %v1789
        %v1982 = vsel %vm1918, %v1854, %v1790
        %v1983 = vsel %vm1919, %v1855, %v1791
        %v1984 = vsel %vm1920, %v1856, %v1792
        %v1985 = vsel %vm1921, %v1857, %v1793
        %v1986 = vsel %vm1922, %v1858, %v1794
        %v1987 = vsel %vm1859, 1, 0
        %v1988 = vsel %vm1860, 1, 0
        %v1989 = vsel %vm1861, 1, 0
        %v1990 = vsel %vm1862, 1, 0
        %v1991 = vsel %vm1863, 1, 0
        %v1992 = vsel %vm1864, 1, 0
        %v1993 = vsel %vm1865, 1, 0
        %v1994 = vsel %vm1866, 1, 0
        %v1995 = vsel %vm1867, 1, 0
        %v1996 = vsel %vm1868, 1, 0
        %v1997 = vsel %vm1869, 1, 0
        %v1998 = vsel %vm1870, 1, 0
        %v1999 = vsel %vm1871, 1, 0
        %v2000 = vsel %vm1872, 1, 0
        %v2001 = vsel %vm1873, 1, 0
        %v2002 = vsel %vm1874, 1, 0
        %v2003 = vsel %vm1875, 1, 0
        %v2004 = vsel %vm1876, 1, 0
        %v2005 = vsel %vm1877, 1, 0
        %v2006 = vsel %vm1878, 1, 0
        %v2007 = vsel %vm1879, 1, 0
        %v2008 = vsel %vm1880, 1, 0
        %v2009 = vsel %vm1881, 1, 0
        %v2010 = vsel %vm1882, 1, 0
        %v2011 = vsel %vm1883, 1, 0
        %v2012 = vsel %vm1884, 1, 0
        %v2013 = vsel %vm1885, 1, 0
        %v2014 = vsel %vm1886, 1, 0
        %v2015 = vsel %vm1887, 1, 0
        %v2016 = vsel %vm1888, 1, 0
        %v2017 = vsel %vm1889, 1, 0
        %v2018 = vsel %vm1890, 1, 0
        %v2019 = vsel %vm1891, 1, 0
        %v2020 = vsel %vm1892, 1, 0
        %v2021 = vsel %vm1893, 1, 0
        %v2022 = vsel %vm1894, 1, 0
        %v2023 = vsel %vm1895, 1, 0
        %v2024 = vsel %vm1896, 1, 0
        %v2025 = vsel %vm1897, 1, 0
        %v2026 = vsel %vm1898, 1, 0
        %v2027 = vsel %vm1899, 1, 0
        %v2028 = vsel %vm1900, 1, 0
        %v2029 = vsel %vm1901, 1, 0
        %v2030 = vsel %vm1902, 1, 0
        %v2031 = vsel %vm1903, 1, 0
        %v2032 = vsel %vm1904, 1, 0
        %v2033 = vsel %vm1905, 1, 0
        %v2034 = vsel %vm1906, 1, 0
        %v2035 = vsel %vm1907, 1, 0
        %v2036 = vsel %vm1908, 1, 0
        %v2037 = vsel %vm1909, 1, 0
        %v2038 = vsel %vm1910, 1, 0
        %v2039 = vsel %vm1911, 1, 0
        %v2040 = vsel %vm1912, 1, 0
        %v2041 = vsel %vm1913, 1, 0
        %v2042 = vsel %vm1914, 1, 0
        %v2043 = vsel %vm1915, 1, 0
        %v2044 = vsel %vm1916, 1, 0
        %v2045 = vsel %vm1917, 1, 0
        %v2046 = vsel %vm1918, 1, 0
        %v2047 = vsel %vm1919, 1, 0
        %v2048 = vsel %vm1920, 1, 0
        %v2049 = vsel %vm1921, 1, 0
        %v2050 = vsel %vm1922, 1, 0
        %s2051 = scalar_lea.vmem [#allocation2], 16
        %v2052 = vld [vmem:[%s2051] sm:$0x1]
        %v2053 = vld [vmem:[%s2051 + $0x2] sm:$0x1]
        %v2054 = vld [vmem:[%s2051 + $0x4] sm:$0x1]
        %v2055 = vld [vmem:[%s2051 + $0x6] sm:$0x1]
        %v2056 = vld [vmem:[%s2051 + $0x8] sm:$0x1]
        %v2057 = vld [vmem:[%s2051 + $0xa] sm:$0x1]
        %v2058 = vld [vmem:[%s2051 + $0xc] sm:$0x1]
        %v2059 = vld [vmem:[%s2051 + $0xe] sm:$0x1]
        %v2060 = vld [vmem:[%s2051 + $0x20] sm:$0x1]
        %v2061 = vld [vmem:[%s2051 + $0x22] sm:$0x1]
        %v2062 = vld [vmem:[%s2051 + $0x24] sm:$0x1]
        %v2063 = vld [vmem:[%s2051 + $0x26] sm:$0x1]
        %v2064 = vld [vmem:[%s2051 + $0x28] sm:$0x1]
        %v2065 = vld [vmem:[%s2051 + $0x2a] sm:$0x1]
        %v2066 = vld [vmem:[%s2051 + $0x2c] sm:$0x1]
        %v2067 = vld [vmem:[%s2051 + $0x2e] sm:$0x1]
        %v2068 = vld [vmem:[%s2051 + $0x40] sm:$0x1]
        %v2069 = vld [vmem:[%s2051 + $0x42] sm:$0x1]
        %v2070 = vld [vmem:[%s2051 + $0x44] sm:$0x1]
        %v2071 = vld [vmem:[%s2051 + $0x46] sm:$0x1]
        %v2072 = vld [vmem:[%s2051 + $0x48] sm:$0x1]
        %v2073 = vld [vmem:[%s2051 + $0x4a] sm:$0x1]
        %v2074 = vld [vmem:[%s2051 + $0x4c] sm:$0x1]
        %v2075 = vld [vmem:[%s2051 + $0x4e] sm:$0x1]
        %v2076 = vld [vmem:[%s2051 + $0x60] sm:$0x1]
        %v2077 = vld [vmem:[%s2051 + $0x62] sm:$0x1]
        %v2078 = vld [vmem:[%s2051 + $0x64] sm:$0x1]
        %v2079 = vld [vmem:[%s2051 + $0x66] sm:$0x1]
        %v2080 = vld [vmem:[%s2051 + $0x68] sm:$0x1]
        %v2081 = vld [vmem:[%s2051 + $0x6a] sm:$0x1]
        %v2082 = vld [vmem:[%s2051 + $0x6c] sm:$0x1]
        %v2083 = vld [vmem:[%s2051 + $0x6e] sm:$0x1]
        %v2084 = vld [vmem:[%s2051 + $0x80] sm:$0x1]
        %v2085 = vld [vmem:[%s2051 + $0x82] sm:$0x1]
        %v2086 = vld [vmem:[%s2051 + $0x84] sm:$0x1]
        %v2087 = vld [vmem:[%s2051 + $0x86] sm:$0x1]
        %v2088 = vld [vmem:[%s2051 + $0x88] sm:$0x1]
        %v2089 = vld [vmem:[%s2051 + $0x8a] sm:$0x1]
        %v2090 = vld [vmem:[%s2051 + $0x8c] sm:$0x1]
        %v2091 = vld [vmem:[%s2051 + $0x8e] sm:$0x1]
        %v2092 = vld [vmem:[%s2051 + $0xa0] sm:$0x1]
        %v2093 = vld [vmem:[%s2051 + $0xa2] sm:$0x1]
        %v2094 = vld [vmem:[%s2051 + $0xa4] sm:$0x1]
        %v2095 = vld [vmem:[%s2051 + $0xa6] sm:$0x1]
        %v2096 = vld [vmem:[%s2051 + $0xa8] sm:$0x1]
        %v2097 = vld [vmem:[%s2051 + $0xaa] sm:$0x1]
        %v2098 = vld [vmem:[%s2051 + $0xac] sm:$0x1]
        %v2099 = vld [vmem:[%s2051 + $0xae] sm:$0x1]
        %v2100 = vld [vmem:[%s2051 + $0xc0] sm:$0x1]
        %v2101 = vld [vmem:[%s2051 + $0xc2] sm:$0x1]
        %v2102 = vld [vmem:[%s2051 + $0xc4] sm:$0x1]
        %v2103 = vld [vmem:[%s2051 + $0xc6] sm:$0x1]
        %v2104 = vld [vmem:[%s2051 + $0xc8] sm:$0x1]
        %v2105 = vld [vmem:[%s2051 + $0xca] sm:$0x1]
        %v2106 = vld [vmem:[%s2051 + $0xcc] sm:$0x1]
        %v2107 = vld [vmem:[%s2051 + $0xce] sm:$0x1]
        %v2108 = vld [vmem:[%s2051 + $0xe0] sm:$0x1]
        %v2109 = vld [vmem:[%s2051 + $0xe2] sm:$0x1]
        %v2110 = vld [vmem:[%s2051 + $0xe4] sm:$0x1]
        %v2111 = vld [vmem:[%s2051 + $0xe6] sm:$0x1]
        %v2112 = vld [vmem:[%s2051 + $0xe8] sm:$0x1]
        %v2113 = vld [vmem:[%s2051 + $0xea] sm:$0x1]
        %v2114 = vld [vmem:[%s2051 + $0xec] sm:$0x1]
        %v2115 = vld [vmem:[%s2051 + $0xee] sm:$0x1]
        %vm2116 = vcmp.gt.f32.partialorder %v2052, %v1923
        %vm2117 = vcmp.gt.f32.partialorder %v2053, %v1924
        %vm2118 = vcmp.gt.f32.partialorder %v2054, %v1925
        %vm2119 = vcmp.gt.f32.partialorder %v2055, %v1926
        %vm2120 = vcmp.gt.f32.partialorder %v2056, %v1927
        %vm2121 = vcmp.gt.f32.partialorder %v2057, %v1928
        %vm2122 = vcmp.gt.f32.partialorder %v2058, %v1929
        %vm2123 = vcmp.gt.f32.partialorder %v2059, %v1930
        %vm2124 = vcmp.gt.f32.partialorder %v2060, %v1931
        %vm2125 = vcmp.gt.f32.partialorder %v2061, %v1932
        %vm2126 = vcmp.gt.f32.partialorder %v2062, %v1933
        %vm2127 = vcmp.gt.f32.partialorder %v2063, %v1934
        %vm2128 = vcmp.gt.f32.partialorder %v2064, %v1935
        %vm2129 = vcmp.gt.f32.partialorder %v2065, %v1936
        %vm2130 = vcmp.gt.f32.partialorder %v2066, %v1937
        %vm2131 = vcmp.gt.f32.partialorder %v2067, %v1938
        %vm2132 = vcmp.gt.f32.partialorder %v2068, %v1939
        %vm2133 = vcmp.gt.f32.partialorder %v2069, %v1940
        %vm2134 = vcmp.gt.f32.partialorder %v2070, %v1941
        %vm2135 = vcmp.gt.f32.partialorder %v2071, %v1942
        %vm2136 = vcmp.gt.f32.partialorder %v2072, %v1943
        %vm2137 = vcmp.gt.f32.partialorder %v2073, %v1944
        %vm2138 = vcmp.gt.f32.partialorder %v2074, %v1945
        %vm2139 = vcmp.gt.f32.partialorder %v2075, %v1946
        %vm2140 = vcmp.gt.f32.partialorder %v2076, %v1947
        %vm2141 = vcmp.gt.f32.partialorder %v2077, %v1948
        %vm2142 = vcmp.gt.f32.partialorder %v2078, %v1949
        %vm2143 = vcmp.gt.f32.partialorder %v2079, %v1950
        %vm2144 = vcmp.gt.f32.partialorder %v2080, %v1951
        %vm2145 = vcmp.gt.f32.partialorder %v2081, %v1952
        %vm2146 = vcmp.gt.f32.partialorder %v2082, %v1953
        %vm2147 = vcmp.gt.f32.partialorder %v2083, %v1954
        %vm2148 = vcmp.gt.f32.partialorder %v2084, %v1955
        %vm2149 = vcmp.gt.f32.partialorder %v2085, %v1956
        %vm2150 = vcmp.gt.f32.partialorder %v2086, %v1957
        %vm2151 = vcmp.gt.f32.partialorder %v2087, %v1958
        %vm2152 = vcmp.gt.f32.partialorder %v2088, %v1959
        %vm2153 = vcmp.gt.f32.partialorder %v2089, %v1960
        %vm2154 = vcmp.gt.f32.partialorder %v2090, %v1961
        %vm2155 = vcmp.gt.f32.partialorder %v2091, %v1962
        %vm2156 = vcmp.gt.f32.partialorder %v2092, %v1963
        %vm2157 = vcmp.gt.f32.partialorder %v2093, %v1964
        %vm2158 = vcmp.gt.f32.partialorder %v2094, %v1965
        %vm2159 = vcmp.gt.f32.partialorder %v2095, %v1966
        %vm2160 = vcmp.gt.f32.partialorder %v2096, %v1967
        %vm2161 = vcmp.gt.f32.partialorder %v2097, %v1968
        %vm2162 = vcmp.gt.f32.partialorder %v2098, %v1969
        %vm2163 = vcmp.gt.f32.partialorder %v2099, %v1970
        %vm2164 = vcmp.gt.f32.partialorder %v2100, %v1971
        %vm2165 = vcmp.gt.f32.partialorder %v2101, %v1972
        %vm2166 = vcmp.gt.f32.partialorder %v2102, %v1973
        %vm2167 = vcmp.gt.f32.partialorder %v2103, %v1974
        %vm2168 = vcmp.gt.f32.partialorder %v2104, %v1975
        %vm2169 = vcmp.gt.f32.partialorder %v2105, %v1976
        %vm2170 = vcmp.gt.f32.partialorder %v2106, %v1977
        %vm2171 = vcmp.gt.f32.partialorder %v2107, %v1978
        %vm2172 = vcmp.gt.f32.partialorder %v2108, %v1979
        %vm2173 = vcmp.gt.f32.partialorder %v2109, %v1980
        %vm2174 = vcmp.gt.f32.partialorder %v2110, %v1981
        %vm2175 = vcmp.gt.f32.partialorder %v2111, %v1982
        %vm2176 = vcmp.gt.f32.partialorder %v2112, %v1983
        %vm2177 = vcmp.gt.f32.partialorder %v2113, %v1984
        %vm2178 = vcmp.gt.f32.partialorder %v2114, %v1985
        %vm2179 = vcmp.gt.f32.partialorder %v2115, %v1986
        %v2180 = vsel %vm2116, %v2052, %v1923
        %v2181 = vsel %vm2117, %v2053, %v1924
        %v2182 = vsel %vm2118, %v2054, %v1925
        %v2183 = vsel %vm2119, %v2055, %v1926
        %v2184 = vsel %vm2120, %v2056, %v1927
        %v2185 = vsel %vm2121, %v2057, %v1928
        %v2186 = vsel %vm2122, %v2058, %v1929
        %v2187 = vsel %vm2123, %v2059, %v1930
        %v2188 = vsel %vm2124, %v2060, %v1931
        %v2189 = vsel %vm2125, %v2061, %v1932
        %v2190 = vsel %vm2126, %v2062, %v1933
        %v2191 = vsel %vm2127, %v2063, %v1934
        %v2192 = vsel %vm2128, %v2064, %v1935
        %v2193 = vsel %vm2129, %v2065, %v1936
        %v2194 = vsel %vm2130, %v2066, %v1937
        %v2195 = vsel %vm2131, %v2067, %v1938
        %v2196 = vsel %vm2132, %v2068, %v1939
        %v2197 = vsel %vm2133, %v2069, %v1940
        %v2198 = vsel %vm2134, %v2070, %v1941
        %v2199 = vsel %vm2135, %v2071, %v1942
        %v2200 = vsel %vm2136, %v2072, %v1943
        %v2201 = vsel %vm2137, %v2073, %v1944
        %v2202 = vsel %vm2138, %v2074, %v1945
        %v2203 = vsel %vm2139, %v2075, %v1946
        %v2204 = vsel %vm2140, %v2076, %v1947
        %v2205 = vsel %vm2141, %v2077, %v1948
        %v2206 = vsel %vm2142, %v2078, %v1949
        %v2207 = vsel %vm2143, %v2079, %v1950
        %v2208 = vsel %vm2144, %v2080, %v1951
        %v2209 = vsel %vm2145, %v2081, %v1952
        %v2210 = vsel %vm2146, %v2082, %v1953
        %v2211 = vsel %vm2147, %v2083, %v1954
        %v2212 = vsel %vm2148, %v2084, %v1955
        %v2213 = vsel %vm2149, %v2085, %v1956
        %v2214 = vsel %vm2150, %v2086, %v1957
        %v2215 = vsel %vm2151, %v2087, %v1958
        %v2216 = vsel %vm2152, %v2088, %v1959
        %v2217 = vsel %vm2153, %v2089, %v1960
        %v2218 = vsel %vm2154, %v2090, %v1961
        %v2219 = vsel %vm2155, %v2091, %v1962
        %v2220 = vsel %vm2156, %v2092, %v1963
        %v2221 = vsel %vm2157, %v2093, %v1964
        %v2222 = vsel %vm2158, %v2094, %v1965
        %v2223 = vsel %vm2159, %v2095, %v1966
        %v2224 = vsel %vm2160, %v2096, %v1967
        %v2225 = vsel %vm2161, %v2097, %v1968
        %v2226 = vsel %vm2162, %v2098, %v1969
        %v2227 = vsel %vm2163, %v2099, %v1970
        %v2228 = vsel %vm2164, %v2100, %v1971
        %v2229 = vsel %vm2165, %v2101, %v1972
        %v2230 = vsel %vm2166, %v2102, %v1973
        %v2231 = vsel %vm2167, %v2103, %v1974
        %v2232 = vsel %vm2168, %v2104, %v1975
        %v2233 = vsel %vm2169, %v2105, %v1976
        %v2234 = vsel %vm2170, %v2106, %v1977
        %v2235 = vsel %vm2171, %v2107, %v1978
        %v2236 = vsel %vm2172, %v2108, %v1979
        %v2237 = vsel %vm2173, %v2109, %v1980
        %v2238 = vsel %vm2174, %v2110, %v1981
        %v2239 = vsel %vm2175, %v2111, %v1982
        %v2240 = vsel %vm2176, %v2112, %v1983
        %v2241 = vsel %vm2177, %v2113, %v1984
        %v2242 = vsel %vm2178, %v2114, %v1985
        %v2243 = vsel %vm2179, %v2115, %v1986
        %v2244 = vsel %vm2116, 16, %v1987
        %v2245 = vsel %vm2117, 16, %v1988
        %v2246 = vsel %vm2118, 16, %v1989
        %v2247 = vsel %vm2119, 16, %v1990
        %v2248 = vsel %vm2120, 16, %v1991
        %v2249 = vsel %vm2121, 16, %v1992
        %v2250 = vsel %vm2122, 16, %v1993
        %v2251 = vsel %vm2123, 16, %v1994
        %v2252 = vsel %vm2124, 16, %v1995
        %v2253 = vsel %vm2125, 16, %v1996
        %v2254 = vsel %vm2126, 16, %v1997
        %v2255 = vsel %vm2127, 16, %v1998
        %v2256 = vsel %vm2128, 16, %v1999
        %v2257 = vsel %vm2129, 16, %v2000
        %v2258 = vsel %vm2130, 16, %v2001
        %v2259 = vsel %vm2131, 16, %v2002
        %v2260 = vsel %vm2132, 16, %v2003
        %v2261 = vsel %vm2133, 16, %v2004
        %v2262 = vsel %vm2134, 16, %v2005
        %v2263 = vsel %vm2135, 16, %v2006
        %v2264 = vsel %vm2136, 16, %v2007
        %v2265 = vsel %vm2137, 16, %v2008
        %v2266 = vsel %vm2138, 16, %v2009
        %v2267 = vsel %vm2139, 16, %v2010
        %v2268 = vsel %vm2140, 16, %v2011
        %v2269 = vsel %vm2141, 16, %v2012
        %v2270 = vsel %vm2142, 16, %v2013
        %v2271 = vsel %vm2143, 16, %v2014
        %v2272 = vsel %vm2144, 16, %v2015
        %v2273 = vsel %vm2145, 16, %v2016
        %v2274 = vsel %vm2146, 16, %v2017
        %v2275 = vsel %vm2147, 16, %v2018
        %v2276 = vsel %vm2148, 16, %v2019
        %v2277 = vsel %vm2149, 16, %v2020
        %v2278 = vsel %vm2150, 16, %v2021
        %v2279 = vsel %vm2151, 16, %v2022
        %v2280 = vsel %vm2152, 16, %v2023
        %v2281 = vsel %vm2153, 16, %v2024
        %v2282 = vsel %vm2154, 16, %v2025
        %v2283 = vsel %vm2155, 16, %v2026
        %v2284 = vsel %vm2156, 16, %v2027
        %v2285 = vsel %vm2157, 16, %v2028
        %v2286 = vsel %vm2158, 16, %v2029
        %v2287 = vsel %vm2159, 16, %v2030
        %v2288 = vsel %vm2160, 16, %v2031
        %v2289 = vsel %vm2161, 16, %v2032
        %v2290 = vsel %vm2162, 16, %v2033
        %v2291 = vsel %vm2163, 16, %v2034
        %v2292 = vsel %vm2164, 16, %v2035
        %v2293 = vsel %vm2165, 16, %v2036
        %v2294 = vsel %vm2166, 16, %v2037
        %v2295 = vsel %vm2167, 16, %v2038
        %v2296 = vsel %vm2168, 16, %v2039
        %v2297 = vsel %vm2169, 16, %v2040
        %v2298 = vsel %vm2170, 16, %v2041
        %v2299 = vsel %vm2171, 16, %v2042
        %v2300 = vsel %vm2172, 16, %v2043
        %v2301 = vsel %vm2173, 16, %v2044
        %v2302 = vsel %vm2174, 16, %v2045
        %v2303 = vsel %vm2175, 16, %v2046
        %v2304 = vsel %vm2176, 16, %v2047
        %v2305 = vsel %vm2177, 16, %v2048
        %v2306 = vsel %vm2178, 16, %v2049
        %v2307 = vsel %vm2179, 16, %v2050
        %v2308 = vld [vmem:[%s2051 + $0x1] sm:$0x1]
        %v2309 = vld [vmem:[%s2051 + $0x3] sm:$0x1]
        %v2310 = vld [vmem:[%s2051 + $0x5] sm:$0x1]
        %v2311 = vld [vmem:[%s2051 + $0x7] sm:$0x1]
        %v2312 = vld [vmem:[%s2051 + $0x9] sm:$0x1]
        %v2313 = vld [vmem:[%s2051 + $0xb] sm:$0x1]
        %v2314 = vld [vmem:[%s2051 + $0xd] sm:$0x1]
        %v2315 = vld [vmem:[%s2051 + $0xf] sm:$0x1]
        %v2316 = vld [vmem:[%s2051 + $0x21] sm:$0x1]
        %v2317 = vld [vmem:[%s2051 + $0x23] sm:$0x1]
        %v2318 = vld [vmem:[%s2051 + $0x25] sm:$0x1]
        %v2319 = vld [vmem:[%s2051 + $0x27] sm:$0x1]
        %v2320 = vld [vmem:[%s2051 + $0x29] sm:$0x1]
        %v2321 = vld [vmem:[%s2051 + $0x2b] sm:$0x1]
        %v2322 = vld [vmem:[%s2051 + $0x2d] sm:$0x1]
        %v2323 = vld [vmem:[%s2051 + $0x2f] sm:$0x1]
        %v2324 = vld [vmem:[%s2051 + $0x41] sm:$0x1]
        %v2325 = vld [vmem:[%s2051 + $0x43] sm:$0x1]
        %v2326 = vld [vmem:[%s2051 + $0x45] sm:$0x1]
        %v2327 = vld [vmem:[%s2051 + $0x47] sm:$0x1]
        %v2328 = vld [vmem:[%s2051 + $0x49] sm:$0x1]
        %v2329 = vld [vmem:[%s2051 + $0x4b] sm:$0x1]
        %v2330 = vld [vmem:[%s2051 + $0x4d] sm:$0x1]
        %v2331 = vld [vmem:[%s2051 + $0x4f] sm:$0x1]
        %v2332 = vld [vmem:[%s2051 + $0x61] sm:$0x1]
        %v2333 = vld [vmem:[%s2051 + $0x63] sm:$0x1]
        %v2334 = vld [vmem:[%s2051 + $0x65] sm:$0x1]
        %v2335 = vld [vmem:[%s2051 + $0x67] sm:$0x1]
        %v2336 = vld [vmem:[%s2051 + $0x69] sm:$0x1]
        %v2337 = vld [vmem:[%s2051 + $0x6b] sm:$0x1]
        %v2338 = vld [vmem:[%s2051 + $0x6d] sm:$0x1]
        %v2339 = vld [vmem:[%s2051 + $0x6f] sm:$0x1]
        %v2340 = vld [vmem:[%s2051 + $0x81] sm:$0x1]
        %v2341 = vld [vmem:[%s2051 + $0x83] sm:$0x1]
        %v2342 = vld [vmem:[%s2051 + $0x85] sm:$0x1]
        %v2343 = vld [vmem:[%s2051 + $0x87] sm:$0x1]
        %v2344 = vld [vmem:[%s2051 + $0x89] sm:$0x1]
        %v2345 = vld [vmem:[%s2051 + $0x8b] sm:$0x1]
        %v2346 = vld [vmem:[%s2051 + $0x8d] sm:$0x1]
        %v2347 = vld [vmem:[%s2051 + $0x8f] sm:$0x1]
        %v2348 = vld [vmem:[%s2051 + $0xa1] sm:$0x1]
        %v2349 = vld [vmem:[%s2051 + $0xa3] sm:$0x1]
        %v2350 = vld [vmem:[%s2051 + $0xa5] sm:$0x1]
        %v2351 = vld [vmem:[%s2051 + $0xa7] sm:$0x1]
        %v2352 = vld [vmem:[%s2051 + $0xa9] sm:$0x1]
        %v2353 = vld [vmem:[%s2051 + $0xab] sm:$0x1]
        %v2354 = vld [vmem:[%s2051 + $0xad] sm:$0x1]
        %v2355 = vld [vmem:[%s2051 + $0xaf] sm:$0x1]
        %v2356 = vld [vmem:[%s2051 + $0xc1] sm:$0x1]
        %v2357 = vld [vmem:[%s2051 + $0xc3] sm:$0x1]
        %v2358 = vld [vmem:[%s2051 + $0xc5] sm:$0x1]
        %v2359 = vld [vmem:[%s2051 + $0xc7] sm:$0x1]
        %v2360 = vld [vmem:[%s2051 + $0xc9] sm:$0x1]
        %v2361 = vld [vmem:[%s2051 + $0xcb] sm:$0x1]
        %v2362 = vld [vmem:[%s2051 + $0xcd] sm:$0x1]
        %v2363 = vld [vmem:[%s2051 + $0xcf] sm:$0x1]
        %v2364 = vld [vmem:[%s2051 + $0xe1] sm:$0x1]
        %v2365 = vld [vmem:[%s2051 + $0xe3] sm:$0x1]
        %v2366 = vld [vmem:[%s2051 + $0xe5] sm:$0x1]
        %v2367 = vld [vmem:[%s2051 + $0xe7] sm:$0x1]
        %v2368 = vld [vmem:[%s2051 + $0xe9] sm:$0x1]
        %v2369 = vld [vmem:[%s2051 + $0xeb] sm:$0x1]
        %v2370 = vld [vmem:[%s2051 + $0xed] sm:$0x1]
        %v2371 = vld [vmem:[%s2051 + $0xef] sm:$0x1]
        %vm2372 = vcmp.gt.f32.partialorder %v2308, %v2180
        %vm2373 = vcmp.gt.f32.partialorder %v2309, %v2181
        %vm2374 = vcmp.gt.f32.partialorder %v2310, %v2182
        %vm2375 = vcmp.gt.f32.partialorder %v2311, %v2183
        %vm2376 = vcmp.gt.f32.partialorder %v2312, %v2184
        %vm2377 = vcmp.gt.f32.partialorder %v2313, %v2185
        %vm2378 = vcmp.gt.f32.partialorder %v2314, %v2186
        %vm2379 = vcmp.gt.f32.partialorder %v2315, %v2187
        %vm2380 = vcmp.gt.f32.partialorder %v2316, %v2188
        %vm2381 = vcmp.gt.f32.partialorder %v2317, %v2189
        %vm2382 = vcmp.gt.f32.partialorder %v2318, %v2190
        %vm2383 = vcmp.gt.f32.partialorder %v2319, %v2191
        %vm2384 = vcmp.gt.f32.partialorder %v2320, %v2192
        %vm2385 = vcmp.gt.f32.partialorder %v2321, %v2193
        %vm2386 = vcmp.gt.f32.partialorder %v2322, %v2194
        %vm2387 = vcmp.gt.f32.partialorder %v2323, %v2195
        %vm2388 = vcmp.gt.f32.partialorder %v2324, %v2196
        %vm2389 = vcmp.gt.f32.partialorder %v2325, %v2197
        %vm2390 = vcmp.gt.f32.partialorder %v2326, %v2198
        %vm2391 = vcmp.gt.f32.partialorder %v2327, %v2199
        %vm2392 = vcmp.gt.f32.partialorder %v2328, %v2200
        %vm2393 = vcmp.gt.f32.partialorder %v2329, %v2201
        %vm2394 = vcmp.gt.f32.partialorder %v2330, %v2202
        %vm2395 = vcmp.gt.f32.partialorder %v2331, %v2203
        %vm2396 = vcmp.gt.f32.partialorder %v2332, %v2204
        %vm2397 = vcmp.gt.f32.partialorder %v2333, %v2205
        %vm2398 = vcmp.gt.f32.partialorder %v2334, %v2206
        %vm2399 = vcmp.gt.f32.partialorder %v2335, %v2207
        %vm2400 = vcmp.gt.f32.partialorder %v2336, %v2208
        %vm2401 = vcmp.gt.f32.partialorder %v2337, %v2209
        %vm2402 = vcmp.gt.f32.partialorder %v2338, %v2210
        %vm2403 = vcmp.gt.f32.partialorder %v2339, %v2211
        %vm2404 = vcmp.gt.f32.partialorder %v2340, %v2212
        %vm2405 = vcmp.gt.f32.partialorder %v2341, %v2213
        %vm2406 = vcmp.gt.f32.partialorder %v2342, %v2214
        %vm2407 = vcmp.gt.f32.partialorder %v2343, %v2215
        %vm2408 = vcmp.gt.f32.partialorder %v2344, %v2216
        %vm2409 = vcmp.gt.f32.partialorder %v2345, %v2217
        %vm2410 = vcmp.gt.f32.partialorder %v2346, %v2218
        %vm2411 = vcmp.gt.f32.partialorder %v2347, %v2219
        %vm2412 = vcmp.gt.f32.partialorder %v2348, %v2220
        %vm2413 = vcmp.gt.f32.partialorder %v2349, %v2221
        %vm2414 = vcmp.gt.f32.partialorder %v2350, %v2222
        %vm2415 = vcmp.gt.f32.partialorder %v2351, %v2223
        %vm2416 = vcmp.gt.f32.partialorder %v2352, %v2224
        %vm2417 = vcmp.gt.f32.partialorder %v2353, %v2225
        %vm2418 = vcmp.gt.f32.partialorder %v2354, %v2226
        %vm2419 = vcmp.gt.f32.partialorder %v2355, %v2227
        %vm2420 = vcmp.gt.f32.partialorder %v2356, %v2228
        %vm2421 = vcmp.gt.f32.partialorder %v2357, %v2229
        %vm2422 = vcmp.gt.f32.partialorder %v2358, %v2230
        %vm2423 = vcmp.gt.f32.partialorder %v2359, %v2231
        %vm2424 = vcmp.gt.f32.partialorder %v2360, %v2232
        %vm2425 = vcmp.gt.f32.partialorder %v2361, %v2233
        %vm2426 = vcmp.gt.f32.partialorder %v2362, %v2234
        %vm2427 = vcmp.gt.f32.partialorder %v2363, %v2235
        %vm2428 = vcmp.gt.f32.partialorder %v2364, %v2236
        %vm2429 = vcmp.gt.f32.partialorder %v2365, %v2237
        %vm2430 = vcmp.gt.f32.partialorder %v2366, %v2238
        %vm2431 = vcmp.gt.f32.partialorder %v2367, %v2239
        %vm2432 = vcmp.gt.f32.partialorder %v2368, %v2240
        %vm2433 = vcmp.gt.f32.partialorder %v2369, %v2241
        %vm2434 = vcmp.gt.f32.partialorder %v2370, %v2242
        %vm2435 = vcmp.gt.f32.partialorder %v2371, %v2243
        %v2436 = vsel %vm2372, %v2308, %v2180
        %v2437 = vsel %vm2373, %v2309, %v2181
        %v2438 = vsel %vm2374, %v2310, %v2182
        %v2439 = vsel %vm2375, %v2311, %v2183
        %v2440 = vsel %vm2376, %v2312, %v2184
        %v2441 = vsel %vm2377, %v2313, %v2185
        %v2442 = vsel %vm2378, %v2314, %v2186
        %v2443 = vsel %vm2379, %v2315, %v2187
        %v2444 = vsel %vm2380, %v2316, %v2188
        %v2445 = vsel %vm2381, %v2317, %v2189
        %v2446 = vsel %vm2382, %v2318, %v2190
        %v2447 = vsel %vm2383, %v2319, %v2191
        %v2448 = vsel %vm2384, %v2320, %v2192
        %v2449 = vsel %vm2385, %v2321, %v2193
        %v2450 = vsel %vm2386, %v2322, %v2194
        %v2451 = vsel %vm2387, %v2323, %v2195
        %v2452 = vsel %vm2388, %v2324, %v2196
        %v2453 = vsel %vm2389, %v2325, %v2197
        %v2454 = vsel %vm2390, %v2326, %v2198
        %v2455 = vsel %vm2391, %v2327, %v2199
        %v2456 = vsel %vm2392, %v2328, %v2200
        %v2457 = vsel %vm2393, %v2329, %v2201
        %v2458 = vsel %vm2394, %v2330, %v2202
        %v2459 = vsel %vm2395, %v2331, %v2203
        %v2460 = vsel %vm2396, %v2332, %v2204
        %v2461 = vsel %vm2397, %v2333, %v2205
        %v2462 = vsel %vm2398, %v2334, %v2206
        %v2463 = vsel %vm2399, %v2335, %v2207
        %v2464 = vsel %vm2400, %v2336, %v2208
        %v2465 = vsel %vm2401, %v2337, %v2209
        %v2466 = vsel %vm2402, %v2338, %v2210
        %v2467 = vsel %vm2403, %v2339, %v2211
        %v2468 = vsel %vm2404, %v2340, %v2212
        %v2469 = vsel %vm2405, %v2341, %v2213
        %v2470 = vsel %vm2406, %v2342, %v2214
        %v2471 = vsel %vm2407, %v2343, %v2215
        %v2472 = vsel %vm2408, %v2344, %v2216
        %v2473 = vsel %vm2409, %v2345, %v2217
        %v2474 = vsel %vm2410, %v2346, %v2218
        %v2475 = vsel %vm2411, %v2347, %v2219
        %v2476 = vsel %vm2412, %v2348, %v2220
        %v2477 = vsel %vm2413, %v2349, %v2221
        %v2478 = vsel %vm2414, %v2350, %v2222
        %v2479 = vsel %vm2415, %v2351, %v2223
        %v2480 = vsel %vm2416, %v2352, %v2224
        %v2481 = vsel %vm2417, %v2353, %v2225
        %v2482 = vsel %vm2418, %v2354, %v2226
        %v2483 = vsel %vm2419, %v2355, %v2227
        %v2484 = vsel %vm2420, %v2356, %v2228
        %v2485 = vsel %vm2421, %v2357, %v2229
        %v2486 = vsel %vm2422, %v2358, %v2230
        %v2487 = vsel %vm2423, %v2359, %v2231
        %v2488 = vsel %vm2424, %v2360, %v2232
        %v2489 = vsel %vm2425, %v2361, %v2233
        %v2490 = vsel %vm2426, %v2362, %v2234
        %v2491 = vsel %vm2427, %v2363, %v2235
        %v2492 = vsel %vm2428, %v2364, %v2236
        %v2493 = vsel %vm2429, %v2365, %v2237
        %v2494 = vsel %vm2430, %v2366, %v2238
        %v2495 = vsel %vm2431, %v2367, %v2239
        %v2496 = vsel %vm2432, %v2368, %v2240
        %v2497 = vsel %vm2433, %v2369, %v2241
        %v2498 = vsel %vm2434, %v2370, %v2242
        %v2499 = vsel %vm2435, %v2371, %v2243
        %v2500 = vsel %vm2372, 17, %v2244
        %v2501 = vsel %vm2373, 17, %v2245
        %v2502 = vsel %vm2374, 17, %v2246
        %v2503 = vsel %vm2375, 17, %v2247
        %v2504 = vsel %vm2376, 17, %v2248
        %v2505 = vsel %vm2377, 17, %v2249
        %v2506 = vsel %vm2378, 17, %v2250
        %v2507 = vsel %vm2379, 17, %v2251
        %v2508 = vsel %vm2380, 17, %v2252
        %v2509 = vsel %vm2381, 17, %v2253
        %v2510 = vsel %vm2382, 17, %v2254
        %v2511 = vsel %vm2383, 17, %v2255
        %v2512 = vsel %vm2384, 17, %v2256
        %v2513 = vsel %vm2385, 17, %v2257
        %v2514 = vsel %vm2386, 17, %v2258
        %v2515 = vsel %vm2387, 17, %v2259
        %v2516 = vsel %vm2388, 17, %v2260
        %v2517 = vsel %vm2389, 17, %v2261
        %v2518 = vsel %vm2390, 17, %v2262
        %v2519 = vsel %vm2391, 17, %v2263
        %v2520 = vsel %vm2392, 17, %v2264
        %v2521 = vsel %vm2393, 17, %v2265
        %v2522 = vsel %vm2394, 17, %v2266
        %v2523 = vsel %vm2395, 17, %v2267
        %v2524 = vsel %vm2396, 17, %v2268
        %v2525 = vsel %vm2397, 17, %v2269
        %v2526 = vsel %vm2398, 17, %v2270
        %v2527 = vsel %vm2399, 17, %v2271
        %v2528 = vsel %vm2400, 17, %v2272
        %v2529 = vsel %vm2401, 17, %v2273
        %v2530 = vsel %vm2402, 17, %v2274
        %v2531 = vsel %vm2403, 17, %v2275
        %v2532 = vsel %vm2404, 17, %v2276
        %v2533 = vsel %vm2405, 17, %v2277
        %v2534 = vsel %vm2406, 17, %v2278
        %v2535 = vsel %vm2407, 17, %v2279
        %v2536 = vsel %vm2408, 17, %v2280
        %v2537 = vsel %vm2409, 17, %v2281
        %v2538 = vsel %vm2410, 17, %v2282
        %v2539 = vsel %vm2411, 17, %v2283
        %v2540 = vsel %vm2412, 17, %v2284
        %v2541 = vsel %vm2413, 17, %v2285
        %v2542 = vsel %vm2414, 17, %v2286
        %v2543 = vsel %vm2415, 17, %v2287
        %v2544 = vsel %vm2416, 17, %v2288
        %v2545 = vsel %vm2417, 17, %v2289
        %v2546 = vsel %vm2418, 17, %v2290
        %v2547 = vsel %vm2419, 17, %v2291
        %v2548 = vsel %vm2420, 17, %v2292
        %v2549 = vsel %vm2421, 17, %v2293
        %v2550 = vsel %vm2422, 17, %v2294
        %v2551 = vsel %vm2423, 17, %v2295
        %v2552 = vsel %vm2424, 17, %v2296
        %v2553 = vsel %vm2425, 17, %v2297
        %v2554 = vsel %vm2426, 17, %v2298
        %v2555 = vsel %vm2427, 17, %v2299
        %v2556 = vsel %vm2428, 17, %v2300
        %v2557 = vsel %vm2429, 17, %v2301
        %v2558 = vsel %vm2430, 17, %v2302
        %v2559 = vsel %vm2431, 17, %v2303
        %v2560 = vsel %vm2432, 17, %v2304
        %v2561 = vsel %vm2433, 17, %v2305
        %v2562 = vsel %vm2434, 17, %v2306
        %v2563 = vsel %vm2435, 17, %v2307
        %v2564 = vlaneseq
        %v2565 = vshrl.u32 %v2564, 7
        %v2566 = vmul.u32 %v2565, 2
        %v2567 = vadd.s32 %v2566, 32
        %v2568 = vadd.s32 %v2566, 64
        %v2569 = vadd.s32 %v2566, 96
        %v2570 = vadd.s32 %v2566, 128
        %v2571 = vadd.s32 %v2566, 160
        %v2572 = vadd.s32 %v2566, 192
        %v2573 = vadd.s32 %v2566, 224
        %v2574 = vrot.slane %v2501, 7
        %vm2575 = vcmask 1041409
        %v2576 = vsel %vm2575, %v2574, %v2500
        %v2577 = vrot.slane %v2502, 6
        %vm2578 = vcmask 1042434
        %v2579 = vsel %vm2578, %v2577, %v2576
        %v2580 = vrot.slane %v2503, 5
        %vm2581 = vcmask 1043459
        %v2582 = vsel %vm2581, %v2580, %v2579
        %v2583 = vrot.slane %v2504, 4
        %vm2584 = vcmask 1044484
        %v2585 = vsel %vm2584, %v2583, %v2582
        %v2586 = vrot.slane %v2505, 3
        %vm2587 = vcmask 1045509
        %v2588 = vsel %vm2587, %v2586, %v2585
        %v2589 = vrot.slane %v2506, 2
        %vm2590 = vcmask 1046534
        %v2591 = vsel %vm2590, %v2589, %v2588
        %v2592 = vrot.slane %v2507, 1
        %vm2593 = vcmask 1047559
        %v2594 = vsel %vm2593, %v2592, %v2591
        %v2595 = vrot.slane %v2509, 7
        %v2596 = vsel %vm2575, %v2595, %v2508
        %v2597 = vrot.slane %v2510, 6
        %v2598 = vsel %vm2578, %v2597, %v2596
        %v2599 = vrot.slane %v2511, 5
        %v2600 = vsel %vm2581, %v2599, %v2598
        %v2601 = vrot.slane %v2512, 4
        %v2602 = vsel %vm2584, %v2601, %v2600
        %v2603 = vrot.slane %v2513, 3
        %v2604 = vsel %vm2587, %v2603, %v2602
        %v2605 = vrot.slane %v2514, 2
        %v2606 = vsel %vm2590, %v2605, %v2604
        %v2607 = vrot.slane %v2515, 1
        %v2608 = vsel %vm2593, %v2607, %v2606
        %v2609 = vrot.slane %v2517, 7
        %v2610 = vsel %vm2575, %v2609, %v2516
        %v2611 = vrot.slane %v2518, 6
        %v2612 = vsel %vm2578, %v2611, %v2610
        %v2613 = vrot.slane %v2519, 5
        %v2614 = vsel %vm2581, %v2613, %v2612
        %v2615 = vrot.slane %v2520, 4
        %v2616 = vsel %vm2584, %v2615, %v2614
        %v2617 = vrot.slane %v2521, 3
        %v2618 = vsel %vm2587, %v2617, %v2616
        %v2619 = vrot.slane %v2522, 2
        %v2620 = vsel %vm2590, %v2619, %v2618
        %v2621 = vrot.slane %v2523, 1
        %v2622 = vsel %vm2593, %v2621, %v2620
        %v2623 = vrot.slane %v2525, 7
        %v2624 = vsel %vm2575, %v2623, %v2524
        %v2625 = vrot.slane %v2526, 6
        %v2626 = vsel %vm2578, %v2625, %v2624
        %v2627 = vrot.slane %v2527, 5
        %v2628 = vsel %vm2581, %v2627, %v2626
        %v2629 = vrot.slane %v2528, 4
        %v2630 = vsel %vm2584, %v2629, %v2628
        %v2631 = vrot.slane %v2529, 3
        %v2632 = vsel %vm2587, %v2631, %v2630
        %v2633 = vrot.slane %v2530, 2
        %v2634 = vsel %vm2590, %v2633, %v2632
        %v2635 = vrot.slane %v2531, 1
        %v2636 = vsel %vm2593, %v2635, %v2634
        %v2637 = vrot.slane %v2533, 7
        %v2638 = vsel %vm2575, %v2637, %v2532
        %v2639 = vrot.slane %v2534, 6
        %v2640 = vsel %vm2578, %v2639, %v2638
        %v2641 = vrot.slane %v2535, 5
        %v2642 = vsel %vm2581, %v2641, %v2640
        %v2643 = vrot.slane %v2536, 4
        %v2644 = vsel %vm2584, %v2643, %v2642
        %v2645 = vrot.slane %v2537, 3
        %v2646 = vsel %vm2587, %v2645, %v2644
        %v2647 = vrot.slane %v2538, 2
        %v2648 = vsel %vm2590, %v2647, %v2646
        %v2649 = vrot.slane %v2539, 1
        %v2650 = vsel %vm2593, %v2649, %v2648
        %v2651 = vrot.slane %v2541, 7
        %v2652 = vsel %vm2575, %v2651, %v2540
        %v2653 = vrot.slane %v2542, 6
        %v2654 = vsel %vm2578, %v2653, %v2652
        %v2655 = vrot.slane %v2543, 5
        %v2656 = vsel %vm2581, %v2655, %v2654
        %v2657 = vrot.slane %v2544, 4
        %v2658 = vsel %vm2584, %v2657, %v2656
        %v2659 = vrot.slane %v2545, 3
        %v2660 = vsel %vm2587, %v2659, %v2658
        %v2661 = vrot.slane %v2546, 2
        %v2662 = vsel %vm2590, %v2661, %v2660
        %v2663 = vrot.slane %v2547, 1
        %v2664 = vsel %vm2593, %v2663, %v2662
        %v2665 = vrot.slane %v2549, 7
        %v2666 = vsel %vm2575, %v2665, %v2548
        %v2667 = vrot.slane %v2550, 6
        %v2668 = vsel %vm2578, %v2667, %v2666
        %v2669 = vrot.slane %v2551, 5
        %v2670 = vsel %vm2581, %v2669, %v2668
        %v2671 = vrot.slane %v2552, 4
        %v2672 = vsel %vm2584, %v2671, %v2670
        %v2673 = vrot.slane %v2553, 3
        %v2674 = vsel %vm2587, %v2673, %v2672
        %v2675 = vrot.slane %v2554, 2
        %v2676 = vsel %vm2590, %v2675, %v2674
        %v2677 = vrot.slane %v2555, 1
        %v2678 = vsel %vm2593, %v2677, %v2676
        %v2679 = vrot.slane %v2557, 7
        %v2680 = vsel %vm2575, %v2679, %v2556
        %v2681 = vrot.slane %v2558, 6
        %v2682 = vsel %vm2578, %v2681, %v2680
        %v2683 = vrot.slane %v2559, 5
        %v2684 = vsel %vm2581, %v2683, %v2682
        %v2685 = vrot.slane %v2560, 4
        %v2686 = vsel %vm2584, %v2685, %v2684
        %v2687 = vrot.slane %v2561, 3
        %v2688 = vsel %vm2587, %v2687, %v2686
        %v2689 = vrot.slane %v2562, 2
        %v2690 = vsel %vm2590, %v2689, %v2688
        %v2691 = vrot.slane %v2563, 1
        %v2692 = vsel %vm2593, %v2691, %v2690
        %v2693 = vadd.s32 %v2566, %v2594
        %v2694 = vadd.s32 %v2567, %v2608
        %v2695 = vadd.s32 %v2568, %v2622
        %v2696 = vadd.s32 %v2569, %v2636
        %v2697 = vadd.s32 %v2570, %v2650
        %v2698 = vadd.s32 %v2571, %v2664
        %v2699 = vadd.s32 %v2572, %v2678
        %v2700 = vadd.s32 %v2573, %v2692
        %2701 = vst.msk [vmem:[%s447] sm:$0xff] %vm865, %v2693
        %2702 = vst.msk [vmem:[%s447 + $0x8] sm:$0xff] %vm865, %v2694
        %2703 = vst.msk [vmem:[%s447 + $0x10] sm:$0xff] %vm865, %v2695
        %2704 = vst.msk [vmem:[%s447 + $0x18] sm:$0xff] %vm865, %v2696
        %2705 = vst.msk [vmem:[%s447 + $0x20] sm:$0xff] %vm865, %v2697
        %2706 = vst.msk [vmem:[%s447 + $0x28] sm:$0xff] %vm865, %v2698
        %2707 = vst.msk [vmem:[%s447 + $0x30] sm:$0xff] %vm865, %v2699
        %2708 = vst.msk [vmem:[%s447 + $0x38] sm:$0xff] %vm865, %v2700
        %vm2709 = vcmask 122880
        %2710 = vst.msk [vmem:[#allocation4] sm:$0x1] %vm2709, 0.0
        %2711 = vst.msk [vmem:[#allocation4 + $0x1] sm:$0x1] %vm2709, 0.0
        %2712 = vst.msk [vmem:[#allocation4 + $0x2] sm:$0x1] %vm2709, 0.0
        %2713 = vst.msk [vmem:[#allocation4 + $0x3] sm:$0x1] %vm2709, 0.0
        %2714 = vst.msk [vmem:[#allocation4 + $0x4] sm:$0x1] %vm2709, 0.0
        %2715 = vst.msk [vmem:[#allocation4 + $0x5] sm:$0x1] %vm2709, 0.0
        %2716 = vst.msk [vmem:[#allocation4 + $0x6] sm:$0x1] %vm2709, 0.0
        %2717 = vst.msk [vmem:[#allocation4 + $0x7] sm:$0x1] %vm2709, 0.0
        %2718 = vst.msk [vmem:[#allocation4 + $0x8] sm:$0x1] %vm2709, 0.0
        %2719 = vst.msk [vmem:[#allocation4 + $0x9] sm:$0x1] %vm2709, 0.0
        %2720 = vst.msk [vmem:[#allocation4 + $0xa] sm:$0x1] %vm2709, 0.0
        %2721 = vst.msk [vmem:[#allocation4 + $0xb] sm:$0x1] %vm2709, 0.0
        %2722 = vst.msk [vmem:[#allocation4 + $0xc] sm:$0x1] %vm2709, 0.0
        %2723 = vst.msk [vmem:[#allocation4 + $0xd] sm:$0x1] %vm2709, 0.0
        %2724 = vst.msk [vmem:[#allocation4 + $0xe] sm:$0x1] %vm2709, 0.0
        %2725 = vst.msk [vmem:[#allocation4 + $0xf] sm:$0x1] %vm2709, 0.0
        %2726 = vst.msk [vmem:[#allocation4 + $0x10] sm:$0x1] %vm2709, 0.0
        %2727 = vst.msk [vmem:[#allocation4 + $0x11] sm:$0x1] %vm2709, 0.0
        %2728 = vst.msk [vmem:[#allocation4 + $0x12] sm:$0x1] %vm2709, 0.0
        %2729 = vst.msk [vmem:[#allocation4 + $0x13] sm:$0x1] %vm2709, 0.0
        %2730 = vst.msk [vmem:[#allocation4 + $0x14] sm:$0x1] %vm2709, 0.0
        %2731 = vst.msk [vmem:[#allocation4 + $0x15] sm:$0x1] %vm2709, 0.0
        %2732 = vst.msk [vmem:[#allocation4 + $0x16] sm:$0x1] %vm2709, 0.0
        %2733 = vst.msk [vmem:[#allocation4 + $0x17] sm:$0x1] %vm2709, 0.0
        %2734 = vst.msk [vmem:[#allocation4 + $0x18] sm:$0x1] %vm2709, 0.0
        %2735 = vst.msk [vmem:[#allocation4 + $0x19] sm:$0x1] %vm2709, 0.0
        %2736 = vst.msk [vmem:[#allocation4 + $0x1a] sm:$0x1] %vm2709, 0.0
        %2737 = vst.msk [vmem:[#allocation4 + $0x1b] sm:$0x1] %vm2709, 0.0
        %2738 = vst.msk [vmem:[#allocation4 + $0x1c] sm:$0x1] %vm2709, 0.0
        %2739 = vst.msk [vmem:[#allocation4 + $0x1d] sm:$0x1] %vm2709, 0.0
        %2740 = vst.msk [vmem:[#allocation4 + $0x1e] sm:$0x1] %vm2709, 0.0
        %2741 = vst.msk [vmem:[#allocation4 + $0x1f] sm:$0x1] %vm2709, 0.0
        %2742 = vst.msk [vmem:[#allocation4 + $0x20] sm:$0x1] %vm2709, 0.0
        %2743 = vst.msk [vmem:[#allocation4 + $0x21] sm:$0x1] %vm2709, 0.0
        %2744 = vst.msk [vmem:[#allocation4 + $0x22] sm:$0x1] %vm2709, 0.0
        %2745 = vst.msk [vmem:[#allocation4 + $0x23] sm:$0x1] %vm2709, 0.0
        %2746 = vst.msk [vmem:[#allocation4 + $0x24] sm:$0x1] %vm2709, 0.0
        %2747 = vst.msk [vmem:[#allocation4 + $0x25] sm:$0x1] %vm2709, 0.0
        %2748 = vst.msk [vmem:[#allocation4 + $0x26] sm:$0x1] %vm2709, 0.0
        %2749 = vst.msk [vmem:[#allocation4 + $0x27] sm:$0x1] %vm2709, 0.0
        %2750 = vst.msk [vmem:[#allocation4 + $0x28] sm:$0x1] %vm2709, 0.0
        %2751 = vst.msk [vmem:[#allocation4 + $0x29] sm:$0x1] %vm2709, 0.0
        %2752 = vst.msk [vmem:[#allocation4 + $0x2a] sm:$0x1] %vm2709, 0.0
        %2753 = vst.msk [vmem:[#allocation4 + $0x2b] sm:$0x1] %vm2709, 0.0
        %2754 = vst.msk [vmem:[#allocation4 + $0x2c] sm:$0x1] %vm2709, 0.0
        %2755 = vst.msk [vmem:[#allocation4 + $0x2d] sm:$0x1] %vm2709, 0.0
        %2756 = vst.msk [vmem:[#allocation4 + $0x2e] sm:$0x1] %vm2709, 0.0
        %2757 = vst.msk [vmem:[#allocation4 + $0x2f] sm:$0x1] %vm2709, 0.0
        %2758 = vst.msk [vmem:[#allocation4 + $0x30] sm:$0x1] %vm2709, 0.0
        %2759 = vst.msk [vmem:[#allocation4 + $0x31] sm:$0x1] %vm2709, 0.0
        %2760 = vst.msk [vmem:[#allocation4 + $0x32] sm:$0x1] %vm2709, 0.0
        %2761 = vst.msk [vmem:[#allocation4 + $0x33] sm:$0x1] %vm2709, 0.0
        %2762 = vst.msk [vmem:[#allocation4 + $0x34] sm:$0x1] %vm2709, 0.0
        %2763 = vst.msk [vmem:[#allocation4 + $0x35] sm:$0x1] %vm2709, 0.0
        %2764 = vst.msk [vmem:[#allocation4 + $0x36] sm:$0x1] %vm2709, 0.0
        %2765 = vst.msk [vmem:[#allocation4 + $0x37] sm:$0x1] %vm2709, 0.0
        %2766 = vst.msk [vmem:[#allocation4 + $0x38] sm:$0x1] %vm2709, 0.0
        %2767 = vst.msk [vmem:[#allocation4 + $0x39] sm:$0x1] %vm2709, 0.0
        %2768 = vst.msk [vmem:[#allocation4 + $0x3a] sm:$0x1] %vm2709, 0.0
        %2769 = vst.msk [vmem:[#allocation4 + $0x3b] sm:$0x1] %vm2709, 0.0
        %2770 = vst.msk [vmem:[#allocation4 + $0x3c] sm:$0x1] %vm2709, 0.0
        %2771 = vst.msk [vmem:[#allocation4 + $0x3d] sm:$0x1] %vm2709, 0.0
        %2772 = vst.msk [vmem:[#allocation4 + $0x3e] sm:$0x1] %vm2709, 0.0
        %2773 = vst.msk [vmem:[#allocation4 + $0x3f] sm:$0x1] %vm2709, 0.0
        %2774 = vst.msk [vmem:[#allocation4 + $0x40] sm:$0x1] %vm2709, 0.0
        %2775 = vst.msk [vmem:[#allocation4 + $0x41] sm:$0x1] %vm2709, 0.0
        %2776 = vst.msk [vmem:[#allocation4 + $0x42] sm:$0x1] %vm2709, 0.0
        %2777 = vst.msk [vmem:[#allocation4 + $0x43] sm:$0x1] %vm2709, 0.0
        %2778 = vst.msk [vmem:[#allocation4 + $0x44] sm:$0x1] %vm2709, 0.0
        %2779 = vst.msk [vmem:[#allocation4 + $0x45] sm:$0x1] %vm2709, 0.0
        %2780 = vst.msk [vmem:[#allocation4 + $0x46] sm:$0x1] %vm2709, 0.0
        %2781 = vst.msk [vmem:[#allocation4 + $0x47] sm:$0x1] %vm2709, 0.0
        %2782 = vst.msk [vmem:[#allocation4 + $0x48] sm:$0x1] %vm2709, 0.0
        %2783 = vst.msk [vmem:[#allocation4 + $0x49] sm:$0x1] %vm2709, 0.0
        %2784 = vst.msk [vmem:[#allocation4 + $0x4a] sm:$0x1] %vm2709, 0.0
        %2785 = vst.msk [vmem:[#allocation4 + $0x4b] sm:$0x1] %vm2709, 0.0
        %2786 = vst.msk [vmem:[#allocation4 + $0x4c] sm:$0x1] %vm2709, 0.0
        %2787 = vst.msk [vmem:[#allocation4 + $0x4d] sm:$0x1] %vm2709, 0.0
        %2788 = vst.msk [vmem:[#allocation4 + $0x4e] sm:$0x1] %vm2709, 0.0
        %2789 = vst.msk [vmem:[#allocation4 + $0x4f] sm:$0x1] %vm2709, 0.0
        %2790 = vst.msk [vmem:[#allocation4 + $0x50] sm:$0x1] %vm2709, 0.0
        %2791 = vst.msk [vmem:[#allocation4 + $0x51] sm:$0x1] %vm2709, 0.0
        %2792 = vst.msk [vmem:[#allocation4 + $0x52] sm:$0x1] %vm2709, 0.0
        %2793 = vst.msk [vmem:[#allocation4 + $0x53] sm:$0x1] %vm2709, 0.0
        %2794 = vst.msk [vmem:[#allocation4 + $0x54] sm:$0x1] %vm2709, 0.0
        %2795 = vst.msk [vmem:[#allocation4 + $0x55] sm:$0x1] %vm2709, 0.0
        %2796 = vst.msk [vmem:[#allocation4 + $0x56] sm:$0x1] %vm2709, 0.0
        %2797 = vst.msk [vmem:[#allocation4 + $0x57] sm:$0x1] %vm2709, 0.0
        %2798 = vst.msk [vmem:[#allocation4 + $0x58] sm:$0x1] %vm2709, 0.0
        %2799 = vst.msk [vmem:[#allocation4 + $0x59] sm:$0x1] %vm2709, 0.0
        %2800 = vst.msk [vmem:[#allocation4 + $0x5a] sm:$0x1] %vm2709, 0.0
        %2801 = vst.msk [vmem:[#allocation4 + $0x5b] sm:$0x1] %vm2709, 0.0
        %2802 = vst.msk [vmem:[#allocation4 + $0x5c] sm:$0x1] %vm2709, 0.0
        %2803 = vst.msk [vmem:[#allocation4 + $0x5d] sm:$0x1] %vm2709, 0.0
        %2804 = vst.msk [vmem:[#allocation4 + $0x5e] sm:$0x1] %vm2709, 0.0
        %2805 = vst.msk [vmem:[#allocation4 + $0x5f] sm:$0x1] %vm2709, 0.0
        %2806 = vst.msk [vmem:[#allocation4 + $0x60] sm:$0x1] %vm2709, 0.0
        %2807 = vst.msk [vmem:[#allocation4 + $0x61] sm:$0x1] %vm2709, 0.0
        %2808 = vst.msk [vmem:[#allocation4 + $0x62] sm:$0x1] %vm2709, 0.0
        %2809 = vst.msk [vmem:[#allocation4 + $0x63] sm:$0x1] %vm2709, 0.0
        %s2810 = scalar_lea.vmem [#allocation4], 11
        %2811 = vst.msk [vmem:[%s2810] sm:$0x1] %vm2709, %v2436
        %2812 = vst.msk [vmem:[%s2810 + $0x1] sm:$0x1] %vm2709, %v2437
        %2813 = vst.msk [vmem:[%s2810 + $0x2] sm:$0x1] %vm2709, %v2438
        %2814 = vst.msk [vmem:[%s2810 + $0x3] sm:$0x1] %vm2709, %v2439
        %2815 = vst.msk [vmem:[%s2810 + $0x4] sm:$0x1] %vm2709, %v2440
        %2816 = vst.msk [vmem:[%s2810 + $0x5] sm:$0x1] %vm2709, %v2441
        %2817 = vst.msk [vmem:[%s2810 + $0x6] sm:$0x1] %vm2709, %v2442
        %2818 = vst.msk [vmem:[%s2810 + $0x7] sm:$0x1] %vm2709, %v2443
        %2819 = vst.msk [vmem:[%s2810 + $0xa] sm:$0x1] %vm2709, %v2444
        %2820 = vst.msk [vmem:[%s2810 + $0xb] sm:$0x1] %vm2709, %v2445
        %2821 = vst.msk [vmem:[%s2810 + $0xc] sm:$0x1] %vm2709, %v2446
        %2822 = vst.msk [vmem:[%s2810 + $0xd] sm:$0x1] %vm2709, %v2447
        %2823 = vst.msk [vmem:[%s2810 + $0xe] sm:$0x1] %vm2709, %v2448
        %2824 = vst.msk [vmem:[%s2810 + $0xf] sm:$0x1] %vm2709, %v2449
        %2825 = vst.msk [vmem:[%s2810 + $0x10] sm:$0x1] %vm2709, %v2450
        %2826 = vst.msk [vmem:[%s2810 + $0x11] sm:$0x1] %vm2709, %v2451
        %2827 = vst.msk [vmem:[%s2810 + $0x14] sm:$0x1] %vm2709, %v2452
        %2828 = vst.msk [vmem:[%s2810 + $0x15] sm:$0x1] %vm2709, %v2453
        %2829 = vst.msk [vmem:[%s2810 + $0x16] sm:$0x1] %vm2709, %v2454
        %2830 = vst.msk [vmem:[%s2810 + $0x17] sm:$0x1] %vm2709, %v2455
        %2831 = vst.msk [vmem:[%s2810 + $0x18] sm:$0x1] %vm2709, %v2456
        %2832 = vst.msk [vmem:[%s2810 + $0x19] sm:$0x1] %vm2709, %v2457
        %2833 = vst.msk [vmem:[%s2810 + $0x1a] sm:$0x1] %vm2709, %v2458
        %2834 = vst.msk [vmem:[%s2810 + $0x1b] sm:$0x1] %vm2709, %v2459
        %2835 = vst.msk [vmem:[%s2810 + $0x1e] sm:$0x1] %vm2709, %v2460
        %2836 = vst.msk [vmem:[%s2810 + $0x1f] sm:$0x1] %vm2709, %v2461
        %2837 = vst.msk [vmem:[%s2810 + $0x20] sm:$0x1] %vm2709, %v2462
        %2838 = vst.msk [vmem:[%s2810 + $0x21] sm:$0x1] %vm2709, %v2463
        %2839 = vst.msk [vmem:[%s2810 + $0x22] sm:$0x1] %vm2709, %v2464
        %2840 = vst.msk [vmem:[%s2810 + $0x23] sm:$0x1] %vm2709, %v2465
        %2841 = vst.msk [vmem:[%s2810 + $0x24] sm:$0x1] %vm2709, %v2466
        %2842 = vst.msk [vmem:[%s2810 + $0x25] sm:$0x1] %vm2709, %v2467
        %2843 = vst.msk [vmem:[%s2810 + $0x28] sm:$0x1] %vm2709, %v2468
        %2844 = vst.msk [vmem:[%s2810 + $0x29] sm:$0x1] %vm2709, %v2469
        %2845 = vst.msk [vmem:[%s2810 + $0x2a] sm:$0x1] %vm2709, %v2470
        %2846 = vst.msk [vmem:[%s2810 + $0x2b] sm:$0x1] %vm2709, %v2471
        %2847 = vst.msk [vmem:[%s2810 + $0x2c] sm:$0x1] %vm2709, %v2472
        %2848 = vst.msk [vmem:[%s2810 + $0x2d] sm:$0x1] %vm2709, %v2473
        %2849 = vst.msk [vmem:[%s2810 + $0x2e] sm:$0x1] %vm2709, %v2474
        %2850 = vst.msk [vmem:[%s2810 + $0x2f] sm:$0x1] %vm2709, %v2475
        %2851 = vst.msk [vmem:[%s2810 + $0x32] sm:$0x1] %vm2709, %v2476
        %2852 = vst.msk [vmem:[%s2810 + $0x33] sm:$0x1] %vm2709, %v2477
        %2853 = vst.msk [vmem:[%s2810 + $0x34] sm:$0x1] %vm2709, %v2478
        %2854 = vst.msk [vmem:[%s2810 + $0x35] sm:$0x1] %vm2709, %v2479
        %2855 = vst.msk [vmem:[%s2810 + $0x36] sm:$0x1] %vm2709, %v2480
        %2856 = vst.msk [vmem:[%s2810 + $0x37] sm:$0x1] %vm2709, %v2481
        %2857 = vst.msk [vmem:[%s2810 + $0x38] sm:$0x1] %vm2709, %v2482
        %2858 = vst.msk [vmem:[%s2810 + $0x39] sm:$0x1] %vm2709, %v2483
        %2859 = vst.msk [vmem:[%s2810 + $0x3c] sm:$0x1] %vm2709, %v2484
        %2860 = vst.msk [vmem:[%s2810 + $0x3d] sm:$0x1] %vm2709, %v2485
        %2861 = vst.msk [vmem:[%s2810 + $0x3e] sm:$0x1] %vm2709, %v2486
        %2862 = vst.msk [vmem:[%s2810 + $0x3f] sm:$0x1] %vm2709, %v2487
        %2863 = vst.msk [vmem:[%s2810 + $0x40] sm:$0x1] %vm2709, %v2488
        %2864 = vst.msk [vmem:[%s2810 + $0x41] sm:$0x1] %vm2709, %v2489
        %2865 = vst.msk [vmem:[%s2810 + $0x42] sm:$0x1] %vm2709, %v2490
        %2866 = vst.msk [vmem:[%s2810 + $0x43] sm:$0x1] %vm2709, %v2491
        %2867 = vst.msk [vmem:[%s2810 + $0x46] sm:$0x1] %vm2709, %v2492
        %2868 = vst.msk [vmem:[%s2810 + $0x47] sm:$0x1] %vm2709, %v2493
        %2869 = vst.msk [vmem:[%s2810 + $0x48] sm:$0x1] %vm2709, %v2494
        %2870 = vst.msk [vmem:[%s2810 + $0x49] sm:$0x1] %vm2709, %v2495
        %2871 = vst.msk [vmem:[%s2810 + $0x4a] sm:$0x1] %vm2709, %v2496
        %2872 = vst.msk [vmem:[%s2810 + $0x4b] sm:$0x1] %vm2709, %v2497
        %2873 = vst.msk [vmem:[%s2810 + $0x4c] sm:$0x1] %vm2709, %v2498
        %2874 = vst.msk [vmem:[%s2810 + $0x4d] sm:$0x1] %vm2709, %v2499
        %v2875 = vld [vmem:[#allocation4] sm:$0x1]
        %v2876 = vld [vmem:[#allocation4 + $0x1] sm:$0x1]
        %v2877 = vld [vmem:[#allocation4 + $0x2] sm:$0x1]
        %v2878 = vld [vmem:[#allocation4 + $0x3] sm:$0x1]
        %v2879 = vld [vmem:[#allocation4 + $0x4] sm:$0x1]
        %v2880 = vld [vmem:[#allocation4 + $0x5] sm:$0x1]
        %v2881 = vld [vmem:[#allocation4 + $0x6] sm:$0x1]
        %v2882 = vld [vmem:[#allocation4 + $0x7] sm:$0x1]
        %v2883 = vld [vmem:[#allocation4 + $0xa] sm:$0x1]
        %v2884 = vld [vmem:[#allocation4 + $0xb] sm:$0x1]
        %v2885 = vld [vmem:[#allocation4 + $0xc] sm:$0x1]
        %v2886 = vld [vmem:[#allocation4 + $0xd] sm:$0x1]
        %v2887 = vld [vmem:[#allocation4 + $0xe] sm:$0x1]
        %v2888 = vld [vmem:[#allocation4 + $0xf] sm:$0x1]
        %v2889 = vld [vmem:[#allocation4 + $0x10] sm:$0x1]
        %v2890 = vld [vmem:[#allocation4 + $0x11] sm:$0x1]
        %v2891 = vld [vmem:[#allocation4 + $0x14] sm:$0x1]
        %v2892 = vld [vmem:[#allocation4 + $0x15] sm:$0x1]
        %v2893 = vld [vmem:[#allocation4 + $0x16] sm:$0x1]
        %v2894 = vld [vmem:[#allocation4 + $0x17] sm:$0x1]
        %v2895 = vld [vmem:[#allocation4 + $0x18] sm:$0x1]
        %v2896 = vld [vmem:[#allocation4 + $0x19] sm:$0x1]
        %v2897 = vld [vmem:[#allocation4 + $0x1a] sm:$0x1]
        %v2898 = vld [vmem:[#allocation4 + $0x1b] sm:$0x1]
        %v2899 = vld [vmem:[#allocation4 + $0x1e] sm:$0x1]
        %v2900 = vld [vmem:[#allocation4 + $0x1f] sm:$0x1]
        %v2901 = vld [vmem:[#allocation4 + $0x20] sm:$0x1]
        %v2902 = vld [vmem:[#allocation4 + $0x21] sm:$0x1]
        %v2903 = vld [vmem:[#allocation4 + $0x22] sm:$0x1]
        %v2904 = vld [vmem:[#allocation4 + $0x23] sm:$0x1]
        %v2905 = vld [vmem:[#allocation4 + $0x24] sm:$0x1]
        %v2906 = vld [vmem:[#allocation4 + $0x25] sm:$0x1]
        %v2907 = vld [vmem:[#allocation4 + $0x28] sm:$0x1]
        %v2908 = vld [vmem:[#allocation4 + $0x29] sm:$0x1]
        %v2909 = vld [vmem:[#allocation4 + $0x2a] sm:$0x1]
        %v2910 = vld [vmem:[#allocation4 + $0x2b] sm:$0x1]
        %v2911 = vld [vmem:[#allocation4 + $0x2c] sm:$0x1]
        %v2912 = vld [vmem:[#allocation4 + $0x2d] sm:$0x1]
        %v2913 = vld [vmem:[#allocation4 + $0x2e] sm:$0x1]
        %v2914 = vld [vmem:[#allocation4 + $0x2f] sm:$0x1]
        %v2915 = vld [vmem:[#allocation4 + $0x32] sm:$0x1]
        %v2916 = vld [vmem:[#allocation4 + $0x33] sm:$0x1]
        %v2917 = vld [vmem:[#allocation4 + $0x34] sm:$0x1]
        %v2918 = vld [vmem:[#allocation4 + $0x35] sm:$0x1]
        %v2919 = vld [vmem:[#allocation4 + $0x36] sm:$0x1]
        %v2920 = vld [vmem:[#allocation4 + $0x37] sm:$0x1]
        %v2921 = vld [vmem:[#allocation4 + $0x38] sm:$0x1]
        %v2922 = vld [vmem:[#allocation4 + $0x39] sm:$0x1]
        %v2923 = vld [vmem:[#allocation4 + $0x3c] sm:$0x1]
        %v2924 = vld [vmem:[#allocation4 + $0x3d] sm:$0x1]
        %v2925 = vld [vmem:[#allocation4 + $0x3e] sm:$0x1]
        %v2926 = vld [vmem:[#allocation4 + $0x3f] sm:$0x1]
        %v2927 = vld [vmem:[#allocation4 + $0x40] sm:$0x1]
        %v2928 = vld [vmem:[#allocation4 + $0x41] sm:$0x1]
        %v2929 = vld [vmem:[#allocation4 + $0x42] sm:$0x1]
        %v2930 = vld [vmem:[#allocation4 + $0x43] sm:$0x1]
        %v2931 = vld [vmem:[#allocation4 + $0x46] sm:$0x1]
        %v2932 = vld [vmem:[#allocation4 + $0x47] sm:$0x1]
        %v2933 = vld [vmem:[#allocation4 + $0x48] sm:$0x1]
        %v2934 = vld [vmem:[#allocation4 + $0x49] sm:$0x1]
        %v2935 = vld [vmem:[#allocation4 + $0x4a] sm:$0x1]
        %v2936 = vld [vmem:[#allocation4 + $0x4b] sm:$0x1]
        %v2937 = vld [vmem:[#allocation4 + $0x4c] sm:$0x1]
        %v2938 = vld [vmem:[#allocation4 + $0x4d] sm:$0x1]
        %v2939 = vpack.c.bf16 %v2875, %v2875
        %v2940 = vpack.c.bf16 %v2876, %v2876
        %v2941 = vpack.c.bf16 %v2877, %v2877
        %v2942 = vpack.c.bf16 %v2878, %v2878
        %v2943 = vpack.c.bf16 %v2879, %v2879
        %v2944 = vpack.c.bf16 %v2880, %v2880
        %v2945 = vpack.c.bf16 %v2881, %v2881
        %v2946 = vpack.c.bf16 %v2882, %v2882
        %v2947 = vpack.c.bf16 %v2883, %v2883
        %v2948 = vpack.c.bf16 %v2884, %v2884
        %v2949 = vpack.c.bf16 %v2885, %v2885
        %v2950 = vpack.c.bf16 %v2886, %v2886
        %v2951 = vpack.c.bf16 %v2887, %v2887
        %v2952 = vpack.c.bf16 %v2888, %v2888
        %v2953 = vpack.c.bf16 %v2889, %v2889
        %v2954 = vpack.c.bf16 %v2890, %v2890
        %v2955 = vpack.c.bf16 %v2891, %v2891
        %v2956 = vpack.c.bf16 %v2892, %v2892
        %v2957 = vpack.c.bf16 %v2893, %v2893
        %v2958 = vpack.c.bf16 %v2894, %v2894
        %v2959 = vpack.c.bf16 %v2895, %v2895
        %v2960 = vpack.c.bf16 %v2896, %v2896
        %v2961 = vpack.c.bf16 %v2897, %v2897
        %v2962 = vpack.c.bf16 %v2898, %v2898
        %v2963 = vpack.c.bf16 %v2899, %v2899
        %v2964 = vpack.c.bf16 %v2900, %v2900
        %v2965 = vpack.c.bf16 %v2901, %v2901
        %v2966 = vpack.c.bf16 %v2902, %v2902
        %v2967 = vpack.c.bf16 %v2903, %v2903
        %v2968 = vpack.c.bf16 %v2904, %v2904
        %v2969 = vpack.c.bf16 %v2905, %v2905
        %v2970 = vpack.c.bf16 %v2906, %v2906
        %v2971 = vpack.c.bf16 %v2907, %v2907
        %v2972 = vpack.c.bf16 %v2908, %v2908
        %v2973 = vpack.c.bf16 %v2909, %v2909
        %v2974 = vpack.c.bf16 %v2910, %v2910
        %v2975 = vpack.c.bf16 %v2911, %v2911
        %v2976 = vpack.c.bf16 %v2912, %v2912
        %v2977 = vpack.c.bf16 %v2913, %v2913
        %v2978 = vpack.c.bf16 %v2914, %v2914
        %v2979 = vpack.c.bf16 %v2915, %v2915
        %v2980 = vpack.c.bf16 %v2916, %v2916
        %v2981 = vpack.c.bf16 %v2917, %v2917
        %v2982 = vpack.c.bf16 %v2918, %v2918
        %v2983 = vpack.c.bf16 %v2919, %v2919
        %v2984 = vpack.c.bf16 %v2920, %v2920
        %v2985 = vpack.c.bf16 %v2921, %v2921
        %v2986 = vpack.c.bf16 %v2922, %v2922
        %v2987 = vpack.c.bf16 %v2923, %v2923
        %v2988 = vpack.c.bf16 %v2924, %v2924
        %v2989 = vpack.c.bf16 %v2925, %v2925
        %v2990 = vpack.c.bf16 %v2926, %v2926
        %v2991 = vpack.c.bf16 %v2927, %v2927
        %v2992 = vpack.c.bf16 %v2928, %v2928
        %v2993 = vpack.c.bf16 %v2929, %v2929
        %v2994 = vpack.c.bf16 %v2930, %v2930
        %v2995 = vpack.c.bf16 %v2931, %v2931
        %v2996 = vpack.c.bf16 %v2932, %v2932
        %v2997 = vpack.c.bf16 %v2933, %v2933
        %v2998 = vpack.c.bf16 %v2934, %v2934
        %v2999 = vpack.c.bf16 %v2935, %v2935
        %v3000 = vpack.c.bf16 %v2936, %v2936
        %v3001 = vpack.c.bf16 %v2937, %v2937
        %v3002 = vpack.c.bf16 %v2938, %v2938
        %v3003 = vld [vmem:[%s3] sm:$0xf]
        %v3004 = vld [vmem:[%s3 + $0x4] sm:$0xf]
        %s3005 = scalar_lea.vmem [#allocation4], 1
        %v3006 = vld [vmem:[%s3005] sm:$0x1]
        %v3007 = vld [vmem:[%s3005 + $0x1] sm:$0x1]
        %v3008 = vld [vmem:[%s3005 + $0x2] sm:$0x1]
        %v3009 = vld [vmem:[%s3005 + $0x3] sm:$0x1]
        %v3010 = vld [vmem:[%s3005 + $0x4] sm:$0x1]
        %v3011 = vld [vmem:[%s3005 + $0x5] sm:$0x1]
        %v3012 = vld [vmem:[%s3005 + $0x6] sm:$0x1]
        %v3013 = vld [vmem:[%s3005 + $0x7] sm:$0x1]
        %v3014 = vld [vmem:[%s3005 + $0xa] sm:$0x1]
        %v3015 = vld [vmem:[%s3005 + $0xb] sm:$0x1]
        %v3016 = vld [vmem:[%s3005 + $0xc] sm:$0x1]
        %v3017 = vld [vmem:[%s3005 + $0xd] sm:$0x1]
        %v3018 = vld [vmem:[%s3005 + $0xe] sm:$0x1]
        %v3019 = vld [vmem:[%s3005 + $0xf] sm:$0x1]
        %v3020 = vld [vmem:[%s3005 + $0x10] sm:$0x1]
        %v3021 = vld [vmem:[%s3005 + $0x11] sm:$0x1]
        %v3022 = vld [vmem:[%s3005 + $0x14] sm:$0x1]
        %v3023 = vld [vmem:[%s3005 + $0x15] sm:$0x1]
        %v3024 = vld [vmem:[%s3005 + $0x16] sm:$0x1]
        %v3025 = vld [vmem:[%s3005 + $0x17] sm:$0x1]
        %v3026 = vld [vmem:[%s3005 + $0x18] sm:$0x1]
        %v3027 = vld [vmem:[%s3005 + $0x19] sm:$0x1]
        %v3028 = vld [vmem:[%s3005 + $0x1a] sm:$0x1]
        %v3029 = vld [vmem:[%s3005 + $0x1b] sm:$0x1]
        %v3030 = vld [vmem:[%s3005 + $0x1e] sm:$0x1]
        %v3031 = vld [vmem:[%s3005 + $0x1f] sm:$0x1]
        %v3032 = vld [vmem:[%s3005 + $0x20] sm:$0x1]
        %v3033 = vld [vmem:[%s3005 + $0x21] sm:$0x1]
        %v3034 = vld [vmem:[%s3005 + $0x22] sm:$0x1]
        %v3035 = vld [vmem:[%s3005 + $0x23] sm:$0x1]
        %v3036 = vld [vmem:[%s3005 + $0x24] sm:$0x1]
        %v3037 = vld [vmem:[%s3005 + $0x25] sm:$0x1]
        %v3038 = vld [vmem:[%s3005 + $0x28] sm:$0x1]
        %v3039 = vld [vmem:[%s3005 + $0x29] sm:$0x1]
        %v3040 = vld [vmem:[%s3005 + $0x2a] sm:$0x1]
        %v3041 = vld [vmem:[%s3005 + $0x2b] sm:$0x1]
        %v3042 = vld [vmem:[%s3005 + $0x2c] sm:$0x1]
        %v3043 = vld [vmem:[%s3005 + $0x2d] sm:$0x1]
        %v3044 = vld [vmem:[%s3005 + $0x2e] sm:$0x1]
        %v3045 = vld [vmem:[%s3005 + $0x2f] sm:$0x1]
        %v3046 = vld [vmem:[%s3005 + $0x32] sm:$0x1]
        %v3047 = vld [vmem:[%s3005 + $0x33] sm:$0x1]
        %v3048 = vld [vmem:[%s3005 + $0x34] sm:$0x1]
        %v3049 = vld [vmem:[%s3005 + $0x35] sm:$0x1]
        %v3050 = vld [vmem:[%s3005 + $0x36] sm:$0x1]
        %v3051 = vld [vmem:[%s3005 + $0x37] sm:$0x1]
        %v3052 = vld [vmem:[%s3005 + $0x38] sm:$0x1]
        %v3053 = vld [vmem:[%s3005 + $0x39] sm:$0x1]
        %v3054 = vld [vmem:[%s3005 + $0x3c] sm:$0x1]
        %v3055 = vld [vmem:[%s3005 + $0x3d] sm:$0x1]
        %v3056 = vld [vmem:[%s3005 + $0x3e] sm:$0x1]
        %v3057 = vld [vmem:[%s3005 + $0x3f] sm:$0x1]
        %v3058 = vld [vmem:[%s3005 + $0x40] sm:$0x1]
        %v3059 = vld [vmem:[%s3005 + $0x41] sm:$0x1]
        %v3060 = vld [vmem:[%s3005 + $0x42] sm:$0x1]
        %v3061 = vld [vmem:[%s3005 + $0x43] sm:$0x1]
        %v3062 = vld [vmem:[%s3005 + $0x46] sm:$0x1]
        %v3063 = vld [vmem:[%s3005 + $0x47] sm:$0x1]
        %v3064 = vld [vmem:[%s3005 + $0x48] sm:$0x1]
        %v3065 = vld [vmem:[%s3005 + $0x49] sm:$0x1]
        %v3066 = vld [vmem:[%s3005 + $0x4a] sm:$0x1]
        %v3067 = vld [vmem:[%s3005 + $0x4b] sm:$0x1]
        %v3068 = vld [vmem:[%s3005 + $0x4c] sm:$0x1]
        %v3069 = vld [vmem:[%s3005 + $0x4d] sm:$0x1]
        %v3070 = vpack.c.bf16 %v3006, %v3006
        %v3071 = vpack.c.bf16 %v3007, %v3007
        %v3072 = vpack.c.bf16 %v3008, %v3008
        %v3073 = vpack.c.bf16 %v3009, %v3009
        %v3074 = vpack.c.bf16 %v3010, %v3010
        %v3075 = vpack.c.bf16 %v3011, %v3011
        %v3076 = vpack.c.bf16 %v3012, %v3012
        %v3077 = vpack.c.bf16 %v3013, %v3013
        %v3078 = vpack.c.bf16 %v3014, %v3014
        %v3079 = vpack.c.bf16 %v3015, %v3015
        %v3080 = vpack.c.bf16 %v3016, %v3016
        %v3081 = vpack.c.bf16 %v3017, %v3017
        %v3082 = vpack.c.bf16 %v3018, %v3018
        %v3083 = vpack.c.bf16 %v3019, %v3019
        %v3084 = vpack.c.bf16 %v3020, %v3020
        %v3085 = vpack.c.bf16 %v3021, %v3021
        %v3086 = vpack.c.bf16 %v3022, %v3022
        %v3087 = vpack.c.bf16 %v3023, %v3023
        %v3088 = vpack.c.bf16 %v3024, %v3024
        %v3089 = vpack.c.bf16 %v3025, %v3025
        %v3090 = vpack.c.bf16 %v3026, %v3026
        %v3091 = vpack.c.bf16 %v3027, %v3027
        %v3092 = vpack.c.bf16 %v3028, %v3028
        %v3093 = vpack.c.bf16 %v3029, %v3029
        %v3094 = vpack.c.bf16 %v3030, %v3030
        %v3095 = vpack.c.bf16 %v3031, %v3031
        %v3096 = vpack.c.bf16 %v3032, %v3032
        %v3097 = vpack.c.bf16 %v3033, %v3033
        %v3098 = vpack.c.bf16 %v3034, %v3034
        %v3099 = vpack.c.bf16 %v3035, %v3035
        %v3100 = vpack.c.bf16 %v3036, %v3036
        %v3101 = vpack.c.bf16 %v3037, %v3037
        %v3102 = vpack.c.bf16 %v3038, %v3038
        %v3103 = vpack.c.bf16 %v3039, %v3039
        %v3104 = vpack.c.bf16 %v3040, %v3040
        %v3105 = vpack.c.bf16 %v3041, %v3041
        %v3106 = vpack.c.bf16 %v3042, %v3042
        %v3107 = vpack.c.bf16 %v3043, %v3043
        %v3108 = vpack.c.bf16 %v3044, %v3044
        %v3109 = vpack.c.bf16 %v3045, %v3045
        %v3110 = vpack.c.bf16 %v3046, %v3046
        %v3111 = vpack.c.bf16 %v3047, %v3047
        %v3112 = vpack.c.bf16 %v3048, %v3048
        %v3113 = vpack.c.bf16 %v3049, %v3049
        %v3114 = vpack.c.bf16 %v3050, %v3050
        %v3115 = vpack.c.bf16 %v3051, %v3051
        %v3116 = vpack.c.bf16 %v3052, %v3052
        %v3117 = vpack.c.bf16 %v3053, %v3053
        %v3118 = vpack.c.bf16 %v3054, %v3054
        %v3119 = vpack.c.bf16 %v3055, %v3055
        %v3120 = vpack.c.bf16 %v3056, %v3056
        %v3121 = vpack.c.bf16 %v3057, %v3057
        %v3122 = vpack.c.bf16 %v3058, %v3058
        %v3123 = vpack.c.bf16 %v3059, %v3059
        %v3124 = vpack.c.bf16 %v3060, %v3060
        %v3125 = vpack.c.bf16 %v3061, %v3061
        %v3126 = vpack.c.bf16 %v3062, %v3062
        %v3127 = vpack.c.bf16 %v3063, %v3063
        %v3128 = vpack.c.bf16 %v3064, %v3064
        %v3129 = vpack.c.bf16 %v3065, %v3065
        %v3130 = vpack.c.bf16 %v3066, %v3066
        %v3131 = vpack.c.bf16 %v3067, %v3067
        %v3132 = vpack.c.bf16 %v3068, %v3068
        %v3133 = vpack.c.bf16 %v3069, %v3069
        %s3134 = scalar_lea.vmem %s3, 8
        %v3135 = vld [vmem:[%s3134] sm:$0xf]
        %v3136 = vld [vmem:[%s3134 + $0x4] sm:$0xf]
        %v3201 = vunpack.c.l.b16 %v3070
        %v3202 = vunpack.c.l.b16 %v3071
        %v3203 = vunpack.c.l.b16 %v3072
        %v3204 = vunpack.c.l.b16 %v3073
        %v3205 = vunpack.c.l.b16 %v3074
        %v3206 = vunpack.c.l.b16 %v3075
        %v3207 = vunpack.c.l.b16 %v3076
        %v3208 = vunpack.c.l.b16 %v3077
        %v3209 = vunpack.c.l.b16 %v3078
        %v3210 = vunpack.c.l.b16 %v3079
        %v3211 = vunpack.c.l.b16 %v3080
        %v3212 = vunpack.c.l.b16 %v3081
        %v3213 = vunpack.c.l.b16 %v3082
        %v3214 = vunpack.c.l.b16 %v3083
        %v3215 = vunpack.c.l.b16 %v3084
        %v3216 = vunpack.c.l.b16 %v3085
        %v3217 = vunpack.c.l.b16 %v3086
        %v3218 = vunpack.c.l.b16 %v3087
        %v3219 = vunpack.c.l.b16 %v3088
        %v3220 = vunpack.c.l.b16 %v3089
        %v3221 = vunpack.c.l.b16 %v3090
        %v3222 = vunpack.c.l.b16 %v3091
        %v3223 = vunpack.c.l.b16 %v3092
        %v3224 = vunpack.c.l.b16 %v3093
        %v3225 = vunpack.c.l.b16 %v3094
        %v3226 = vunpack.c.l.b16 %v3095
        %v3227 = vunpack.c.l.b16 %v3096
        %v3228 = vunpack.c.l.b16 %v3097
        %v3229 = vunpack.c.l.b16 %v3098
        %v3230 = vunpack.c.l.b16 %v3099
        %v3231 = vunpack.c.l.b16 %v3100
        %v3232 = vunpack.c.l.b16 %v3101
        %v3233 = vunpack.c.l.b16 %v3102
        %v3234 = vunpack.c.l.b16 %v3103
        %v3235 = vunpack.c.l.b16 %v3104
        %v3236 = vunpack.c.l.b16 %v3105
        %v3237 = vunpack.c.l.b16 %v3106
        %v3238 = vunpack.c.l.b16 %v3107
        %v3239 = vunpack.c.l.b16 %v3108
        %v3240 = vunpack.c.l.b16 %v3109
        %v3241 = vunpack.c.l.b16 %v3110
        %v3242 = vunpack.c.l.b16 %v3111
        %v3243 = vunpack.c.l.b16 %v3112
        %v3244 = vunpack.c.l.b16 %v3113
        %v3245 = vunpack.c.l.b16 %v3114
        %v3246 = vunpack.c.l.b16 %v3115
        %v3247 = vunpack.c.l.b16 %v3116
        %v3248 = vunpack.c.l.b16 %v3117
        %v3249 = vunpack.c.l.b16 %v3118
        %v3250 = vunpack.c.l.b16 %v3119
        %v3251 = vunpack.c.l.b16 %v3120
        %v3252 = vunpack.c.l.b16 %v3121
        %v3253 = vunpack.c.l.b16 %v3122
        %v3254 = vunpack.c.l.b16 %v3123
        %v3255 = vunpack.c.l.b16 %v3124
        %v3256 = vunpack.c.l.b16 %v3125
        %v3257 = vunpack.c.l.b16 %v3126
        %v3258 = vunpack.c.l.b16 %v3127
        %v3259 = vunpack.c.l.b16 %v3128
        %v3260 = vunpack.c.l.b16 %v3129
        %v3261 = vunpack.c.l.b16 %v3130
        %v3262 = vunpack.c.l.b16 %v3131
        %v3263 = vunpack.c.l.b16 %v3132
        %v3264 = vunpack.c.l.b16 %v3133
        %v3265 = vrot.slane %v3202, 7
        %v3266 = vsel %vm2575, %v3265, %v3201
        %v3267 = vrot.slane %v3203, 6
        %v3268 = vsel %vm2578, %v3267, %v3266
        %v3269 = vrot.slane %v3204, 5
        %v3270 = vsel %vm2581, %v3269, %v3268
        %v3271 = vrot.slane %v3205, 4
        %v3272 = vsel %vm2584, %v3271, %v3270
        %v3273 = vrot.slane %v3206, 3
        %v3274 = vsel %vm2587, %v3273, %v3272
        %v3275 = vrot.slane %v3207, 2
        %v3276 = vsel %vm2590, %v3275, %v3274
        %v3277 = vrot.slane %v3208, 1
        %v3278 = vsel %vm2593, %v3277, %v3276
        %v3279 = vrot.slane %v3210, 7
        %v3280 = vsel %vm2575, %v3279, %v3209
        %v3281 = vrot.slane %v3211, 6
        %v3282 = vsel %vm2578, %v3281, %v3280
        %v3283 = vrot.slane %v3212, 5
        %v3284 = vsel %vm2581, %v3283, %v3282
        %v3285 = vrot.slane %v3213, 4
        %v3286 = vsel %vm2584, %v3285, %v3284
        %v3287 = vrot.slane %v3214, 3
        %v3288 = vsel %vm2587, %v3287, %v3286
        %v3289 = vrot.slane %v3215, 2
        %v3290 = vsel %vm2590, %v3289, %v3288
        %v3291 = vrot.slane %v3216, 1
        %v3292 = vsel %vm2593, %v3291, %v3290
        %v3293 = vrot.slane %v3218, 7
        %v3294 = vsel %vm2575, %v3293, %v3217
        %v3295 = vrot.slane %v3219, 6
        %v3296 = vsel %vm2578, %v3295, %v3294
        %v3297 = vrot.slane %v3220, 5
        %v3298 = vsel %vm2581, %v3297, %v3296
        %v3299 = vrot.slane %v3221, 4
        %v3300 = vsel %vm2584, %v3299, %v3298
        %v3301 = vrot.slane %v3222, 3
        %v3302 = vsel %vm2587, %v3301, %v3300
        %v3303 = vrot.slane %v3223, 2
        %v3304 = vsel %vm2590, %v3303, %v3302
        %v3305 = vrot.slane %v3224, 1
        %v3306 = vsel %vm2593, %v3305, %v3304
        %v3307 = vrot.slane %v3226, 7
        %v3308 = vsel %vm2575, %v3307, %v3225
        %v3309 = vrot.slane %v3227, 6
        %v3310 = vsel %vm2578, %v3309, %v3308
        %v3311 = vrot.slane %v3228, 5
        %v3312 = vsel %vm2581, %v3311, %v3310
        %v3313 = vrot.slane %v3229, 4
        %v3314 = vsel %vm2584, %v3313, %v3312
        %v3315 = vrot.slane %v3230, 3
        %v3316 = vsel %vm2587, %v3315, %v3314
        %v3317 = vrot.slane %v3231, 2
        %v3318 = vsel %vm2590, %v3317, %v3316
        %v3319 = vrot.slane %v3232, 1
        %v3320 = vsel %vm2593, %v3319, %v3318
        %v3321 = vrot.slane %v3234, 7
        %v3322 = vsel %vm2575, %v3321, %v3233
        %v3323 = vrot.slane %v3235, 6
        %v3324 = vsel %vm2578, %v3323, %v3322
        %v3325 = vrot.slane %v3236, 5
        %v3326 = vsel %vm2581, %v3325, %v3324
        %v3327 = vrot.slane %v3237, 4
        %v3328 = vsel %vm2584, %v3327, %v3326
        %v3329 = vrot.slane %v3238, 3
        %v3330 = vsel %vm2587, %v3329, %v3328
        %v3331 = vrot.slane %v3239, 2
        %v3332 = vsel %vm2590, %v3331, %v3330
        %v3333 = vrot.slane %v3240, 1
        %v3334 = vsel %vm2593, %v3333, %v3332
        %v3335 = vrot.slane %v3242, 7
        %v3336 = vsel %vm2575, %v3335, %v3241
        %v3337 = vrot.slane %v3243, 6
        %v3338 = vsel %vm2578, %v3337, %v3336
        %v3339 = vrot.slane %v3244, 5
        %v3340 = vsel %vm2581, %v3339, %v3338
        %v3341 = vrot.slane %v3245, 4
        %v3342 = vsel %vm2584, %v3341, %v3340
        %v3343 = vrot.slane %v3246, 3
        %v3344 = vsel %vm2587, %v3343, %v3342
        %v3345 = vrot.slane %v3247, 2
        %v3346 = vsel %vm2590, %v3345, %v3344
        %v3347 = vrot.slane %v3248, 1
        %v3348 = vsel %vm2593, %v3347, %v3346
        %v3349 = vrot.slane %v3250, 7
        %v3350 = vsel %vm2575, %v3349, %v3249
        %v3351 = vrot.slane %v3251, 6
        %v3352 = vsel %vm2578, %v3351, %v3350
        %v3353 = vrot.slane %v3252, 5
        %v3354 = vsel %vm2581, %v3353, %v3352
        %v3355 = vrot.slane %v3253, 4
        %v3356 = vsel %vm2584, %v3355, %v3354
        %v3357 = vrot.slane %v3254, 3
        %v3358 = vsel %vm2587, %v3357, %v3356
        %v3359 = vrot.slane %v3255, 2
        %v3360 = vsel %vm2590, %v3359, %v3358
        %v3361 = vrot.slane %v3256, 1
        %v3362 = vsel %vm2593, %v3361, %v3360
        %v3363 = vrot.slane %v3258, 7
        %v3364 = vsel %vm2575, %v3363, %v3257
        %v3365 = vrot.slane %v3259, 6
        %v3366 = vsel %vm2578, %v3365, %v3364
        %v3367 = vrot.slane %v3260, 5
        %v3368 = vsel %vm2581, %v3367, %v3366
        %v3369 = vrot.slane %v3261, 4
        %v3370 = vsel %vm2584, %v3369, %v3368
        %v3371 = vrot.slane %v3262, 3
        %v3372 = vsel %vm2587, %v3371, %v3370
        %v3373 = vrot.slane %v3263, 2
        %v3374 = vsel %vm2590, %v3373, %v3372
        %v3375 = vrot.slane %v3264, 1
        %v3376 = vsel %vm2593, %v3375, %v3374
        %v3377 = vpack.c.b16 %v3292, %v3278
        %v3378 = vpack.c.b16 %v3320, %v3306
        %v3379 = vpack.c.b16 %v3348, %v3334
        %v3380 = vpack.c.b16 %v3376, %v3362
        %v3383 = vunpack.c.l.b16 %v3135
        %v3384 = vunpack.c.l.b16 %v3136
        %v3385 = vpack.c.b16 %v3384, %v3383
        %v3388 = vsel %vm865, %v3377, 0
        %v3391 = vsel %vm865, %v3378, 0
        %v3394 = vsel %vm865, %v3379, 0
        %v3397 = vsel %vm865, %v3380, 0
        %3399 = vmatprep.subr.bf16.mxu0 0
        %3400 = vmatpush1.bf16.msra.mxu0 %v3385
        %3401 = vmatprep.subr.bf16.mxu0 0
        %3402 = vmatpush1.bf16.msra.mxu0 0
        %3403 = vmatprep.subr.bf16.mxu0 0
        %3404 = vmatpush1.bf16.msra.mxu0 0
        %3405 = vmatprep.subr.bf16.mxu0 0
        %3406 = vmatpush1.bf16.msra.mxu0 0
        %3407 = vmatprep.subr.bf16.mxu0 0
        %3408 = vmatpush1.bf16.msra.mxu0 0
        %3409 = vmatprep.subr.bf16.mxu0 0
        %3410 = vmatpush1.bf16.msra.mxu0 0
        %3411 = vmatprep.subr.bf16.mxu0 0
        %3412 = vmatpush1.bf16.msra.mxu0 0
        %3413 = vmatprep.subr.bf16.mxu0 0
        %3414 = vmatpush1.bf16.msra.mxu0 0
        %3415 = vmatprep.subr.bf16.mxu0 0
        %3416 = vmatpush1.bf16.msra.mxu0 0
        %3417 = vmatprep.subr.bf16.mxu0 0
        %3418 = vmatpush1.bf16.msra.mxu0 0
        %3419 = vmatprep.subr.bf16.mxu0 0
        %3420 = vmatpush1.bf16.msra.mxu0 0
        %3421 = vmatprep.subr.bf16.mxu0 0
        %3422 = vmatpush1.bf16.msra.mxu0 0
        %3423 = vmatprep.subr.bf16.mxu0 0
        %3424 = vmatpush1.bf16.msra.mxu0 0
        %3425 = vmatprep.subr.bf16.mxu0 0
        %3426 = vmatpush1.bf16.msra.mxu0 0
        %3427 = vmatprep.subr.bf16.mxu0 0
        %3428 = vmatpush1.bf16.msra.mxu0 0
        %3429 = vmatprep.subr.bf16.mxu0 0
        %3430 = vmatpush1.bf16.msra.mxu0 0
        %3431 = vmatprep.mubr.bf16.mxu0 0
        %3432 = vmatmul.mubr.bf16.gmra.mrb[0].mxu0 %v3388
        %v3433 = vpop.f32.mrb[0].mxu0
        %v3434 = vadd.f32 0.0, %v3433
        %v3435 = vpop.f32.mrb[0].mxu0
        %v3436 = vpop.f32.mrb[0].mxu0
        %v3437 = vadd.f32 0.0, %v3436
        %v3438 = vpop.f32.mrb[0].mxu0
        %3439 = vmatprep.mubr.bf16.mxu0 0
        %3440 = vmatmul.mubr.bf16.gmra.mrb[0].mxu0 %v3391
        %v3441 = vpop.f32.mrb[0].mxu0
        %v3442 = vadd.f32 0.0, %v3441
        %v3443 = vpop.f32.mrb[0].mxu0
        %v3444 = vpop.f32.mrb[0].mxu0
        %v3445 = vadd.f32 0.0, %v3444
        %v3446 = vpop.f32.mrb[0].mxu0
        %3447 = vmatprep.mubr.bf16.mxu0 0
        %3448 = vmatmul.mubr.bf16.gmra.mrb[0].mxu0 %v3394
        %v3449 = vpop.f32.mrb[0].mxu0
        %v3450 = vadd.f32 0.0, %v3449
        %v3451 = vpop.f32.mrb[0].mxu0
        %v3452 = vpop.f32.mrb[0].mxu0
        %v3453 = vadd.f32 0.0, %v3452
        %v3454 = vpop.f32.mrb[0].mxu0
        %3455 = vmatprep.mubr.bf16.mxu0 0
        %3456 = vmatmul.mubr.bf16.gmra.mrb[0].mxu0 %v3397
        %v3457 = vpop.f32.mrb[0].mxu0
        %v3458 = vadd.f32 0.0, %v3457
        %v3459 = vpop.f32.mrb[0].mxu0
        %v3460 = vpop.f32.mrb[0].mxu0
        %v3461 = vadd.f32 0.0, %v3460
        %v3462 = vpop.f32.mrb[0].mxu0
        %3463 = vdwg.mxu0
        %v3528 = vunpack.c.l.b16 %v2939
        %v3529 = vunpack.c.l.b16 %v2940
        %v3530 = vunpack.c.l.b16 %v2941
        %v3531 = vunpack.c.l.b16 %v2942
        %v3532 = vunpack.c.l.b16 %v2943
        %v3533 = vunpack.c.l.b16 %v2944
        %v3534 = vunpack.c.l.b16 %v2945
        %v3535 = vunpack.c.l.b16 %v2946
        %v3536 = vunpack.c.l.b16 %v2947
        %v3537 = vunpack.c.l.b16 %v2948
        %v3538 = vunpack.c.l.b16 %v2949
        %v3539 = vunpack.c.l.b16 %v2950
        %v3540 = vunpack.c.l.b16 %v2951
        %v3541 = vunpack.c.l.b16 %v2952
        %v3542 = vunpack.c.l.b16 %v2953
        %v3543 = vunpack.c.l.b16 %v2954
        %v3544 = vunpack.c.l.b16 %v2955
        %v3545 = vunpack.c.l.b16 %v2956
        %v3546 = vunpack.c.l.b16 %v2957
        %v3547 = vunpack.c.l.b16 %v2958
        %v3548 = vunpack.c.l.b16 %v2959
        %v3549 = vunpack.c.l.b16 %v2960
        %v3550 = vunpack.c.l.b16 %v2961
        %v3551 = vunpack.c.l.b16 %v2962
        %v3552 = vunpack.c.l.b16 %v2963
        %v3553 = vunpack.c.l.b16 %v2964
        %v3554 = vunpack.c.l.b16 %v2965
        %v3555 = vunpack.c.l.b16 %v2966
        %v3556 = vunpack.c.l.b16 %v2967
        %v3557 = vunpack.c.l.b16 %v2968
        %v3558 = vunpack.c.l.b16 %v2969
        %v3559 = vunpack.c.l.b16 %v2970
        %v3560 = vunpack.c.l.b16 %v2971
        %v3561 = vunpack.c.l.b16 %v2972
        %v3562 = vunpack.c.l.b16 %v2973
        %v3563 = vunpack.c.l.b16 %v2974
        %v3564 = vunpack.c.l.b16 %v2975
        %v3565 = vunpack.c.l.b16 %v2976
        %v3566 = vunpack.c.l.b16 %v2977
        %v3567 = vunpack.c.l.b16 %v2978
        %v3568 = vunpack.c.l.b16 %v2979
        %v3569 = vunpack.c.l.b16 %v2980
        %v3570 = vunpack.c.l.b16 %v2981
        %v3571 = vunpack.c.l.b16 %v2982
        %v3572 = vunpack.c.l.b16 %v2983
        %v3573 = vunpack.c.l.b16 %v2984
        %v3574 = vunpack.c.l.b16 %v2985
        %v3575 = vunpack.c.l.b16 %v2986
        %v3576 = vunpack.c.l.b16 %v2987
        %v3577 = vunpack.c.l.b16 %v2988
        %v3578 = vunpack.c.l.b16 %v2989
        %v3579 = vunpack.c.l.b16 %v2990
        %v3580 = vunpack.c.l.b16 %v2991
        %v3581 = vunpack.c.l.b16 %v2992
        %v3582 = vunpack.c.l.b16 %v2993
        %v3583 = vunpack.c.l.b16 %v2994
        %v3584 = vunpack.c.l.b16 %v2995
        %v3585 = vunpack.c.l.b16 %v2996
        %v3586 = vunpack.c.l.b16 %v2997
        %v3587 = vunpack.c.l.b16 %v2998
        %v3588 = vunpack.c.l.b16 %v2999
        %v3589 = vunpack.c.l.b16 %v3000
        %v3590 = vunpack.c.l.b16 %v3001
        %v3591 = vunpack.c.l.b16 %v3002
        %v3592 = vrot.slane %v3529, 7
        %v3593 = vsel %vm2575, %v3592, %v3528
        %v3594 = vrot.slane %v3530, 6
        %v3595 = vsel %vm2578, %v3594, %v3593
        %v3596 = vrot.slane %v3531, 5
        %v3597 = vsel %vm2581, %v3596, %v3595
        %v3598 = vrot.slane %v3532, 4
        %v3599 = vsel %vm2584, %v3598, %v3597
        %v3600 = vrot.slane %v3533, 3
        %v3601 = vsel %vm2587, %v3600, %v3599
        %v3602 = vrot.slane %v3534, 2
        %v3603 = vsel %vm2590, %v3602, %v3601
        %v3604 = vrot.slane %v3535, 1
        %v3605 = vsel %vm2593, %v3604, %v3603
        %v3606 = vrot.slane %v3537, 7
        %v3607 = vsel %vm2575, %v3606, %v3536
        %v3608 = vrot.slane %v3538, 6
        %v3609 = vsel %vm2578, %v3608, %v3607
        %v3610 = vrot.slane %v3539, 5
        %v3611 = vsel %vm2581, %v3610, %v3609
        %v3612 = vrot.slane %v3540, 4
        %v3613 = vsel %vm2584, %v3612, %v3611
        %v3614 = vrot.slane %v3541, 3
        %v3615 = vsel %vm2587, %v3614, %v3613
        %v3616 = vrot.slane %v3542, 2
        %v3617 = vsel %vm2590, %v3616, %v3615
        %v3618 = vrot.slane %v3543, 1
        %v3619 = vsel %vm2593, %v3618, %v3617
        %v3620 = vrot.slane %v3545, 7
        %v3621 = vsel %vm2575, %v3620, %v3544
        %v3622 = vrot.slane %v3546, 6
        %v3623 = vsel %vm2578, %v3622, %v3621
        %v3624 = vrot.slane %v3547, 5
        %v3625 = vsel %vm2581, %v3624, %v3623
        %v3626 = vrot.slane %v3548, 4
        %v3627 = vsel %vm2584, %v3626, %v3625
        %v3628 = vrot.slane %v3549, 3
        %v3629 = vsel %vm2587, %v3628, %v3627
        %v3630 = vrot.slane %v3550, 2
        %v3631 = vsel %vm2590, %v3630, %v3629
        %v3632 = vrot.slane %v3551, 1
        %v3633 = vsel %vm2593, %v3632, %v3631
        %v3634 = vrot.slane %v3553, 7
        %v3635 = vsel %vm2575, %v3634, %v3552
        %v3636 = vrot.slane %v3554, 6
        %v3637 = vsel %vm2578, %v3636, %v3635
        %v3638 = vrot.slane %v3555, 5
        %v3639 = vsel %vm2581, %v3638, %v3637
        %v3640 = vrot.slane %v3556, 4
        %v3641 = vsel %vm2584, %v3640, %v3639
        %v3642 = vrot.slane %v3557, 3
        %v3643 = vsel %vm2587, %v3642, %v3641
        %v3644 = vrot.slane %v3558, 2
        %v3645 = vsel %vm2590, %v3644, %v3643
        %v3646 = vrot.slane %v3559, 1
        %v3647 = vsel %vm2593, %v3646, %v3645
        %v3648 = vrot.slane %v3561, 7
        %v3649 = vsel %vm2575, %v3648, %v3560
        %v3650 = vrot.slane %v3562, 6
        %v3651 = vsel %vm2578, %v3650, %v3649
        %v3652 = vrot.slane %v3563, 5
        %v3653 = vsel %vm2581, %v3652, %v3651
        %v3654 = vrot.slane %v3564, 4
        %v3655 = vsel %vm2584, %v3654, %v3653
        %v3656 = vrot.slane %v3565, 3
        %v3657 = vsel %vm2587, %v3656, %v3655
        %v3658 = vrot.slane %v3566, 2
        %v3659 = vsel %vm2590, %v3658, %v3657
        %v3660 = vrot.slane %v3567, 1
        %v3661 = vsel %vm2593, %v3660, %v3659
        %v3662 = vrot.slane %v3569, 7
        %v3663 = vsel %vm2575, %v3662, %v3568
        %v3664 = vrot.slane %v3570, 6
        %v3665 = vsel %vm2578, %v3664, %v3663
        %v3666 = vrot.slane %v3571, 5
        %v3667 = vsel %vm2581, %v3666, %v3665
        %v3668 = vrot.slane %v3572, 4
        %v3669 = vsel %vm2584, %v3668, %v3667
        %v3670 = vrot.slane %v3573, 3
        %v3671 = vsel %vm2587, %v3670, %v3669
        %v3672 = vrot.slane %v3574, 2
        %v3673 = vsel %vm2590, %v3672, %v3671
        %v3674 = vrot.slane %v3575, 1
        %v3675 = vsel %vm2593, %v3674, %v3673
        %v3676 = vrot.slane %v3577, 7
        %v3677 = vsel %vm2575, %v3676, %v3576
        %v3678 = vrot.slane %v3578, 6
        %v3679 = vsel %vm2578, %v3678, %v3677
        %v3680 = vrot.slane %v3579, 5
        %v3681 = vsel %vm2581, %v3680, %v3679
        %v3682 = vrot.slane %v3580, 4
        %v3683 = vsel %vm2584, %v3682, %v3681
        %v3684 = vrot.slane %v3581, 3
        %v3685 = vsel %vm2587, %v3684, %v3683
        %v3686 = vrot.slane %v3582, 2
        %v3687 = vsel %vm2590, %v3686, %v3685
        %v3688 = vrot.slane %v3583, 1
        %v3689 = vsel %vm2593, %v3688, %v3687
        %v3690 = vrot.slane %v3585, 7
        %v3691 = vsel %vm2575, %v3690, %v3584
        %v3692 = vrot.slane %v3586, 6
        %v3693 = vsel %vm2578, %v3692, %v3691
        %v3694 = vrot.slane %v3587, 5
        %v3695 = vsel %vm2581, %v3694, %v3693
        %v3696 = vrot.slane %v3588, 4
        %v3697 = vsel %vm2584, %v3696, %v3695
        %v3698 = vrot.slane %v3589, 3
        %v3699 = vsel %vm2587, %v3698, %v3697
        %v3700 = vrot.slane %v3590, 2
        %v3701 = vsel %vm2590, %v3700, %v3699
        %v3702 = vrot.slane %v3591, 1
        %v3703 = vsel %vm2593, %v3702, %v3701
        %v3704 = vpack.c.b16 %v3619, %v3605
        %v3705 = vpack.c.b16 %v3647, %v3633
        %v3706 = vpack.c.b16 %v3675, %v3661
        %v3707 = vpack.c.b16 %v3703, %v3689
        %v3710 = vunpack.c.l.b16 %v3003
        %v3711 = vunpack.c.l.b16 %v3004
        %v3712 = vpack.c.b16 %v3711, %v3710
        %v3715 = vsel %vm865, %v3704, 0
        %v3718 = vsel %vm865, %v3705, 0
        %v3721 = vsel %vm865, %v3706, 0
        %v3724 = vsel %vm865, %v3707, 0
        %3726 = vmatprep.subr.bf16.mxu0 0
        %3727 = vmatpush1.bf16.msra.mxu0 %v3712
        %3728 = vmatprep.subr.bf16.mxu0 0
        %3729 = vmatpush1.bf16.msra.mxu0 0
        %3730 = vmatprep.subr.bf16.mxu0 0
        %3731 = vmatpush1.bf16.msra.mxu0 0
        %3732 = vmatprep.subr.bf16.mxu0 0
        %3733 = vmatpush1.bf16.msra.mxu0 0
        %3734 = vmatprep.subr.bf16.mxu0 0
        %3735 = vmatpush1.bf16.msra.mxu0 0
        %3736 = vmatprep.subr.bf16.mxu0 0
        %3737 = vmatpush1.bf16.msra.mxu0 0
        %3738 = vmatprep.subr.bf16.mxu0 0
        %3739 = vmatpush1.bf16.msra.mxu0 0
        %3740 = vmatprep.subr.bf16.mxu0 0
        %3741 = vmatpush1.bf16.msra.mxu0 0
        %3742 = vmatprep.subr.bf16.mxu0 0
        %3743 = vmatpush1.bf16.msra.mxu0 0
        %3744 = vmatprep.subr.bf16.mxu0 0
        %3745 = vmatpush1.bf16.msra.mxu0 0
        %3746 = vmatprep.subr.bf16.mxu0 0
        %3747 = vmatpush1.bf16.msra.mxu0 0
        %3748 = vmatprep.subr.bf16.mxu0 0
        %3749 = vmatpush1.bf16.msra.mxu0 0
        %3750 = vmatprep.subr.bf16.mxu0 0
        %3751 = vmatpush1.bf16.msra.mxu0 0
        %3752 = vmatprep.subr.bf16.mxu0 0
        %3753 = vmatpush1.bf16.msra.mxu0 0
        %3754 = vmatprep.subr.bf16.mxu0 0
        %3755 = vmatpush1.bf16.msra.mxu0 0
        %3756 = vmatprep.subr.bf16.mxu0 0
        %3757 = vmatpush1.bf16.msra.mxu0 0
        %3758 = vmatprep.mubr.bf16.mxu0 0
        %3759 = vmatmul.mubr.bf16.gmra.mrb[0].mxu0 %v3715
        %v3760 = vpop.f32.mrb[0].mxu0
        %v3761 = vadd.f32 %v3434, %v3760
        %v3762 = vpop.f32.mrb[0].mxu0
        %v3763 = vpop.f32.mrb[0].mxu0
        %v3764 = vadd.f32 %v3437, %v3763
        %v3765 = vpop.f32.mrb[0].mxu0
        %3766 = vmatprep.mubr.bf16.mxu0 0
        %3767 = vmatmul.mubr.bf16.gmra.mrb[0].mxu0 %v3718
        %v3768 = vpop.f32.mrb[0].mxu0
        %v3769 = vadd.f32 %v3442, %v3768
        %v3770 = vpop.f32.mrb[0].mxu0
        %v3771 = vpop.f32.mrb[0].mxu0
        %v3772 = vadd.f32 %v3445, %v3771
        %v3773 = vpop.f32.mrb[0].mxu0
        %3774 = vmatprep.mubr.bf16.mxu0 0
        %3775 = vmatmul.mubr.bf16.gmra.mrb[0].mxu0 %v3721
        %v3776 = vpop.f32.mrb[0].mxu0
        %v3777 = vadd.f32 %v3450, %v3776
        %v3778 = vpop.f32.mrb[0].mxu0
        %v3779 = vpop.f32.mrb[0].mxu0
        %v3780 = vadd.f32 %v3453, %v3779
        %v3781 = vpop.f32.mrb[0].mxu0
        %3782 = vmatprep.mubr.bf16.mxu0 0
        %3783 = vmatmul.mubr.bf16.gmra.mrb[0].mxu0 %v3724
        %v3784 = vpop.f32.mrb[0].mxu0
        %v3785 = vadd.f32 %v3458, %v3784
        %v3786 = vpop.f32.mrb[0].mxu0
        %v3787 = vpop.f32.mrb[0].mxu0
        %v3788 = vadd.f32 %v3461, %v3787
        %v3789 = vpop.f32.mrb[0].mxu0
        %3790 = vdwg.mxu0
        %s3791 = scalar_lea.vmem [#allocation4], 2
        %v3792 = vld [vmem:[%s3791] sm:$0x1]
        %v3793 = vld [vmem:[%s3791 + $0x1] sm:$0x1]
        %v3794 = vld [vmem:[%s3791 + $0x2] sm:$0x1]
        %v3795 = vld [vmem:[%s3791 + $0x3] sm:$0x1]
        %v3796 = vld [vmem:[%s3791 + $0x4] sm:$0x1]
        %v3797 = vld [vmem:[%s3791 + $0x5] sm:$0x1]
        %v3798 = vld [vmem:[%s3791 + $0x6] sm:$0x1]
        %v3799 = vld [vmem:[%s3791 + $0x7] sm:$0x1]
        %v3800 = vld [vmem:[%s3791 + $0xa] sm:$0x1]
        %v3801 = vld [vmem:[%s3791 + $0xb] sm:$0x1]
        %v3802 = vld [vmem:[%s3791 + $0xc] sm:$0x1]
        %v3803 = vld [vmem:[%s3791 + $0xd] sm:$0x1]
        %v3804 = vld [vmem:[%s3791 + $0xe] sm:$0x1]
        %v3805 = vld [vmem:[%s3791 + $0xf] sm:$0x1]
        %v3806 = vld [vmem:[%s3791 + $0x10] sm:$0x1]
        %v3807 = vld [vmem:[%s3791 + $0x11] sm:$0x1]
        %v3808 = vld [vmem:[%s3791 + $0x14] sm:$0x1]
        %v3809 = vld [vmem:[%s3791 + $0x15] sm:$0x1]
        %v3810 = vld [vmem:[%s3791 + $0x16] sm:$0x1]
        %v3811 = vld [vmem:[%s3791 + $0x17] sm:$0x1]
        %v3812 = vld [vmem:[%s3791 + $0x18] sm:$0x1]
        %v3813 = vld [vmem:[%s3791 + $0x19] sm:$0x1]
        %v3814 = vld [vmem:[%s3791 + $0x1a] sm:$0x1]
        %v3815 = vld [vmem:[%s3791 + $0x1b] sm:$0x1]
        %v3816 = vld [vmem:[%s3791 + $0x1e] sm:$0x1]
        %v3817 = vld [vmem:[%s3791 + $0x1f] sm:$0x1]
        %v3818 = vld [vmem:[%s3791 + $0x20] sm:$0x1]
        %v3819 = vld [vmem:[%s3791 + $0x21] sm:$0x1]
        %v3820 = vld [vmem:[%s3791 + $0x22] sm:$0x1]
        %v3821 = vld [vmem:[%s3791 + $0x23] sm:$0x1]
        %v3822 = vld [vmem:[%s3791 + $0x24] sm:$0x1]
        %v3823 = vld [vmem:[%s3791 + $0x25] sm:$0x1]
        %v3824 = vld [vmem:[%s3791 + $0x28] sm:$0x1]
        %v3825 = vld [vmem:[%s3791 + $0x29] sm:$0x1]
        %v3826 = vld [vmem:[%s3791 + $0x2a] sm:$0x1]
        %v3827 = vld [vmem:[%s3791 + $0x2b] sm:$0x1]
        %v3828 = vld [vmem:[%s3791 + $0x2c] sm:$0x1]
        %v3829 = vld [vmem:[%s3791 + $0x2d] sm:$0x1]
        %v3830 = vld [vmem:[%s3791 + $0x2e] sm:$0x1]
        %v3831 = vld [vmem:[%s3791 + $0x2f] sm:$0x1]
        %v3832 = vld [vmem:[%s3791 + $0x32] sm:$0x1]
        %v3833 = vld [vmem:[%s3791 + $0x33] sm:$0x1]
        %v3834 = vld [vmem:[%s3791 + $0x34] sm:$0x1]
        %v3835 = vld [vmem:[%s3791 + $0x35] sm:$0x1]
        %v3836 = vld [vmem:[%s3791 + $0x36] sm:$0x1]
        %v3837 = vld [vmem:[%s3791 + $0x37] sm:$0x1]
        %v3838 = vld [vmem:[%s3791 + $0x38] sm:$0x1]
        %v3839 = vld [vmem:[%s3791 + $0x39] sm:$0x1]
        %v3840 = vld [vmem:[%s3791 + $0x3c] sm:$0x1]
        %v3841 = vld [vmem:[%s3791 + $0x3d] sm:$0x1]
        %v3842 = vld [vmem:[%s3791 + $0x3e] sm:$0x1]
        %v3843 = vld [vmem:[%s3791 + $0x3f] sm:$0x1]
        %v3844 = vld [vmem:[%s3791 + $0x40] sm:$0x1]
        %v3845 = vld [vmem:[%s3791 + $0x41] sm:$0x1]
        %v3846 = vld [vmem:[%s3791 + $0x42] sm:$0x1]
        %v3847 = vld [vmem:[%s3791 + $0x43] sm:$0x1]
        %v3848 = vld [vmem:[%s3791 + $0x46] sm:$0x1]
        %v3849 = vld [vmem:[%s3791 + $0x47] sm:$0x1]
        %v3850 = vld [vmem:[%s3791 + $0x48] sm:$0x1]
        %v3851 = vld [vmem:[%s3791 + $0x49] sm:$0x1]
        %v3852 = vld [vmem:[%s3791 + $0x4a] sm:$0x1]
        %v3853 = vld [vmem:[%s3791 + $0x4b] sm:$0x1]
        %v3854 = vld [vmem:[%s3791 + $0x4c] sm:$0x1]
        %v3855 = vld [vmem:[%s3791 + $0x4d] sm:$0x1]
        %v3856 = vpack.c.bf16 %v3792, %v3792
        %v3857 = vpack.c.bf16 %v3793, %v3793
        %v3858 = vpack.c.bf16 %v3794, %v3794
        %v3859 = vpack.c.bf16 %v3795, %v3795
        %v3860 = vpack.c.bf16 %v3796, %v3796
        %v3861 = vpack.c.bf16 %v3797, %v3797
        %v3862 = vpack.c.bf16 %v3798, %v3798
        %v3863 = vpack.c.bf16 %v3799, %v3799
        %v3864 = vpack.c.bf16 %v3800, %v3800
        %v3865 = vpack.c.bf16 %v3801, %v3801
        %v3866 = vpack.c.bf16 %v3802, %v3802
        %v3867 = vpack.c.bf16 %v3803, %v3803
        %v3868 = vpack.c.bf16 %v3804, %v3804
        %v3869 = vpack.c.bf16 %v3805, %v3805
        %v3870 = vpack.c.bf16 %v3806, %v3806
        %v3871 = vpack.c.bf16 %v3807, %v3807
        %v3872 = vpack.c.bf16 %v3808, %v3808
        %v3873 = vpack.c.bf16 %v3809, %v3809
        %v3874 = vpack.c.bf16 %v3810, %v3810
        %v3875 = vpack.c.bf16 %v3811, %v3811
        %v3876 = vpack.c.bf16 %v3812, %v3812
        %v3877 = vpack.c.bf16 %v3813, %v3813
        %v3878 = vpack.c.bf16 %v3814, %v3814
        %v3879 = vpack.c.bf16 %v3815, %v3815
        %v3880 = vpack.c.bf16 %v3816, %v3816
        %v3881 = vpack.c.bf16 %v3817, %v3817
        %v3882 = vpack.c.bf16 %v3818, %v3818
        %v3883 = vpack.c.bf16 %v3819, %v3819
        %v3884 = vpack.c.bf16 %v3820, %v3820
        %v3885 = vpack.c.bf16 %v3821, %v3821
        %v3886 = vpack.c.bf16 %v3822, %v3822
        %v3887 = vpack.c.bf16 %v3823, %v3823
        %v3888 = vpack.c.bf16 %v3824, %v3824
        %v3889 = vpack.c.bf16 %v3825, %v3825
        %v3890 = vpack.c.bf16 %v3826, %v3826
        %v3891 = vpack.c.bf16 %v3827, %v3827
        %v3892 = vpack.c.bf16 %v3828, %v3828
        %v3893 = vpack.c.bf16 %v3829, %v3829
        %v3894 = vpack.c.bf16 %v3830, %v3830
        %v3895 = vpack.c.bf16 %v3831, %v3831
        %v3896 = vpack.c.bf16 %v3832, %v3832
        %v3897 = vpack.c.bf16 %v3833, %v3833
        %v3898 = vpack.c.bf16 %v3834, %v3834
        %v3899 = vpack.c.bf16 %v3835, %v3835
        %v3900 = vpack.c.bf16 %v3836, %v3836
        %v3901 = vpack.c.bf16 %v3837, %v3837
        %v3902 = vpack.c.bf16 %v3838, %v3838
        %v3903 = vpack.c.bf16 %v3839, %v3839
        %v3904 = vpack.c.bf16 %v3840, %v3840
        %v3905 = vpack.c.bf16 %v3841, %v3841
        %v3906 = vpack.c.bf16 %v3842, %v3842
        %v3907 = vpack.c.bf16 %v3843, %v3843
        %v3908 = vpack.c.bf16 %v3844, %v3844
        %v3909 = vpack.c.bf16 %v3845, %v3845
        %v3910 = vpack.c.bf16 %v3846, %v3846
        %v3911 = vpack.c.bf16 %v3847, %v3847
        %v3912 = vpack.c.bf16 %v3848, %v3848
        %v3913 = vpack.c.bf16 %v3849, %v3849
        %v3914 = vpack.c.bf16 %v3850, %v3850
        %v3915 = vpack.c.bf16 %v3851, %v3851
        %v3916 = vpack.c.bf16 %v3852, %v3852
        %v3917 = vpack.c.bf16 %v3853, %v3853
        %v3918 = vpack.c.bf16 %v3854, %v3854
        %v3919 = vpack.c.bf16 %v3855, %v3855
        %s3920 = scalar_lea.vmem %s3, 16
        %v3921 = vld [vmem:[%s3920] sm:$0xf]
        %v3922 = vld [vmem:[%s3920 + $0x4] sm:$0xf]
        %v3987 = vunpack.c.l.b16 %v3856
        %v3988 = vunpack.c.l.b16 %v3857
        %v3989 = vunpack.c.l.b16 %v3858
        %v3990 = vunpack.c.l.b16 %v3859
        %v3991 = vunpack.c.l.b16 %v3860
        %v3992 = vunpack.c.l.b16 %v3861
        %v3993 = vunpack.c.l.b16 %v3862
        %v3994 = vunpack.c.l.b16 %v3863
        %v3995 = vunpack.c.l.b16 %v3864
        %v3996 = vunpack.c.l.b16 %v3865
        %v3997 = vunpack.c.l.b16 %v3866
        %v3998 = vunpack.c.l.b16 %v3867
        %v3999 = vunpack.c.l.b16 %v3868
        %v4000 = vunpack.c.l.b16 %v3869
        %v4001 = vunpack.c.l.b16 %v3870
        %v4002 = vunpack.c.l.b16 %v3871
        %v4003 = vunpack.c.l.b16 %v3872
        %v4004 = vunpack.c.l.b16 %v3873
        %v4005 = vunpack.c.l.b16 %v3874
        %v4006 = vunpack.c.l.b16 %v3875
        %v4007 = vunpack.c.l.b16 %v3876
        %v4008 = vunpack.c.l.b16 %v3877
        %v4009 = vunpack.c.l.b16 %v3878
        %v4010 = vunpack.c.l.b16 %v3879
        %v4011 = vunpack.c.l.b16 %v3880
        %v4012 = vunpack.c.l.b16 %v3881
        %v4013 = vunpack.c.l.b16 %v3882
        %v4014 = vunpack.c.l.b16 %v3883
        %v4015 = vunpack.c.l.b16 %v3884
        %v4016 = vunpack.c.l.b16 %v3885
        %v4017 = vunpack.c.l.b16 %v3886
        %v4018 = vunpack.c.l.b16 %v3887
        %v4019 = vunpack.c.l.b16 %v3888
        %v4020 = vunpack.c.l.b16 %v3889
        %v4021 = vunpack.c.l.b16 %v3890
        %v4022 = vunpack.c.l.b16 %v3891
        %v4023 = vunpack.c.l.b16 %v3892
        %v4024 = vunpack.c.l.b16 %v3893
        %v4025 = vunpack.c.l.b16 %v3894
        %v4026 = vunpack.c.l.b16 %v3895
        %v4027 = vunpack.c.l.b16 %v3896
        %v4028 = vunpack.c.l.b16 %v3897
        %v4029 = vunpack.c.l.b16 %v3898
        %v4030 = vunpack.c.l.b16 %v3899
        %v4031 = vunpack.c.l.b16 %v3900
        %v4032 = vunpack.c.l.b16 %v3901
        %v4033 = vunpack.c.l.b16 %v3902
        %v4034 = vunpack.c.l.b16 %v3903
        %v4035 = vunpack.c.l.b16 %v3904
        %v4036 = vunpack.c.l.b16 %v3905
        %v4037 = vunpack.c.l.b16 %v3906
        %v4038 = vunpack.c.l.b16 %v3907
        %v4039 = vunpack.c.l.b16 %v3908
        %v4040 = vunpack.c.l.b16 %v3909
        %v4041 = vunpack.c.l.b16 %v3910
        %v4042 = vunpack.c.l.b16 %v3911
        %v4043 = vunpack.c.l.b16 %v3912
        %v4044 = vunpack.c.l.b16 %v3913
        %v4045 = vunpack.c.l.b16 %v3914
        %v4046 = vunpack.c.l.b16 %v3915
        %v4047 = vunpack.c.l.b16 %v3916
        %v4048 = vunpack.c.l.b16 %v3917
        %v4049 = vunpack.c.l.b16 %v3918
        %v4050 = vunpack.c.l.b16 %v3919
        %v4051 = vrot.slane %v3988, 7
        %v4052 = vsel %vm2575, %v4051, %v3987
        %v4053 = vrot.slane %v3989, 6
        %v4054 = vsel %vm2578, %v4053, %v4052
        %v4055 = vrot.slane %v3990, 5
        %v4056 = vsel %vm2581, %v4055, %v4054
        %v4057 = vrot.slane %v3991, 4
        %v4058 = vsel %vm2584, %v4057, %v4056
        %v4059 = vrot.slane %v3992, 3
        %v4060 = vsel %vm2587, %v4059, %v4058
        %v4061 = vrot.slane %v3993, 2
        %v4062 = vsel %vm2590, %v4061, %v4060
        %v4063 = vrot.slane %v3994, 1
        %v4064 = vsel %vm2593, %v4063, %v4062
        %v4065 = vrot.slane %v3996, 7
        %v4066 = vsel %vm2575, %v4065, %v3995
        %v4067 = vrot.slane %v3997, 6
        %v4068 = vsel %vm2578, %v4067, %v4066
        %v4069 = vrot.slane %v3998, 5
        %v4070 = vsel %vm2581, %v4069, %v4068
        %v4071 = vrot.slane %v3999, 4
        %v4072 = vsel %vm2584, %v4071, %v4070
        %v4073 = vrot.slane %v4000, 3
        %v4074 = vsel %vm2587, %v4073, %v4072
        %v4075 = vrot.slane %v4001, 2
        %v4076 = vsel %vm2590, %v4075, %v4074
        %v4077 = vrot.slane %v4002, 1
        %v4078 = vsel %vm2593, %v4077, %v4076
        %v4079 = vrot.slane %v4004, 7
        %v4080 = vsel %vm2575, %v4079, %v4003
        %v4081 = vrot.slane %v4005, 6
        %v4082 = vsel %vm2578, %v4081, %v4080
        %v4083 = vrot.slane %v4006, 5
        %v4084 = vsel %vm2581, %v4083, %v4082
        %v4085 = vrot.slane %v4007, 4
        %v4086 = vsel %vm2584, %v4085, %v4084
        %v4087 = vrot.slane %v4008, 3
        %v4088 = vsel %vm2587, %v4087, %v4086
        %v4089 = vrot.slane %v4009, 2
        %v4090 = vsel %vm2590, %v4089, %v4088
        %v4091 = vrot.slane %v4010, 1
        %v4092 = vsel %vm2593, %v4091, %v4090
        %v4093 = vrot.slane %v4012, 7
        %v4094 = vsel %vm2575, %v4093, %v4011
        %v4095 = vrot.slane %v4013, 6
        %v4096 = vsel %vm2578, %v4095, %v4094
        %v4097 = vrot.slane %v4014, 5
        %v4098 = vsel %vm2581, %v4097, %v4096
        %v4099 = vrot.slane %v4015, 4
        %v4100 = vsel %vm2584, %v4099, %v4098
        %v4101 = vrot.slane %v4016, 3
        %v4102 = vsel %vm2587, %v4101, %v4100
        %v4103 = vrot.slane %v4017, 2
        %v4104 = vsel %vm2590, %v4103, %v4102
        %v4105 = vrot.slane %v4018, 1
        %v4106 = vsel %vm2593, %v4105, %v4104
        %v4107 = vrot.slane %v4020, 7
        %v4108 = vsel %vm2575, %v4107, %v4019
        %v4109 = vrot.slane %v4021, 6
        %v4110 = vsel %vm2578, %v4109, %v4108
        %v4111 = vrot.slane %v4022, 5
        %v4112 = vsel %vm2581, %v4111, %v4110
        %v4113 = vrot.slane %v4023, 4
        %v4114 = vsel %vm2584, %v4113, %v4112
        %v4115 = vrot.slane %v4024, 3
        %v4116 = vsel %vm2587, %v4115, %v4114
        %v4117 = vrot.slane %v4025, 2
        %v4118 = vsel %vm2590, %v4117, %v4116
        %v4119 = vrot.slane %v4026, 1
        %v4120 = vsel %vm2593, %v4119, %v4118
        %v4121 = vrot.slane %v4028, 7
        %v4122 = vsel %vm2575, %v4121, %v4027
        %v4123 = vrot.slane %v4029, 6
        %v4124 = vsel %vm2578, %v4123, %v4122
        %v4125 = vrot.slane %v4030, 5
        %v4126 = vsel %vm2581, %v4125, %v4124
        %v4127 = vrot.slane %v4031, 4
        %v4128 = vsel %vm2584, %v4127, %v4126
        %v4129 = vrot.slane %v4032, 3
        %v4130 = vsel %vm2587, %v4129, %v4128
        %v4131 = vrot.slane %v4033, 2
        %v4132 = vsel %vm2590, %v4131, %v4130
        %v4133 = vrot.slane %v4034, 1
        %v4134 = vsel %vm2593, %v4133, %v4132
        %v4135 = vrot.slane %v4036, 7
        %v4136 = vsel %vm2575, %v4135, %v4035
        %v4137 = vrot.slane %v4037, 6
        %v4138 = vsel %vm2578, %v4137, %v4136
        %v4139 = vrot.slane %v4038, 5
        %v4140 = vsel %vm2581, %v4139, %v4138
        %v4141 = vrot.slane %v4039, 4
        %v4142 = vsel %vm2584, %v4141, %v4140
        %v4143 = vrot.slane %v4040, 3
        %v4144 = vsel %vm2587, %v4143, %v4142
        %v4145 = vrot.slane %v4041, 2
        %v4146 = vsel %vm2590, %v4145, %v4144
        %v4147 = vrot.slane %v4042, 1
        %v4148 = vsel %vm2593, %v4147, %v4146
        %v4149 = vrot.slane %v4044, 7
        %v4150 = vsel %vm2575, %v4149, %v4043
        %v4151 = vrot.slane %v4045, 6
        %v4152 = vsel %vm2578, %v4151, %v4150
        %v4153 = vrot.slane %v4046, 5
        %v4154 = vsel %vm2581, %v4153, %v4152
        %v4155 = vrot.slane %v4047, 4
        %v4156 = vsel %vm2584, %v4155, %v4154
        %v4157 = vrot.slane %v4048, 3
        %v4158 = vsel %vm2587, %v4157, %v4156
        %v4159 = vrot.slane %v4049, 2
        %v4160 = vsel %vm2590, %v4159, %v4158
        %v4161 = vrot.slane %v4050, 1
        %v4162 = vsel %vm2593, %v4161, %v4160
        %v4163 = vpack.c.b16 %v4078, %v4064
        %v4164 = vpack.c.b16 %v4106, %v4092
        %v4165 = vpack.c.b16 %v4134, %v4120
        %v4166 = vpack.c.b16 %v4162, %v4148
        %v4169 = vunpack.c.l.b16 %v3921
        %v4170 = vunpack.c.l.b16 %v3922
        %v4171 = vpack.c.b16 %v4170, %v4169
        %v4174 = vsel %vm865, %v4163, 0
        %v4177 = vsel %vm865, %v4164, 0
        %v4180 = vsel %vm865, %v4165, 0
        %v4183 = vsel %vm865, %v4166, 0
        %4185 = vmatprep.subr.bf16.mxu0 0
        %4186 = vmatpush1.bf16.msra.mxu0 %v4171
        %4187 = vmatprep.subr.bf16.mxu0 0
        %4188 = vmatpush1.bf16.msra.mxu0 0
        %4189 = vmatprep.subr.bf16.mxu0 0
        %4190 = vmatpush1.bf16.msra.mxu0 0
        %4191 = vmatprep.subr.bf16.mxu0 0
        %4192 = vmatpush1.bf16.msra.mxu0 0
        %4193 = vmatprep.subr.bf16.mxu0 0
        %4194 = vmatpush1.bf16.msra.mxu0 0
        %4195 = vmatprep.subr.bf16.mxu0 0
        %4196 = vmatpush1.bf16.msra.mxu0 0
        %4197 = vmatprep.subr.bf16.mxu0 0
        %4198 = vmatpush1.bf16.msra.mxu0 0
        %4199 = vmatprep.subr.bf16.mxu0 0
        %4200 = vmatpush1.bf16.msra.mxu0 0
        %4201 = vmatprep.subr.bf16.mxu0 0
        %4202 = vmatpush1.bf16.msra.mxu0 0
        %4203 = vmatprep.subr.bf16.mxu0 0
        %4204 = vmatpush1.bf16.msra.mxu0 0
        %4205 = vmatprep.subr.bf16.mxu0 0
        %4206 = vmatpush1.bf16.msra.mxu0 0
        %4207 = vmatprep.subr.bf16.mxu0 0
        %4208 = vmatpush1.bf16.msra.mxu0 0
        %4209 = vmatprep.subr.bf16.mxu0 0
        %4210 = vmatpush1.bf16.msra.mxu0 0
        %4211 = vmatprep.subr.bf16.mxu0 0
        %4212 = vmatpush1.bf16.msra.mxu0 0
        %4213 = vmatprep.subr.bf16.mxu0 0
        %4214 = vmatpush1.bf16.msra.mxu0 0
        %4215 = vmatprep.subr.bf16.mxu0 0
        %4216 = vmatpush1.bf16.msra.mxu0 0
        %4217 = vmatprep.mubr.bf16.mxu0 0
        %4218 = vmatmul.mubr.bf16.gmra.mrb[0].mxu0 %v4174
        %v4219 = vpop.f32.mrb[0].mxu0
        %v4220 = vadd.f32 0.0, %v4219
        %v4221 = vpop.f32.mrb[0].mxu0
        %v4222 = vpop.f32.mrb[0].mxu0
        %v4223 = vadd.f32 0.0, %v4222
        %v4224 = vpop.f32.mrb[0].mxu0
        %4225 = vmatprep.mubr.bf16.mxu0 0
        %4226 = vmatmul.mubr.bf16.gmra.mrb[0].mxu0 %v4177
        %v4227 = vpop.f32.mrb[0].mxu0
        %v4228 = vadd.f32 0.0, %v4227
        %v4229 = vpop.f32.mrb[0].mxu0
        %v4230 = vpop.f32.mrb[0].mxu0
        %v4231 = vadd.f32 0.0, %v4230
        %v4232 = vpop.f32.mrb[0].mxu0
        %4233 = vmatprep.mubr.bf16.mxu0 0
        %4234 = vmatmul.mubr.bf16.gmra.mrb[0].mxu0 %v4180
        %v4235 = vpop.f32.mrb[0].mxu0
        %v4236 = vadd.f32 0.0, %v4235
        %v4237 = vpop.f32.mrb[0].mxu0
        %v4238 = vpop.f32.mrb[0].mxu0
        %v4239 = vadd.f32 0.0, %v4238
        %v4240 = vpop.f32.mrb[0].mxu0
        %4241 = vmatprep.mubr.bf16.mxu0 0
        %4242 = vmatmul.mubr.bf16.gmra.mrb[0].mxu0 %v4183
        %v4243 = vpop.f32.mrb[0].mxu0
        %v4244 = vadd.f32 0.0, %v4243
        %v4245 = vpop.f32.mrb[0].mxu0
        %v4246 = vpop.f32.mrb[0].mxu0
        %v4247 = vadd.f32 0.0, %v4246
        %v4248 = vpop.f32.mrb[0].mxu0
        %4249 = vdwg.mxu0
        %v4250 = vadd.f32 %v3761, %v4220
        %v4251 = vadd.f32 %v3764, %v4223
        %v4252 = vadd.f32 %v3769, %v4228
        %v4253 = vadd.f32 %v3772, %v4231
        %v4254 = vadd.f32 %v3777, %v4236
        %v4255 = vadd.f32 %v3780, %v4239
        %v4256 = vadd.f32 %v3785, %v4244
        %v4257 = vadd.f32 %v3788, %v4247
        %s4258 = scalar_lea.vmem [#allocation4], 10
        %v4259 = vld [vmem:[%s4258] sm:$0x1]
        %v4260 = vld [vmem:[%s4258 + $0x1] sm:$0x1]
        %v4261 = vld [vmem:[%s4258 + $0x2] sm:$0x1]
        %v4262 = vld [vmem:[%s4258 + $0x3] sm:$0x1]
        %v4263 = vld [vmem:[%s4258 + $0x4] sm:$0x1]
        %v4264 = vld [vmem:[%s4258 + $0x5] sm:$0x1]
        %v4265 = vld [vmem:[%s4258 + $0x6] sm:$0x1]
        %v4266 = vld [vmem:[%s4258 + $0x7] sm:$0x1]
        %v4267 = vld [vmem:[%s4258 + $0xa] sm:$0x1]
        %v4268 = vld [vmem:[%s4258 + $0xb] sm:$0x1]
        %v4269 = vld [vmem:[%s4258 + $0xc] sm:$0x1]
        %v4270 = vld [vmem:[%s4258 + $0xd] sm:$0x1]
        %v4271 = vld [vmem:[%s4258 + $0xe] sm:$0x1]
        %v4272 = vld [vmem:[%s4258 + $0xf] sm:$0x1]
        %v4273 = vld [vmem:[%s4258 + $0x10] sm:$0x1]
        %v4274 = vld [vmem:[%s4258 + $0x11] sm:$0x1]
        %v4275 = vld [vmem:[%s4258 + $0x14] sm:$0x1]
        %v4276 = vld [vmem:[%s4258 + $0x15] sm:$0x1]
        %v4277 = vld [vmem:[%s4258 + $0x16] sm:$0x1]
        %v4278 = vld [vmem:[%s4258 + $0x17] sm:$0x1]
        %v4279 = vld [vmem:[%s4258 + $0x18] sm:$0x1]
        %v4280 = vld [vmem:[%s4258 + $0x19] sm:$0x1]
        %v4281 = vld [vmem:[%s4258 + $0x1a] sm:$0x1]
        %v4282 = vld [vmem:[%s4258 + $0x1b] sm:$0x1]
        %v4283 = vld [vmem:[%s4258 + $0x1e] sm:$0x1]
        %v4284 = vld [vmem:[%s4258 + $0x1f] sm:$0x1]
        %v4285 = vld [vmem:[%s4258 + $0x20] sm:$0x1]
        %v4286 = vld [vmem:[%s4258 + $0x21] sm:$0x1]
        %v4287 = vld [vmem:[%s4258 + $0x22] sm:$0x1]
        %v4288 = vld [vmem:[%s4258 + $0x23] sm:$0x1]
        %v4289 = vld [vmem:[%s4258 + $0x24] sm:$0x1]
        %v4290 = vld [vmem:[%s4258 + $0x25] sm:$0x1]
        %v4291 = vld [vmem:[%s4258 + $0x28] sm:$0x1]
        %v4292 = vld [vmem:[%s4258 + $0x29] sm:$0x1]
        %v4293 = vld [vmem:[%s4258 + $0x2a] sm:$0x1]
        %v4294 = vld [vmem:[%s4258 + $0x2b] sm:$0x1]
        %v4295 = vld [vmem:[%s4258 + $0x2c] sm:$0x1]
        %v4296 = vld [vmem:[%s4258 + $0x2d] sm:$0x1]
        %v4297 = vld [vmem:[%s4258 + $0x2e] sm:$0x1]
        %v4298 = vld [vmem:[%s4258 + $0x2f] sm:$0x1]
        %v4299 = vld [vmem:[%s4258 + $0x32] sm:$0x1]
        %v4300 = vld [vmem:[%s4258 + $0x33] sm:$0x1]
        %v4301 = vld [vmem:[%s4258 + $0x34] sm:$0x1]
        %v4302 = vld [vmem:[%s4258 + $0x35] sm:$0x1]
        %v4303 = vld [vmem:[%s4258 + $0x36] sm:$0x1]
        %v4304 = vld [vmem:[%s4258 + $0x37] sm:$0x1]
        %v4305 = vld [vmem:[%s4258 + $0x38] sm:$0x1]
        %v4306 = vld [vmem:[%s4258 + $0x39] sm:$0x1]
        %v4307 = vld [vmem:[%s4258 + $0x3c] sm:$0x1]
        %v4308 = vld [vmem:[%s4258 + $0x3d] sm:$0x1]
        %v4309 = vld [vmem:[%s4258 + $0x3e] sm:$0x1]
        %v4310 = vld [vmem:[%s4258 + $0x3f] sm:$0x1]
        %v4311 = vld [vmem:[%s4258 + $0x40] sm:$0x1]
        %v4312 = vld [vmem:[%s4258 + $0x41] sm:$0x1]
        %v4313 = vld [vmem:[%s4258 + $0x42] sm:$0x1]
        %v4314 = vld [vmem:[%s4258 + $0x43] sm:$0x1]
        %v4315 = vld [vmem:[%s4258 + $0x46] sm:$0x1]
        %v4316 = vld [vmem:[%s4258 + $0x47] sm:$0x1]
        %v4317 = vld [vmem:[%s4258 + $0x48] sm:$0x1]
        %v4318 = vld [vmem:[%s4258 + $0x49] sm:$0x1]
        %v4319 = vld [vmem:[%s4258 + $0x4a] sm:$0x1]
        %v4320 = vld [vmem:[%s4258 + $0x4b] sm:$0x1]
        %v4321 = vld [vmem:[%s4258 + $0x4c] sm:$0x1]
        %v4322 = vld [vmem:[%s4258 + $0x4d] sm:$0x1]
        %v4323 = vpack.c.bf16 %v4259, %v4259
        %v4324 = vpack.c.bf16 %v4260, %v4260
        %v4325 = vpack.c.bf16 %v4261, %v4261
        %v4326 = vpack.c.bf16 %v4262, %v4262
        %v4327 = vpack.c.bf16 %v4263, %v4263
        %v4328 = vpack.c.bf16 %v4264, %v4264
        %v4329 = vpack.c.bf16 %v4265, %v4265
        %v4330 = vpack.c.bf16 %v4266, %v4266
        %v4331 = vpack.c.bf16 %v4267, %v4267
        %v4332 = vpack.c.bf16 %v4268, %v4268
        %v4333 = vpack.c.bf16 %v4269, %v4269
        %v4334 = vpack.c.bf16 %v4270, %v4270
        %v4335 = vpack.c.bf16 %v4271, %v4271
        %v4336 = vpack.c.bf16 %v4272, %v4272
        %v4337 = vpack.c.bf16 %v4273, %v4273
        %v4338 = vpack.c.bf16 %v4274, %v4274
        %v4339 = vpack.c.bf16 %v4275, %v4275
        %v4340 = vpack.c.bf16 %v4276, %v4276
        %v4341 = vpack.c.bf16 %v4277, %v4277
        %v4342 = vpack.c.bf16 %v4278, %v4278
        %v4343 = vpack.c.bf16 %v4279, %v4279
        %v4344 = vpack.c.bf16 %v4280, %v4280
        %v4345 = vpack.c.bf16 %v4281, %v4281
        %v4346 = vpack.c.bf16 %v4282, %v4282
        %v4347 = vpack.c.bf16 %v4283, %v4283
        %v4348 = vpack.c.bf16 %v4284, %v4284
        %v4349 = vpack.c.bf16 %v4285, %v4285
        %v4350 = vpack.c.bf16 %v4286, %v4286
        %v4351 = vpack.c.bf16 %v4287, %v4287
        %v4352 = vpack.c.bf16 %v4288, %v4288
        %v4353 = vpack.c.bf16 %v4289, %v4289
        %v4354 = vpack.c.bf16 %v4290, %v4290
        %v4355 = vpack.c.bf16 %v4291, %v4291
        %v4356 = vpack.c.bf16 %v4292, %v4292
        %v4357 = vpack.c.bf16 %v4293, %v4293
        %v4358 = vpack.c.bf16 %v4294, %v4294
        %v4359 = vpack.c.bf16 %v4295, %v4295
        %v4360 = vpack.c.bf16 %v4296, %v4296
        %v4361 = vpack.c.bf16 %v4297, %v4297
        %v4362 = vpack.c.bf16 %v4298, %v4298
        %v4363 = vpack.c.bf16 %v4299, %v4299
        %v4364 = vpack.c.bf16 %v4300, %v4300
        %v4365 = vpack.c.bf16 %v4301, %v4301
        %v4366 = vpack.c.bf16 %v4302, %v4302
        %v4367 = vpack.c.bf16 %v4303, %v4303
        %v4368 = vpack.c.bf16 %v4304, %v4304
        %v4369 = vpack.c.bf16 %v4305, %v4305
        %v4370 = vpack.c.bf16 %v4306, %v4306
        %v4371 = vpack.c.bf16 %v4307, %v4307
        %v4372 = vpack.c.bf16 %v4308, %v4308
        %v4373 = vpack.c.bf16 %v4309, %v4309
        %v4374 = vpack.c.bf16 %v4310, %v4310
        %v4375 = vpack.c.bf16 %v4311, %v4311
        %v4376 = vpack.c.bf16 %v4312, %v4312
        %v4377 = vpack.c.bf16 %v4313, %v4313
        %v4378 = vpack.c.bf16 %v4314, %v4314
        %v4379 = vpack.c.bf16 %v4315, %v4315
        %v4380 = vpack.c.bf16 %v4316, %v4316
        %v4381 = vpack.c.bf16 %v4317, %v4317
        %v4382 = vpack.c.bf16 %v4318, %v4318
        %v4383 = vpack.c.bf16 %v4319, %v4319
        %v4384 = vpack.c.bf16 %v4320, %v4320
        %v4385 = vpack.c.bf16 %v4321, %v4321
        %v4386 = vpack.c.bf16 %v4322, %v4322
        %s4387 = scalar_lea.vmem %s3, 24
        %v4388 = vld [vmem:[%s4387] sm:$0xf]
        %v4389 = vld [vmem:[%s4387 + $0x4] sm:$0xf]
        %v4454 = vunpack.c.l.b16 %v4323
        %v4455 = vunpack.c.l.b16 %v4324
        %v4456 = vunpack.c.l.b16 %v4325
        %v4457 = vunpack.c.l.b16 %v4326
        %v4458 = vunpack.c.l.b16 %v4327
        %v4459 = vunpack.c.l.b16 %v4328
        %v4460 = vunpack.c.l.b16 %v4329
        %v4461 = vunpack.c.l.b16 %v4330
        %v4462 = vunpack.c.l.b16 %v4331
        %v4463 = vunpack.c.l.b16 %v4332
        %v4464 = vunpack.c.l.b16 %v4333
        %v4465 = vunpack.c.l.b16 %v4334
        %v4466 = vunpack.c.l.b16 %v4335
        %v4467 = vunpack.c.l.b16 %v4336
        %v4468 = vunpack.c.l.b16 %v4337
        %v4469 = vunpack.c.l.b16 %v4338
        %v4470 = vunpack.c.l.b16 %v4339
        %v4471 = vunpack.c.l.b16 %v4340
        %v4472 = vunpack.c.l.b16 %v4341
        %v4473 = vunpack.c.l.b16 %v4342
        %v4474 = vunpack.c.l.b16 %v4343
        %v4475 = vunpack.c.l.b16 %v4344
        %v4476 = vunpack.c.l.b16 %v4345
        %v4477 = vunpack.c.l.b16 %v4346
        %v4478 = vunpack.c.l.b16 %v4347
        %v4479 = vunpack.c.l.b16 %v4348
        %v4480 = vunpack.c.l.b16 %v4349
        %v4481 = vunpack.c.l.b16 %v4350
        %v4482 = vunpack.c.l.b16 %v4351
        %v4483 = vunpack.c.l.b16 %v4352
        %v4484 = vunpack.c.l.b16 %v4353
        %v4485 = vunpack.c.l.b16 %v4354
        %v4486 = vunpack.c.l.b16 %v4355
        %v4487 = vunpack.c.l.b16 %v4356
        %v4488 = vunpack.c.l.b16 %v4357
        %v4489 = vunpack.c.l.b16 %v4358
        %v4490 = vunpack.c.l.b16 %v4359
        %v4491 = vunpack.c.l.b16 %v4360
        %v4492 = vunpack.c.l.b16 %v4361
        %v4493 = vunpack.c.l.b16 %v4362
        %v4494 = vunpack.c.l.b16 %v4363
        %v4495 = vunpack.c.l.b16 %v4364
        %v4496 = vunpack.c.l.b16 %v4365
        %v4497 = vunpack.c.l.b16 %v4366
        %v4498 = vunpack.c.l.b16 %v4367
        %v4499 = vunpack.c.l.b16 %v4368
        %v4500 = vunpack.c.l.b16 %v4369
        %v4501 = vunpack.c.l.b16 %v4370
        %v4502 = vunpack.c.l.b16 %v4371
        %v4503 = vunpack.c.l.b16 %v4372
        %v4504 = vunpack.c.l.b16 %v4373
        %v4505 = vunpack.c.l.b16 %v4374
        %v4506 = vunpack.c.l.b16 %v4375
        %v4507 = vunpack.c.l.b16 %v4376
        %v4508 = vunpack.c.l.b16 %v4377
        %v4509 = vunpack.c.l.b16 %v4378
        %v4510 = vunpack.c.l.b16 %v4379
        %v4511 = vunpack.c.l.b16 %v4380
        %v4512 = vunpack.c.l.b16 %v4381
        %v4513 = vunpack.c.l.b16 %v4382
        %v4514 = vunpack.c.l.b16 %v4383
        %v4515 = vunpack.c.l.b16 %v4384
        %v4516 = vunpack.c.l.b16 %v4385
        %v4517 = vunpack.c.l.b16 %v4386
        %v4518 = vrot.slane %v4455, 7
        %v4519 = vsel %vm2575, %v4518, %v4454
        %v4520 = vrot.slane %v4456, 6
        %v4521 = vsel %vm2578, %v4520, %v4519
        %v4522 = vrot.slane %v4457, 5
        %v4523 = vsel %vm2581, %v4522, %v4521
        %v4524 = vrot.slane %v4458, 4
        %v4525 = vsel %vm2584, %v4524, %v4523
        %v4526 = vrot.slane %v4459, 3
        %v4527 = vsel %vm2587, %v4526, %v4525
        %v4528 = vrot.slane %v4460, 2
        %v4529 = vsel %vm2590, %v4528, %v4527
        %v4530 = vrot.slane %v4461, 1
        %v4531 = vsel %vm2593, %v4530, %v4529
        %v4532 = vrot.slane %v4463, 7
        %v4533 = vsel %vm2575, %v4532, %v4462
        %v4534 = vrot.slane %v4464, 6
        %v4535 = vsel %vm2578, %v4534, %v4533
        %v4536 = vrot.slane %v4465, 5
        %v4537 = vsel %vm2581, %v4536, %v4535
        %v4538 = vrot.slane %v4466, 4
        %v4539 = vsel %vm2584, %v4538, %v4537
        %v4540 = vrot.slane %v4467, 3
        %v4541 = vsel %vm2587, %v4540, %v4539
        %v4542 = vrot.slane %v4468, 2
        %v4543 = vsel %vm2590, %v4542, %v4541
        %v4544 = vrot.slane %v4469, 1
        %v4545 = vsel %vm2593, %v4544, %v4543
        %v4546 = vrot.slane %v4471, 7
        %v4547 = vsel %vm2575, %v4546, %v4470
        %v4548 = vrot.slane %v4472, 6
        %v4549 = vsel %vm2578, %v4548, %v4547
        %v4550 = vrot.slane %v4473, 5
        %v4551 = vsel %vm2581, %v4550, %v4549
        %v4552 = vrot.slane %v4474, 4
        %v4553 = vsel %vm2584, %v4552, %v4551
        %v4554 = vrot.slane %v4475, 3
        %v4555 = vsel %vm2587, %v4554, %v4553
        %v4556 = vrot.slane %v4476, 2
        %v4557 = vsel %vm2590, %v4556, %v4555
        %v4558 = vrot.slane %v4477, 1
        %v4559 = vsel %vm2593, %v4558, %v4557
        %v4560 = vrot.slane %v4479, 7
        %v4561 = vsel %vm2575, %v4560, %v4478
        %v4562 = vrot.slane %v4480, 6
        %v4563 = vsel %vm2578, %v4562, %v4561
        %v4564 = vrot.slane %v4481, 5
        %v4565 = vsel %vm2581, %v4564, %v4563
        %v4566 = vrot.slane %v4482, 4
        %v4567 = vsel %vm2584, %v4566, %v4565
        %v4568 = vrot.slane %v4483, 3
        %v4569 = vsel %vm2587, %v4568, %v4567
        %v4570 = vrot.slane %v4484, 2
        %v4571 = vsel %vm2590, %v4570, %v4569
        %v4572 = vrot.slane %v4485, 1
        %v4573 = vsel %vm2593, %v4572, %v4571
        %v4574 = vrot.slane %v4487, 7
        %v4575 = vsel %vm2575, %v4574, %v4486
        %v4576 = vrot.slane %v4488, 6
        %v4577 = vsel %vm2578, %v4576, %v4575
        %v4578 = vrot.slane %v4489, 5
        %v4579 = vsel %vm2581, %v4578, %v4577
        %v4580 = vrot.slane %v4490, 4
        %v4581 = vsel %vm2584, %v4580, %v4579
        %v4582 = vrot.slane %v4491, 3
        %v4583 = vsel %vm2587, %v4582, %v4581
        %v4584 = vrot.slane %v4492, 2
        %v4585 = vsel %vm2590, %v4584, %v4583
        %v4586 = vrot.slane %v4493, 1
        %v4587 = vsel %vm2593, %v4586, %v4585
        %v4588 = vrot.slane %v4495, 7
        %v4589 = vsel %vm2575, %v4588, %v4494
        %v4590 = vrot.slane %v4496, 6
        %v4591 = vsel %vm2578, %v4590, %v4589
        %v4592 = vrot.slane %v4497, 5
        %v4593 = vsel %vm2581, %v4592, %v4591
        %v4594 = vrot.slane %v4498, 4
        %v4595 = vsel %vm2584, %v4594, %v4593
        %v4596 = vrot.slane %v4499, 3
        %v4597 = vsel %vm2587, %v4596, %v4595
        %v4598 = vrot.slane %v4500, 2
        %v4599 = vsel %vm2590, %v4598, %v4597
        %v4600 = vrot.slane %v4501, 1
        %v4601 = vsel %vm2593, %v4600, %v4599
        %v4602 = vrot.slane %v4503, 7
        %v4603 = vsel %vm2575, %v4602, %v4502
        %v4604 = vrot.slane %v4504, 6
        %v4605 = vsel %vm2578, %v4604, %v4603
        %v4606 = vrot.slane %v4505, 5
        %v4607 = vsel %vm2581, %v4606, %v4605
        %v4608 = vrot.slane %v4506, 4
        %v4609 = vsel %vm2584, %v4608, %v4607
        %v4610 = vrot.slane %v4507, 3
        %v4611 = vsel %vm2587, %v4610, %v4609
        %v4612 = vrot.slane %v4508, 2
        %v4613 = vsel %vm2590, %v4612, %v4611
        %v4614 = vrot.slane %v4509, 1
        %v4615 = vsel %vm2593, %v4614, %v4613
        %v4616 = vrot.slane %v4511, 7
        %v4617 = vsel %vm2575, %v4616, %v4510
        %v4618 = vrot.slane %v4512, 6
        %v4619 = vsel %vm2578, %v4618, %v4617
        %v4620 = vrot.slane %v4513, 5
        %v4621 = vsel %vm2581, %v4620, %v4619
        %v4622 = vrot.slane %v4514, 4
        %v4623 = vsel %vm2584, %v4622, %v4621
        %v4624 = vrot.slane %v4515, 3
        %v4625 = vsel %vm2587, %v4624, %v4623
        %v4626 = vrot.slane %v4516, 2
        %v4627 = vsel %vm2590, %v4626, %v4625
        %v4628 = vrot.slane %v4517, 1
        %v4629 = vsel %vm2593, %v4628, %v4627
        %v4630 = vpack.c.b16 %v4545, %v4531
        %v4631 = vpack.c.b16 %v4573, %v4559
        %v4632 = vpack.c.b16 %v4601, %v4587
        %v4633 = vpack.c.b16 %v4629, %v4615
        %v4636 = vunpack.c.l.b16 %v4388
        %v4637 = vunpack.c.l.b16 %v4389
        %v4638 = vpack.c.b16 %v4637, %v4636
        %v4641 = vsel %vm865, %v4630, 0
        %v4644 = vsel %vm865, %v4631, 0
        %v4647 = vsel %vm865, %v4632, 0
        %v4650 = vsel %vm865, %v4633, 0
        %4652 = vmatprep.subr.bf16.mxu0 0
        %4653 = vmatpush1.bf16.msra.mxu0 %v4638
        %4654 = vmatprep.subr.bf16.mxu0 0
        %4655 = vmatpush1.bf16.msra.mxu0 0
        %4656 = vmatprep.subr.bf16.mxu0 0
        %4657 = vmatpush1.bf16.msra.mxu0 0
        %4658 = vmatprep.subr.bf16.mxu0 0
        %4659 = vmatpush1.bf16.msra.mxu0 0
        %4660 = vmatprep.subr.bf16.mxu0 0
        %4661 = vmatpush1.bf16.msra.mxu0 0
        %4662 = vmatprep.subr.bf16.mxu0 0
        %4663 = vmatpush1.bf16.msra.mxu0 0
        %4664 = vmatprep.subr.bf16.mxu0 0
        %4665 = vmatpush1.bf16.msra.mxu0 0
        %4666 = vmatprep.subr.bf16.mxu0 0
        %4667 = vmatpush1.bf16.msra.mxu0 0
        %4668 = vmatprep.subr.bf16.mxu0 0
        %4669 = vmatpush1.bf16.msra.mxu0 0
        %4670 = vmatprep.subr.bf16.mxu0 0
        %4671 = vmatpush1.bf16.msra.mxu0 0
        %4672 = vmatprep.subr.bf16.mxu0 0
        %4673 = vmatpush1.bf16.msra.mxu0 0
        %4674 = vmatprep.subr.bf16.mxu0 0
        %4675 = vmatpush1.bf16.msra.mxu0 0
        %4676 = vmatprep.subr.bf16.mxu0 0
        %4677 = vmatpush1.bf16.msra.mxu0 0
        %4678 = vmatprep.subr.bf16.mxu0 0
        %4679 = vmatpush1.bf16.msra.mxu0 0
        %4680 = vmatprep.subr.bf16.mxu0 0
        %4681 = vmatpush1.bf16.msra.mxu0 0
        %4682 = vmatprep.subr.bf16.mxu0 0
        %4683 = vmatpush1.bf16.msra.mxu0 0
        %4684 = vmatprep.mubr.bf16.mxu0 0
        %4685 = vmatmul.mubr.bf16.gmra.mrb[0].mxu0 %v4641
        %v4686 = vpop.f32.mrb[0].mxu0
        %v4687 = vadd.f32 0.0, %v4686
        %v4688 = vpop.f32.mrb[0].mxu0
        %v4689 = vpop.f32.mrb[0].mxu0
        %v4690 = vadd.f32 0.0, %v4689
        %v4691 = vpop.f32.mrb[0].mxu0
        %4692 = vmatprep.mubr.bf16.mxu0 0
        %4693 = vmatmul.mubr.bf16.gmra.mrb[0].mxu0 %v4644
        %v4694 = vpop.f32.mrb[0].mxu0
        %v4695 = vadd.f32 0.0, %v4694
        %v4696 = vpop.f32.mrb[0].mxu0
        %v4697 = vpop.f32.mrb[0].mxu0
        %v4698 = vadd.f32 0.0, %v4697
        %v4699 = vpop.f32.mrb[0].mxu0
        %4700 = vmatprep.mubr.bf16.mxu0 0
        %4701 = vmatmul.mubr.bf16.gmra.mrb[0].mxu0 %v4647
        %v4702 = vpop.f32.mrb[0].mxu0
        %v4703 = vadd.f32 0.0, %v4702
        %v4704 = vpop.f32.mrb[0].mxu0
        %v4705 = vpop.f32.mrb[0].mxu0
        %v4706 = vadd.f32 0.0, %v4705
        %v4707 = vpop.f32.mrb[0].mxu0
        %4708 = vmatprep.mubr.bf16.mxu0 0
        %4709 = vmatmul.mubr.bf16.gmra.mrb[0].mxu0 %v4650
        %v4710 = vpop.f32.mrb[0].mxu0
        %v4711 = vadd.f32 0.0, %v4710
        %v4712 = vpop.f32.mrb[0].mxu0
        %v4713 = vpop.f32.mrb[0].mxu0
        %v4714 = vadd.f32 0.0, %v4713
        %v4715 = vpop.f32.mrb[0].mxu0
        %4716 = vdwg.mxu0
        %v4717 = vadd.f32 %v4250, %v4687
        %v4718 = vadd.f32 %v4251, %v4690
        %v4719 = vadd.f32 %v4252, %v4695
        %v4720 = vadd.f32 %v4253, %v4698
        %v4721 = vadd.f32 %v4254, %v4703
        %v4722 = vadd.f32 %v4255, %v4706
        %v4723 = vadd.f32 %v4256, %v4711
        %v4724 = vadd.f32 %v4257, %v4714
        %v4725 = vld [vmem:[%s2810] sm:$0x1]
        %v4726 = vld [vmem:[%s2810 + $0x1] sm:$0x1]
        %v4727 = vld [vmem:[%s2810 + $0x2] sm:$0x1]
        %v4728 = vld [vmem:[%s2810 + $0x3] sm:$0x1]
        %v4729 = vld [vmem:[%s2810 + $0x4] sm:$0x1]
        %v4730 = vld [vmem:[%s2810 + $0x5] sm:$0x1]
        %v4731 = vld [vmem:[%s2810 + $0x6] sm:$0x1]
        %v4732 = vld [vmem:[%s2810 + $0x7] sm:$0x1]
        %v4733 = vld [vmem:[%s2810 + $0xa] sm:$0x1]
        %v4734 = vld [vmem:[%s2810 + $0xb] sm:$0x1]
        %v4735 = vld [vmem:[%s2810 + $0xc] sm:$0x1]
        %v4736 = vld [vmem:[%s2810 + $0xd] sm:$0x1]
        %v4737 = vld [vmem:[%s2810 + $0xe] sm:$0x1]
        %v4738 = vld [vmem:[%s2810 + $0xf] sm:$0x1]
        %v4739 = vld [vmem:[%s2810 + $0x10] sm:$0x1]
        %v4740 = vld [vmem:[%s2810 + $0x11] sm:$0x1]
        %v4741 = vld [vmem:[%s2810 + $0x14] sm:$0x1]
        %v4742 = vld [vmem:[%s2810 + $0x15] sm:$0x1]
        %v4743 = vld [vmem:[%s2810 + $0x16] sm:$0x1]
        %v4744 = vld [vmem:[%s2810 + $0x17] sm:$0x1]
        %v4745 = vld [vmem:[%s2810 + $0x18] sm:$0x1]
        %v4746 = vld [vmem:[%s2810 + $0x19] sm:$0x1]
        %v4747 = vld [vmem:[%s2810 + $0x1a] sm:$0x1]
        %v4748 = vld [vmem:[%s2810 + $0x1b] sm:$0x1]
        %v4749 = vld [vmem:[%s2810 + $0x1e] sm:$0x1]
        %v4750 = vld [vmem:[%s2810 + $0x1f] sm:$0x1]
        %v4751 = vld [vmem:[%s2810 + $0x20] sm:$0x1]
        %v4752 = vld [vmem:[%s2810 + $0x21] sm:$0x1]
        %v4753 = vld [vmem:[%s2810 + $0x22] sm:$0x1]
        %v4754 = vld [vmem:[%s2810 + $0x23] sm:$0x1]
        %v4755 = vld [vmem:[%s2810 + $0x24] sm:$0x1]
        %v4756 = vld [vmem:[%s2810 + $0x25] sm:$0x1]
        %v4757 = vld [vmem:[%s2810 + $0x28] sm:$0x1]
        %v4758 = vld [vmem:[%s2810 + $0x29] sm:$0x1]
        %v4759 = vld [vmem:[%s2810 + $0x2a] sm:$0x1]
        %v4760 = vld [vmem:[%s2810 + $0x2b] sm:$0x1]
        %v4761 = vld [vmem:[%s2810 + $0x2c] sm:$0x1]
        %v4762 = vld [vmem:[%s2810 + $0x2d] sm:$0x1]
        %v4763 = vld [vmem:[%s2810 + $0x2e] sm:$0x1]
        %v4764 = vld [vmem:[%s2810 + $0x2f] sm:$0x1]
        %v4765 = vld [vmem:[%s2810 + $0x32] sm:$0x1]
        %v4766 = vld [vmem:[%s2810 + $0x33] sm:$0x1]
        %v4767 = vld [vmem:[%s2810 + $0x34] sm:$0x1]
        %v4768 = vld [vmem:[%s2810 + $0x35] sm:$0x1]
        %v4769 = vld [vmem:[%s2810 + $0x36] sm:$0x1]
        %v4770 = vld [vmem:[%s2810 + $0x37] sm:$0x1]
        %v4771 = vld [vmem:[%s2810 + $0x38] sm:$0x1]
        %v4772 = vld [vmem:[%s2810 + $0x39] sm:$0x1]
        %v4773 = vld [vmem:[%s2810 + $0x3c] sm:$0x1]
        %v4774 = vld [vmem:[%s2810 + $0x3d] sm:$0x1]
        %v4775 = vld [vmem:[%s2810 + $0x3e] sm:$0x1]
        %v4776 = vld [vmem:[%s2810 + $0x3f] sm:$0x1]
        %v4777 = vld [vmem:[%s2810 + $0x40] sm:$0x1]
        %v4778 = vld [vmem:[%s2810 + $0x41] sm:$0x1]
        %v4779 = vld [vmem:[%s2810 + $0x42] sm:$0x1]
        %v4780 = vld [vmem:[%s2810 + $0x43] sm:$0x1]
        %v4781 = vld [vmem:[%s2810 + $0x46] sm:$0x1]
        %v4782 = vld [vmem:[%s2810 + $0x47] sm:$0x1]
        %v4783 = vld [vmem:[%s2810 + $0x48] sm:$0x1]
        %v4784 = vld [vmem:[%s2810 + $0x49] sm:$0x1]
        %v4785 = vld [vmem:[%s2810 + $0x4a] sm:$0x1]
        %v4786 = vld [vmem:[%s2810 + $0x4b] sm:$0x1]
        %v4787 = vld [vmem:[%s2810 + $0x4c] sm:$0x1]
        %v4788 = vld [vmem:[%s2810 + $0x4d] sm:$0x1]
        %v4789 = vpack.c.bf16 %v4725, %v4725
        %v4790 = vpack.c.bf16 %v4726, %v4726
        %v4791 = vpack.c.bf16 %v4727, %v4727
        %v4792 = vpack.c.bf16 %v4728, %v4728
        %v4793 = vpack.c.bf16 %v4729, %v4729
        %v4794 = vpack.c.bf16 %v4730, %v4730
        %v4795 = vpack.c.bf16 %v4731, %v4731
        %v4796 = vpack.c.bf16 %v4732, %v4732
        %v4797 = vpack.c.bf16 %v4733, %v4733
        %v4798 = vpack.c.bf16 %v4734, %v4734
        %v4799 = vpack.c.bf16 %v4735, %v4735
        %v4800 = vpack.c.bf16 %v4736, %v4736
        %v4801 = vpack.c.bf16 %v4737, %v4737
        %v4802 = vpack.c.bf16 %v4738, %v4738
        %v4803 = vpack.c.bf16 %v4739, %v4739
        %v4804 = vpack.c.bf16 %v4740, %v4740
        %v4805 = vpack.c.bf16 %v4741, %v4741
        %v4806 = vpack.c.bf16 %v4742, %v4742
        %v4807 = vpack.c.bf16 %v4743, %v4743
        %v4808 = vpack.c.bf16 %v4744, %v4744
        %v4809 = vpack.c.bf16 %v4745, %v4745
        %v4810 = vpack.c.bf16 %v4746, %v4746
        %v4811 = vpack.c.bf16 %v4747, %v4747
        %v4812 = vpack.c.bf16 %v4748, %v4748
        %v4813 = vpack.c.bf16 %v4749, %v4749
        %v4814 = vpack.c.bf16 %v4750, %v4750
        %v4815 = vpack.c.bf16 %v4751, %v4751
        %v4816 = vpack.c.bf16 %v4752, %v4752
        %v4817 = vpack.c.bf16 %v4753, %v4753
        %v4818 = vpack.c.bf16 %v4754, %v4754
        %v4819 = vpack.c.bf16 %v4755, %v4755
        %v4820 = vpack.c.bf16 %v4756, %v4756
        %v4821 = vpack.c.bf16 %v4757, %v4757
        %v4822 = vpack.c.bf16 %v4758, %v4758
        %v4823 = vpack.c.bf16 %v4759, %v4759
        %v4824 = vpack.c.bf16 %v4760, %v4760
        %v4825 = vpack.c.bf16 %v4761, %v4761
        %v4826 = vpack.c.bf16 %v4762, %v4762
        %v4827 = vpack.c.bf16 %v4763, %v4763
        %v4828 = vpack.c.bf16 %v4764, %v4764
        %v4829 = vpack.c.bf16 %v4765, %v4765
        %v4830 = vpack.c.bf16 %v4766, %v4766
        %v4831 = vpack.c.bf16 %v4767, %v4767
        %v4832 = vpack.c.bf16 %v4768, %v4768
        %v4833 = vpack.c.bf16 %v4769, %v4769
        %v4834 = vpack.c.bf16 %v4770, %v4770
        %v4835 = vpack.c.bf16 %v4771, %v4771
        %v4836 = vpack.c.bf16 %v4772, %v4772
        %v4837 = vpack.c.bf16 %v4773, %v4773
        %v4838 = vpack.c.bf16 %v4774, %v4774
        %v4839 = vpack.c.bf16 %v4775, %v4775
        %v4840 = vpack.c.bf16 %v4776, %v4776
        %v4841 = vpack.c.bf16 %v4777, %v4777
        %v4842 = vpack.c.bf16 %v4778, %v4778
        %v4843 = vpack.c.bf16 %v4779, %v4779
        %v4844 = vpack.c.bf16 %v4780, %v4780
        %v4845 = vpack.c.bf16 %v4781, %v4781
        %v4846 = vpack.c.bf16 %v4782, %v4782
        %v4847 = vpack.c.bf16 %v4783, %v4783
        %v4848 = vpack.c.bf16 %v4784, %v4784
        %v4849 = vpack.c.bf16 %v4785, %v4785
        %v4850 = vpack.c.bf16 %v4786, %v4786
        %v4851 = vpack.c.bf16 %v4787, %v4787
        %v4852 = vpack.c.bf16 %v4788, %v4788
        %s4853 = scalar_lea.vmem %s3, 32
        %v4854 = vld [vmem:[%s4853] sm:$0xf]
        %v4855 = vld [vmem:[%s4853 + $0x4] sm:$0xf]
        %v4920 = vunpack.c.l.b16 %v4789
        %v4921 = vunpack.c.l.b16 %v4790
        %v4922 = vunpack.c.l.b16 %v4791
        %v4923 = vunpack.c.l.b16 %v4792
        %v4924 = vunpack.c.l.b16 %v4793
        %v4925 = vunpack.c.l.b16 %v4794
        %v4926 = vunpack.c.l.b16 %v4795
        %v4927 = vunpack.c.l.b16 %v4796
        %v4928 = vunpack.c.l.b16 %v4797
        %v4929 = vunpack.c.l.b16 %v4798
        %v4930 = vunpack.c.l.b16 %v4799
        %v4931 = vunpack.c.l.b16 %v4800
        %v4932 = vunpack.c.l.b16 %v4801
        %v4933 = vunpack.c.l.b16 %v4802
        %v4934 = vunpack.c.l.b16 %v4803
        %v4935 = vunpack.c.l.b16 %v4804
        %v4936 = vunpack.c.l.b16 %v4805
        %v4937 = vunpack.c.l.b16 %v4806
        %v4938 = vunpack.c.l.b16 %v4807
        %v4939 = vunpack.c.l.b16 %v4808
        %v4940 = vunpack.c.l.b16 %v4809
        %v4941 = vunpack.c.l.b16 %v4810
        %v4942 = vunpack.c.l.b16 %v4811
        %v4943 = vunpack.c.l.b16 %v4812
        %v4944 = vunpack.c.l.b16 %v4813
        %v4945 = vunpack.c.l.b16 %v4814
        %v4946 = vunpack.c.l.b16 %v4815
        %v4947 = vunpack.c.l.b16 %v4816
        %v4948 = vunpack.c.l.b16 %v4817
        %v4949 = vunpack.c.l.b16 %v4818
        %v4950 = vunpack.c.l.b16 %v4819
        %v4951 = vunpack.c.l.b16 %v4820
        %v4952 = vunpack.c.l.b16 %v4821
        %v4953 = vunpack.c.l.b16 %v4822
        %v4954 = vunpack.c.l.b16 %v4823
        %v4955 = vunpack.c.l.b16 %v4824
        %v4956 = vunpack.c.l.b16 %v4825
        %v4957 = vunpack.c.l.b16 %v4826
        %v4958 = vunpack.c.l.b16 %v4827
        %v4959 = vunpack.c.l.b16 %v4828
        %v4960 = vunpack.c.l.b16 %v4829
        %v4961 = vunpack.c.l.b16 %v4830
        %v4962 = vunpack.c.l.b16 %v4831
        %v4963 = vunpack.c.l.b16 %v4832
        %v4964 = vunpack.c.l.b16 %v4833
        %v4965 = vunpack.c.l.b16 %v4834
        %v4966 = vunpack.c.l.b16 %v4835
        %v4967 = vunpack.c.l.b16 %v4836
        %v4968 = vunpack.c.l.b16 %v4837
        %v4969 = vunpack.c.l.b16 %v4838
        %v4970 = vunpack.c.l.b16 %v4839
        %v4971 = vunpack.c.l.b16 %v4840
        %v4972 = vunpack.c.l.b16 %v4841
        %v4973 = vunpack.c.l.b16 %v4842
        %v4974 = vunpack.c.l.b16 %v4843
        %v4975 = vunpack.c.l.b16 %v4844
        %v4976 = vunpack.c.l.b16 %v4845
        %v4977 = vunpack.c.l.b16 %v4846
        %v4978 = vunpack.c.l.b16 %v4847
        %v4979 = vunpack.c.l.b16 %v4848
        %v4980 = vunpack.c.l.b16 %v4849
        %v4981 = vunpack.c.l.b16 %v4850
        %v4982 = vunpack.c.l.b16 %v4851
        %v4983 = vunpack.c.l.b16 %v4852
        %v4984 = vrot.slane %v4921, 7
        %v4985 = vsel %vm2575, %v4984, %v4920
        %v4986 = vrot.slane %v4922, 6
        %v4987 = vsel %vm2578, %v4986, %v4985
        %v4988 = vrot.slane %v4923, 5
        %v4989 = vsel %vm2581, %v4988, %v4987
        %v4990 = vrot.slane %v4924, 4
        %v4991 = vsel %vm2584, %v4990, %v4989
        %v4992 = vrot.slane %v4925, 3
        %v4993 = vsel %vm2587, %v4992, %v4991
        %v4994 = vrot.slane %v4926, 2
        %v4995 = vsel %vm2590, %v4994, %v4993
        %v4996 = vrot.slane %v4927, 1
        %v4997 = vsel %vm2593, %v4996, %v4995
        %v4998 = vrot.slane %v4929, 7
        %v4999 = vsel %vm2575, %v4998, %v4928
        %v5000 = vrot.slane %v4930, 6
        %v5001 = vsel %vm2578, %v5000, %v4999
        %v5002 = vrot.slane %v4931, 5
        %v5003 = vsel %vm2581, %v5002, %v5001
        %v5004 = vrot.slane %v4932, 4
        %v5005 = vsel %vm2584, %v5004, %v5003
        %v5006 = vrot.slane %v4933, 3
        %v5007 = vsel %vm2587, %v5006, %v5005
        %v5008 = vrot.slane %v4934, 2
        %v5009 = vsel %vm2590, %v5008, %v5007
        %v5010 = vrot.slane %v4935, 1
        %v5011 = vsel %vm2593, %v5010, %v5009
        %v5012 = vrot.slane %v4937, 7
        %v5013 = vsel %vm2575, %v5012, %v4936
        %v5014 = vrot.slane %v4938, 6
        %v5015 = vsel %vm2578, %v5014, %v5013
        %v5016 = vrot.slane %v4939, 5
        %v5017 = vsel %vm2581, %v5016, %v5015
        %v5018 = vrot.slane %v4940, 4
        %v5019 = vsel %vm2584, %v5018, %v5017
        %v5020 = vrot.slane %v4941, 3
        %v5021 = vsel %vm2587, %v5020, %v5019
        %v5022 = vrot.slane %v4942, 2
        %v5023 = vsel %vm2590, %v5022, %v5021
        %v5024 = vrot.slane %v4943, 1
        %v5025 = vsel %vm2593, %v5024, %v5023
        %v5026 = vrot.slane %v4945, 7
        %v5027 = vsel %vm2575, %v5026, %v4944
        %v5028 = vrot.slane %v4946, 6
        %v5029 = vsel %vm2578, %v5028, %v5027
        %v5030 = vrot.slane %v4947, 5
        %v5031 = vsel %vm2581, %v5030, %v5029
        %v5032 = vrot.slane %v4948, 4
        %v5033 = vsel %vm2584, %v5032, %v5031
        %v5034 = vrot.slane %v4949, 3
        %v5035 = vsel %vm2587, %v5034, %v5033
        %v5036 = vrot.slane %v4950, 2
        %v5037 = vsel %vm2590, %v5036, %v5035
        %v5038 = vrot.slane %v4951, 1
        %v5039 = vsel %vm2593, %v5038, %v5037
        %v5040 = vrot.slane %v4953, 7
        %v5041 = vsel %vm2575, %v5040, %v4952
        %v5042 = vrot.slane %v4954, 6
        %v5043 = vsel %vm2578, %v5042, %v5041
        %v5044 = vrot.slane %v4955, 5
        %v5045 = vsel %vm2581, %v5044, %v5043
        %v5046 = vrot.slane %v4956, 4
        %v5047 = vsel %vm2584, %v5046, %v5045
        %v5048 = vrot.slane %v4957, 3
        %v5049 = vsel %vm2587, %v5048, %v5047
        %v5050 = vrot.slane %v4958, 2
        %v5051 = vsel %vm2590, %v5050, %v5049
        %v5052 = vrot.slane %v4959, 1
        %v5053 = vsel %vm2593, %v5052, %v5051
        %v5054 = vrot.slane %v4961, 7
        %v5055 = vsel %vm2575, %v5054, %v4960
        %v5056 = vrot.slane %v4962, 6
        %v5057 = vsel %vm2578, %v5056, %v5055
        %v5058 = vrot.slane %v4963, 5
        %v5059 = vsel %vm2581, %v5058, %v5057
        %v5060 = vrot.slane %v4964, 4
        %v5061 = vsel %vm2584, %v5060, %v5059
        %v5062 = vrot.slane %v4965, 3
        %v5063 = vsel %vm2587, %v5062, %v5061
        %v5064 = vrot.slane %v4966, 2
        %v5065 = vsel %vm2590, %v5064, %v5063
        %v5066 = vrot.slane %v4967, 1
        %v5067 = vsel %vm2593, %v5066, %v5065
        %v5068 = vrot.slane %v4969, 7
        %v5069 = vsel %vm2575, %v5068, %v4968
        %v5070 = vrot.slane %v4970, 6
        %v5071 = vsel %vm2578, %v5070, %v5069
        %v5072 = vrot.slane %v4971, 5
        %v5073 = vsel %vm2581, %v5072, %v5071
        %v5074 = vrot.slane %v4972, 4
        %v5075 = vsel %vm2584, %v5074, %v5073
        %v5076 = vrot.slane %v4973, 3
        %v5077 = vsel %vm2587, %v5076, %v5075
        %v5078 = vrot.slane %v4974, 2
        %v5079 = vsel %vm2590, %v5078, %v5077
        %v5080 = vrot.slane %v4975, 1
        %v5081 = vsel %vm2593, %v5080, %v5079
        %v5082 = vrot.slane %v4977, 7
        %v5083 = vsel %vm2575, %v5082, %v4976
        %v5084 = vrot.slane %v4978, 6
        %v5085 = vsel %vm2578, %v5084, %v5083
        %v5086 = vrot.slane %v4979, 5
        %v5087 = vsel %vm2581, %v5086, %v5085
        %v5088 = vrot.slane %v4980, 4
        %v5089 = vsel %vm2584, %v5088, %v5087
        %v5090 = vrot.slane %v4981, 3
        %v5091 = vsel %vm2587, %v5090, %v5089
        %v5092 = vrot.slane %v4982, 2
        %v5093 = vsel %vm2590, %v5092, %v5091
        %v5094 = vrot.slane %v4983, 1
        %v5095 = vsel %vm2593, %v5094, %v5093
        %v5096 = vpack.c.b16 %v5011, %v4997
        %v5097 = vpack.c.b16 %v5039, %v5025
        %v5098 = vpack.c.b16 %v5067, %v5053
        %v5099 = vpack.c.b16 %v5095, %v5081
        %v5102 = vunpack.c.l.b16 %v4854
        %v5103 = vunpack.c.l.b16 %v4855
        %v5104 = vpack.c.b16 %v5103, %v5102
        %v5107 = vsel %vm865, %v5096, 0
        %v5110 = vsel %vm865, %v5097, 0
        %v5113 = vsel %vm865, %v5098, 0
        %v5116 = vsel %vm865, %v5099, 0
        %5118 = vmatprep.subr.bf16.mxu0 0
        %5119 = vmatpush1.bf16.msra.mxu0 %v5104
        %5120 = vmatprep.subr.bf16.mxu0 0
        %5121 = vmatpush1.bf16.msra.mxu0 0
        %5122 = vmatprep.subr.bf16.mxu0 0
        %5123 = vmatpush1.bf16.msra.mxu0 0
        %5124 = vmatprep.subr.bf16.mxu0 0
        %5125 = vmatpush1.bf16.msra.mxu0 0
        %5126 = vmatprep.subr.bf16.mxu0 0
        %5127 = vmatpush1.bf16.msra.mxu0 0
        %5128 = vmatprep.subr.bf16.mxu0 0
        %5129 = vmatpush1.bf16.msra.mxu0 0
        %5130 = vmatprep.subr.bf16.mxu0 0
        %5131 = vmatpush1.bf16.msra.mxu0 0
        %5132 = vmatprep.subr.bf16.mxu0 0
        %5133 = vmatpush1.bf16.msra.mxu0 0
        %5134 = vmatprep.subr.bf16.mxu0 0
        %5135 = vmatpush1.bf16.msra.mxu0 0
        %5136 = vmatprep.subr.bf16.mxu0 0
        %5137 = vmatpush1.bf16.msra.mxu0 0
        %5138 = vmatprep.subr.bf16.mxu0 0
        %5139 = vmatpush1.bf16.msra.mxu0 0
        %5140 = vmatprep.subr.bf16.mxu0 0
        %5141 = vmatpush1.bf16.msra.mxu0 0
        %5142 = vmatprep.subr.bf16.mxu0 0
        %5143 = vmatpush1.bf16.msra.mxu0 0
        %5144 = vmatprep.subr.bf16.mxu0 0
        %5145 = vmatpush1.bf16.msra.mxu0 0
        %5146 = vmatprep.subr.bf16.mxu0 0
        %5147 = vmatpush1.bf16.msra.mxu0 0
        %5148 = vmatprep.subr.bf16.mxu0 0
        %5149 = vmatpush1.bf16.msra.mxu0 0
        %5150 = vmatprep.mubr.bf16.mxu0 0
        %5151 = vmatmul.mubr.bf16.gmra.mrb[0].mxu0 %v5107
        %v5152 = vpop.f32.mrb[0].mxu0
        %v5153 = vadd.f32 0.0, %v5152
        %v5154 = vpop.f32.mrb[0].mxu0
        %v5155 = vpop.f32.mrb[0].mxu0
        %v5156 = vadd.f32 0.0, %v5155
        %v5157 = vpop.f32.mrb[0].mxu0
        %5158 = vmatprep.mubr.bf16.mxu0 0
        %5159 = vmatmul.mubr.bf16.gmra.mrb[0].mxu0 %v5110
        %v5160 = vpop.f32.mrb[0].mxu0
        %v5161 = vadd.f32 0.0, %v5160
        %v5162 = vpop.f32.mrb[0].mxu0
        %v5163 = vpop.f32.mrb[0].mxu0
        %v5164 = vadd.f32 0.0, %v5163
        %v5165 = vpop.f32.mrb[0].mxu0
        %5166 = vmatprep.mubr.bf16.mxu0 0
        %5167 = vmatmul.mubr.bf16.gmra.mrb[0].mxu0 %v5113
        %v5168 = vpop.f32.mrb[0].mxu0
        %v5169 = vadd.f32 0.0, %v5168
        %v5170 = vpop.f32.mrb[0].mxu0
        %v5171 = vpop.f32.mrb[0].mxu0
        %v5172 = vadd.f32 0.0, %v5171
        %v5173 = vpop.f32.mrb[0].mxu0
        %5174 = vmatprep.mubr.bf16.mxu0 0
        %5175 = vmatmul.mubr.bf16.gmra.mrb[0].mxu0 %v5116
        %v5176 = vpop.f32.mrb[0].mxu0
        %v5177 = vadd.f32 0.0, %v5176
        %v5178 = vpop.f32.mrb[0].mxu0
        %v5179 = vpop.f32.mrb[0].mxu0
        %v5180 = vadd.f32 0.0, %v5179
        %v5181 = vpop.f32.mrb[0].mxu0
        %5182 = vdwg.mxu0
        %v5183 = vadd.f32 %v4717, %v5153
        %v5184 = vadd.f32 %v4718, %v5156
        %v5185 = vadd.f32 %v4719, %v5161
        %v5186 = vadd.f32 %v4720, %v5164
        %v5187 = vadd.f32 %v4721, %v5169
        %v5188 = vadd.f32 %v4722, %v5172
        %v5189 = vadd.f32 %v4723, %v5177
        %v5190 = vadd.f32 %v4724, %v5180
        %s5191 = scalar_lea.vmem [#allocation4], 12
        %v5192 = vld [vmem:[%s5191] sm:$0x1]
        %v5193 = vld [vmem:[%s5191 + $0x1] sm:$0x1]
        %v5194 = vld [vmem:[%s5191 + $0x2] sm:$0x1]
        %v5195 = vld [vmem:[%s5191 + $0x3] sm:$0x1]
        %v5196 = vld [vmem:[%s5191 + $0x4] sm:$0x1]
        %v5197 = vld [vmem:[%s5191 + $0x5] sm:$0x1]
        %v5198 = vld [vmem:[%s5191 + $0x6] sm:$0x1]
        %v5199 = vld [vmem:[%s5191 + $0x7] sm:$0x1]
        %v5200 = vld [vmem:[%s5191 + $0xa] sm:$0x1]
        %v5201 = vld [vmem:[%s5191 + $0xb] sm:$0x1]
        %v5202 = vld [vmem:[%s5191 + $0xc] sm:$0x1]
        %v5203 = vld [vmem:[%s5191 + $0xd] sm:$0x1]
        %v5204 = vld [vmem:[%s5191 + $0xe] sm:$0x1]
        %v5205 = vld [vmem:[%s5191 + $0xf] sm:$0x1]
        %v5206 = vld [vmem:[%s5191 + $0x10] sm:$0x1]
        %v5207 = vld [vmem:[%s5191 + $0x11] sm:$0x1]
        %v5208 = vld [vmem:[%s5191 + $0x14] sm:$0x1]
        %v5209 = vld [vmem:[%s5191 + $0x15] sm:$0x1]
        %v5210 = vld [vmem:[%s5191 + $0x16] sm:$0x1]
        %v5211 = vld [vmem:[%s5191 + $0x17] sm:$0x1]
        %v5212 = vld [vmem:[%s5191 + $0x18] sm:$0x1]
        %v5213 = vld [vmem:[%s5191 + $0x19] sm:$0x1]
        %v5214 = vld [vmem:[%s5191 + $0x1a] sm:$0x1]
        %v5215 = vld [vmem:[%s5191 + $0x1b] sm:$0x1]
        %v5216 = vld [vmem:[%s5191 + $0x1e] sm:$0x1]
        %v5217 = vld [vmem:[%s5191 + $0x1f] sm:$0x1]
        %v5218 = vld [vmem:[%s5191 + $0x20] sm:$0x1]
        %v5219 = vld [vmem:[%s5191 + $0x21] sm:$0x1]
        %v5220 = vld [vmem:[%s5191 + $0x22] sm:$0x1]
        %v5221 = vld [vmem:[%s5191 + $0x23] sm:$0x1]
        %v5222 = vld [vmem:[%s5191 + $0x24] sm:$0x1]
        %v5223 = vld [vmem:[%s5191 + $0x25] sm:$0x1]
        %v5224 = vld [vmem:[%s5191 + $0x28] sm:$0x1]
        %v5225 = vld [vmem:[%s5191 + $0x29] sm:$0x1]
        %v5226 = vld [vmem:[%s5191 + $0x2a] sm:$0x1]
        %v5227 = vld [vmem:[%s5191 + $0x2b] sm:$0x1]
        %v5228 = vld [vmem:[%s5191 + $0x2c] sm:$0x1]
        %v5229 = vld [vmem:[%s5191 + $0x2d] sm:$0x1]
        %v5230 = vld [vmem:[%s5191 + $0x2e] sm:$0x1]
        %v5231 = vld [vmem:[%s5191 + $0x2f] sm:$0x1]
        %v5232 = vld [vmem:[%s5191 + $0x32] sm:$0x1]
        %v5233 = vld [vmem:[%s5191 + $0x33] sm:$0x1]
        %v5234 = vld [vmem:[%s5191 + $0x34] sm:$0x1]
        %v5235 = vld [vmem:[%s5191 + $0x35] sm:$0x1]
        %v5236 = vld [vmem:[%s5191 + $0x36] sm:$0x1]
        %v5237 = vld [vmem:[%s5191 + $0x37] sm:$0x1]
        %v5238 = vld [vmem:[%s5191 + $0x38] sm:$0x1]
        %v5239 = vld [vmem:[%s5191 + $0x39] sm:$0x1]
        %v5240 = vld [vmem:[%s5191 + $0x3c] sm:$0x1]
        %v5241 = vld [vmem:[%s5191 + $0x3d] sm:$0x1]
        %v5242 = vld [vmem:[%s5191 + $0x3e] sm:$0x1]
        %v5243 = vld [vmem:[%s5191 + $0x3f] sm:$0x1]
        %v5244 = vld [vmem:[%s5191 + $0x40] sm:$0x1]
        %v5245 = vld [vmem:[%s5191 + $0x41] sm:$0x1]
        %v5246 = vld [vmem:[%s5191 + $0x42] sm:$0x1]
        %v5247 = vld [vmem:[%s5191 + $0x43] sm:$0x1]
        %v5248 = vld [vmem:[%s5191 + $0x46] sm:$0x1]
        %v5249 = vld [vmem:[%s5191 + $0x47] sm:$0x1]
        %v5250 = vld [vmem:[%s5191 + $0x48] sm:$0x1]
        %v5251 = vld [vmem:[%s5191 + $0x49] sm:$0x1]
        %v5252 = vld [vmem:[%s5191 + $0x4a] sm:$0x1]
        %v5253 = vld [vmem:[%s5191 + $0x4b] sm:$0x1]
        %v5254 = vld [vmem:[%s5191 + $0x4c] sm:$0x1]
        %v5255 = vld [vmem:[%s5191 + $0x4d] sm:$0x1]
        %v5256 = vpack.c.bf16 %v5192, %v5192
        %v5257 = vpack.c.bf16 %v5193, %v5193
        %v5258 = vpack.c.bf16 %v5194, %v5194
        %v5259 = vpack.c.bf16 %v5195, %v5195
        %v5260 = vpack.c.bf16 %v5196, %v5196
        %v5261 = vpack.c.bf16 %v5197, %v5197
        %v5262 = vpack.c.bf16 %v5198, %v5198
        %v5263 = vpack.c.bf16 %v5199, %v5199
        %v5264 = vpack.c.bf16 %v5200, %v5200
        %v5265 = vpack.c.bf16 %v5201, %v5201
        %v5266 = vpack.c.bf16 %v5202, %v5202
        %v5267 = vpack.c.bf16 %v5203, %v5203
        %v5268 = vpack.c.bf16 %v5204, %v5204
        %v5269 = vpack.c.bf16 %v5205, %v5205
        %v5270 = vpack.c.bf16 %v5206, %v5206
        %v5271 = vpack.c.bf16 %v5207, %v5207
        %v5272 = vpack.c.bf16 %v5208, %v5208
        %v5273 = vpack.c.bf16 %v5209, %v5209
        %v5274 = vpack.c.bf16 %v5210, %v5210
        %v5275 = vpack.c.bf16 %v5211, %v5211
        %v5276 = vpack.c.bf16 %v5212, %v5212
        %v5277 = vpack.c.bf16 %v5213, %v5213
        %v5278 = vpack.c.bf16 %v5214, %v5214
        %v5279 = vpack.c.bf16 %v5215, %v5215
        %v5280 = vpack.c.bf16 %v5216, %v5216
        %v5281 = vpack.c.bf16 %v5217, %v5217
        %v5282 = vpack.c.bf16 %v5218, %v5218
        %v5283 = vpack.c.bf16 %v5219, %v5219
        %v5284 = vpack.c.bf16 %v5220, %v5220
        %v5285 = vpack.c.bf16 %v5221, %v5221
        %v5286 = vpack.c.bf16 %v5222, %v5222
        %v5287 = vpack.c.bf16 %v5223, %v5223
        %v5288 = vpack.c.bf16 %v5224, %v5224
        %v5289 = vpack.c.bf16 %v5225, %v5225
        %v5290 = vpack.c.bf16 %v5226, %v5226
        %v5291 = vpack.c.bf16 %v5227, %v5227
        %v5292 = vpack.c.bf16 %v5228, %v5228
        %v5293 = vpack.c.bf16 %v5229, %v5229
        %v5294 = vpack.c.bf16 %v5230, %v5230
        %v5295 = vpack.c.bf16 %v5231, %v5231
        %v5296 = vpack.c.bf16 %v5232, %v5232
        %v5297 = vpack.c.bf16 %v5233, %v5233
        %v5298 = vpack.c.bf16 %v5234, %v5234
        %v5299 = vpack.c.bf16 %v5235, %v5235
        %v5300 = vpack.c.bf16 %v5236, %v5236
        %v5301 = vpack.c.bf16 %v5237, %v5237
        %v5302 = vpack.c.bf16 %v5238, %v5238
        %v5303 = vpack.c.bf16 %v5239, %v5239
        %v5304 = vpack.c.bf16 %v5240, %v5240
        %v5305 = vpack.c.bf16 %v5241, %v5241
        %v5306 = vpack.c.bf16 %v5242, %v5242
        %v5307 = vpack.c.bf16 %v5243, %v5243
        %v5308 = vpack.c.bf16 %v5244, %v5244
        %v5309 = vpack.c.bf16 %v5245, %v5245
        %v5310 = vpack.c.bf16 %v5246, %v5246
        %v5311 = vpack.c.bf16 %v5247, %v5247
        %v5312 = vpack.c.bf16 %v5248, %v5248
        %v5313 = vpack.c.bf16 %v5249, %v5249
        %v5314 = vpack.c.bf16 %v5250, %v5250
        %v5315 = vpack.c.bf16 %v5251, %v5251
        %v5316 = vpack.c.bf16 %v5252, %v5252
        %v5317 = vpack.c.bf16 %v5253, %v5253
        %v5318 = vpack.c.bf16 %v5254, %v5254
        %v5319 = vpack.c.bf16 %v5255, %v5255
        %s5320 = scalar_lea.vmem %s3, 40
        %v5321 = vld [vmem:[%s5320] sm:$0xf]
        %v5322 = vld [vmem:[%s5320 + $0x4] sm:$0xf]
        %v5387 = vunpack.c.l.b16 %v5256
        %v5388 = vunpack.c.l.b16 %v5257
        %v5389 = vunpack.c.l.b16 %v5258
        %v5390 = vunpack.c.l.b16 %v5259
        %v5391 = vunpack.c.l.b16 %v5260
        %v5392 = vunpack.c.l.b16 %v5261
        %v5393 = vunpack.c.l.b16 %v5262
        %v5394 = vunpack.c.l.b16 %v5263
        %v5395 = vunpack.c.l.b16 %v5264
        %v5396 = vunpack.c.l.b16 %v5265
        %v5397 = vunpack.c.l.b16 %v5266
        %v5398 = vunpack.c.l.b16 %v5267
        %v5399 = vunpack.c.l.b16 %v5268
        %v5400 = vunpack.c.l.b16 %v5269
        %v5401 = vunpack.c.l.b16 %v5270
        %v5402 = vunpack.c.l.b16 %v5271
        %v5403 = vunpack.c.l.b16 %v5272
        %v5404 = vunpack.c.l.b16 %v5273
        %v5405 = vunpack.c.l.b16 %v5274
        %v5406 = vunpack.c.l.b16 %v5275
        %v5407 = vunpack.c.l.b16 %v5276
        %v5408 = vunpack.c.l.b16 %v5277
        %v5409 = vunpack.c.l.b16 %v5278
        %v5410 = vunpack.c.l.b16 %v5279
        %v5411 = vunpack.c.l.b16 %v5280
        %v5412 = vunpack.c.l.b16 %v5281
        %v5413 = vunpack.c.l.b16 %v5282
        %v5414 = vunpack.c.l.b16 %v5283
        %v5415 = vunpack.c.l.b16 %v5284
        %v5416 = vunpack.c.l.b16 %v5285
        %v5417 = vunpack.c.l.b16 %v5286
        %v5418 = vunpack.c.l.b16 %v5287
        %v5419 = vunpack.c.l.b16 %v5288
        %v5420 = vunpack.c.l.b16 %v5289
        %v5421 = vunpack.c.l.b16 %v5290
        %v5422 = vunpack.c.l.b16 %v5291
        %v5423 = vunpack.c.l.b16 %v5292
        %v5424 = vunpack.c.l.b16 %v5293
        %v5425 = vunpack.c.l.b16 %v5294
        %v5426 = vunpack.c.l.b16 %v5295
        %v5427 = vunpack.c.l.b16 %v5296
        %v5428 = vunpack.c.l.b16 %v5297
        %v5429 = vunpack.c.l.b16 %v5298
        %v5430 = vunpack.c.l.b16 %v5299
        %v5431 = vunpack.c.l.b16 %v5300
        %v5432 = vunpack.c.l.b16 %v5301
        %v5433 = vunpack.c.l.b16 %v5302
        %v5434 = vunpack.c.l.b16 %v5303
        %v5435 = vunpack.c.l.b16 %v5304
        %v5436 = vunpack.c.l.b16 %v5305
        %v5437 = vunpack.c.l.b16 %v5306
        %v5438 = vunpack.c.l.b16 %v5307
        %v5439 = vunpack.c.l.b16 %v5308
        %v5440 = vunpack.c.l.b16 %v5309
        %v5441 = vunpack.c.l.b16 %v5310
        %v5442 = vunpack.c.l.b16 %v5311
        %v5443 = vunpack.c.l.b16 %v5312
        %v5444 = vunpack.c.l.b16 %v5313
        %v5445 = vunpack.c.l.b16 %v5314
        %v5446 = vunpack.c.l.b16 %v5315
        %v5447 = vunpack.c.l.b16 %v5316
        %v5448 = vunpack.c.l.b16 %v5317
        %v5449 = vunpack.c.l.b16 %v5318
        %v5450 = vunpack.c.l.b16 %v5319
        %v5451 = vrot.slane %v5388, 7
        %v5452 = vsel %vm2575, %v5451, %v5387
        %v5453 = vrot.slane %v5389, 6
        %v5454 = vsel %vm2578, %v5453, %v5452
        %v5455 = vrot.slane %v5390, 5
        %v5456 = vsel %vm2581, %v5455, %v5454
        %v5457 = vrot.slane %v5391, 4
        %v5458 = vsel %vm2584, %v5457, %v5456
        %v5459 = vrot.slane %v5392, 3
        %v5460 = vsel %vm2587, %v5459, %v5458
        %v5461 = vrot.slane %v5393, 2
        %v5462 = vsel %vm2590, %v5461, %v5460
        %v5463 = vrot.slane %v5394, 1
        %v5464 = vsel %vm2593, %v5463, %v5462
        %v5465 = vrot.slane %v5396, 7
        %v5466 = vsel %vm2575, %v5465, %v5395
        %v5467 = vrot.slane %v5397, 6
        %v5468 = vsel %vm2578, %v5467, %v5466
        %v5469 = vrot.slane %v5398, 5
        %v5470 = vsel %vm2581, %v5469, %v5468
        %v5471 = vrot.slane %v5399, 4
        %v5472 = vsel %vm2584, %v5471, %v5470
        %v5473 = vrot.slane %v5400, 3
        %v5474 = vsel %vm2587, %v5473, %v5472
        %v5475 = vrot.slane %v5401, 2
        %v5476 = vsel %vm2590, %v5475, %v5474
        %v5477 = vrot.slane %v5402, 1
        %v5478 = vsel %vm2593, %v5477, %v5476
        %v5479 = vrot.slane %v5404, 7
        %v5480 = vsel %vm2575, %v5479, %v5403
        %v5481 = vrot.slane %v5405, 6
        %v5482 = vsel %vm2578, %v5481, %v5480
        %v5483 = vrot.slane %v5406, 5
        %v5484 = vsel %vm2581, %v5483, %v5482
        %v5485 = vrot.slane %v5407, 4
        %v5486 = vsel %vm2584, %v5485, %v5484
        %v5487 = vrot.slane %v5408, 3
        %v5488 = vsel %vm2587, %v5487, %v5486
        %v5489 = vrot.slane %v5409, 2
        %v5490 = vsel %vm2590, %v5489, %v5488
        %v5491 = vrot.slane %v5410, 1
        %v5492 = vsel %vm2593, %v5491, %v5490
        %v5493 = vrot.slane %v5412, 7
        %v5494 = vsel %vm2575, %v5493, %v5411
        %v5495 = vrot.slane %v5413, 6
        %v5496 = vsel %vm2578, %v5495, %v5494
        %v5497 = vrot.slane %v5414, 5
        %v5498 = vsel %vm2581, %v5497, %v5496
        %v5499 = vrot.slane %v5415, 4
        %v5500 = vsel %vm2584, %v5499, %v5498
        %v5501 = vrot.slane %v5416, 3
        %v5502 = vsel %vm2587, %v5501, %v5500
        %v5503 = vrot.slane %v5417, 2
        %v5504 = vsel %vm2590, %v5503, %v5502
        %v5505 = vrot.slane %v5418, 1
        %v5506 = vsel %vm2593, %v5505, %v5504
        %v5507 = vrot.slane %v5420, 7
        %v5508 = vsel %vm2575, %v5507, %v5419
        %v5509 = vrot.slane %v5421, 6
        %v5510 = vsel %vm2578, %v5509, %v5508
        %v5511 = vrot.slane %v5422, 5
        %v5512 = vsel %vm2581, %v5511, %v5510
        %v5513 = vrot.slane %v5423, 4
        %v5514 = vsel %vm2584, %v5513, %v5512
        %v5515 = vrot.slane %v5424, 3
        %v5516 = vsel %vm2587, %v5515, %v5514
        %v5517 = vrot.slane %v5425, 2
        %v5518 = vsel %vm2590, %v5517, %v5516
        %v5519 = vrot.slane %v5426, 1
        %v5520 = vsel %vm2593, %v5519, %v5518
        %v5521 = vrot.slane %v5428, 7
        %v5522 = vsel %vm2575, %v5521, %v5427
        %v5523 = vrot.slane %v5429, 6
        %v5524 = vsel %vm2578, %v5523, %v5522
        %v5525 = vrot.slane %v5430, 5
        %v5526 = vsel %vm2581, %v5525, %v5524
        %v5527 = vrot.slane %v5431, 4
        %v5528 = vsel %vm2584, %v5527, %v5526
        %v5529 = vrot.slane %v5432, 3
        %v5530 = vsel %vm2587, %v5529, %v5528
        %v5531 = vrot.slane %v5433, 2
        %v5532 = vsel %vm2590, %v5531, %v5530
        %v5533 = vrot.slane %v5434, 1
        %v5534 = vsel %vm2593, %v5533, %v5532
        %v5535 = vrot.slane %v5436, 7
        %v5536 = vsel %vm2575, %v5535, %v5435
        %v5537 = vrot.slane %v5437, 6
        %v5538 = vsel %vm2578, %v5537, %v5536
        %v5539 = vrot.slane %v5438, 5
        %v5540 = vsel %vm2581, %v5539, %v5538
        %v5541 = vrot.slane %v5439, 4
        %v5542 = vsel %vm2584, %v5541, %v5540
        %v5543 = vrot.slane %v5440, 3
        %v5544 = vsel %vm2587, %v5543, %v5542
        %v5545 = vrot.slane %v5441, 2
        %v5546 = vsel %vm2590, %v5545, %v5544
        %v5547 = vrot.slane %v5442, 1
        %v5548 = vsel %vm2593, %v5547, %v5546
        %v5549 = vrot.slane %v5444, 7
        %v5550 = vsel %vm2575, %v5549, %v5443
        %v5551 = vrot.slane %v5445, 6
        %v5552 = vsel %vm2578, %v5551, %v5550
        %v5553 = vrot.slane %v5446, 5
        %v5554 = vsel %vm2581, %v5553, %v5552
        %v5555 = vrot.slane %v5447, 4
        %v5556 = vsel %vm2584, %v5555, %v5554
        %v5557 = vrot.slane %v5448, 3
        %v5558 = vsel %vm2587, %v5557, %v5556
        %v5559 = vrot.slane %v5449, 2
        %v5560 = vsel %vm2590, %v5559, %v5558
        %v5561 = vrot.slane %v5450, 1
        %v5562 = vsel %vm2593, %v5561, %v5560
        %v5563 = vpack.c.b16 %v5478, %v5464
        %v5564 = vpack.c.b16 %v5506, %v5492
        %v5565 = vpack.c.b16 %v5534, %v5520
        %v5566 = vpack.c.b16 %v5562, %v5548
        %v5569 = vunpack.c.l.b16 %v5321
        %v5570 = vunpack.c.l.b16 %v5322
        %v5571 = vpack.c.b16 %v5570, %v5569
        %v5574 = vsel %vm865, %v5563, 0
        %v5577 = vsel %vm865, %v5564, 0
        %v5580 = vsel %vm865, %v5565, 0
        %v5583 = vsel %vm865, %v5566, 0
        %5585 = vmatprep.subr.bf16.mxu0 0
        %5586 = vmatpush1.bf16.msra.mxu0 %v5571
        %5587 = vmatprep.subr.bf16.mxu0 0
        %5588 = vmatpush1.bf16.msra.mxu0 0
        %5589 = vmatprep.subr.bf16.mxu0 0
        %5590 = vmatpush1.bf16.msra.mxu0 0
        %5591 = vmatprep.subr.bf16.mxu0 0
        %5592 = vmatpush1.bf16.msra.mxu0 0
        %5593 = vmatprep.subr.bf16.mxu0 0
        %5594 = vmatpush1.bf16.msra.mxu0 0
        %5595 = vmatprep.subr.bf16.mxu0 0
        %5596 = vmatpush1.bf16.msra.mxu0 0
        %5597 = vmatprep.subr.bf16.mxu0 0
        %5598 = vmatpush1.bf16.msra.mxu0 0
        %5599 = vmatprep.subr.bf16.mxu0 0
        %5600 = vmatpush1.bf16.msra.mxu0 0
        %5601 = vmatprep.subr.bf16.mxu0 0
        %5602 = vmatpush1.bf16.msra.mxu0 0
        %5603 = vmatprep.subr.bf16.mxu0 0
        %5604 = vmatpush1.bf16.msra.mxu0 0
        %5605 = vmatprep.subr.bf16.mxu0 0
        %5606 = vmatpush1.bf16.msra.mxu0 0
        %5607 = vmatprep.subr.bf16.mxu0 0
        %5608 = vmatpush1.bf16.msra.mxu0 0
        %5609 = vmatprep.subr.bf16.mxu0 0
        %5610 = vmatpush1.bf16.msra.mxu0 0
        %5611 = vmatprep.subr.bf16.mxu0 0
        %5612 = vmatpush1.bf16.msra.mxu0 0
        %5613 = vmatprep.subr.bf16.mxu0 0
        %5614 = vmatpush1.bf16.msra.mxu0 0
        %5615 = vmatprep.subr.bf16.mxu0 0
        %5616 = vmatpush1.bf16.msra.mxu0 0
        %5617 = vmatprep.mubr.bf16.mxu0 0
        %5618 = vmatmul.mubr.bf16.gmra.mrb[0].mxu0 %v5574
        %v5619 = vpop.f32.mrb[0].mxu0
        %v5620 = vadd.f32 0.0, %v5619
        %v5621 = vpop.f32.mrb[0].mxu0
        %v5622 = vpop.f32.mrb[0].mxu0
        %v5623 = vadd.f32 0.0, %v5622
        %v5624 = vpop.f32.mrb[0].mxu0
        %5625 = vmatprep.mubr.bf16.mxu0 0
        %5626 = vmatmul.mubr.bf16.gmra.mrb[0].mxu0 %v5577
        %v5627 = vpop.f32.mrb[0].mxu0
        %v5628 = vadd.f32 0.0, %v5627
        %v5629 = vpop.f32.mrb[0].mxu0
        %v5630 = vpop.f32.mrb[0].mxu0
        %v5631 = vadd.f32 0.0, %v5630
        %v5632 = vpop.f32.mrb[0].mxu0
        %5633 = vmatprep.mubr.bf16.mxu0 0
        %5634 = vmatmul.mubr.bf16.gmra.mrb[0].mxu0 %v5580
        %v5635 = vpop.f32.mrb[0].mxu0
        %v5636 = vadd.f32 0.0, %v5635
        %v5637 = vpop.f32.mrb[0].mxu0
        %v5638 = vpop.f32.mrb[0].mxu0
        %v5639 = vadd.f32 0.0, %v5638
        %v5640 = vpop.f32.mrb[0].mxu0
        %5641 = vmatprep.mubr.bf16.mxu0 0
        %5642 = vmatmul.mubr.bf16.gmra.mrb[0].mxu0 %v5583
        %v5643 = vpop.f32.mrb[0].mxu0
        %v5644 = vadd.f32 0.0, %v5643
        %v5645 = vpop.f32.mrb[0].mxu0
        %v5646 = vpop.f32.mrb[0].mxu0
        %v5647 = vadd.f32 0.0, %v5646
        %v5648 = vpop.f32.mrb[0].mxu0
        %5649 = vdwg.mxu0
        %v5650 = vadd.f32 %v5183, %v5620
        %v5651 = vadd.f32 %v5184, %v5623
        %v5652 = vadd.f32 %v5185, %v5628
        %v5653 = vadd.f32 %v5186, %v5631
        %v5654 = vadd.f32 %v5187, %v5636
        %v5655 = vadd.f32 %v5188, %v5639
        %v5656 = vadd.f32 %v5189, %v5644
        %v5657 = vadd.f32 %v5190, %v5647
        %s5658 = scalar_lea.vmem [#allocation4], 20
        %v5659 = vld [vmem:[%s5658] sm:$0x1]
        %v5660 = vld [vmem:[%s5658 + $0x1] sm:$0x1]
        %v5661 = vld [vmem:[%s5658 + $0x2] sm:$0x1]
        %v5662 = vld [vmem:[%s5658 + $0x3] sm:$0x1]
        %v5663 = vld [vmem:[%s5658 + $0x4] sm:$0x1]
        %v5664 = vld [vmem:[%s5658 + $0x5] sm:$0x1]
        %v5665 = vld [vmem:[%s5658 + $0x6] sm:$0x1]
        %v5666 = vld [vmem:[%s5658 + $0x7] sm:$0x1]
        %v5667 = vld [vmem:[%s5658 + $0xa] sm:$0x1]
        %v5668 = vld [vmem:[%s5658 + $0xb] sm:$0x1]
        %v5669 = vld [vmem:[%s5658 + $0xc] sm:$0x1]
        %v5670 = vld [vmem:[%s5658 + $0xd] sm:$0x1]
        %v5671 = vld [vmem:[%s5658 + $0xe] sm:$0x1]
        %v5672 = vld [vmem:[%s5658 + $0xf] sm:$0x1]
        %v5673 = vld [vmem:[%s5658 + $0x10] sm:$0x1]
        %v5674 = vld [vmem:[%s5658 + $0x11] sm:$0x1]
        %v5675 = vld [vmem:[%s5658 + $0x14] sm:$0x1]
        %v5676 = vld [vmem:[%s5658 + $0x15] sm:$0x1]
        %v5677 = vld [vmem:[%s5658 + $0x16] sm:$0x1]
        %v5678 = vld [vmem:[%s5658 + $0x17] sm:$0x1]
        %v5679 = vld [vmem:[%s5658 + $0x18] sm:$0x1]
        %v5680 = vld [vmem:[%s5658 + $0x19] sm:$0x1]
        %v5681 = vld [vmem:[%s5658 + $0x1a] sm:$0x1]
        %v5682 = vld [vmem:[%s5658 + $0x1b] sm:$0x1]
        %v5683 = vld [vmem:[%s5658 + $0x1e] sm:$0x1]
        %v5684 = vld [vmem:[%s5658 + $0x1f] sm:$0x1]
        %v5685 = vld [vmem:[%s5658 + $0x20] sm:$0x1]
        %v5686 = vld [vmem:[%s5658 + $0x21] sm:$0x1]
        %v5687 = vld [vmem:[%s5658 + $0x22] sm:$0x1]
        %v5688 = vld [vmem:[%s5658 + $0x23] sm:$0x1]
        %v5689 = vld [vmem:[%s5658 + $0x24] sm:$0x1]
        %v5690 = vld [vmem:[%s5658 + $0x25] sm:$0x1]
        %v5691 = vld [vmem:[%s5658 + $0x28] sm:$0x1]
        %v5692 = vld [vmem:[%s5658 + $0x29] sm:$0x1]
        %v5693 = vld [vmem:[%s5658 + $0x2a] sm:$0x1]
        %v5694 = vld [vmem:[%s5658 + $0x2b] sm:$0x1]
        %v5695 = vld [vmem:[%s5658 + $0x2c] sm:$0x1]
        %v5696 = vld [vmem:[%s5658 + $0x2d] sm:$0x1]
        %v5697 = vld [vmem:[%s5658 + $0x2e] sm:$0x1]
        %v5698 = vld [vmem:[%s5658 + $0x2f] sm:$0x1]
        %v5699 = vld [vmem:[%s5658 + $0x32] sm:$0x1]
        %v5700 = vld [vmem:[%s5658 + $0x33] sm:$0x1]
        %v5701 = vld [vmem:[%s5658 + $0x34] sm:$0x1]
        %v5702 = vld [vmem:[%s5658 + $0x35] sm:$0x1]
        %v5703 = vld [vmem:[%s5658 + $0x36] sm:$0x1]
        %v5704 = vld [vmem:[%s5658 + $0x37] sm:$0x1]
        %v5705 = vld [vmem:[%s5658 + $0x38] sm:$0x1]
        %v5706 = vld [vmem:[%s5658 + $0x39] sm:$0x1]
        %v5707 = vld [vmem:[%s5658 + $0x3c] sm:$0x1]
        %v5708 = vld [vmem:[%s5658 + $0x3d] sm:$0x1]
        %v5709 = vld [vmem:[%s5658 + $0x3e] sm:$0x1]
        %v5710 = vld [vmem:[%s5658 + $0x3f] sm:$0x1]
        %v5711 = vld [vmem:[%s5658 + $0x40] sm:$0x1]
        %v5712 = vld [vmem:[%s5658 + $0x41] sm:$0x1]
        %v5713 = vld [vmem:[%s5658 + $0x42] sm:$0x1]
        %v5714 = vld [vmem:[%s5658 + $0x43] sm:$0x1]
        %v5715 = vld [vmem:[%s5658 + $0x46] sm:$0x1]
        %v5716 = vld [vmem:[%s5658 + $0x47] sm:$0x1]
        %v5717 = vld [vmem:[%s5658 + $0x48] sm:$0x1]
        %v5718 = vld [vmem:[%s5658 + $0x49] sm:$0x1]
        %v5719 = vld [vmem:[%s5658 + $0x4a] sm:$0x1]
        %v5720 = vld [vmem:[%s5658 + $0x4b] sm:$0x1]
        %v5721 = vld [vmem:[%s5658 + $0x4c] sm:$0x1]
        %v5722 = vld [vmem:[%s5658 + $0x4d] sm:$0x1]
        %v5723 = vpack.c.bf16 %v5659, %v5659
        %v5724 = vpack.c.bf16 %v5660, %v5660
        %v5725 = vpack.c.bf16 %v5661, %v5661
        %v5726 = vpack.c.bf16 %v5662, %v5662
        %v5727 = vpack.c.bf16 %v5663, %v5663
        %v5728 = vpack.c.bf16 %v5664, %v5664
        %v5729 = vpack.c.bf16 %v5665, %v5665
        %v5730 = vpack.c.bf16 %v5666, %v5666
        %v5731 = vpack.c.bf16 %v5667, %v5667
        %v5732 = vpack.c.bf16 %v5668, %v5668
        %v5733 = vpack.c.bf16 %v5669, %v5669
        %v5734 = vpack.c.bf16 %v5670, %v5670
        %v5735 = vpack.c.bf16 %v5671, %v5671
        %v5736 = vpack.c.bf16 %v5672, %v5672
        %v5737 = vpack.c.bf16 %v5673, %v5673
        %v5738 = vpack.c.bf16 %v5674, %v5674
        %v5739 = vpack.c.bf16 %v5675, %v5675
        %v5740 = vpack.c.bf16 %v5676, %v5676
        %v5741 = vpack.c.bf16 %v5677, %v5677
        %v5742 = vpack.c.bf16 %v5678, %v5678
        %v5743 = vpack.c.bf16 %v5679, %v5679
        %v5744 = vpack.c.bf16 %v5680, %v5680
        %v5745 = vpack.c.bf16 %v5681, %v5681
        %v5746 = vpack.c.bf16 %v5682, %v5682
        %v5747 = vpack.c.bf16 %v5683, %v5683
        %v5748 = vpack.c.bf16 %v5684, %v5684
        %v5749 = vpack.c.bf16 %v5685, %v5685
        %v5750 = vpack.c.bf16 %v5686, %v5686
        %v5751 = vpack.c.bf16 %v5687, %v5687
        %v5752 = vpack.c.bf16 %v5688, %v5688
        %v5753 = vpack.c.bf16 %v5689, %v5689
        %v5754 = vpack.c.bf16 %v5690, %v5690
        %v5755 = vpack.c.bf16 %v5691, %v5691
        %v5756 = vpack.c.bf16 %v5692, %v5692
        %v5757 = vpack.c.bf16 %v5693, %v5693
        %v5758 = vpack.c.bf16 %v5694, %v5694
        %v5759 = vpack.c.bf16 %v5695, %v5695
        %v5760 = vpack.c.bf16 %v5696, %v5696
        %v5761 = vpack.c.bf16 %v5697, %v5697
        %v5762 = vpack.c.bf16 %v5698, %v5698
        %v5763 = vpack.c.bf16 %v5699, %v5699
        %v5764 = vpack.c.bf16 %v5700, %v5700
        %v5765 = vpack.c.bf16 %v5701, %v5701
        %v5766 = vpack.c.bf16 %v5702, %v5702
        %v5767 = vpack.c.bf16 %v5703, %v5703
        %v5768 = vpack.c.bf16 %v5704, %v5704
        %v5769 = vpack.c.bf16 %v5705, %v5705
        %v5770 = vpack.c.bf16 %v5706, %v5706
        %v5771 = vpack.c.bf16 %v5707, %v5707
        %v5772 = vpack.c.bf16 %v5708, %v5708
        %v5773 = vpack.c.bf16 %v5709, %v5709
        %v5774 = vpack.c.bf16 %v5710, %v5710
        %v5775 = vpack.c.bf16 %v5711, %v5711
        %v5776 = vpack.c.bf16 %v5712, %v5712
        %v5777 = vpack.c.bf16 %v5713, %v5713
        %v5778 = vpack.c.bf16 %v5714, %v5714
        %v5779 = vpack.c.bf16 %v5715, %v5715
        %v5780 = vpack.c.bf16 %v5716, %v5716
        %v5781 = vpack.c.bf16 %v5717, %v5717
        %v5782 = vpack.c.bf16 %v5718, %v5718
        %v5783 = vpack.c.bf16 %v5719, %v5719
        %v5784 = vpack.c.bf16 %v5720, %v5720
        %v5785 = vpack.c.bf16 %v5721, %v5721
        %v5786 = vpack.c.bf16 %v5722, %v5722
        %s5787 = scalar_lea.vmem %s3, 48
        %v5788 = vld [vmem:[%s5787] sm:$0xf]
        %v5789 = vld [vmem:[%s5787 + $0x4] sm:$0xf]
        %v5854 = vunpack.c.l.b16 %v5723
        %v5855 = vunpack.c.l.b16 %v5724
        %v5856 = vunpack.c.l.b16 %v5725
        %v5857 = vunpack.c.l.b16 %v5726
        %v5858 = vunpack.c.l.b16 %v5727
        %v5859 = vunpack.c.l.b16 %v5728
        %v5860 = vunpack.c.l.b16 %v5729
        %v5861 = vunpack.c.l.b16 %v5730
        %v5862 = vunpack.c.l.b16 %v5731
        %v5863 = vunpack.c.l.b16 %v5732
        %v5864 = vunpack.c.l.b16 %v5733
        %v5865 = vunpack.c.l.b16 %v5734
        %v5866 = vunpack.c.l.b16 %v5735
        %v5867 = vunpack.c.l.b16 %v5736
        %v5868 = vunpack.c.l.b16 %v5737
        %v5869 = vunpack.c.l.b16 %v5738
        %v5870 = vunpack.c.l.b16 %v5739
        %v5871 = vunpack.c.l.b16 %v5740
        %v5872 = vunpack.c.l.b16 %v5741
        %v5873 = vunpack.c.l.b16 %v5742
        %v5874 = vunpack.c.l.b16 %v5743
        %v5875 = vunpack.c.l.b16 %v5744
        %v5876 = vunpack.c.l.b16 %v5745
        %v5877 = vunpack.c.l.b16 %v5746
        %v5878 = vunpack.c.l.b16 %v5747
        %v5879 = vunpack.c.l.b16 %v5748
        %v5880 = vunpack.c.l.b16 %v5749
        %v5881 = vunpack.c.l.b16 %v5750
        %v5882 = vunpack.c.l.b16 %v5751
        %v5883 = vunpack.c.l.b16 %v5752
        %v5884 = vunpack.c.l.b16 %v5753
        %v5885 = vunpack.c.l.b16 %v5754
        %v5886 = vunpack.c.l.b16 %v5755
        %v5887 = vunpack.c.l.b16 %v5756
        %v5888 = vunpack.c.l.b16 %v5757
        %v5889 = vunpack.c.l.b16 %v5758
        %v5890 = vunpack.c.l.b16 %v5759
        %v5891 = vunpack.c.l.b16 %v5760
        %v5892 = vunpack.c.l.b16 %v5761
        %v5893 = vunpack.c.l.b16 %v5762
        %v5894 = vunpack.c.l.b16 %v5763
        %v5895 = vunpack.c.l.b16 %v5764
        %v5896 = vunpack.c.l.b16 %v5765
        %v5897 = vunpack.c.l.b16 %v5766
        %v5898 = vunpack.c.l.b16 %v5767
        %v5899 = vunpack.c.l.b16 %v5768
        %v5900 = vunpack.c.l.b16 %v5769
        %v5901 = vunpack.c.l.b16 %v5770
        %v5902 = vunpack.c.l.b16 %v5771
        %v5903 = vunpack.c.l.b16 %v5772
        %v5904 = vunpack.c.l.b16 %v5773
        %v5905 = vunpack.c.l.b16 %v5774
        %v5906 = vunpack.c.l.b16 %v5775
        %v5907 = vunpack.c.l.b16 %v5776
        %v5908 = vunpack.c.l.b16 %v5777
        %v5909 = vunpack.c.l.b16 %v5778
        %v5910 = vunpack.c.l.b16 %v5779
        %v5911 = vunpack.c.l.b16 %v5780
        %v5912 = vunpack.c.l.b16 %v5781
        %v5913 = vunpack.c.l.b16 %v5782
        %v5914 = vunpack.c.l.b16 %v5783
        %v5915 = vunpack.c.l.b16 %v5784
        %v5916 = vunpack.c.l.b16 %v5785
        %v5917 = vunpack.c.l.b16 %v5786
        %v5918 = vrot.slane %v5855, 7
        %v5919 = vsel %vm2575, %v5918, %v5854
        %v5920 = vrot.slane %v5856, 6
        %v5921 = vsel %vm2578, %v5920, %v5919
        %v5922 = vrot.slane %v5857, 5
        %v5923 = vsel %vm2581, %v5922, %v5921
        %v5924 = vrot.slane %v5858, 4
        %v5925 = vsel %vm2584, %v5924, %v5923
        %v5926 = vrot.slane %v5859, 3
        %v5927 = vsel %vm2587, %v5926, %v5925
        %v5928 = vrot.slane %v5860, 2
        %v5929 = vsel %vm2590, %v5928, %v5927
        %v5930 = vrot.slane %v5861, 1
        %v5931 = vsel %vm2593, %v5930, %v5929
        %v5932 = vrot.slane %v5863, 7
        %v5933 = vsel %vm2575, %v5932, %v5862
        %v5934 = vrot.slane %v5864, 6
        %v5935 = vsel %vm2578, %v5934, %v5933
        %v5936 = vrot.slane %v5865, 5
        %v5937 = vsel %vm2581, %v5936, %v5935
        %v5938 = vrot.slane %v5866, 4
        %v5939 = vsel %vm2584, %v5938, %v5937
        %v5940 = vrot.slane %v5867, 3
        %v5941 = vsel %vm2587, %v5940, %v5939
        %v5942 = vrot.slane %v5868, 2
        %v5943 = vsel %vm2590, %v5942, %v5941
        %v5944 = vrot.slane %v5869, 1
        %v5945 = vsel %vm2593, %v5944, %v5943
        %v5946 = vrot.slane %v5871, 7
        %v5947 = vsel %vm2575, %v5946, %v5870
        %v5948 = vrot.slane %v5872, 6
        %v5949 = vsel %vm2578, %v5948, %v5947
        %v5950 = vrot.slane %v5873, 5
        %v5951 = vsel %vm2581, %v5950, %v5949
        %v5952 = vrot.slane %v5874, 4
        %v5953 = vsel %vm2584, %v5952, %v5951
        %v5954 = vrot.slane %v5875, 3
        %v5955 = vsel %vm2587, %v5954, %v5953
        %v5956 = vrot.slane %v5876, 2
        %v5957 = vsel %vm2590, %v5956, %v5955
        %v5958 = vrot.slane %v5877, 1
        %v5959 = vsel %vm2593, %v5958, %v5957
        %v5960 = vrot.slane %v5879, 7
        %v5961 = vsel %vm2575, %v5960, %v5878
        %v5962 = vrot.slane %v5880, 6
        %v5963 = vsel %vm2578, %v5962, %v5961
        %v5964 = vrot.slane %v5881, 5
        %v5965 = vsel %vm2581, %v5964, %v5963
        %v5966 = vrot.slane %v5882, 4
        %v5967 = vsel %vm2584, %v5966, %v5965
        %v5968 = vrot.slane %v5883, 3
        %v5969 = vsel %vm2587, %v5968, %v5967
        %v5970 = vrot.slane %v5884, 2
        %v5971 = vsel %vm2590, %v5970, %v5969
        %v5972 = vrot.slane %v5885, 1
        %v5973 = vsel %vm2593, %v5972, %v5971
        %v5974 = vrot.slane %v5887, 7
        %v5975 = vsel %vm2575, %v5974, %v5886
        %v5976 = vrot.slane %v5888, 6
        %v5977 = vsel %vm2578, %v5976, %v5975
        %v5978 = vrot.slane %v5889, 5
        %v5979 = vsel %vm2581, %v5978, %v5977
        %v5980 = vrot.slane %v5890, 4
        %v5981 = vsel %vm2584, %v5980, %v5979
        %v5982 = vrot.slane %v5891, 3
        %v5983 = vsel %vm2587, %v5982, %v5981
        %v5984 = vrot.slane %v5892, 2
        %v5985 = vsel %vm2590, %v5984, %v5983
        %v5986 = vrot.slane %v5893, 1
        %v5987 = vsel %vm2593, %v5986, %v5985
        %v5988 = vrot.slane %v5895, 7
        %v5989 = vsel %vm2575, %v5988, %v5894
        %v5990 = vrot.slane %v5896, 6
        %v5991 = vsel %vm2578, %v5990, %v5989
        %v5992 = vrot.slane %v5897, 5
        %v5993 = vsel %vm2581, %v5992, %v5991
        %v5994 = vrot.slane %v5898, 4
        %v5995 = vsel %vm2584, %v5994, %v5993
        %v5996 = vrot.slane %v5899, 3
        %v5997 = vsel %vm2587, %v5996, %v5995
        %v5998 = vrot.slane %v5900, 2
        %v5999 = vsel %vm2590, %v5998, %v5997
        %v6000 = vrot.slane %v5901, 1
        %v6001 = vsel %vm2593, %v6000, %v5999
        %v6002 = vrot.slane %v5903, 7
        %v6003 = vsel %vm2575, %v6002, %v5902
        %v6004 = vrot.slane %v5904, 6
        %v6005 = vsel %vm2578, %v6004, %v6003
        %v6006 = vrot.slane %v5905, 5
        %v6007 = vsel %vm2581, %v6006, %v6005
        %v6008 = vrot.slane %v5906, 4
        %v6009 = vsel %vm2584, %v6008, %v6007
        %v6010 = vrot.slane %v5907, 3
        %v6011 = vsel %vm2587, %v6010, %v6009
        %v6012 = vrot.slane %v5908, 2
        %v6013 = vsel %vm2590, %v6012, %v6011
        %v6014 = vrot.slane %v5909, 1
        %v6015 = vsel %vm2593, %v6014, %v6013
        %v6016 = vrot.slane %v5911, 7
        %v6017 = vsel %vm2575, %v6016, %v5910
        %v6018 = vrot.slane %v5912, 6
        %v6019 = vsel %vm2578, %v6018, %v6017
        %v6020 = vrot.slane %v5913, 5
        %v6021 = vsel %vm2581, %v6020, %v6019
        %v6022 = vrot.slane %v5914, 4
        %v6023 = vsel %vm2584, %v6022, %v6021
        %v6024 = vrot.slane %v5915, 3
        %v6025 = vsel %vm2587, %v6024, %v6023
        %v6026 = vrot.slane %v5916, 2
        %v6027 = vsel %vm2590, %v6026, %v6025
        %v6028 = vrot.slane %v5917, 1
        %v6029 = vsel %vm2593, %v6028, %v6027
        %v6030 = vpack.c.b16 %v5945, %v5931
        %v6031 = vpack.c.b16 %v5973, %v5959
        %v6032 = vpack.c.b16 %v6001, %v5987
        %v6033 = vpack.c.b16 %v6029, %v6015
        %v6036 = vunpack.c.l.b16 %v5788
        %v6037 = vunpack.c.l.b16 %v5789
        %v6038 = vpack.c.b16 %v6037, %v6036
        %v6041 = vsel %vm865, %v6030, 0
        %v6044 = vsel %vm865, %v6031, 0
        %v6047 = vsel %vm865, %v6032, 0
        %v6050 = vsel %vm865, %v6033, 0
        %6052 = vmatprep.subr.bf16.mxu0 0
        %6053 = vmatpush1.bf16.msra.mxu0 %v6038
        %6054 = vmatprep.subr.bf16.mxu0 0
        %6055 = vmatpush1.bf16.msra.mxu0 0
        %6056 = vmatprep.subr.bf16.mxu0 0
        %6057 = vmatpush1.bf16.msra.mxu0 0
        %6058 = vmatprep.subr.bf16.mxu0 0
        %6059 = vmatpush1.bf16.msra.mxu0 0
        %6060 = vmatprep.subr.bf16.mxu0 0
        %6061 = vmatpush1.bf16.msra.mxu0 0
        %6062 = vmatprep.subr.bf16.mxu0 0
        %6063 = vmatpush1.bf16.msra.mxu0 0
        %6064 = vmatprep.subr.bf16.mxu0 0
        %6065 = vmatpush1.bf16.msra.mxu0 0
        %6066 = vmatprep.subr.bf16.mxu0 0
        %6067 = vmatpush1.bf16.msra.mxu0 0
        %6068 = vmatprep.subr.bf16.mxu0 0
        %6069 = vmatpush1.bf16.msra.mxu0 0
        %6070 = vmatprep.subr.bf16.mxu0 0
        %6071 = vmatpush1.bf16.msra.mxu0 0
        %6072 = vmatprep.subr.bf16.mxu0 0
        %6073 = vmatpush1.bf16.msra.mxu0 0
        %6074 = vmatprep.subr.bf16.mxu0 0
        %6075 = vmatpush1.bf16.msra.mxu0 0
        %6076 = vmatprep.subr.bf16.mxu0 0
        %6077 = vmatpush1.bf16.msra.mxu0 0
        %6078 = vmatprep.subr.bf16.mxu0 0
        %6079 = vmatpush1.bf16.msra.mxu0 0
        %6080 = vmatprep.subr.bf16.mxu0 0
        %6081 = vmatpush1.bf16.msra.mxu0 0
        %6082 = vmatprep.subr.bf16.mxu0 0
        %6083 = vmatpush1.bf16.msra.mxu0 0
        %6084 = vmatprep.mubr.bf16.mxu0 0
        %6085 = vmatmul.mubr.bf16.gmra.mrb[0].mxu0 %v6041
        %v6086 = vpop.f32.mrb[0].mxu0
        %v6087 = vadd.f32 0.0, %v6086
        %v6088 = vpop.f32.mrb[0].mxu0
        %v6089 = vpop.f32.mrb[0].mxu0
        %v6090 = vadd.f32 0.0, %v6089
        %v6091 = vpop.f32.mrb[0].mxu0
        %6092 = vmatprep.mubr.bf16.mxu0 0
        %6093 = vmatmul.mubr.bf16.gmra.mrb[0].mxu0 %v6044
        %v6094 = vpop.f32.mrb[0].mxu0
        %v6095 = vadd.f32 0.0, %v6094
        %v6096 = vpop.f32.mrb[0].mxu0
        %v6097 = vpop.f32.mrb[0].mxu0
        %v6098 = vadd.f32 0.0, %v6097
        %v6099 = vpop.f32.mrb[0].mxu0
        %6100 = vmatprep.mubr.bf16.mxu0 0
        %6101 = vmatmul.mubr.bf16.gmra.mrb[0].mxu0 %v6047
        %v6102 = vpop.f32.mrb[0].mxu0
        %v6103 = vadd.f32 0.0, %v6102
        %v6104 = vpop.f32.mrb[0].mxu0
        %v6105 = vpop.f32.mrb[0].mxu0
        %v6106 = vadd.f32 0.0, %v6105
        %v6107 = vpop.f32.mrb[0].mxu0
        %6108 = vmatprep.mubr.bf16.mxu0 0
        %6109 = vmatmul.mubr.bf16.gmra.mrb[0].mxu0 %v6050
        %v6110 = vpop.f32.mrb[0].mxu0
        %v6111 = vadd.f32 0.0, %v6110
        %v6112 = vpop.f32.mrb[0].mxu0
        %v6113 = vpop.f32.mrb[0].mxu0
        %v6114 = vadd.f32 0.0, %v6113
        %v6115 = vpop.f32.mrb[0].mxu0
        %6116 = vdwg.mxu0
        %v6117 = vadd.f32 %v5650, %v6087
        %v6118 = vadd.f32 %v5651, %v6090
        %v6119 = vadd.f32 %v5652, %v6095
        %v6120 = vadd.f32 %v5653, %v6098
        %v6121 = vadd.f32 %v5654, %v6103
        %v6122 = vadd.f32 %v5655, %v6106
        %v6123 = vadd.f32 %v5656, %v6111
        %v6124 = vadd.f32 %v5657, %v6114
        %s6125 = scalar_lea.vmem [#allocation4], 21
        %v6126 = vld [vmem:[%s6125] sm:$0x1]
        %v6127 = vld [vmem:[%s6125 + $0x1] sm:$0x1]
        %v6128 = vld [vmem:[%s6125 + $0x2] sm:$0x1]
        %v6129 = vld [vmem:[%s6125 + $0x3] sm:$0x1]
        %v6130 = vld [vmem:[%s6125 + $0x4] sm:$0x1]
        %v6131 = vld [vmem:[%s6125 + $0x5] sm:$0x1]
        %v6132 = vld [vmem:[%s6125 + $0x6] sm:$0x1]
        %v6133 = vld [vmem:[%s6125 + $0x7] sm:$0x1]
        %v6134 = vld [vmem:[%s6125 + $0xa] sm:$0x1]
        %v6135 = vld [vmem:[%s6125 + $0xb] sm:$0x1]
        %v6136 = vld [vmem:[%s6125 + $0xc] sm:$0x1]
        %v6137 = vld [vmem:[%s6125 + $0xd] sm:$0x1]
        %v6138 = vld [vmem:[%s6125 + $0xe] sm:$0x1]
        %v6139 = vld [vmem:[%s6125 + $0xf] sm:$0x1]
        %v6140 = vld [vmem:[%s6125 + $0x10] sm:$0x1]
        %v6141 = vld [vmem:[%s6125 + $0x11] sm:$0x1]
        %v6142 = vld [vmem:[%s6125 + $0x14] sm:$0x1]
        %v6143 = vld [vmem:[%s6125 + $0x15] sm:$0x1]
        %v6144 = vld [vmem:[%s6125 + $0x16] sm:$0x1]
        %v6145 = vld [vmem:[%s6125 + $0x17] sm:$0x1]
        %v6146 = vld [vmem:[%s6125 + $0x18] sm:$0x1]
        %v6147 = vld [vmem:[%s6125 + $0x19] sm:$0x1]
        %v6148 = vld [vmem:[%s6125 + $0x1a] sm:$0x1]
        %v6149 = vld [vmem:[%s6125 + $0x1b] sm:$0x1]
        %v6150 = vld [vmem:[%s6125 + $0x1e] sm:$0x1]
        %v6151 = vld [vmem:[%s6125 + $0x1f] sm:$0x1]
        %v6152 = vld [vmem:[%s6125 + $0x20] sm:$0x1]
        %v6153 = vld [vmem:[%s6125 + $0x21] sm:$0x1]
        %v6154 = vld [vmem:[%s6125 + $0x22] sm:$0x1]
        %v6155 = vld [vmem:[%s6125 + $0x23] sm:$0x1]
        %v6156 = vld [vmem:[%s6125 + $0x24] sm:$0x1]
        %v6157 = vld [vmem:[%s6125 + $0x25] sm:$0x1]
        %v6158 = vld [vmem:[%s6125 + $0x28] sm:$0x1]
        %v6159 = vld [vmem:[%s6125 + $0x29] sm:$0x1]
        %v6160 = vld [vmem:[%s6125 + $0x2a] sm:$0x1]
        %v6161 = vld [vmem:[%s6125 + $0x2b] sm:$0x1]
        %v6162 = vld [vmem:[%s6125 + $0x2c] sm:$0x1]
        %v6163 = vld [vmem:[%s6125 + $0x2d] sm:$0x1]
        %v6164 = vld [vmem:[%s6125 + $0x2e] sm:$0x1]
        %v6165 = vld [vmem:[%s6125 + $0x2f] sm:$0x1]
        %v6166 = vld [vmem:[%s6125 + $0x32] sm:$0x1]
        %v6167 = vld [vmem:[%s6125 + $0x33] sm:$0x1]
        %v6168 = vld [vmem:[%s6125 + $0x34] sm:$0x1]
        %v6169 = vld [vmem:[%s6125 + $0x35] sm:$0x1]
        %v6170 = vld [vmem:[%s6125 + $0x36] sm:$0x1]
        %v6171 = vld [vmem:[%s6125 + $0x37] sm:$0x1]
        %v6172 = vld [vmem:[%s6125 + $0x38] sm:$0x1]
        %v6173 = vld [vmem:[%s6125 + $0x39] sm:$0x1]
        %v6174 = vld [vmem:[%s6125 + $0x3c] sm:$0x1]
        %v6175 = vld [vmem:[%s6125 + $0x3d] sm:$0x1]
        %v6176 = vld [vmem:[%s6125 + $0x3e] sm:$0x1]
        %v6177 = vld [vmem:[%s6125 + $0x3f] sm:$0x1]
        %v6178 = vld [vmem:[%s6125 + $0x40] sm:$0x1]
        %v6179 = vld [vmem:[%s6125 + $0x41] sm:$0x1]
        %v6180 = vld [vmem:[%s6125 + $0x42] sm:$0x1]
        %v6181 = vld [vmem:[%s6125 + $0x43] sm:$0x1]
        %v6182 = vld [vmem:[%s6125 + $0x46] sm:$0x1]
        %v6183 = vld [vmem:[%s6125 + $0x47] sm:$0x1]
        %v6184 = vld [vmem:[%s6125 + $0x48] sm:$0x1]
        %v6185 = vld [vmem:[%s6125 + $0x49] sm:$0x1]
        %v6186 = vld [vmem:[%s6125 + $0x4a] sm:$0x1]
        %v6187 = vld [vmem:[%s6125 + $0x4b] sm:$0x1]
        %v6188 = vld [vmem:[%s6125 + $0x4c] sm:$0x1]
        %v6189 = vld [vmem:[%s6125 + $0x4d] sm:$0x1]
        %v6190 = vpack.c.bf16 %v6126, %v6126
        %v6191 = vpack.c.bf16 %v6127, %v6127
        %v6192 = vpack.c.bf16 %v6128, %v6128
        %v6193 = vpack.c.bf16 %v6129, %v6129
        %v6194 = vpack.c.bf16 %v6130, %v6130
        %v6195 = vpack.c.bf16 %v6131, %v6131
        %v6196 = vpack.c.bf16 %v6132, %v6132
        %v6197 = vpack.c.bf16 %v6133, %v6133
        %v6198 = vpack.c.bf16 %v6134, %v6134
        %v6199 = vpack.c.bf16 %v6135, %v6135
        %v6200 = vpack.c.bf16 %v6136, %v6136
        %v6201 = vpack.c.bf16 %v6137, %v6137
        %v6202 = vpack.c.bf16 %v6138, %v6138
        %v6203 = vpack.c.bf16 %v6139, %v6139
        %v6204 = vpack.c.bf16 %v6140, %v6140
        %v6205 = vpack.c.bf16 %v6141, %v6141
        %v6206 = vpack.c.bf16 %v6142, %v6142
        %v6207 = vpack.c.bf16 %v6143, %v6143
        %v6208 = vpack.c.bf16 %v6144, %v6144
        %v6209 = vpack.c.bf16 %v6145, %v6145
        %v6210 = vpack.c.bf16 %v6146, %v6146
        %v6211 = vpack.c.bf16 %v6147, %v6147
        %v6212 = vpack.c.bf16 %v6148, %v6148
        %v6213 = vpack.c.bf16 %v6149, %v6149
        %v6214 = vpack.c.bf16 %v6150, %v6150
        %v6215 = vpack.c.bf16 %v6151, %v6151
        %v6216 = vpack.c.bf16 %v6152, %v6152
        %v6217 = vpack.c.bf16 %v6153, %v6153
        %v6218 = vpack.c.bf16 %v6154, %v6154
        %v6219 = vpack.c.bf16 %v6155, %v6155
        %v6220 = vpack.c.bf16 %v6156, %v6156
        %v6221 = vpack.c.bf16 %v6157, %v6157
        %v6222 = vpack.c.bf16 %v6158, %v6158
        %v6223 = vpack.c.bf16 %v6159, %v6159
        %v6224 = vpack.c.bf16 %v6160, %v6160
        %v6225 = vpack.c.bf16 %v6161, %v6161
        %v6226 = vpack.c.bf16 %v6162, %v6162
        %v6227 = vpack.c.bf16 %v6163, %v6163
        %v6228 = vpack.c.bf16 %v6164, %v6164
        %v6229 = vpack.c.bf16 %v6165, %v6165
        %v6230 = vpack.c.bf16 %v6166, %v6166
        %v6231 = vpack.c.bf16 %v6167, %v6167
        %v6232 = vpack.c.bf16 %v6168, %v6168
        %v6233 = vpack.c.bf16 %v6169, %v6169
        %v6234 = vpack.c.bf16 %v6170, %v6170
        %v6235 = vpack.c.bf16 %v6171, %v6171
        %v6236 = vpack.c.bf16 %v6172, %v6172
        %v6237 = vpack.c.bf16 %v6173, %v6173
        %v6238 = vpack.c.bf16 %v6174, %v6174
        %v6239 = vpack.c.bf16 %v6175, %v6175
        %v6240 = vpack.c.bf16 %v6176, %v6176
        %v6241 = vpack.c.bf16 %v6177, %v6177
        %v6242 = vpack.c.bf16 %v6178, %v6178
        %v6243 = vpack.c.bf16 %v6179, %v6179
        %v6244 = vpack.c.bf16 %v6180, %v6180
        %v6245 = vpack.c.bf16 %v6181, %v6181
        %v6246 = vpack.c.bf16 %v6182, %v6182
        %v6247 = vpack.c.bf16 %v6183, %v6183
        %v6248 = vpack.c.bf16 %v6184, %v6184
        %v6249 = vpack.c.bf16 %v6185, %v6185
        %v6250 = vpack.c.bf16 %v6186, %v6186
        %v6251 = vpack.c.bf16 %v6187, %v6187
        %v6252 = vpack.c.bf16 %v6188, %v6188
        %v6253 = vpack.c.bf16 %v6189, %v6189
        %s6254 = scalar_lea.vmem %s3, 56
        %v6255 = vld [vmem:[%s6254] sm:$0xf]
        %v6256 = vld [vmem:[%s6254 + $0x4] sm:$0xf]
        %v6321 = vunpack.c.l.b16 %v6190
        %v6322 = vunpack.c.l.b16 %v6191
        %v6323 = vunpack.c.l.b16 %v6192
        %v6324 = vunpack.c.l.b16 %v6193
        %v6325 = vunpack.c.l.b16 %v6194
        %v6326 = vunpack.c.l.b16 %v6195
        %v6327 = vunpack.c.l.b16 %v6196
        %v6328 = vunpack.c.l.b16 %v6197
        %v6329 = vunpack.c.l.b16 %v6198
        %v6330 = vunpack.c.l.b16 %v6199
        %v6331 = vunpack.c.l.b16 %v6200
        %v6332 = vunpack.c.l.b16 %v6201
        %v6333 = vunpack.c.l.b16 %v6202
        %v6334 = vunpack.c.l.b16 %v6203
        %v6335 = vunpack.c.l.b16 %v6204
        %v6336 = vunpack.c.l.b16 %v6205
        %v6337 = vunpack.c.l.b16 %v6206
        %v6338 = vunpack.c.l.b16 %v6207
        %v6339 = vunpack.c.l.b16 %v6208
        %v6340 = vunpack.c.l.b16 %v6209
        %v6341 = vunpack.c.l.b16 %v6210
        %v6342 = vunpack.c.l.b16 %v6211
        %v6343 = vunpack.c.l.b16 %v6212
        %v6344 = vunpack.c.l.b16 %v6213
        %v6345 = vunpack.c.l.b16 %v6214
        %v6346 = vunpack.c.l.b16 %v6215
        %v6347 = vunpack.c.l.b16 %v6216
        %v6348 = vunpack.c.l.b16 %v6217
        %v6349 = vunpack.c.l.b16 %v6218
        %v6350 = vunpack.c.l.b16 %v6219
        %v6351 = vunpack.c.l.b16 %v6220
        %v6352 = vunpack.c.l.b16 %v6221
        %v6353 = vunpack.c.l.b16 %v6222
        %v6354 = vunpack.c.l.b16 %v6223
        %v6355 = vunpack.c.l.b16 %v6224
        %v6356 = vunpack.c.l.b16 %v6225
        %v6357 = vunpack.c.l.b16 %v6226
        %v6358 = vunpack.c.l.b16 %v6227
        %v6359 = vunpack.c.l.b16 %v6228
        %v6360 = vunpack.c.l.b16 %v6229
        %v6361 = vunpack.c.l.b16 %v6230
        %v6362 = vunpack.c.l.b16 %v6231
        %v6363 = vunpack.c.l.b16 %v6232
        %v6364 = vunpack.c.l.b16 %v6233
        %v6365 = vunpack.c.l.b16 %v6234
        %v6366 = vunpack.c.l.b16 %v6235
        %v6367 = vunpack.c.l.b16 %v6236
        %v6368 = vunpack.c.l.b16 %v6237
        %v6369 = vunpack.c.l.b16 %v6238
        %v6370 = vunpack.c.l.b16 %v6239
        %v6371 = vunpack.c.l.b16 %v6240
        %v6372 = vunpack.c.l.b16 %v6241
        %v6373 = vunpack.c.l.b16 %v6242
        %v6374 = vunpack.c.l.b16 %v6243
        %v6375 = vunpack.c.l.b16 %v6244
        %v6376 = vunpack.c.l.b16 %v6245
        %v6377 = vunpack.c.l.b16 %v6246
        %v6378 = vunpack.c.l.b16 %v6247
        %v6379 = vunpack.c.l.b16 %v6248
        %v6380 = vunpack.c.l.b16 %v6249
        %v6381 = vunpack.c.l.b16 %v6250
        %v6382 = vunpack.c.l.b16 %v6251
        %v6383 = vunpack.c.l.b16 %v6252
        %v6384 = vunpack.c.l.b16 %v6253
        %v6385 = vrot.slane %v6322, 7
        %v6386 = vsel %vm2575, %v6385, %v6321
        %v6387 = vrot.slane %v6323, 6
        %v6388 = vsel %vm2578, %v6387, %v6386
        %v6389 = vrot.slane %v6324, 5
        %v6390 = vsel %vm2581, %v6389, %v6388
        %v6391 = vrot.slane %v6325, 4
        %v6392 = vsel %vm2584, %v6391, %v6390
        %v6393 = vrot.slane %v6326, 3
        %v6394 = vsel %vm2587, %v6393, %v6392
        %v6395 = vrot.slane %v6327, 2
        %v6396 = vsel %vm2590, %v6395, %v6394
        %v6397 = vrot.slane %v6328, 1
        %v6398 = vsel %vm2593, %v6397, %v6396
        %v6399 = vrot.slane %v6330, 7
        %v6400 = vsel %vm2575, %v6399, %v6329
        %v6401 = vrot.slane %v6331, 6
        %v6402 = vsel %vm2578, %v6401, %v6400
        %v6403 = vrot.slane %v6332, 5
        %v6404 = vsel %vm2581, %v6403, %v6402
        %v6405 = vrot.slane %v6333, 4
        %v6406 = vsel %vm2584, %v6405, %v6404
        %v6407 = vrot.slane %v6334, 3
        %v6408 = vsel %vm2587, %v6407, %v6406
        %v6409 = vrot.slane %v6335, 2
        %v6410 = vsel %vm2590, %v6409, %v6408
        %v6411 = vrot.slane %v6336, 1
        %v6412 = vsel %vm2593, %v6411, %v6410
        %v6413 = vrot.slane %v6338, 7
        %v6414 = vsel %vm2575, %v6413, %v6337
        %v6415 = vrot.slane %v6339, 6
        %v6416 = vsel %vm2578, %v6415, %v6414
        %v6417 = vrot.slane %v6340, 5
        %v6418 = vsel %vm2581, %v6417, %v6416
        %v6419 = vrot.slane %v6341, 4
        %v6420 = vsel %vm2584, %v6419, %v6418
        %v6421 = vrot.slane %v6342, 3
        %v6422 = vsel %vm2587, %v6421, %v6420
        %v6423 = vrot.slane %v6343, 2
        %v6424 = vsel %vm2590, %v6423, %v6422
        %v6425 = vrot.slane %v6344, 1
        %v6426 = vsel %vm2593, %v6425, %v6424
        %v6427 = vrot.slane %v6346, 7
        %v6428 = vsel %vm2575, %v6427, %v6345
        %v6429 = vrot.slane %v6347, 6
        %v6430 = vsel %vm2578, %v6429, %v6428
        %v6431 = vrot.slane %v6348, 5
        %v6432 = vsel %vm2581, %v6431, %v6430
        %v6433 = vrot.slane %v6349, 4
        %v6434 = vsel %vm2584, %v6433, %v6432
        %v6435 = vrot.slane %v6350, 3
        %v6436 = vsel %vm2587, %v6435, %v6434
        %v6437 = vrot.slane %v6351, 2
        %v6438 = vsel %vm2590, %v6437, %v6436
        %v6439 = vrot.slane %v6352, 1
        %v6440 = vsel %vm2593, %v6439, %v6438
        %v6441 = vrot.slane %v6354, 7
        %v6442 = vsel %vm2575, %v6441, %v6353
        %v6443 = vrot.slane %v6355, 6
        %v6444 = vsel %vm2578, %v6443, %v6442
        %v6445 = vrot.slane %v6356, 5
        %v6446 = vsel %vm2581, %v6445, %v6444
        %v6447 = vrot.slane %v6357, 4
        %v6448 = vsel %vm2584, %v6447, %v6446
        %v6449 = vrot.slane %v6358, 3
        %v6450 = vsel %vm2587, %v6449, %v6448
        %v6451 = vrot.slane %v6359, 2
        %v6452 = vsel %vm2590, %v6451, %v6450
        %v6453 = vrot.slane %v6360, 1
        %v6454 = vsel %vm2593, %v6453, %v6452
        %v6455 = vrot.slane %v6362, 7
        %v6456 = vsel %vm2575, %v6455, %v6361
        %v6457 = vrot.slane %v6363, 6
        %v6458 = vsel %vm2578, %v6457, %v6456
        %v6459 = vrot.slane %v6364, 5
        %v6460 = vsel %vm2581, %v6459, %v6458
        %v6461 = vrot.slane %v6365, 4
        %v6462 = vsel %vm2584, %v6461, %v6460
        %v6463 = vrot.slane %v6366, 3
        %v6464 = vsel %vm2587, %v6463, %v6462
        %v6465 = vrot.slane %v6367, 2
        %v6466 = vsel %vm2590, %v6465, %v6464
        %v6467 = vrot.slane %v6368, 1
        %v6468 = vsel %vm2593, %v6467, %v6466
        %v6469 = vrot.slane %v6370, 7
        %v6470 = vsel %vm2575, %v6469, %v6369
        %v6471 = vrot.slane %v6371, 6
        %v6472 = vsel %vm2578, %v6471, %v6470
        %v6473 = vrot.slane %v6372, 5
        %v6474 = vsel %vm2581, %v6473, %v6472
        %v6475 = vrot.slane %v6373, 4
        %v6476 = vsel %vm2584, %v6475, %v6474
        %v6477 = vrot.slane %v6374, 3
        %v6478 = vsel %vm2587, %v6477, %v6476
        %v6479 = vrot.slane %v6375, 2
        %v6480 = vsel %vm2590, %v6479, %v6478
        %v6481 = vrot.slane %v6376, 1
        %v6482 = vsel %vm2593, %v6481, %v6480
        %v6483 = vrot.slane %v6378, 7
        %v6484 = vsel %vm2575, %v6483, %v6377
        %v6485 = vrot.slane %v6379, 6
        %v6486 = vsel %vm2578, %v6485, %v6484
        %v6487 = vrot.slane %v6380, 5
        %v6488 = vsel %vm2581, %v6487, %v6486
        %v6489 = vrot.slane %v6381, 4
        %v6490 = vsel %vm2584, %v6489, %v6488
        %v6491 = vrot.slane %v6382, 3
        %v6492 = vsel %vm2587, %v6491, %v6490
        %v6493 = vrot.slane %v6383, 2
        %v6494 = vsel %vm2590, %v6493, %v6492
        %v6495 = vrot.slane %v6384, 1
        %v6496 = vsel %vm2593, %v6495, %v6494
        %v6497 = vpack.c.b16 %v6412, %v6398
        %v6498 = vpack.c.b16 %v6440, %v6426
        %v6499 = vpack.c.b16 %v6468, %v6454
        %v6500 = vpack.c.b16 %v6496, %v6482
        %v6503 = vunpack.c.l.b16 %v6255
        %v6504 = vunpack.c.l.b16 %v6256
        %v6505 = vpack.c.b16 %v6504, %v6503
        %v6508 = vsel %vm865, %v6497, 0
        %v6511 = vsel %vm865, %v6498, 0
        %v6514 = vsel %vm865, %v6499, 0
        %v6517 = vsel %vm865, %v6500, 0
        %6519 = vmatprep.subr.bf16.mxu0 0
        %6520 = vmatpush1.bf16.msra.mxu0 %v6505
        %6521 = vmatprep.subr.bf16.mxu0 0
        %6522 = vmatpush1.bf16.msra.mxu0 0
        %6523 = vmatprep.subr.bf16.mxu0 0
        %6524 = vmatpush1.bf16.msra.mxu0 0
        %6525 = vmatprep.subr.bf16.mxu0 0
        %6526 = vmatpush1.bf16.msra.mxu0 0
        %6527 = vmatprep.subr.bf16.mxu0 0
        %6528 = vmatpush1.bf16.msra.mxu0 0
        %6529 = vmatprep.subr.bf16.mxu0 0
        %6530 = vmatpush1.bf16.msra.mxu0 0
        %6531 = vmatprep.subr.bf16.mxu0 0
        %6532 = vmatpush1.bf16.msra.mxu0 0
        %6533 = vmatprep.subr.bf16.mxu0 0
        %6534 = vmatpush1.bf16.msra.mxu0 0
        %6535 = vmatprep.subr.bf16.mxu0 0
        %6536 = vmatpush1.bf16.msra.mxu0 0
        %6537 = vmatprep.subr.bf16.mxu0 0
        %6538 = vmatpush1.bf16.msra.mxu0 0
        %6539 = vmatprep.subr.bf16.mxu0 0
        %6540 = vmatpush1.bf16.msra.mxu0 0
        %6541 = vmatprep.subr.bf16.mxu0 0
        %6542 = vmatpush1.bf16.msra.mxu0 0
        %6543 = vmatprep.subr.bf16.mxu0 0
        %6544 = vmatpush1.bf16.msra.mxu0 0
        %6545 = vmatprep.subr.bf16.mxu0 0
        %6546 = vmatpush1.bf16.msra.mxu0 0
        %6547 = vmatprep.subr.bf16.mxu0 0
        %6548 = vmatpush1.bf16.msra.mxu0 0
        %6549 = vmatprep.subr.bf16.mxu0 0
        %6550 = vmatpush1.bf16.msra.mxu0 0
        %6551 = vmatprep.mubr.bf16.mxu0 0
        %6552 = vmatmul.mubr.bf16.gmra.mrb[0].mxu0 %v6508
        %v6553 = vpop.f32.mrb[0].mxu0
        %v6554 = vadd.f32 0.0, %v6553
        %v6555 = vpop.f32.mrb[0].mxu0
        %v6556 = vpop.f32.mrb[0].mxu0
        %v6557 = vadd.f32 0.0, %v6556
        %v6558 = vpop.f32.mrb[0].mxu0
        %6559 = vmatprep.mubr.bf16.mxu0 0
        %6560 = vmatmul.mubr.bf16.gmra.mrb[0].mxu0 %v6511
        %v6561 = vpop.f32.mrb[0].mxu0
        %v6562 = vadd.f32 0.0, %v6561
        %v6563 = vpop.f32.mrb[0].mxu0
        %v6564 = vpop.f32.mrb[0].mxu0
        %v6565 = vadd.f32 0.0, %v6564
        %v6566 = vpop.f32.mrb[0].mxu0
        %6567 = vmatprep.mubr.bf16.mxu0 0
        %6568 = vmatmul.mubr.bf16.gmra.mrb[0].mxu0 %v6514
        %v6569 = vpop.f32.mrb[0].mxu0
        %v6570 = vadd.f32 0.0, %v6569
        %v6571 = vpop.f32.mrb[0].mxu0
        %v6572 = vpop.f32.mrb[0].mxu0
        %v6573 = vadd.f32 0.0, %v6572
        %v6574 = vpop.f32.mrb[0].mxu0
        %6575 = vmatprep.mubr.bf16.mxu0 0
        %6576 = vmatmul.mubr.bf16.gmra.mrb[0].mxu0 %v6517
        %v6577 = vpop.f32.mrb[0].mxu0
        %v6578 = vadd.f32 0.0, %v6577
        %v6579 = vpop.f32.mrb[0].mxu0
        %v6580 = vpop.f32.mrb[0].mxu0
        %v6581 = vadd.f32 0.0, %v6580
        %v6582 = vpop.f32.mrb[0].mxu0
        %6583 = vdwg.mxu0
        %v6584 = vadd.f32 %v6117, %v6554
        %v6585 = vadd.f32 %v6118, %v6557
        %v6586 = vadd.f32 %v6119, %v6562
        %v6587 = vadd.f32 %v6120, %v6565
        %v6588 = vadd.f32 %v6121, %v6570
        %v6589 = vadd.f32 %v6122, %v6573
        %v6590 = vadd.f32 %v6123, %v6578
        %v6591 = vadd.f32 %v6124, %v6581
        %s6592 = scalar_lea.vmem [#allocation4], 22
        %v6593 = vld [vmem:[%s6592] sm:$0x1]
        %v6594 = vld [vmem:[%s6592 + $0x1] sm:$0x1]
        %v6595 = vld [vmem:[%s6592 + $0x2] sm:$0x1]
        %v6596 = vld [vmem:[%s6592 + $0x3] sm:$0x1]
        %v6597 = vld [vmem:[%s6592 + $0x4] sm:$0x1]
        %v6598 = vld [vmem:[%s6592 + $0x5] sm:$0x1]
        %v6599 = vld [vmem:[%s6592 + $0x6] sm:$0x1]
        %v6600 = vld [vmem:[%s6592 + $0x7] sm:$0x1]
        %v6601 = vld [vmem:[%s6592 + $0xa] sm:$0x1]
        %v6602 = vld [vmem:[%s6592 + $0xb] sm:$0x1]
        %v6603 = vld [vmem:[%s6592 + $0xc] sm:$0x1]
        %v6604 = vld [vmem:[%s6592 + $0xd] sm:$0x1]
        %v6605 = vld [vmem:[%s6592 + $0xe] sm:$0x1]
        %v6606 = vld [vmem:[%s6592 + $0xf] sm:$0x1]
        %v6607 = vld [vmem:[%s6592 + $0x10] sm:$0x1]
        %v6608 = vld [vmem:[%s6592 + $0x11] sm:$0x1]
        %v6609 = vld [vmem:[%s6592 + $0x14] sm:$0x1]
        %v6610 = vld [vmem:[%s6592 + $0x15] sm:$0x1]
        %v6611 = vld [vmem:[%s6592 + $0x16] sm:$0x1]
        %v6612 = vld [vmem:[%s6592 + $0x17] sm:$0x1]
        %v6613 = vld [vmem:[%s6592 + $0x18] sm:$0x1]
        %v6614 = vld [vmem:[%s6592 + $0x19] sm:$0x1]
        %v6615 = vld [vmem:[%s6592 + $0x1a] sm:$0x1]
        %v6616 = vld [vmem:[%s6592 + $0x1b] sm:$0x1]
        %v6617 = vld [vmem:[%s6592 + $0x1e] sm:$0x1]
        %v6618 = vld [vmem:[%s6592 + $0x1f] sm:$0x1]
        %v6619 = vld [vmem:[%s6592 + $0x20] sm:$0x1]
        %v6620 = vld [vmem:[%s6592 + $0x21] sm:$0x1]
        %v6621 = vld [vmem:[%s6592 + $0x22] sm:$0x1]
        %v6622 = vld [vmem:[%s6592 + $0x23] sm:$0x1]
        %v6623 = vld [vmem:[%s6592 + $0x24] sm:$0x1]
        %v6624 = vld [vmem:[%s6592 + $0x25] sm:$0x1]
        %v6625 = vld [vmem:[%s6592 + $0x28] sm:$0x1]
        %v6626 = vld [vmem:[%s6592 + $0x29] sm:$0x1]
        %v6627 = vld [vmem:[%s6592 + $0x2a] sm:$0x1]
        %v6628 = vld [vmem:[%s6592 + $0x2b] sm:$0x1]
        %v6629 = vld [vmem:[%s6592 + $0x2c] sm:$0x1]
        %v6630 = vld [vmem:[%s6592 + $0x2d] sm:$0x1]
        %v6631 = vld [vmem:[%s6592 + $0x2e] sm:$0x1]
        %v6632 = vld [vmem:[%s6592 + $0x2f] sm:$0x1]
        %v6633 = vld [vmem:[%s6592 + $0x32] sm:$0x1]
        %v6634 = vld [vmem:[%s6592 + $0x33] sm:$0x1]
        %v6635 = vld [vmem:[%s6592 + $0x34] sm:$0x1]
        %v6636 = vld [vmem:[%s6592 + $0x35] sm:$0x1]
        %v6637 = vld [vmem:[%s6592 + $0x36] sm:$0x1]
        %v6638 = vld [vmem:[%s6592 + $0x37] sm:$0x1]
        %v6639 = vld [vmem:[%s6592 + $0x38] sm:$0x1]
        %v6640 = vld [vmem:[%s6592 + $0x39] sm:$0x1]
        %v6641 = vld [vmem:[%s6592 + $0x3c] sm:$0x1]
        %v6642 = vld [vmem:[%s6592 + $0x3d] sm:$0x1]
        %v6643 = vld [vmem:[%s6592 + $0x3e] sm:$0x1]
        %v6644 = vld [vmem:[%s6592 + $0x3f] sm:$0x1]
        %v6645 = vld [vmem:[%s6592 + $0x40] sm:$0x1]
        %v6646 = vld [vmem:[%s6592 + $0x41] sm:$0x1]
        %v6647 = vld [vmem:[%s6592 + $0x42] sm:$0x1]
        %v6648 = vld [vmem:[%s6592 + $0x43] sm:$0x1]
        %v6649 = vld [vmem:[%s6592 + $0x46] sm:$0x1]
        %v6650 = vld [vmem:[%s6592 + $0x47] sm:$0x1]
        %v6651 = vld [vmem:[%s6592 + $0x48] sm:$0x1]
        %v6652 = vld [vmem:[%s6592 + $0x49] sm:$0x1]
        %v6653 = vld [vmem:[%s6592 + $0x4a] sm:$0x1]
        %v6654 = vld [vmem:[%s6592 + $0x4b] sm:$0x1]
        %v6655 = vld [vmem:[%s6592 + $0x4c] sm:$0x1]
        %v6656 = vld [vmem:[%s6592 + $0x4d] sm:$0x1]
        %v6657 = vpack.c.bf16 %v6593, %v6593
        %v6658 = vpack.c.bf16 %v6594, %v6594
        %v6659 = vpack.c.bf16 %v6595, %v6595
        %v6660 = vpack.c.bf16 %v6596, %v6596
        %v6661 = vpack.c.bf16 %v6597, %v6597
        %v6662 = vpack.c.bf16 %v6598, %v6598
        %v6663 = vpack.c.bf16 %v6599, %v6599
        %v6664 = vpack.c.bf16 %v6600, %v6600
        %v6665 = vpack.c.bf16 %v6601, %v6601
        %v6666 = vpack.c.bf16 %v6602, %v6602
        %v6667 = vpack.c.bf16 %v6603, %v6603
        %v6668 = vpack.c.bf16 %v6604, %v6604
        %v6669 = vpack.c.bf16 %v6605, %v6605
        %v6670 = vpack.c.bf16 %v6606, %v6606
        %v6671 = vpack.c.bf16 %v6607, %v6607
        %v6672 = vpack.c.bf16 %v6608, %v6608
        %v6673 = vpack.c.bf16 %v6609, %v6609
        %v6674 = vpack.c.bf16 %v6610, %v6610
        %v6675 = vpack.c.bf16 %v6611, %v6611
        %v6676 = vpack.c.bf16 %v6612, %v6612
        %v6677 = vpack.c.bf16 %v6613, %v6613
        %v6678 = vpack.c.bf16 %v6614, %v6614
        %v6679 = vpack.c.bf16 %v6615, %v6615
        %v6680 = vpack.c.bf16 %v6616, %v6616
        %v6681 = vpack.c.bf16 %v6617, %v6617
        %v6682 = vpack.c.bf16 %v6618, %v6618
        %v6683 = vpack.c.bf16 %v6619, %v6619
        %v6684 = vpack.c.bf16 %v6620, %v6620
        %v6685 = vpack.c.bf16 %v6621, %v6621
        %v6686 = vpack.c.bf16 %v6622, %v6622
        %v6687 = vpack.c.bf16 %v6623, %v6623
        %v6688 = vpack.c.bf16 %v6624, %v6624
        %v6689 = vpack.c.bf16 %v6625, %v6625
        %v6690 = vpack.c.bf16 %v6626, %v6626
        %v6691 = vpack.c.bf16 %v6627, %v6627
        %v6692 = vpack.c.bf16 %v6628, %v6628
        %v6693 = vpack.c.bf16 %v6629, %v6629
        %v6694 = vpack.c.bf16 %v6630, %v6630
        %v6695 = vpack.c.bf16 %v6631, %v6631
        %v6696 = vpack.c.bf16 %v6632, %v6632
        %v6697 = vpack.c.bf16 %v6633, %v6633
        %v6698 = vpack.c.bf16 %v6634, %v6634
        %v6699 = vpack.c.bf16 %v6635, %v6635
        %v6700 = vpack.c.bf16 %v6636, %v6636
        %v6701 = vpack.c.bf16 %v6637, %v6637
        %v6702 = vpack.c.bf16 %v6638, %v6638
        %v6703 = vpack.c.bf16 %v6639, %v6639
        %v6704 = vpack.c.bf16 %v6640, %v6640
        %v6705 = vpack.c.bf16 %v6641, %v6641
        %v6706 = vpack.c.bf16 %v6642, %v6642
        %v6707 = vpack.c.bf16 %v6643, %v6643
        %v6708 = vpack.c.bf16 %v6644, %v6644
        %v6709 = vpack.c.bf16 %v6645, %v6645
        %v6710 = vpack.c.bf16 %v6646, %v6646
        %v6711 = vpack.c.bf16 %v6647, %v6647
        %v6712 = vpack.c.bf16 %v6648, %v6648
        %v6713 = vpack.c.bf16 %v6649, %v6649
        %v6714 = vpack.c.bf16 %v6650, %v6650
        %v6715 = vpack.c.bf16 %v6651, %v6651
        %v6716 = vpack.c.bf16 %v6652, %v6652
        %v6717 = vpack.c.bf16 %v6653, %v6653
        %v6718 = vpack.c.bf16 %v6654, %v6654
        %v6719 = vpack.c.bf16 %v6655, %v6655
        %v6720 = vpack.c.bf16 %v6656, %v6656
        %s6721 = scalar_lea.vmem %s3, 64
        %v6722 = vld [vmem:[%s6721] sm:$0xf]
        %v6723 = vld [vmem:[%s6721 + $0x4] sm:$0xf]
        %v6788 = vunpack.c.l.b16 %v6657
        %v6789 = vunpack.c.l.b16 %v6658
        %v6790 = vunpack.c.l.b16 %v6659
        %v6791 = vunpack.c.l.b16 %v6660
        %v6792 = vunpack.c.l.b16 %v6661
        %v6793 = vunpack.c.l.b16 %v6662
        %v6794 = vunpack.c.l.b16 %v6663
        %v6795 = vunpack.c.l.b16 %v6664
        %v6796 = vunpack.c.l.b16 %v6665
        %v6797 = vunpack.c.l.b16 %v6666
        %v6798 = vunpack.c.l.b16 %v6667
        %v6799 = vunpack.c.l.b16 %v6668
        %v6800 = vunpack.c.l.b16 %v6669
        %v6801 = vunpack.c.l.b16 %v6670
        %v6802 = vunpack.c.l.b16 %v6671
        %v6803 = vunpack.c.l.b16 %v6672
        %v6804 = vunpack.c.l.b16 %v6673
        %v6805 = vunpack.c.l.b16 %v6674
        %v6806 = vunpack.c.l.b16 %v6675
        %v6807 = vunpack.c.l.b16 %v6676
        %v6808 = vunpack.c.l.b16 %v6677
        %v6809 = vunpack.c.l.b16 %v6678
        %v6810 = vunpack.c.l.b16 %v6679
        %v6811 = vunpack.c.l.b16 %v6680
        %v6812 = vunpack.c.l.b16 %v6681
        %v6813 = vunpack.c.l.b16 %v6682
        %v6814 = vunpack.c.l.b16 %v6683
        %v6815 = vunpack.c.l.b16 %v6684
        %v6816 = vunpack.c.l.b16 %v6685
        %v6817 = vunpack.c.l.b16 %v6686
        %v6818 = vunpack.c.l.b16 %v6687
        %v6819 = vunpack.c.l.b16 %v6688
        %v6820 = vunpack.c.l.b16 %v6689
        %v6821 = vunpack.c.l.b16 %v6690
        %v6822 = vunpack.c.l.b16 %v6691
        %v6823 = vunpack.c.l.b16 %v6692
        %v6824 = vunpack.c.l.b16 %v6693
        %v6825 = vunpack.c.l.b16 %v6694
        %v6826 = vunpack.c.l.b16 %v6695
        %v6827 = vunpack.c.l.b16 %v6696
        %v6828 = vunpack.c.l.b16 %v6697
        %v6829 = vunpack.c.l.b16 %v6698
        %v6830 = vunpack.c.l.b16 %v6699
        %v6831 = vunpack.c.l.b16 %v6700
        %v6832 = vunpack.c.l.b16 %v6701
        %v6833 = vunpack.c.l.b16 %v6702
        %v6834 = vunpack.c.l.b16 %v6703
        %v6835 = vunpack.c.l.b16 %v6704
        %v6836 = vunpack.c.l.b16 %v6705
        %v6837 = vunpack.c.l.b16 %v6706
        %v6838 = vunpack.c.l.b16 %v6707
        %v6839 = vunpack.c.l.b16 %v6708
        %v6840 = vunpack.c.l.b16 %v6709
        %v6841 = vunpack.c.l.b16 %v6710
        %v6842 = vunpack.c.l.b16 %v6711
        %v6843 = vunpack.c.l.b16 %v6712
        %v6844 = vunpack.c.l.b16 %v6713
        %v6845 = vunpack.c.l.b16 %v6714
        %v6846 = vunpack.c.l.b16 %v6715
        %v6847 = vunpack.c.l.b16 %v6716
        %v6848 = vunpack.c.l.b16 %v6717
        %v6849 = vunpack.c.l.b16 %v6718
        %v6850 = vunpack.c.l.b16 %v6719
        %v6851 = vunpack.c.l.b16 %v6720
        %v6852 = vrot.slane %v6789, 7
        %v6853 = vsel %vm2575, %v6852, %v6788
        %v6854 = vrot.slane %v6790, 6
        %v6855 = vsel %vm2578, %v6854, %v6853
        %v6856 = vrot.slane %v6791, 5
        %v6857 = vsel %vm2581, %v6856, %v6855
        %v6858 = vrot.slane %v6792, 4
        %v6859 = vsel %vm2584, %v6858, %v6857
        %v6860 = vrot.slane %v6793, 3
        %v6861 = vsel %vm2587, %v6860, %v6859
        %v6862 = vrot.slane %v6794, 2
        %v6863 = vsel %vm2590, %v6862, %v6861
        %v6864 = vrot.slane %v6795, 1
        %v6865 = vsel %vm2593, %v6864, %v6863
        %v6866 = vrot.slane %v6797, 7
        %v6867 = vsel %vm2575, %v6866, %v6796
        %v6868 = vrot.slane %v6798, 6
        %v6869 = vsel %vm2578, %v6868, %v6867
        %v6870 = vrot.slane %v6799, 5
        %v6871 = vsel %vm2581, %v6870, %v6869
        %v6872 = vrot.slane %v6800, 4
        %v6873 = vsel %vm2584, %v6872, %v6871
        %v6874 = vrot.slane %v6801, 3
        %v6875 = vsel %vm2587, %v6874, %v6873
        %v6876 = vrot.slane %v6802, 2
        %v6877 = vsel %vm2590, %v6876, %v6875
        %v6878 = vrot.slane %v6803, 1
        %v6879 = vsel %vm2593, %v6878, %v6877
        %v6880 = vrot.slane %v6805, 7
        %v6881 = vsel %vm2575, %v6880, %v6804
        %v6882 = vrot.slane %v6806, 6
        %v6883 = vsel %vm2578, %v6882, %v6881
        %v6884 = vrot.slane %v6807, 5
        %v6885 = vsel %vm2581, %v6884, %v6883
        %v6886 = vrot.slane %v6808, 4
        %v6887 = vsel %vm2584, %v6886, %v6885
        %v6888 = vrot.slane %v6809, 3
        %v6889 = vsel %vm2587, %v6888, %v6887
        %v6890 = vrot.slane %v6810, 2
        %v6891 = vsel %vm2590, %v6890, %v6889
        %v6892 = vrot.slane %v6811, 1
        %v6893 = vsel %vm2593, %v6892, %v6891
        %v6894 = vrot.slane %v6813, 7
        %v6895 = vsel %vm2575, %v6894, %v6812
        %v6896 = vrot.slane %v6814, 6
        %v6897 = vsel %vm2578, %v6896, %v6895
        %v6898 = vrot.slane %v6815, 5
        %v6899 = vsel %vm2581, %v6898, %v6897
        %v6900 = vrot.slane %v6816, 4
        %v6901 = vsel %vm2584, %v6900, %v6899
        %v6902 = vrot.slane %v6817, 3
        %v6903 = vsel %vm2587, %v6902, %v6901
        %v6904 = vrot.slane %v6818, 2
        %v6905 = vsel %vm2590, %v6904, %v6903
        %v6906 = vrot.slane %v6819, 1
        %v6907 = vsel %vm2593, %v6906, %v6905
        %v6908 = vrot.slane %v6821, 7
        %v6909 = vsel %vm2575, %v6908, %v6820
        %v6910 = vrot.slane %v6822, 6
        %v6911 = vsel %vm2578, %v6910, %v6909
        %v6912 = vrot.slane %v6823, 5
        %v6913 = vsel %vm2581, %v6912, %v6911
        %v6914 = vrot.slane %v6824, 4
        %v6915 = vsel %vm2584, %v6914, %v6913
        %v6916 = vrot.slane %v6825, 3
        %v6917 = vsel %vm2587, %v6916, %v6915
        %v6918 = vrot.slane %v6826, 2
        %v6919 = vsel %vm2590, %v6918, %v6917
        %v6920 = vrot.slane %v6827, 1
        %v6921 = vsel %vm2593, %v6920, %v6919
        %v6922 = vrot.slane %v6829, 7
        %v6923 = vsel %vm2575, %v6922, %v6828
        %v6924 = vrot.slane %v6830, 6
        %v6925 = vsel %vm2578, %v6924, %v6923
        %v6926 = vrot.slane %v6831, 5
        %v6927 = vsel %vm2581, %v6926, %v6925
        %v6928 = vrot.slane %v6832, 4
        %v6929 = vsel %vm2584, %v6928, %v6927
        %v6930 = vrot.slane %v6833, 3
        %v6931 = vsel %vm2587, %v6930, %v6929
        %v6932 = vrot.slane %v6834, 2
        %v6933 = vsel %vm2590, %v6932, %v6931
        %v6934 = vrot.slane %v6835, 1
        %v6935 = vsel %vm2593, %v6934, %v6933
        %v6936 = vrot.slane %v6837, 7
        %v6937 = vsel %vm2575, %v6936, %v6836
        %v6938 = vrot.slane %v6838, 6
        %v6939 = vsel %vm2578, %v6938, %v6937
        %v6940 = vrot.slane %v6839, 5
        %v6941 = vsel %vm2581, %v6940, %v6939
        %v6942 = vrot.slane %v6840, 4
        %v6943 = vsel %vm2584, %v6942, %v6941
        %v6944 = vrot.slane %v6841, 3
        %v6945 = vsel %vm2587, %v6944, %v6943
        %v6946 = vrot.slane %v6842, 2
        %v6947 = vsel %vm2590, %v6946, %v6945
        %v6948 = vrot.slane %v6843, 1
        %v6949 = vsel %vm2593, %v6948, %v6947
        %v6950 = vrot.slane %v6845, 7
        %v6951 = vsel %vm2575, %v6950, %v6844
        %v6952 = vrot.slane %v6846, 6
        %v6953 = vsel %vm2578, %v6952, %v6951
        %v6954 = vrot.slane %v6847, 5
        %v6955 = vsel %vm2581, %v6954, %v6953
        %v6956 = vrot.slane %v6848, 4
        %v6957 = vsel %vm2584, %v6956, %v6955
        %v6958 = vrot.slane %v6849, 3
        %v6959 = vsel %vm2587, %v6958, %v6957
        %v6960 = vrot.slane %v6850, 2
        %v6961 = vsel %vm2590, %v6960, %v6959
        %v6962 = vrot.slane %v6851, 1
        %v6963 = vsel %vm2593, %v6962, %v6961
        %v6964 = vpack.c.b16 %v6879, %v6865
        %v6965 = vpack.c.b16 %v6907, %v6893
        %v6966 = vpack.c.b16 %v6935, %v6921
        %v6967 = vpack.c.b16 %v6963, %v6949
        %v6970 = vunpack.c.l.b16 %v6722
        %v6971 = vunpack.c.l.b16 %v6723
        %v6972 = vpack.c.b16 %v6971, %v6970
        %v6975 = vsel %vm865, %v6964, 0
        %v6978 = vsel %vm865, %v6965, 0
        %v6981 = vsel %vm865, %v6966, 0
        %v6984 = vsel %vm865, %v6967, 0
        %6986 = vmatprep.subr.bf16.mxu0 0
        %6987 = vmatpush1.bf16.msra.mxu0 %v6972
        %6988 = vmatprep.subr.bf16.mxu0 0
        %6989 = vmatpush1.bf16.msra.mxu0 0
        %6990 = vmatprep.subr.bf16.mxu0 0
        %6991 = vmatpush1.bf16.msra.mxu0 0
        %6992 = vmatprep.subr.bf16.mxu0 0
        %6993 = vmatpush1.bf16.msra.mxu0 0
        %6994 = vmatprep.subr.bf16.mxu0 0
        %6995 = vmatpush1.bf16.msra.mxu0 0
        %6996 = vmatprep.subr.bf16.mxu0 0
        %6997 = vmatpush1.bf16.msra.mxu0 0
        %6998 = vmatprep.subr.bf16.mxu0 0
        %6999 = vmatpush1.bf16.msra.mxu0 0
        %7000 = vmatprep.subr.bf16.mxu0 0
        %7001 = vmatpush1.bf16.msra.mxu0 0
        %7002 = vmatprep.subr.bf16.mxu0 0
        %7003 = vmatpush1.bf16.msra.mxu0 0
        %7004 = vmatprep.subr.bf16.mxu0 0
        %7005 = vmatpush1.bf16.msra.mxu0 0
        %7006 = vmatprep.subr.bf16.mxu0 0
        %7007 = vmatpush1.bf16.msra.mxu0 0
        %7008 = vmatprep.subr.bf16.mxu0 0
        %7009 = vmatpush1.bf16.msra.mxu0 0
        %7010 = vmatprep.subr.bf16.mxu0 0
        %7011 = vmatpush1.bf16.msra.mxu0 0
        %7012 = vmatprep.subr.bf16.mxu0 0
        %7013 = vmatpush1.bf16.msra.mxu0 0
        %7014 = vmatprep.subr.bf16.mxu0 0
        %7015 = vmatpush1.bf16.msra.mxu0 0
        %7016 = vmatprep.subr.bf16.mxu0 0
        %7017 = vmatpush1.bf16.msra.mxu0 0
        %7018 = vmatprep.mubr.bf16.mxu0 0
        %7019 = vmatmul.mubr.bf16.gmra.mrb[0].mxu0 %v6975
        %v7020 = vpop.f32.mrb[0].mxu0
        %v7021 = vadd.f32 0.0, %v7020
        %v7022 = vpop.f32.mrb[0].mxu0
        %v7023 = vpop.f32.mrb[0].mxu0
        %v7024 = vadd.f32 0.0, %v7023
        %v7025 = vpop.f32.mrb[0].mxu0
        %7026 = vmatprep.mubr.bf16.mxu0 0
        %7027 = vmatmul.mubr.bf16.gmra.mrb[0].mxu0 %v6978
        %v7028 = vpop.f32.mrb[0].mxu0
        %v7029 = vadd.f32 0.0, %v7028
        %v7030 = vpop.f32.mrb[0].mxu0
        %v7031 = vpop.f32.mrb[0].mxu0
        %v7032 = vadd.f32 0.0, %v7031
        %v7033 = vpop.f32.mrb[0].mxu0
        %7034 = vmatprep.mubr.bf16.mxu0 0
        %7035 = vmatmul.mubr.bf16.gmra.mrb[0].mxu0 %v6981
        %v7036 = vpop.f32.mrb[0].mxu0
        %v7037 = vadd.f32 0.0, %v7036
        %v7038 = vpop.f32.mrb[0].mxu0
        %v7039 = vpop.f32.mrb[0].mxu0
        %v7040 = vadd.f32 0.0, %v7039
        %v7041 = vpop.f32.mrb[0].mxu0
        %7042 = vmatprep.mubr.bf16.mxu0 0
        %7043 = vmatmul.mubr.bf16.gmra.mrb[0].mxu0 %v6984
        %v7044 = vpop.f32.mrb[0].mxu0
        %v7045 = vadd.f32 0.0, %v7044
        %v7046 = vpop.f32.mrb[0].mxu0
        %v7047 = vpop.f32.mrb[0].mxu0
        %v7048 = vadd.f32 0.0, %v7047
        %v7049 = vpop.f32.mrb[0].mxu0
        %7050 = vdwg.mxu0
        %v7051 = vadd.f32 %v6584, %v7021
        %v7052 = vadd.f32 %v6585, %v7024
        %v7053 = vadd.f32 %v6586, %v7029
        %v7054 = vadd.f32 %v6587, %v7032
        %v7055 = vadd.f32 %v6588, %v7037
        %v7056 = vadd.f32 %v6589, %v7040
        %v7057 = vadd.f32 %v6590, %v7045
        %v7058 = vadd.f32 %v6591, %v7048
        %v7059 = vld [vmem:[%s4] sm:$0x1]
        %v7061 = vlaneseq
        %v7062 = vshrl.u32 %v7061, 7
        %v7063 = vsub.s32 0, %v7062
        %v7064 = vrot.slane %v7059, %v7063
        %v7066 = vadd.f32 %v7051, %v7064
        %v7067 = vadd.f32 %v7052, %v7064
        %v7068 = vadd.f32 %v7053, %v7064
        %v7069 = vadd.f32 %v7054, %v7064
        %v7070 = vadd.f32 %v7055, %v7064
        %v7071 = vadd.f32 %v7056, %v7064
        %v7072 = vadd.f32 %v7057, %v7064
        %v7073 = vadd.f32 %v7058, %v7064
        %v7074 = vmax.f32 %v7066, 0.0
        %v7075 = vmax.f32 %v7067, 0.0
        %v7076 = vmax.f32 %v7068, 0.0
        %v7077 = vmax.f32 %v7069, 0.0
        %v7078 = vmax.f32 %v7070, 0.0
        %v7079 = vmax.f32 %v7071, 0.0
        %v7080 = vmax.f32 %v7072, 0.0
        %v7081 = vmax.f32 %v7073, 0.0
        %vm7082 = vcmask 261120
        %7083 = vst.msk [vmem:[%s468] sm:$0xff] %vm7082, %v7074
        %7084 = vst.msk [vmem:[%s468 + $0x8] sm:$0xff] %vm7082, %v7075
        %7085 = vst.msk [vmem:[%s468 + $0x10] sm:$0xff] %vm7082, %v7076
        %7086 = vst.msk [vmem:[%s468 + $0x18] sm:$0xff] %vm7082, %v7077
        %7087 = vst.msk [vmem:[%s468 + $0x20] sm:$0xff] %vm7082, %v7078
        %7088 = vst.msk [vmem:[%s468 + $0x28] sm:$0xff] %vm7082, %v7079
        %7089 = vst.msk [vmem:[%s468 + $0x30] sm:$0xff] %vm7082, %v7080
        %7090 = vst.msk [vmem:[%s468 + $0x38] sm:$0xff] %vm7082, %v7081
        %v7099 = vcombine.high %v7074, %v7074
        %v7101 = vunpack.c.l.s4 1983009808
        %v7102 = vunpack.c.0.s8 %v7101
        %v7103 = vlaneseq
        %v7104 = vshrl.u32 %v7103, 7
        %v7105 = vsub.s32 %v7102, %v7104
        %v7106 = vrot.slane %v7074, %v7105
        %v7108 = vunpack.c.l.s4 1983009808
        %v7109 = vunpack.c.0.s8 %v7108
        %v7110 = vlaneseq
        %v7111 = vshrl.u32 %v7110, 7
        %v7112 = vsub.s32 %v7109, %v7111
        %v7113 = vrot.slane %v7099, %v7112
        %v7114 = vcombine.high %v7106, %v7106
        %v7115 = vcombine.high %v7113, %v7113
        %v7116 = vcombine.high %v7075, %v7075
        %v7118 = vunpack.c.l.s4 1983009808
        %v7119 = vunpack.c.0.s8 %v7118
        %v7120 = vlaneseq
        %v7121 = vshrl.u32 %v7120, 7
        %v7122 = vsub.s32 %v7119, %v7121
        %v7123 = vrot.slane %v7075, %v7122
        %v7125 = vunpack.c.l.s4 1983009808
        %v7126 = vunpack.c.0.s8 %v7125
        %v7127 = vlaneseq
        %v7128 = vshrl.u32 %v7127, 7
        %v7129 = vsub.s32 %v7126, %v7128
        %v7130 = vrot.slane %v7116, %v7129
        %v7131 = vcombine.high %v7123, %v7123
        %v7132 = vcombine.high %v7130, %v7130
        %v7133 = vcombine.high %v7076, %v7076
        %v7135 = vunpack.c.l.s4 1983009808
        %v7136 = vunpack.c.0.s8 %v7135
        %v7137 = vlaneseq
        %v7138 = vshrl.u32 %v7137, 7
        %v7139 = vsub.s32 %v7136, %v7138
        %v7140 = vrot.slane %v7076, %v7139
        %v7142 = vunpack.c.l.s4 1983009808
        %v7143 = vunpack.c.0.s8 %v7142
        %v7144 = vlaneseq
        %v7145 = vshrl.u32 %v7144, 7
        %v7146 = vsub.s32 %v7143, %v7145
        %v7147 = vrot.slane %v7133, %v7146
        %v7148 = vcombine.high %v7140, %v7140
        %v7149 = vcombine.high %v7147, %v7147
        %v7150 = vcombine.high %v7077, %v7077
        %v7152 = vunpack.c.l.s4 1983009808
        %v7153 = vunpack.c.0.s8 %v7152
        %v7154 = vlaneseq
        %v7155 = vshrl.u32 %v7154, 7
        %v7156 = vsub.s32 %v7153, %v7155
        %v7157 = vrot.slane %v7077, %v7156
        %v7159 = vunpack.c.l.s4 1983009808
        %v7160 = vunpack.c.0.s8 %v7159
        %v7161 = vlaneseq
        %v7162 = vshrl.u32 %v7161, 7
        %v7163 = vsub.s32 %v7160, %v7162
        %v7164 = vrot.slane %v7150, %v7163
        %v7165 = vcombine.high %v7157, %v7157
        %v7166 = vcombine.high %v7164, %v7164
        %v7167 = vcombine.high %v7078, %v7078
        %v7169 = vunpack.c.l.s4 1983009808
        %v7170 = vunpack.c.0.s8 %v7169
        %v7171 = vlaneseq
        %v7172 = vshrl.u32 %v7171, 7
        %v7173 = vsub.s32 %v7170, %v7172
        %v7174 = vrot.slane %v7078, %v7173
        %v7176 = vunpack.c.l.s4 1983009808
        %v7177 = vunpack.c.0.s8 %v7176
        %v7178 = vlaneseq
        %v7179 = vshrl.u32 %v7178, 7
        %v7180 = vsub.s32 %v7177, %v7179
        %v7181 = vrot.slane %v7167, %v7180
        %v7182 = vcombine.high %v7174, %v7174
        %v7183 = vcombine.high %v7181, %v7181
        %v7184 = vcombine.high %v7079, %v7079
        %v7186 = vunpack.c.l.s4 1983009808
        %v7187 = vunpack.c.0.s8 %v7186
        %v7188 = vlaneseq
        %v7189 = vshrl.u32 %v7188, 7
        %v7190 = vsub.s32 %v7187, %v7189
        %v7191 = vrot.slane %v7079, %v7190
        %v7193 = vunpack.c.l.s4 1983009808
        %v7194 = vunpack.c.0.s8 %v7193
        %v7195 = vlaneseq
        %v7196 = vshrl.u32 %v7195, 7
        %v7197 = vsub.s32 %v7194, %v7196
        %v7198 = vrot.slane %v7184, %v7197
        %v7199 = vcombine.high %v7191, %v7191
        %v7200 = vcombine.high %v7198, %v7198
        %v7201 = vcombine.high %v7080, %v7080
        %v7203 = vunpack.c.l.s4 1983009808
        %v7204 = vunpack.c.0.s8 %v7203
        %v7205 = vlaneseq
        %v7206 = vshrl.u32 %v7205, 7
        %v7207 = vsub.s32 %v7204, %v7206
        %v7208 = vrot.slane %v7080, %v7207
        %v7210 = vunpack.c.l.s4 1983009808
        %v7211 = vunpack.c.0.s8 %v7210
        %v7212 = vlaneseq
        %v7213 = vshrl.u32 %v7212, 7
        %v7214 = vsub.s32 %v7211, %v7213
        %v7215 = vrot.slane %v7201, %v7214
        %v7216 = vcombine.high %v7208, %v7208
        %v7217 = vcombine.high %v7215, %v7215
        %v7218 = vcombine.high %v7081, %v7081
        %v7220 = vunpack.c.l.s4 1983009808
        %v7221 = vunpack.c.0.s8 %v7220
        %v7222 = vlaneseq
        %v7223 = vshrl.u32 %v7222, 7
        %v7224 = vsub.s32 %v7221, %v7223
        %v7225 = vrot.slane %v7081, %v7224
        %v7227 = vunpack.c.l.s4 1983009808
        %v7228 = vunpack.c.0.s8 %v7227
        %v7229 = vlaneseq
        %v7230 = vshrl.u32 %v7229, 7
        %v7231 = vsub.s32 %v7228, %v7230
        %v7232 = vrot.slane %v7218, %v7231
        %v7233 = vcombine.high %v7225, %v7225
        %v7234 = vcombine.high %v7232, %v7232
        %vm7267 = vcmask 254976
        %7268 = vst.msk [vmem:[#allocation3] sm:$0x3] %vm7267, %v7106
        %7269 = vst.msk [vmem:[#allocation3 + $0x2] sm:$0x3] %vm7267, %v7114
        %7270 = vst.msk [vmem:[#allocation3 + $0x4] sm:$0x3] %vm7267, %v7113
        %7271 = vst.msk [vmem:[#allocation3 + $0x6] sm:$0x3] %vm7267, %v7115
        %7272 = vst.msk [vmem:[#allocation3 + $0x8] sm:$0x3] %vm7267, %v7123
        %7273 = vst.msk [vmem:[#allocation3 + $0xa] sm:$0x3] %vm7267, %v7131
        %7274 = vst.msk [vmem:[#allocation3 + $0xc] sm:$0x3] %vm7267, %v7130
        %7275 = vst.msk [vmem:[#allocation3 + $0xe] sm:$0x3] %vm7267, %v7132
        %7276 = vst.msk [vmem:[#allocation3 + $0x10] sm:$0x3] %vm7267, %v7140
        %7277 = vst.msk [vmem:[#allocation3 + $0x12] sm:$0x3] %vm7267, %v7148
        %7278 = vst.msk [vmem:[#allocation3 + $0x14] sm:$0x3] %vm7267, %v7147
        %7279 = vst.msk [vmem:[#allocation3 + $0x16] sm:$0x3] %vm7267, %v7149
        %7280 = vst.msk [vmem:[#allocation3 + $0x18] sm:$0x3] %vm7267, %v7157
        %7281 = vst.msk [vmem:[#allocation3 + $0x1a] sm:$0x3] %vm7267, %v7165
        %7282 = vst.msk [vmem:[#allocation3 + $0x1c] sm:$0x3] %vm7267, %v7164
        %7283 = vst.msk [vmem:[#allocation3 + $0x1e] sm:$0x3] %vm7267, %v7166
        %7284 = vst.msk [vmem:[#allocation3 + $0x20] sm:$0x3] %vm7267, %v7174
        %7285 = vst.msk [vmem:[#allocation3 + $0x22] sm:$0x3] %vm7267, %v7182
        %7286 = vst.msk [vmem:[#allocation3 + $0x24] sm:$0x3] %vm7267, %v7181
        %7287 = vst.msk [vmem:[#allocation3 + $0x26] sm:$0x3] %vm7267, %v7183
        %7288 = vst.msk [vmem:[#allocation3 + $0x28] sm:$0x3] %vm7267, %v7191
        %7289 = vst.msk [vmem:[#allocation3 + $0x2a] sm:$0x3] %vm7267, %v7199
        %7290 = vst.msk [vmem:[#allocation3 + $0x2c] sm:$0x3] %vm7267, %v7198
        %7291 = vst.msk [vmem:[#allocation3 + $0x2e] sm:$0x3] %vm7267, %v7200
        %7292 = vst.msk [vmem:[#allocation3 + $0x30] sm:$0x3] %vm7267, %v7208
        %7293 = vst.msk [vmem:[#allocation3 + $0x32] sm:$0x3] %vm7267, %v7216
        %7294 = vst.msk [vmem:[#allocation3 + $0x34] sm:$0x3] %vm7267, %v7215
        %7295 = vst.msk [vmem:[#allocation3 + $0x36] sm:$0x3] %vm7267, %v7217
        %7296 = vst.msk [vmem:[#allocation3 + $0x38] sm:$0x3] %vm7267, %v7225
        %7297 = vst.msk [vmem:[#allocation3 + $0x3a] sm:$0x3] %vm7267, %v7233
        %7298 = vst.msk [vmem:[#allocation3 + $0x3c] sm:$0x3] %vm7267, %v7232
        %7299 = vst.msk [vmem:[#allocation3 + $0x3e] sm:$0x3] %vm7267, %v7234
        %v7300 = vld [vmem:[#allocation3] sm:$0x1]
        %v7301 = vld [vmem:[#allocation3 + $0x2] sm:$0x1]
        %v7302 = vld [vmem:[#allocation3 + $0x4] sm:$0x1]
        %v7303 = vld [vmem:[#allocation3 + $0x6] sm:$0x1]
        %v7304 = vld [vmem:[#allocation3 + $0x10] sm:$0x1]
        %v7305 = vld [vmem:[#allocation3 + $0x12] sm:$0x1]
        %v7306 = vld [vmem:[#allocation3 + $0x14] sm:$0x1]
        %v7307 = vld [vmem:[#allocation3 + $0x16] sm:$0x1]
        %v7308 = vld [vmem:[#allocation3 + $0x20] sm:$0x1]
        %v7309 = vld [vmem:[#allocation3 + $0x22] sm:$0x1]
        %v7310 = vld [vmem:[#allocation3 + $0x24] sm:$0x1]
        %v7311 = vld [vmem:[#allocation3 + $0x26] sm:$0x1]
        %v7312 = vld [vmem:[#allocation3 + $0x30] sm:$0x1]
        %v7313 = vld [vmem:[#allocation3 + $0x32] sm:$0x1]
        %v7314 = vld [vmem:[#allocation3 + $0x34] sm:$0x1]
        %v7315 = vld [vmem:[#allocation3 + $0x36] sm:$0x1]
        %v7316 = vld [vmem:[#allocation3 + $0x1] sm:$0x1]
        %v7317 = vld [vmem:[#allocation3 + $0x3] sm:$0x1]
        %v7318 = vld [vmem:[#allocation3 + $0x5] sm:$0x1]
        %v7319 = vld [vmem:[#allocation3 + $0x7] sm:$0x1]
        %v7320 = vld [vmem:[#allocation3 + $0x11] sm:$0x1]
        %v7321 = vld [vmem:[#allocation3 + $0x13] sm:$0x1]
        %v7322 = vld [vmem:[#allocation3 + $0x15] sm:$0x1]
        %v7323 = vld [vmem:[#allocation3 + $0x17] sm:$0x1]
        %v7324 = vld [vmem:[#allocation3 + $0x21] sm:$0x1]
        %v7325 = vld [vmem:[#allocation3 + $0x23] sm:$0x1]
        %v7326 = vld [vmem:[#allocation3 + $0x25] sm:$0x1]
        %v7327 = vld [vmem:[#allocation3 + $0x27] sm:$0x1]
        %v7328 = vld [vmem:[#allocation3 + $0x31] sm:$0x1]
        %v7329 = vld [vmem:[#allocation3 + $0x33] sm:$0x1]
        %v7330 = vld [vmem:[#allocation3 + $0x35] sm:$0x1]
        %v7331 = vld [vmem:[#allocation3 + $0x37] sm:$0x1]
        %vm7332 = vcmp.gt.f32.partialorder %v7316, %v7300
        %vm7333 = vcmp.gt.f32.partialorder %v7317, %v7301
        %vm7334 = vcmp.gt.f32.partialorder %v7318, %v7302
        %vm7335 = vcmp.gt.f32.partialorder %v7319, %v7303
        %vm7336 = vcmp.gt.f32.partialorder %v7320, %v7304
        %vm7337 = vcmp.gt.f32.partialorder %v7321, %v7305
        %vm7338 = vcmp.gt.f32.partialorder %v7322, %v7306
        %vm7339 = vcmp.gt.f32.partialorder %v7323, %v7307
        %vm7340 = vcmp.gt.f32.partialorder %v7324, %v7308
        %vm7341 = vcmp.gt.f32.partialorder %v7325, %v7309
        %vm7342 = vcmp.gt.f32.partialorder %v7326, %v7310
        %vm7343 = vcmp.gt.f32.partialorder %v7327, %v7311
        %vm7344 = vcmp.gt.f32.partialorder %v7328, %v7312
        %vm7345 = vcmp.gt.f32.partialorder %v7329, %v7313
        %vm7346 = vcmp.gt.f32.partialorder %v7330, %v7314
        %vm7347 = vcmp.gt.f32.partialorder %v7331, %v7315
        %v7348 = vsel %vm7332, %v7316, %v7300
        %v7349 = vsel %vm7333, %v7317, %v7301
        %v7350 = vsel %vm7334, %v7318, %v7302
        %v7351 = vsel %vm7335, %v7319, %v7303
        %v7352 = vsel %vm7336, %v7320, %v7304
        %v7353 = vsel %vm7337, %v7321, %v7305
        %v7354 = vsel %vm7338, %v7322, %v7306
        %v7355 = vsel %vm7339, %v7323, %v7307
        %v7356 = vsel %vm7340, %v7324, %v7308
        %v7357 = vsel %vm7341, %v7325, %v7309
        %v7358 = vsel %vm7342, %v7326, %v7310
        %v7359 = vsel %vm7343, %v7327, %v7311
        %v7360 = vsel %vm7344, %v7328, %v7312
        %v7361 = vsel %vm7345, %v7329, %v7313
        %v7362 = vsel %vm7346, %v7330, %v7314
        %v7363 = vsel %vm7347, %v7331, %v7315
        %v7364 = vsel %vm7332, 1, 0
        %v7365 = vsel %vm7333, 1, 0
        %v7366 = vsel %vm7334, 1, 0
        %v7367 = vsel %vm7335, 1, 0
        %v7368 = vsel %vm7336, 1, 0
        %v7369 = vsel %vm7337, 1, 0
        %v7370 = vsel %vm7338, 1, 0
        %v7371 = vsel %vm7339, 1, 0
        %v7372 = vsel %vm7340, 1, 0
        %v7373 = vsel %vm7341, 1, 0
        %v7374 = vsel %vm7342, 1, 0
        %v7375 = vsel %vm7343, 1, 0
        %v7376 = vsel %vm7344, 1, 0
        %v7377 = vsel %vm7345, 1, 0
        %v7378 = vsel %vm7346, 1, 0
        %v7379 = vsel %vm7347, 1, 0
        %s7380 = scalar_lea.vmem [#allocation3], 8
        %v7381 = vld [vmem:[%s7380] sm:$0x1]
        %v7382 = vld [vmem:[%s7380 + $0x2] sm:$0x1]
        %v7383 = vld [vmem:[%s7380 + $0x4] sm:$0x1]
        %v7384 = vld [vmem:[%s7380 + $0x6] sm:$0x1]
        %v7385 = vld [vmem:[%s7380 + $0x10] sm:$0x1]
        %v7386 = vld [vmem:[%s7380 + $0x12] sm:$0x1]
        %v7387 = vld [vmem:[%s7380 + $0x14] sm:$0x1]
        %v7388 = vld [vmem:[%s7380 + $0x16] sm:$0x1]
        %v7389 = vld [vmem:[%s7380 + $0x20] sm:$0x1]
        %v7390 = vld [vmem:[%s7380 + $0x22] sm:$0x1]
        %v7391 = vld [vmem:[%s7380 + $0x24] sm:$0x1]
        %v7392 = vld [vmem:[%s7380 + $0x26] sm:$0x1]
        %v7393 = vld [vmem:[%s7380 + $0x30] sm:$0x1]
        %v7394 = vld [vmem:[%s7380 + $0x32] sm:$0x1]
        %v7395 = vld [vmem:[%s7380 + $0x34] sm:$0x1]
        %v7396 = vld [vmem:[%s7380 + $0x36] sm:$0x1]
        %vm7397 = vcmp.gt.f32.partialorder %v7381, %v7348
        %vm7398 = vcmp.gt.f32.partialorder %v7382, %v7349
        %vm7399 = vcmp.gt.f32.partialorder %v7383, %v7350
        %vm7400 = vcmp.gt.f32.partialorder %v7384, %v7351
        %vm7401 = vcmp.gt.f32.partialorder %v7385, %v7352
        %vm7402 = vcmp.gt.f32.partialorder %v7386, %v7353
        %vm7403 = vcmp.gt.f32.partialorder %v7387, %v7354
        %vm7404 = vcmp.gt.f32.partialorder %v7388, %v7355
        %vm7405 = vcmp.gt.f32.partialorder %v7389, %v7356
        %vm7406 = vcmp.gt.f32.partialorder %v7390, %v7357
        %vm7407 = vcmp.gt.f32.partialorder %v7391, %v7358
        %vm7408 = vcmp.gt.f32.partialorder %v7392, %v7359
        %vm7409 = vcmp.gt.f32.partialorder %v7393, %v7360
        %vm7410 = vcmp.gt.f32.partialorder %v7394, %v7361
        %vm7411 = vcmp.gt.f32.partialorder %v7395, %v7362
        %vm7412 = vcmp.gt.f32.partialorder %v7396, %v7363
        %v7413 = vsel %vm7397, %v7381, %v7348
        %v7414 = vsel %vm7398, %v7382, %v7349
        %v7415 = vsel %vm7399, %v7383, %v7350
        %v7416 = vsel %vm7400, %v7384, %v7351
        %v7417 = vsel %vm7401, %v7385, %v7352
        %v7418 = vsel %vm7402, %v7386, %v7353
        %v7419 = vsel %vm7403, %v7387, %v7354
        %v7420 = vsel %vm7404, %v7388, %v7355
        %v7421 = vsel %vm7405, %v7389, %v7356
        %v7422 = vsel %vm7406, %v7390, %v7357
        %v7423 = vsel %vm7407, %v7391, %v7358
        %v7424 = vsel %vm7408, %v7392, %v7359
        %v7425 = vsel %vm7409, %v7393, %v7360
        %v7426 = vsel %vm7410, %v7394, %v7361
        %v7427 = vsel %vm7411, %v7395, %v7362
        %v7428 = vsel %vm7412, %v7396, %v7363
        %v7429 = vsel %vm7397, 8, %v7364
        %v7430 = vsel %vm7398, 8, %v7365
        %v7431 = vsel %vm7399, 8, %v7366
        %v7432 = vsel %vm7400, 8, %v7367
        %v7433 = vsel %vm7401, 8, %v7368
        %v7434 = vsel %vm7402, 8, %v7369
        %v7435 = vsel %vm7403, 8, %v7370
        %v7436 = vsel %vm7404, 8, %v7371
        %v7437 = vsel %vm7405, 8, %v7372
        %v7438 = vsel %vm7406, 8, %v7373
        %v7439 = vsel %vm7407, 8, %v7374
        %v7440 = vsel %vm7408, 8, %v7375
        %v7441 = vsel %vm7409, 8, %v7376
        %v7442 = vsel %vm7410, 8, %v7377
        %v7443 = vsel %vm7411, 8, %v7378
        %v7444 = vsel %vm7412, 8, %v7379
        %v7445 = vld [vmem:[%s7380 + $0x1] sm:$0x1]
        %v7446 = vld [vmem:[%s7380 + $0x3] sm:$0x1]
        %v7447 = vld [vmem:[%s7380 + $0x5] sm:$0x1]
        %v7448 = vld [vmem:[%s7380 + $0x7] sm:$0x1]
        %v7449 = vld [vmem:[%s7380 + $0x11] sm:$0x1]
        %v7450 = vld [vmem:[%s7380 + $0x13] sm:$0x1]
        %v7451 = vld [vmem:[%s7380 + $0x15] sm:$0x1]
        %v7452 = vld [vmem:[%s7380 + $0x17] sm:$0x1]
        %v7453 = vld [vmem:[%s7380 + $0x21] sm:$0x1]
        %v7454 = vld [vmem:[%s7380 + $0x23] sm:$0x1]
        %v7455 = vld [vmem:[%s7380 + $0x25] sm:$0x1]
        %v7456 = vld [vmem:[%s7380 + $0x27] sm:$0x1]
        %v7457 = vld [vmem:[%s7380 + $0x31] sm:$0x1]
        %v7458 = vld [vmem:[%s7380 + $0x33] sm:$0x1]
        %v7459 = vld [vmem:[%s7380 + $0x35] sm:$0x1]
        %v7460 = vld [vmem:[%s7380 + $0x37] sm:$0x1]
        %vm7461 = vcmp.gt.f32.partialorder %v7445, %v7413
        %vm7462 = vcmp.gt.f32.partialorder %v7446, %v7414
        %vm7463 = vcmp.gt.f32.partialorder %v7447, %v7415
        %vm7464 = vcmp.gt.f32.partialorder %v7448, %v7416
        %vm7465 = vcmp.gt.f32.partialorder %v7449, %v7417
        %vm7466 = vcmp.gt.f32.partialorder %v7450, %v7418
        %vm7467 = vcmp.gt.f32.partialorder %v7451, %v7419
        %vm7468 = vcmp.gt.f32.partialorder %v7452, %v7420
        %vm7469 = vcmp.gt.f32.partialorder %v7453, %v7421
        %vm7470 = vcmp.gt.f32.partialorder %v7454, %v7422
        %vm7471 = vcmp.gt.f32.partialorder %v7455, %v7423
        %vm7472 = vcmp.gt.f32.partialorder %v7456, %v7424
        %vm7473 = vcmp.gt.f32.partialorder %v7457, %v7425
        %vm7474 = vcmp.gt.f32.partialorder %v7458, %v7426
        %vm7475 = vcmp.gt.f32.partialorder %v7459, %v7427
        %vm7476 = vcmp.gt.f32.partialorder %v7460, %v7428
        %v7477 = vsel %vm7461, %v7445, %v7413
        %v7478 = vsel %vm7462, %v7446, %v7414
        %v7479 = vsel %vm7463, %v7447, %v7415
        %v7480 = vsel %vm7464, %v7448, %v7416
        %v7481 = vsel %vm7465, %v7449, %v7417
        %v7482 = vsel %vm7466, %v7450, %v7418
        %v7483 = vsel %vm7467, %v7451, %v7419
        %v7484 = vsel %vm7468, %v7452, %v7420
        %v7485 = vsel %vm7469, %v7453, %v7421
        %v7486 = vsel %vm7470, %v7454, %v7422
        %v7487 = vsel %vm7471, %v7455, %v7423
        %v7488 = vsel %vm7472, %v7456, %v7424
        %v7489 = vsel %vm7473, %v7457, %v7425
        %v7490 = vsel %vm7474, %v7458, %v7426
        %v7491 = vsel %vm7475, %v7459, %v7427
        %v7492 = vsel %vm7476, %v7460, %v7428
        %v7493 = vsel %vm7461, 9, %v7429
        %v7494 = vsel %vm7462, 9, %v7430
        %v7495 = vsel %vm7463, 9, %v7431
        %v7496 = vsel %vm7464, 9, %v7432
        %v7497 = vsel %vm7465, 9, %v7433
        %v7498 = vsel %vm7466, 9, %v7434
        %v7499 = vsel %vm7467, 9, %v7435
        %v7500 = vsel %vm7468, 9, %v7436
        %v7501 = vsel %vm7469, 9, %v7437
        %v7502 = vsel %vm7470, 9, %v7438
        %v7503 = vsel %vm7471, 9, %v7439
        %v7504 = vsel %vm7472, 9, %v7440
        %v7505 = vsel %vm7473, 9, %v7441
        %v7506 = vsel %vm7474, 9, %v7442
        %v7507 = vsel %vm7475, 9, %v7443
        %v7508 = vsel %vm7476, 9, %v7444
        %v7509 = vadd.s32 %v2566, 16
        %v7510 = vadd.s32 %v2566, 48
        %v7511 = vrot.slane %v7494, 7
        %v7512 = vsel %vm2575, %v7511, %v7493
        %v7513 = vrot.slane %v7495, 6
        %v7514 = vsel %vm2578, %v7513, %v7512
        %v7515 = vrot.slane %v7496, 5
        %v7516 = vsel %vm2581, %v7515, %v7514
        %v7517 = vrot.slane %v7498, 7
        %v7518 = vsel %vm2575, %v7517, %v7497
        %v7519 = vrot.slane %v7499, 6
        %v7520 = vsel %vm2578, %v7519, %v7518
        %v7521 = vrot.slane %v7500, 5
        %v7522 = vsel %vm2581, %v7521, %v7520
        %v7523 = vrot.slane %v7502, 7
        %v7524 = vsel %vm2575, %v7523, %v7501
        %v7525 = vrot.slane %v7503, 6
        %v7526 = vsel %vm2578, %v7525, %v7524
        %v7527 = vrot.slane %v7504, 5
        %v7528 = vsel %vm2581, %v7527, %v7526
        %v7529 = vrot.slane %v7506, 7
        %v7530 = vsel %vm2575, %v7529, %v7505
        %v7531 = vrot.slane %v7507, 6
        %v7532 = vsel %vm2578, %v7531, %v7530
        %v7533 = vrot.slane %v7508, 5
        %v7534 = vsel %vm2581, %v7533, %v7532
        %v7535 = vadd.s32 %v2566, %v7516
        %v7536 = vadd.s32 %v7509, %v7522
        %v7537 = vadd.s32 %v2567, %v7528
        %v7538 = vadd.s32 %v7510, %v7534
        %vm7539 = vcmask 257024
        %7540 = vst.msk [vmem:[%s454] sm:$0xf] %vm7539, %v7535
        %7541 = vst.msk [vmem:[%s454 + $0x4] sm:$0xf] %vm7539, %v7536
        %7542 = vst.msk [vmem:[%s454 + $0x8] sm:$0xf] %vm7539, %v7537
        %7543 = vst.msk [vmem:[%s454 + $0xc] sm:$0xf] %vm7539, %v7538
        %vm7544 = vcmask 253952
        %7545 = vst.msk [vmem:[#allocation5] sm:$0x1] %vm7544, 0.0
        %7546 = vst.msk [vmem:[#allocation5 + $0x1] sm:$0x1] %vm7544, 0.0
        %7547 = vst.msk [vmem:[#allocation5 + $0x2] sm:$0x1] %vm7544, 0.0
        %7548 = vst.msk [vmem:[#allocation5 + $0x3] sm:$0x1] %vm7544, 0.0
        %7549 = vst.msk [vmem:[#allocation5 + $0x4] sm:$0x1] %vm7544, 0.0
        %7550 = vst.msk [vmem:[#allocation5 + $0x5] sm:$0x1] %vm7544, 0.0
        %7551 = vst.msk [vmem:[#allocation5 + $0x6] sm:$0x1] %vm7544, 0.0
        %7552 = vst.msk [vmem:[#allocation5 + $0x7] sm:$0x1] %vm7544, 0.0
        %7553 = vst.msk [vmem:[#allocation5 + $0x8] sm:$0x1] %vm7544, 0.0
        %7554 = vst.msk [vmem:[#allocation5 + $0x9] sm:$0x1] %vm7544, 0.0
        %7555 = vst.msk [vmem:[#allocation5 + $0xa] sm:$0x1] %vm7544, 0.0
        %7556 = vst.msk [vmem:[#allocation5 + $0xb] sm:$0x1] %vm7544, 0.0
        %7557 = vst.msk [vmem:[#allocation5 + $0xc] sm:$0x1] %vm7544, 0.0
        %7558 = vst.msk [vmem:[#allocation5 + $0xd] sm:$0x1] %vm7544, 0.0
        %7559 = vst.msk [vmem:[#allocation5 + $0xe] sm:$0x1] %vm7544, 0.0
        %7560 = vst.msk [vmem:[#allocation5 + $0xf] sm:$0x1] %vm7544, 0.0
        %7561 = vst.msk [vmem:[#allocation5 + $0x10] sm:$0x1] %vm7544, 0.0
        %7562 = vst.msk [vmem:[#allocation5 + $0x11] sm:$0x1] %vm7544, 0.0
        %7563 = vst.msk [vmem:[#allocation5 + $0x12] sm:$0x1] %vm7544, 0.0
        %7564 = vst.msk [vmem:[#allocation5 + $0x13] sm:$0x1] %vm7544, 0.0
        %7565 = vst.msk [vmem:[#allocation5 + $0x14] sm:$0x1] %vm7544, 0.0
        %7566 = vst.msk [vmem:[#allocation5 + $0x15] sm:$0x1] %vm7544, 0.0
        %7567 = vst.msk [vmem:[#allocation5 + $0x16] sm:$0x1] %vm7544, 0.0
        %7568 = vst.msk [vmem:[#allocation5 + $0x17] sm:$0x1] %vm7544, 0.0
        %7569 = vst.msk [vmem:[#allocation5 + $0x18] sm:$0x1] %vm7544, 0.0
        %7570 = vst.msk [vmem:[#allocation5 + $0x19] sm:$0x1] %vm7544, 0.0
        %7571 = vst.msk [vmem:[#allocation5 + $0x1a] sm:$0x1] %vm7544, 0.0
        %7572 = vst.msk [vmem:[#allocation5 + $0x1b] sm:$0x1] %vm7544, 0.0
        %7573 = vst.msk [vmem:[#allocation5 + $0x1c] sm:$0x1] %vm7544, 0.0
        %7574 = vst.msk [vmem:[#allocation5 + $0x1d] sm:$0x1] %vm7544, 0.0
        %7575 = vst.msk [vmem:[#allocation5 + $0x1e] sm:$0x1] %vm7544, 0.0
        %7576 = vst.msk [vmem:[#allocation5 + $0x1f] sm:$0x1] %vm7544, 0.0
        %7577 = vst.msk [vmem:[#allocation5 + $0x20] sm:$0x1] %vm7544, 0.0
        %7578 = vst.msk [vmem:[#allocation5 + $0x21] sm:$0x1] %vm7544, 0.0
        %7579 = vst.msk [vmem:[#allocation5 + $0x22] sm:$0x1] %vm7544, 0.0
        %7580 = vst.msk [vmem:[#allocation5 + $0x23] sm:$0x1] %vm7544, 0.0
        %s7581 = scalar_lea.vmem [#allocation5], 7
        %7582 = vst.msk [vmem:[%s7581] sm:$0x1] %vm7544, %v7477
        %7583 = vst.msk [vmem:[%s7581 + $0x1] sm:$0x1] %vm7544, %v7478
        %7584 = vst.msk [vmem:[%s7581 + $0x2] sm:$0x1] %vm7544, %v7479
        %7585 = vst.msk [vmem:[%s7581 + $0x3] sm:$0x1] %vm7544, %v7480
        %7586 = vst.msk [vmem:[%s7581 + $0x6] sm:$0x1] %vm7544, %v7481
        %7587 = vst.msk [vmem:[%s7581 + $0x7] sm:$0x1] %vm7544, %v7482
        %7588 = vst.msk [vmem:[%s7581 + $0x8] sm:$0x1] %vm7544, %v7483
        %7589 = vst.msk [vmem:[%s7581 + $0x9] sm:$0x1] %vm7544, %v7484
        %7590 = vst.msk [vmem:[%s7581 + $0xc] sm:$0x1] %vm7544, %v7485
        %7591 = vst.msk [vmem:[%s7581 + $0xd] sm:$0x1] %vm7544, %v7486
        %7592 = vst.msk [vmem:[%s7581 + $0xe] sm:$0x1] %vm7544, %v7487
        %7593 = vst.msk [vmem:[%s7581 + $0xf] sm:$0x1] %vm7544, %v7488
        %7594 = vst.msk [vmem:[%s7581 + $0x12] sm:$0x1] %vm7544, %v7489
        %7595 = vst.msk [vmem:[%s7581 + $0x13] sm:$0x1] %vm7544, %v7490
        %7596 = vst.msk [vmem:[%s7581 + $0x14] sm:$0x1] %vm7544, %v7491
        %7597 = vst.msk [vmem:[%s7581 + $0x15] sm:$0x1] %vm7544, %v7492
        %v7598 = vld [vmem:[#allocation5] sm:$0x1]
        %v7599 = vld [vmem:[#allocation5 + $0x1] sm:$0x1]
        %v7600 = vld [vmem:[#allocation5 + $0x2] sm:$0x1]
        %v7601 = vld [vmem:[#allocation5 + $0x3] sm:$0x1]
        %v7602 = vld [vmem:[#allocation5 + $0x6] sm:$0x1]
        %v7603 = vld [vmem:[#allocation5 + $0x7] sm:$0x1]
        %v7604 = vld [vmem:[#allocation5 + $0x8] sm:$0x1]
        %v7605 = vld [vmem:[#allocation5 + $0x9] sm:$0x1]
        %v7606 = vld [vmem:[#allocation5 + $0xc] sm:$0x1]
        %v7607 = vld [vmem:[#allocation5 + $0xd] sm:$0x1]
        %v7608 = vld [vmem:[#allocation5 + $0xe] sm:$0x1]
        %v7609 = vld [vmem:[#allocation5 + $0xf] sm:$0x1]
        %v7610 = vld [vmem:[#allocation5 + $0x12] sm:$0x1]
        %v7611 = vld [vmem:[#allocation5 + $0x13] sm:$0x1]
        %v7612 = vld [vmem:[#allocation5 + $0x14] sm:$0x1]
        %v7613 = vld [vmem:[#allocation5 + $0x15] sm:$0x1]
        %v7614 = vpack.c.bf16 %v7598, %v7598
        %v7615 = vpack.c.bf16 %v7599, %v7599
        %v7616 = vpack.c.bf16 %v7600, %v7600
        %v7617 = vpack.c.bf16 %v7601, %v7601
        %v7618 = vpack.c.bf16 %v7602, %v7602
        %v7619 = vpack.c.bf16 %v7603, %v7603
        %v7620 = vpack.c.bf16 %v7604, %v7604
        %v7621 = vpack.c.bf16 %v7605, %v7605
        %v7622 = vpack.c.bf16 %v7606, %v7606
        %v7623 = vpack.c.bf16 %v7607, %v7607
        %v7624 = vpack.c.bf16 %v7608, %v7608
        %v7625 = vpack.c.bf16 %v7609, %v7609
        %v7626 = vpack.c.bf16 %v7610, %v7610
        %v7627 = vpack.c.bf16 %v7611, %v7611
        %v7628 = vpack.c.bf16 %v7612, %v7612
        %v7629 = vpack.c.bf16 %v7613, %v7613
        %v7630 = vld [vmem:[%s5] sm:$0xf]
        %v7631 = vld [vmem:[%s5 + $0x4] sm:$0xf]
        %v7632 = vld [vmem:[%s5 + $0x8] sm:$0xf]
        %v7633 = vld [vmem:[%s5 + $0xc] sm:$0xf]
        %s7634 = scalar_lea.vmem [#allocation5], 1
        %v7635 = vld [vmem:[%s7634] sm:$0x1]
        %v7636 = vld [vmem:[%s7634 + $0x1] sm:$0x1]
        %v7637 = vld [vmem:[%s7634 + $0x2] sm:$0x1]
        %v7638 = vld [vmem:[%s7634 + $0x3] sm:$0x1]
        %v7639 = vld [vmem:[%s7634 + $0x6] sm:$0x1]
        %v7640 = vld [vmem:[%s7634 + $0x7] sm:$0x1]
        %v7641 = vld [vmem:[%s7634 + $0x8] sm:$0x1]
        %v7642 = vld [vmem:[%s7634 + $0x9] sm:$0x1]
        %v7643 = vld [vmem:[%s7634 + $0xc] sm:$0x1]
        %v7644 = vld [vmem:[%s7634 + $0xd] sm:$0x1]
        %v7645 = vld [vmem:[%s7634 + $0xe] sm:$0x1]
        %v7646 = vld [vmem:[%s7634 + $0xf] sm:$0x1]
        %v7647 = vld [vmem:[%s7634 + $0x12] sm:$0x1]
        %v7648 = vld [vmem:[%s7634 + $0x13] sm:$0x1]
        %v7649 = vld [vmem:[%s7634 + $0x14] sm:$0x1]
        %v7650 = vld [vmem:[%s7634 + $0x15] sm:$0x1]
        %v7651 = vpack.c.bf16 %v7635, %v7635
        %v7652 = vpack.c.bf16 %v7636, %v7636
        %v7653 = vpack.c.bf16 %v7637, %v7637
        %v7654 = vpack.c.bf16 %v7638, %v7638
        %v7655 = vpack.c.bf16 %v7639, %v7639
        %v7656 = vpack.c.bf16 %v7640, %v7640
        %v7657 = vpack.c.bf16 %v7641, %v7641
        %v7658 = vpack.c.bf16 %v7642, %v7642
        %v7659 = vpack.c.bf16 %v7643, %v7643
        %v7660 = vpack.c.bf16 %v7644, %v7644
        %v7661 = vpack.c.bf16 %v7645, %v7645
        %v7662 = vpack.c.bf16 %v7646, %v7646
        %v7663 = vpack.c.bf16 %v7647, %v7647
        %v7664 = vpack.c.bf16 %v7648, %v7648
        %v7665 = vpack.c.bf16 %v7649, %v7649
        %v7666 = vpack.c.bf16 %v7650, %v7650
        %s7667 = scalar_lea.vmem %s5, 16
        %v7668 = vld [vmem:[%s7667] sm:$0xf]
        %v7669 = vld [vmem:[%s7667 + $0x4] sm:$0xf]
        %v7670 = vld [vmem:[%s7667 + $0x8] sm:$0xf]
        %v7671 = vld [vmem:[%s7667 + $0xc] sm:$0xf]
        %v7688 = vunpack.c.l.b16 %v7651
        %v7689 = vunpack.c.l.b16 %v7652
        %v7690 = vunpack.c.l.b16 %v7653
        %v7691 = vunpack.c.l.b16 %v7654
        %v7692 = vunpack.c.l.b16 %v7655
        %v7693 = vunpack.c.l.b16 %v7656
        %v7694 = vunpack.c.l.b16 %v7657
        %v7695 = vunpack.c.l.b16 %v7658
        %v7696 = vunpack.c.l.b16 %v7659
        %v7697 = vunpack.c.l.b16 %v7660
        %v7698 = vunpack.c.l.b16 %v7661
        %v7699 = vunpack.c.l.b16 %v7662
        %v7700 = vunpack.c.l.b16 %v7663
        %v7701 = vunpack.c.l.b16 %v7664
        %v7702 = vunpack.c.l.b16 %v7665
        %v7703 = vunpack.c.l.b16 %v7666
        %v7704 = vrot.slane %v7689, 7
        %v7705 = vsel %vm2575, %v7704, %v7688
        %v7706 = vrot.slane %v7690, 6
        %v7707 = vsel %vm2578, %v7706, %v7705
        %v7708 = vrot.slane %v7691, 5
        %v7709 = vsel %vm2581, %v7708, %v7707
        %v7710 = vrot.slane %v7692, 4
        %v7711 = vsel %vm2584, %v7710, %v7709
        %v7712 = vrot.slane %v7693, 3
        %v7713 = vsel %vm2587, %v7712, %v7711
        %v7714 = vrot.slane %v7694, 2
        %v7715 = vsel %vm2590, %v7714, %v7713
        %v7716 = vrot.slane %v7695, 1
        %v7717 = vsel %vm2593, %v7716, %v7715
        %v7718 = vrot.slane %v7697, 7
        %v7719 = vsel %vm2575, %v7718, %v7696
        %v7720 = vrot.slane %v7698, 6
        %v7721 = vsel %vm2578, %v7720, %v7719
        %v7722 = vrot.slane %v7699, 5
        %v7723 = vsel %vm2581, %v7722, %v7721
        %v7724 = vrot.slane %v7700, 4
        %v7725 = vsel %vm2584, %v7724, %v7723
        %v7726 = vrot.slane %v7701, 3
        %v7727 = vsel %vm2587, %v7726, %v7725
        %v7728 = vrot.slane %v7702, 2
        %v7729 = vsel %vm2590, %v7728, %v7727
        %v7730 = vrot.slane %v7703, 1
        %v7731 = vsel %vm2593, %v7730, %v7729
        %v7732 = vpack.c.b16 %v7731, %v7717
        %v7737 = vunpack.c.l.b16 %v7668
        %v7738 = vunpack.c.l.b16 %v7669
        %v7739 = vunpack.c.l.b16 %v7670
        %v7740 = vunpack.c.l.b16 %v7671
        %v7741 = vpack.c.b16 %v7738, %v7737
        %v7742 = vpack.c.b16 %v7740, %v7739
        %v7746 = vsel %vm7082, %v7732, 0
        %7748 = vmatprep.subr.bf16.mxu0 0
        %7749 = vmatpush1.bf16.msra.mxu0 %v7741
        %7750 = vmatprep.subr.bf16.mxu0 0
        %7751 = vmatpush1.bf16.msra.mxu0 %v7742
        %7752 = vmatprep.subr.bf16.mxu0 0
        %7753 = vmatpush1.bf16.msra.mxu0 0
        %7754 = vmatprep.subr.bf16.mxu0 0
        %7755 = vmatpush1.bf16.msra.mxu0 0
        %7756 = vmatprep.subr.bf16.mxu0 0
        %7757 = vmatpush1.bf16.msra.mxu0 0
        %7758 = vmatprep.subr.bf16.mxu0 0
        %7759 = vmatpush1.bf16.msra.mxu0 0
        %7760 = vmatprep.subr.bf16.mxu0 0
        %7761 = vmatpush1.bf16.msra.mxu0 0
        %7762 = vmatprep.subr.bf16.mxu0 0
        %7763 = vmatpush1.bf16.msra.mxu0 0
        %7764 = vmatprep.subr.bf16.mxu0 0
        %7765 = vmatpush1.bf16.msra.mxu0 0
        %7766 = vmatprep.subr.bf16.mxu0 0
        %7767 = vmatpush1.bf16.msra.mxu0 0
        %7768 = vmatprep.subr.bf16.mxu0 0
        %7769 = vmatpush1.bf16.msra.mxu0 0
        %7770 = vmatprep.subr.bf16.mxu0 0
        %7771 = vmatpush1.bf16.msra.mxu0 0
        %7772 = vmatprep.subr.bf16.mxu0 0
        %7773 = vmatpush1.bf16.msra.mxu0 0
        %7774 = vmatprep.subr.bf16.mxu0 0
        %7775 = vmatpush1.bf16.msra.mxu0 0
        %7776 = vmatprep.subr.bf16.mxu0 0
        %7777 = vmatpush1.bf16.msra.mxu0 0
        %7778 = vmatprep.subr.bf16.mxu0 0
        %7779 = vmatpush1.bf16.msra.mxu0 0
        %7780 = vmatprep.mubr.bf16.mxu0 0
        %7781 = vmatmul.mubr.bf16.gmra.mrb[0].mxu0 %v7746
        %v7782 = vpop.f32.mrb[0].mxu0
        %v7783 = vadd.f32 0.0, %v7782
        %v7784 = vpop.f32.mrb[0].mxu0
        %v7785 = vpop.f32.mrb[0].mxu0
        %v7786 = vadd.f32 0.0, %v7785
        %v7787 = vpop.f32.mrb[0].mxu0
        %7788 = vdwg.mxu0
        %v7805 = vunpack.c.l.b16 %v7614
        %v7806 = vunpack.c.l.b16 %v7615
        %v7807 = vunpack.c.l.b16 %v7616
        %v7808 = vunpack.c.l.b16 %v7617
        %v7809 = vunpack.c.l.b16 %v7618
        %v7810 = vunpack.c.l.b16 %v7619
        %v7811 = vunpack.c.l.b16 %v7620
        %v7812 = vunpack.c.l.b16 %v7621
        %v7813 = vunpack.c.l.b16 %v7622
        %v7814 = vunpack.c.l.b16 %v7623
        %v7815 = vunpack.c.l.b16 %v7624
        %v7816 = vunpack.c.l.b16 %v7625
        %v7817 = vunpack.c.l.b16 %v7626
        %v7818 = vunpack.c.l.b16 %v7627
        %v7819 = vunpack.c.l.b16 %v7628
        %v7820 = vunpack.c.l.b16 %v7629
        %v7821 = vrot.slane %v7806, 7
        %v7822 = vsel %vm2575, %v7821, %v7805
        %v7823 = vrot.slane %v7807, 6
        %v7824 = vsel %vm2578, %v7823, %v7822
        %v7825 = vrot.slane %v7808, 5
        %v7826 = vsel %vm2581, %v7825, %v7824
        %v7827 = vrot.slane %v7809, 4
        %v7828 = vsel %vm2584, %v7827, %v7826
        %v7829 = vrot.slane %v7810, 3
        %v7830 = vsel %vm2587, %v7829, %v7828
        %v7831 = vrot.slane %v7811, 2
        %v7832 = vsel %vm2590, %v7831, %v7830
        %v7833 = vrot.slane %v7812, 1
        %v7834 = vsel %vm2593, %v7833, %v7832
        %v7835 = vrot.slane %v7814, 7
        %v7836 = vsel %vm2575, %v7835, %v7813
        %v7837 = vrot.slane %v7815, 6
        %v7838 = vsel %vm2578, %v7837, %v7836
        %v7839 = vrot.slane %v7816, 5
        %v7840 = vsel %vm2581, %v7839, %v7838
        %v7841 = vrot.slane %v7817, 4
        %v7842 = vsel %vm2584, %v7841, %v7840
        %v7843 = vrot.slane %v7818, 3
        %v7844 = vsel %vm2587, %v7843, %v7842
        %v7845 = vrot.slane %v7819, 2
        %v7846 = vsel %vm2590, %v7845, %v7844
        %v7847 = vrot.slane %v7820, 1
        %v7848 = vsel %vm2593, %v7847, %v7846
        %v7849 = vpack.c.b16 %v7848, %v7834
        %v7854 = vunpack.c.l.b16 %v7630
        %v7855 = vunpack.c.l.b16 %v7631
        %v7856 = vunpack.c.l.b16 %v7632
        %v7857 = vunpack.c.l.b16 %v7633
        %v7858 = vpack.c.b16 %v7855, %v7854
        %v7859 = vpack.c.b16 %v7857, %v7856
        %v7863 = vsel %vm7082, %v7849, 0
        %7865 = vmatprep.subr.bf16.mxu0 0
        %7866 = vmatpush1.bf16.msra.mxu0 %v7858
        %7867 = vmatprep.subr.bf16.mxu0 0
        %7868 = vmatpush1.bf16.msra.mxu0 %v7859
        %7869 = vmatprep.subr.bf16.mxu0 0
        %7870 = vmatpush1.bf16.msra.mxu0 0
        %7871 = vmatprep.subr.bf16.mxu0 0
        %7872 = vmatpush1.bf16.msra.mxu0 0
        %7873 = vmatprep.subr.bf16.mxu0 0
        %7874 = vmatpush1.bf16.msra.mxu0 0
        %7875 = vmatprep.subr.bf16.mxu0 0
        %7876 = vmatpush1.bf16.msra.mxu0 0
        %7877 = vmatprep.subr.bf16.mxu0 0
        %7878 = vmatpush1.bf16.msra.mxu0 0
        %7879 = vmatprep.subr.bf16.mxu0 0
        %7880 = vmatpush1.bf16.msra.mxu0 0
        %7881 = vmatprep.subr.bf16.mxu0 0
        %7882 = vmatpush1.bf16.msra.mxu0 0
        %7883 = vmatprep.subr.bf16.mxu0 0
        %7884 = vmatpush1.bf16.msra.mxu0 0
        %7885 = vmatprep.subr.bf16.mxu0 0
        %7886 = vmatpush1.bf16.msra.mxu0 0
        %7887 = vmatprep.subr.bf16.mxu0 0
        %7888 = vmatpush1.bf16.msra.mxu0 0
        %7889 = vmatprep.subr.bf16.mxu0 0
        %7890 = vmatpush1.bf16.msra.mxu0 0
        %7891 = vmatprep.subr.bf16.mxu0 0
        %7892 = vmatpush1.bf16.msra.mxu0 0
        %7893 = vmatprep.subr.bf16.mxu0 0
        %7894 = vmatpush1.bf16.msra.mxu0 0
        %7895 = vmatprep.subr.bf16.mxu0 0
        %7896 = vmatpush1.bf16.msra.mxu0 0
        %7897 = vmatprep.mubr.bf16.mxu0 0
        %7898 = vmatmul.mubr.bf16.gmra.mrb[0].mxu0 %v7863
        %v7899 = vpop.f32.mrb[0].mxu0
        %v7900 = vadd.f32 %v7783, %v7899
        %v7901 = vpop.f32.mrb[0].mxu0
        %v7902 = vpop.f32.mrb[0].mxu0
        %v7903 = vadd.f32 %v7786, %v7902
        %v7904 = vpop.f32.mrb[0].mxu0
        %7905 = vdwg.mxu0
        %s7906 = scalar_lea.vmem [#allocation5], 2
        %v7907 = vld [vmem:[%s7906] sm:$0x1]
        %v7908 = vld [vmem:[%s7906 + $0x1] sm:$0x1]
        %v7909 = vld [vmem:[%s7906 + $0x2] sm:$0x1]
        %v7910 = vld [vmem:[%s7906 + $0x3] sm:$0x1]
        %v7911 = vld [vmem:[%s7906 + $0x6] sm:$0x1]
        %v7912 = vld [vmem:[%s7906 + $0x7] sm:$0x1]
        %v7913 = vld [vmem:[%s7906 + $0x8] sm:$0x1]
        %v7914 = vld [vmem:[%s7906 + $0x9] sm:$0x1]
        %v7915 = vld [vmem:[%s7906 + $0xc] sm:$0x1]
        %v7916 = vld [vmem:[%s7906 + $0xd] sm:$0x1]
        %v7917 = vld [vmem:[%s7906 + $0xe] sm:$0x1]
        %v7918 = vld [vmem:[%s7906 + $0xf] sm:$0x1]
        %v7919 = vld [vmem:[%s7906 + $0x12] sm:$0x1]
        %v7920 = vld [vmem:[%s7906 + $0x13] sm:$0x1]
        %v7921 = vld [vmem:[%s7906 + $0x14] sm:$0x1]
        %v7922 = vld [vmem:[%s7906 + $0x15] sm:$0x1]
        %v7923 = vpack.c.bf16 %v7907, %v7907
        %v7924 = vpack.c.bf16 %v7908, %v7908
        %v7925 = vpack.c.bf16 %v7909, %v7909
        %v7926 = vpack.c.bf16 %v7910, %v7910
        %v7927 = vpack.c.bf16 %v7911, %v7911
        %v7928 = vpack.c.bf16 %v7912, %v7912
        %v7929 = vpack.c.bf16 %v7913, %v7913
        %v7930 = vpack.c.bf16 %v7914, %v7914
        %v7931 = vpack.c.bf16 %v7915, %v7915
        %v7932 = vpack.c.bf16 %v7916, %v7916
        %v7933 = vpack.c.bf16 %v7917, %v7917
        %v7934 = vpack.c.bf16 %v7918, %v7918
        %v7935 = vpack.c.bf16 %v7919, %v7919
        %v7936 = vpack.c.bf16 %v7920, %v7920
        %v7937 = vpack.c.bf16 %v7921, %v7921
        %v7938 = vpack.c.bf16 %v7922, %v7922
        %s7939 = scalar_lea.vmem %s5, 32
        %v7940 = vld [vmem:[%s7939] sm:$0xf]
        %v7941 = vld [vmem:[%s7939 + $0x4] sm:$0xf]
        %v7942 = vld [vmem:[%s7939 + $0x8] sm:$0xf]
        %v7943 = vld [vmem:[%s7939 + $0xc] sm:$0xf]
        %v7960 = vunpack.c.l.b16 %v7923
        %v7961 = vunpack.c.l.b16 %v7924
        %v7962 = vunpack.c.l.b16 %v7925
        %v7963 = vunpack.c.l.b16 %v7926
        %v7964 = vunpack.c.l.b16 %v7927
        %v7965 = vunpack.c.l.b16 %v7928
        %v7966 = vunpack.c.l.b16 %v7929
        %v7967 = vunpack.c.l.b16 %v7930
        %v7968 = vunpack.c.l.b16 %v7931
        %v7969 = vunpack.c.l.b16 %v7932
        %v7970 = vunpack.c.l.b16 %v7933
        %v7971 = vunpack.c.l.b16 %v7934
        %v7972 = vunpack.c.l.b16 %v7935
        %v7973 = vunpack.c.l.b16 %v7936
        %v7974 = vunpack.c.l.b16 %v7937
        %v7975 = vunpack.c.l.b16 %v7938
        %v7976 = vrot.slane %v7961, 7
        %v7977 = vsel %vm2575, %v7976, %v7960
        %v7978 = vrot.slane %v7962, 6
        %v7979 = vsel %vm2578, %v7978, %v7977
        %v7980 = vrot.slane %v7963, 5
        %v7981 = vsel %vm2581, %v7980, %v7979
        %v7982 = vrot.slane %v7964, 4
        %v7983 = vsel %vm2584, %v7982, %v7981
        %v7984 = vrot.slane %v7965, 3
        %v7985 = vsel %vm2587, %v7984, %v7983
        %v7986 = vrot.slane %v7966, 2
        %v7987 = vsel %vm2590, %v7986, %v7985
        %v7988 = vrot.slane %v7967, 1
        %v7989 = vsel %vm2593, %v7988, %v7987
        %v7990 = vrot.slane %v7969, 7
        %v7991 = vsel %vm2575, %v7990, %v7968
        %v7992 = vrot.slane %v7970, 6
        %v7993 = vsel %vm2578, %v7992, %v7991
        %v7994 = vrot.slane %v7971, 5
        %v7995 = vsel %vm2581, %v7994, %v7993
        %v7996 = vrot.slane %v7972, 4
        %v7997 = vsel %vm2584, %v7996, %v7995
        %v7998 = vrot.slane %v7973, 3
        %v7999 = vsel %vm2587, %v7998, %v7997
        %v8000 = vrot.slane %v7974, 2
        %v8001 = vsel %vm2590, %v8000, %v7999
        %v8002 = vrot.slane %v7975, 1
        %v8003 = vsel %vm2593, %v8002, %v8001
        %v8004 = vpack.c.b16 %v8003, %v7989
        %v8009 = vunpack.c.l.b16 %v7940
        %v8010 = vunpack.c.l.b16 %v7941
        %v8011 = vunpack.c.l.b16 %v7942
        %v8012 = vunpack.c.l.b16 %v7943
        %v8013 = vpack.c.b16 %v8010, %v8009
        %v8014 = vpack.c.b16 %v8012, %v8011
        %v8018 = vsel %vm7082, %v8004, 0
        %8020 = vmatprep.subr.bf16.mxu0 0
        %8021 = vmatpush1.bf16.msra.mxu0 %v8013
        %8022 = vmatprep.subr.bf16.mxu0 0
        %8023 = vmatpush1.bf16.msra.mxu0 %v8014
        %8024 = vmatprep.subr.bf16.mxu0 0
        %8025 = vmatpush1.bf16.msra.mxu0 0
        %8026 = vmatprep.subr.bf16.mxu0 0
        %8027 = vmatpush1.bf16.msra.mxu0 0
        %8028 = vmatprep.subr.bf16.mxu0 0
        %8029 = vmatpush1.bf16.msra.mxu0 0
        %8030 = vmatprep.subr.bf16.mxu0 0
        %8031 = vmatpush1.bf16.msra.mxu0 0
        %8032 = vmatprep.subr.bf16.mxu0 0
        %8033 = vmatpush1.bf16.msra.mxu0 0
        %8034 = vmatprep.subr.bf16.mxu0 0
        %8035 = vmatpush1.bf16.msra.mxu0 0
        %8036 = vmatprep.subr.bf16.mxu0 0
        %8037 = vmatpush1.bf16.msra.mxu0 0
        %8038 = vmatprep.subr.bf16.mxu0 0
        %8039 = vmatpush1.bf16.msra.mxu0 0
        %8040 = vmatprep.subr.bf16.mxu0 0
        %8041 = vmatpush1.bf16.msra.mxu0 0
        %8042 = vmatprep.subr.bf16.mxu0 0
        %8043 = vmatpush1.bf16.msra.mxu0 0
        %8044 = vmatprep.subr.bf16.mxu0 0
        %8045 = vmatpush1.bf16.msra.mxu0 0
        %8046 = vmatprep.subr.bf16.mxu0 0
        %8047 = vmatpush1.bf16.msra.mxu0 0
        %8048 = vmatprep.subr.bf16.mxu0 0
        %8049 = vmatpush1.bf16.msra.mxu0 0
        %8050 = vmatprep.subr.bf16.mxu0 0
        %8051 = vmatpush1.bf16.msra.mxu0 0
        %8052 = vmatprep.mubr.bf16.mxu0 0
        %8053 = vmatmul.mubr.bf16.gmra.mrb[0].mxu0 %v8018
        %v8054 = vpop.f32.mrb[0].mxu0
        %v8055 = vadd.f32 0.0, %v8054
        %v8056 = vpop.f32.mrb[0].mxu0
        %v8057 = vpop.f32.mrb[0].mxu0
        %v8058 = vadd.f32 0.0, %v8057
        %v8059 = vpop.f32.mrb[0].mxu0
        %8060 = vdwg.mxu0
        %v8061 = vadd.f32 %v7900, %v8055
        %v8062 = vadd.f32 %v7903, %v8058
        %s8063 = scalar_lea.vmem [#allocation5], 6
        %v8064 = vld [vmem:[%s8063] sm:$0x1]
        %v8065 = vld [vmem:[%s8063 + $0x1] sm:$0x1]
        %v8066 = vld [vmem:[%s8063 + $0x2] sm:$0x1]
        %v8067 = vld [vmem:[%s8063 + $0x3] sm:$0x1]
        %v8068 = vld [vmem:[%s8063 + $0x6] sm:$0x1]
        %v8069 = vld [vmem:[%s8063 + $0x7] sm:$0x1]
        %v8070 = vld [vmem:[%s8063 + $0x8] sm:$0x1]
        %v8071 = vld [vmem:[%s8063 + $0x9] sm:$0x1]
        %v8072 = vld [vmem:[%s8063 + $0xc] sm:$0x1]
        %v8073 = vld [vmem:[%s8063 + $0xd] sm:$0x1]
        %v8074 = vld [vmem:[%s8063 + $0xe] sm:$0x1]
        %v8075 = vld [vmem:[%s8063 + $0xf] sm:$0x1]
        %v8076 = vld [vmem:[%s8063 + $0x12] sm:$0x1]
        %v8077 = vld [vmem:[%s8063 + $0x13] sm:$0x1]
        %v8078 = vld [vmem:[%s8063 + $0x14] sm:$0x1]
        %v8079 = vld [vmem:[%s8063 + $0x15] sm:$0x1]
        %v8080 = vpack.c.bf16 %v8064, %v8064
        %v8081 = vpack.c.bf16 %v8065, %v8065
        %v8082 = vpack.c.bf16 %v8066, %v8066
        %v8083 = vpack.c.bf16 %v8067, %v8067
        %v8084 = vpack.c.bf16 %v8068, %v8068
        %v8085 = vpack.c.bf16 %v8069, %v8069
        %v8086 = vpack.c.bf16 %v8070, %v8070
        %v8087 = vpack.c.bf16 %v8071, %v8071
        %v8088 = vpack.c.bf16 %v8072, %v8072
        %v8089 = vpack.c.bf16 %v8073, %v8073
        %v8090 = vpack.c.bf16 %v8074, %v8074
        %v8091 = vpack.c.bf16 %v8075, %v8075
        %v8092 = vpack.c.bf16 %v8076, %v8076
        %v8093 = vpack.c.bf16 %v8077, %v8077
        %v8094 = vpack.c.bf16 %v8078, %v8078
        %v8095 = vpack.c.bf16 %v8079, %v8079
        %s8096 = scalar_lea.vmem %s5, 48
        %v8097 = vld [vmem:[%s8096] sm:$0xf]
        %v8098 = vld [vmem:[%s8096 + $0x4] sm:$0xf]
        %v8099 = vld [vmem:[%s8096 + $0x8] sm:$0xf]
        %v8100 = vld [vmem:[%s8096 + $0xc] sm:$0xf]
        %v8117 = vunpack.c.l.b16 %v8080
        %v8118 = vunpack.c.l.b16 %v8081
        %v8119 = vunpack.c.l.b16 %v8082
        %v8120 = vunpack.c.l.b16 %v8083
        %v8121 = vunpack.c.l.b16 %v8084
        %v8122 = vunpack.c.l.b16 %v8085
        %v8123 = vunpack.c.l.b16 %v8086
        %v8124 = vunpack.c.l.b16 %v8087
        %v8125 = vunpack.c.l.b16 %v8088
        %v8126 = vunpack.c.l.b16 %v8089
        %v8127 = vunpack.c.l.b16 %v8090
        %v8128 = vunpack.c.l.b16 %v8091
        %v8129 = vunpack.c.l.b16 %v8092
        %v8130 = vunpack.c.l.b16 %v8093
        %v8131 = vunpack.c.l.b16 %v8094
        %v8132 = vunpack.c.l.b16 %v8095
        %v8133 = vrot.slane %v8118, 7
        %v8134 = vsel %vm2575, %v8133, %v8117
        %v8135 = vrot.slane %v8119, 6
        %v8136 = vsel %vm2578, %v8135, %v8134
        %v8137 = vrot.slane %v8120, 5
        %v8138 = vsel %vm2581, %v8137, %v8136
        %v8139 = vrot.slane %v8121, 4
        %v8140 = vsel %vm2584, %v8139, %v8138
        %v8141 = vrot.slane %v8122, 3
        %v8142 = vsel %vm2587, %v8141, %v8140
        %v8143 = vrot.slane %v8123, 2
        %v8144 = vsel %vm2590, %v8143, %v8142
        %v8145 = vrot.slane %v8124, 1
        %v8146 = vsel %vm2593, %v8145, %v8144
        %v8147 = vrot.slane %v8126, 7
        %v8148 = vsel %vm2575, %v8147, %v8125
        %v8149 = vrot.slane %v8127, 6
        %v8150 = vsel %vm2578, %v8149, %v8148
        %v8151 = vrot.slane %v8128, 5
        %v8152 = vsel %vm2581, %v8151, %v8150
        %v8153 = vrot.slane %v8129, 4
        %v8154 = vsel %vm2584, %v8153, %v8152
        %v8155 = vrot.slane %v8130, 3
        %v8156 = vsel %vm2587, %v8155, %v8154
        %v8157 = vrot.slane %v8131, 2
        %v8158 = vsel %vm2590, %v8157, %v8156
        %v8159 = vrot.slane %v8132, 1
        %v8160 = vsel %vm2593, %v8159, %v8158
        %v8161 = vpack.c.b16 %v8160, %v8146
        %v8166 = vunpack.c.l.b16 %v8097
        %v8167 = vunpack.c.l.b16 %v8098
        %v8168 = vunpack.c.l.b16 %v8099
        %v8169 = vunpack.c.l.b16 %v8100
        %v8170 = vpack.c.b16 %v8167, %v8166
        %v8171 = vpack.c.b16 %v8169, %v8168
        %v8175 = vsel %vm7082, %v8161, 0
        %8177 = vmatprep.subr.bf16.mxu0 0
        %8178 = vmatpush1.bf16.msra.mxu0 %v8170
        %8179 = vmatprep.subr.bf16.mxu0 0
        %8180 = vmatpush1.bf16.msra.mxu0 %v8171
        %8181 = vmatprep.subr.bf16.mxu0 0
        %8182 = vmatpush1.bf16.msra.mxu0 0
        %8183 = vmatprep.subr.bf16.mxu0 0
        %8184 = vmatpush1.bf16.msra.mxu0 0
        %8185 = vmatprep.subr.bf16.mxu0 0
        %8186 = vmatpush1.bf16.msra.mxu0 0
        %8187 = vmatprep.subr.bf16.mxu0 0
        %8188 = vmatpush1.bf16.msra.mxu0 0
        %8189 = vmatprep.subr.bf16.mxu0 0
        %8190 = vmatpush1.bf16.msra.mxu0 0
        %8191 = vmatprep.subr.bf16.mxu0 0
        %8192 = vmatpush1.bf16.msra.mxu0 0
        %8193 = vmatprep.subr.bf16.mxu0 0
        %8194 = vmatpush1.bf16.msra.mxu0 0
        %8195 = vmatprep.subr.bf16.mxu0 0
        %8196 = vmatpush1.bf16.msra.mxu0 0
        %8197 = vmatprep.subr.bf16.mxu0 0
        %8198 = vmatpush1.bf16.msra.mxu0 0
        %8199 = vmatprep.subr.bf16.mxu0 0
        %8200 = vmatpush1.bf16.msra.mxu0 0
        %8201 = vmatprep.subr.bf16.mxu0 0
        %8202 = vmatpush1.bf16.msra.mxu0 0
        %8203 = vmatprep.subr.bf16.mxu0 0
        %8204 = vmatpush1.bf16.msra.mxu0 0
        %8205 = vmatprep.subr.bf16.mxu0 0
        %8206 = vmatpush1.bf16.msra.mxu0 0
        %8207 = vmatprep.subr.bf16.mxu0 0
        %8208 = vmatpush1.bf16.msra.mxu0 0
        %8209 = vmatprep.mubr.bf16.mxu0 0
        %8210 = vmatmul.mubr.bf16.gmra.mrb[0].mxu0 %v8175
        %v8211 = vpop.f32.mrb[0].mxu0
        %v8212 = vadd.f32 0.0, %v8211
        %v8213 = vpop.f32.mrb[0].mxu0
        %v8214 = vpop.f32.mrb[0].mxu0
        %v8215 = vadd.f32 0.0, %v8214
        %v8216 = vpop.f32.mrb[0].mxu0
        %8217 = vdwg.mxu0
        %v8218 = vadd.f32 %v8061, %v8212
        %v8219 = vadd.f32 %v8062, %v8215
        %v8220 = vld [vmem:[%s7581] sm:$0x1]
        %v8221 = vld [vmem:[%s7581 + $0x1] sm:$0x1]
        %v8222 = vld [vmem:[%s7581 + $0x2] sm:$0x1]
        %v8223 = vld [vmem:[%s7581 + $0x3] sm:$0x1]
        %v8224 = vld [vmem:[%s7581 + $0x6] sm:$0x1]
        %v8225 = vld [vmem:[%s7581 + $0x7] sm:$0x1]
        %v8226 = vld [vmem:[%s7581 + $0x8] sm:$0x1]
        %v8227 = vld [vmem:[%s7581 + $0x9] sm:$0x1]
        %v8228 = vld [vmem:[%s7581 + $0xc] sm:$0x1]
        %v8229 = vld [vmem:[%s7581 + $0xd] sm:$0x1]
        %v8230 = vld [vmem:[%s7581 + $0xe] sm:$0x1]
        %v8231 = vld [vmem:[%s7581 + $0xf] sm:$0x1]
        %v8232 = vld [vmem:[%s7581 + $0x12] sm:$0x1]
        %v8233 = vld [vmem:[%s7581 + $0x13] sm:$0x1]
        %v8234 = vld [vmem:[%s7581 + $0x14] sm:$0x1]
        %v8235 = vld [vmem:[%s7581 + $0x15] sm:$0x1]
        %v8236 = vpack.c.bf16 %v8220, %v8220
        %v8237 = vpack.c.bf16 %v8221, %v8221
        %v8238 = vpack.c.bf16 %v8222, %v8222
        %v8239 = vpack.c.bf16 %v8223, %v8223
        %v8240 = vpack.c.bf16 %v8224, %v8224
        %v8241 = vpack.c.bf16 %v8225, %v8225
        %v8242 = vpack.c.bf16 %v8226, %v8226
        %v8243 = vpack.c.bf16 %v8227, %v8227
        %v8244 = vpack.c.bf16 %v8228, %v8228
        %v8245 = vpack.c.bf16 %v8229, %v8229
        %v8246 = vpack.c.bf16 %v8230, %v8230
        %v8247 = vpack.c.bf16 %v8231, %v8231
        %v8248 = vpack.c.bf16 %v8232, %v8232
        %v8249 = vpack.c.bf16 %v8233, %v8233
        %v8250 = vpack.c.bf16 %v8234, %v8234
        %v8251 = vpack.c.bf16 %v8235, %v8235
        %s8252 = scalar_lea.vmem %s5, 64
        %v8253 = vld [vmem:[%s8252] sm:$0xf]
        %v8254 = vld [vmem:[%s8252 + $0x4] sm:$0xf]
        %v8255 = vld [vmem:[%s8252 + $0x8] sm:$0xf]
        %v8256 = vld [vmem:[%s8252 + $0xc] sm:$0xf]
        %v8273 = vunpack.c.l.b16 %v8236
        %v8274 = vunpack.c.l.b16 %v8237
        %v8275 = vunpack.c.l.b16 %v8238
        %v8276 = vunpack.c.l.b16 %v8239
        %v8277 = vunpack.c.l.b16 %v8240
        %v8278 = vunpack.c.l.b16 %v8241
        %v8279 = vunpack.c.l.b16 %v8242
        %v8280 = vunpack.c.l.b16 %v8243
        %v8281 = vunpack.c.l.b16 %v8244
        %v8282 = vunpack.c.l.b16 %v8245
        %v8283 = vunpack.c.l.b16 %v8246
        %v8284 = vunpack.c.l.b16 %v8247
        %v8285 = vunpack.c.l.b16 %v8248
        %v8286 = vunpack.c.l.b16 %v8249
        %v8287 = vunpack.c.l.b16 %v8250
        %v8288 = vunpack.c.l.b16 %v8251
        %v8289 = vrot.slane %v8274, 7
        %v8290 = vsel %vm2575, %v8289, %v8273
        %v8291 = vrot.slane %v8275, 6
        %v8292 = vsel %vm2578, %v8291, %v8290
        %v8293 = vrot.slane %v8276, 5
        %v8294 = vsel %vm2581, %v8293, %v8292
        %v8295 = vrot.slane %v8277, 4
        %v8296 = vsel %vm2584, %v8295, %v8294
        %v8297 = vrot.slane %v8278, 3
        %v8298 = vsel %vm2587, %v8297, %v8296
        %v8299 = vrot.slane %v8279, 2
        %v8300 = vsel %vm2590, %v8299, %v8298
        %v8301 = vrot.slane %v8280, 1
        %v8302 = vsel %vm2593, %v8301, %v8300
        %v8303 = vrot.slane %v8282, 7
        %v8304 = vsel %vm2575, %v8303, %v8281
        %v8305 = vrot.slane %v8283, 6
        %v8306 = vsel %vm2578, %v8305, %v8304
        %v8307 = vrot.slane %v8284, 5
        %v8308 = vsel %vm2581, %v8307, %v8306
        %v8309 = vrot.slane %v8285, 4
        %v8310 = vsel %vm2584, %v8309, %v8308
        %v8311 = vrot.slane %v8286, 3
        %v8312 = vsel %vm2587, %v8311, %v8310
        %v8313 = vrot.slane %v8287, 2
        %v8314 = vsel %vm2590, %v8313, %v8312
        %v8315 = vrot.slane %v8288, 1
        %v8316 = vsel %vm2593, %v8315, %v8314
        %v8317 = vpack.c.b16 %v8316, %v8302
        %v8322 = vunpack.c.l.b16 %v8253
        %v8323 = vunpack.c.l.b16 %v8254
        %v8324 = vunpack.c.l.b16 %v8255
        %v8325 = vunpack.c.l.b16 %v8256
        %v8326 = vpack.c.b16 %v8323, %v8322
        %v8327 = vpack.c.b16 %v8325, %v8324
        %v8331 = vsel %vm7082, %v8317, 0
        %8333 = vmatprep.subr.bf16.mxu0 0
        %8334 = vmatpush1.bf16.msra.mxu0 %v8326
        %8335 = vmatprep.subr.bf16.mxu0 0
        %8336 = vmatpush1.bf16.msra.mxu0 %v8327
        %8337 = vmatprep.subr.bf16.mxu0 0
        %8338 = vmatpush1.bf16.msra.mxu0 0
        %8339 = vmatprep.subr.bf16.mxu0 0
        %8340 = vmatpush1.bf16.msra.mxu0 0
        %8341 = vmatprep.subr.bf16.mxu0 0
        %8342 = vmatpush1.bf16.msra.mxu0 0
        %8343 = vmatprep.subr.bf16.mxu0 0
        %8344 = vmatpush1.bf16.msra.mxu0 0
        %8345 = vmatprep.subr.bf16.mxu0 0
        %8346 = vmatpush1.bf16.msra.mxu0 0
        %8347 = vmatprep.subr.bf16.mxu0 0
        %8348 = vmatpush1.bf16.msra.mxu0 0
        %8349 = vmatprep.subr.bf16.mxu0 0
        %8350 = vmatpush1.bf16.msra.mxu0 0
        %8351 = vmatprep.subr.bf16.mxu0 0
        %8352 = vmatpush1.bf16.msra.mxu0 0
        %8353 = vmatprep.subr.bf16.mxu0 0
        %8354 = vmatpush1.bf16.msra.mxu0 0
        %8355 = vmatprep.subr.bf16.mxu0 0
        %8356 = vmatpush1.bf16.msra.mxu0 0
        %8357 = vmatprep.subr.bf16.mxu0 0
        %8358 = vmatpush1.bf16.msra.mxu0 0
        %8359 = vmatprep.subr.bf16.mxu0 0
        %8360 = vmatpush1.bf16.msra.mxu0 0
        %8361 = vmatprep.subr.bf16.mxu0 0
        %8362 = vmatpush1.bf16.msra.mxu0 0
        %8363 = vmatprep.subr.bf16.mxu0 0
        %8364 = vmatpush1.bf16.msra.mxu0 0
        %8365 = vmatprep.mubr.bf16.mxu0 0
        %8366 = vmatmul.mubr.bf16.gmra.mrb[0].mxu0 %v8331
        %v8367 = vpop.f32.mrb[0].mxu0
        %v8368 = vadd.f32 0.0, %v8367
        %v8369 = vpop.f32.mrb[0].mxu0
        %v8370 = vpop.f32.mrb[0].mxu0
        %v8371 = vadd.f32 0.0, %v8370
        %v8372 = vpop.f32.mrb[0].mxu0
        %8373 = vdwg.mxu0
        %v8374 = vadd.f32 %v8218, %v8368
        %v8375 = vadd.f32 %v8219, %v8371
        %s8376 = scalar_lea.vmem [#allocation5], 8
        %v8377 = vld [vmem:[%s8376] sm:$0x1]
        %v8378 = vld [vmem:[%s8376 + $0x1] sm:$0x1]
        %v8379 = vld [vmem:[%s8376 + $0x2] sm:$0x1]
        %v8380 = vld [vmem:[%s8376 + $0x3] sm:$0x1]
        %v8381 = vld [vmem:[%s8376 + $0x6] sm:$0x1]
        %v8382 = vld [vmem:[%s8376 + $0x7] sm:$0x1]
        %v8383 = vld [vmem:[%s8376 + $0x8] sm:$0x1]
        %v8384 = vld [vmem:[%s8376 + $0x9] sm:$0x1]
        %v8385 = vld [vmem:[%s8376 + $0xc] sm:$0x1]
        %v8386 = vld [vmem:[%s8376 + $0xd] sm:$0x1]
        %v8387 = vld [vmem:[%s8376 + $0xe] sm:$0x1]
        %v8388 = vld [vmem:[%s8376 + $0xf] sm:$0x1]
        %v8389 = vld [vmem:[%s8376 + $0x12] sm:$0x1]
        %v8390 = vld [vmem:[%s8376 + $0x13] sm:$0x1]
        %v8391 = vld [vmem:[%s8376 + $0x14] sm:$0x1]
        %v8392 = vld [vmem:[%s8376 + $0x15] sm:$0x1]
        %v8393 = vpack.c.bf16 %v8377, %v8377
        %v8394 = vpack.c.bf16 %v8378, %v8378
        %v8395 = vpack.c.bf16 %v8379, %v8379
        %v8396 = vpack.c.bf16 %v8380, %v8380
        %v8397 = vpack.c.bf16 %v8381, %v8381
        %v8398 = vpack.c.bf16 %v8382, %v8382
        %v8399 = vpack.c.bf16 %v8383, %v8383
        %v8400 = vpack.c.bf16 %v8384, %v8384
        %v8401 = vpack.c.bf16 %v8385, %v8385
        %v8402 = vpack.c.bf16 %v8386, %v8386
        %v8403 = vpack.c.bf16 %v8387, %v8387
        %v8404 = vpack.c.bf16 %v8388, %v8388
        %v8405 = vpack.c.bf16 %v8389, %v8389
        %v8406 = vpack.c.bf16 %v8390, %v8390
        %v8407 = vpack.c.bf16 %v8391, %v8391
        %v8408 = vpack.c.bf16 %v8392, %v8392
        %s8409 = scalar_lea.vmem %s5, 80
        %v8410 = vld [vmem:[%s8409] sm:$0xf]
        %v8411 = vld [vmem:[%s8409 + $0x4] sm:$0xf]
        %v8412 = vld [vmem:[%s8409 + $0x8] sm:$0xf]
        %v8413 = vld [vmem:[%s8409 + $0xc] sm:$0xf]
        %v8430 = vunpack.c.l.b16 %v8393
        %v8431 = vunpack.c.l.b16 %v8394
        %v8432 = vunpack.c.l.b16 %v8395
        %v8433 = vunpack.c.l.b16 %v8396
        %v8434 = vunpack.c.l.b16 %v8397
        %v8435 = vunpack.c.l.b16 %v8398
        %v8436 = vunpack.c.l.b16 %v8399
        %v8437 = vunpack.c.l.b16 %v8400
        %v8438 = vunpack.c.l.b16 %v8401
        %v8439 = vunpack.c.l.b16 %v8402
        %v8440 = vunpack.c.l.b16 %v8403
        %v8441 = vunpack.c.l.b16 %v8404
        %v8442 = vunpack.c.l.b16 %v8405
        %v8443 = vunpack.c.l.b16 %v8406
        %v8444 = vunpack.c.l.b16 %v8407
        %v8445 = vunpack.c.l.b16 %v8408
        %v8446 = vrot.slane %v8431, 7
        %v8447 = vsel %vm2575, %v8446, %v8430
        %v8448 = vrot.slane %v8432, 6
        %v8449 = vsel %vm2578, %v8448, %v8447
        %v8450 = vrot.slane %v8433, 5
        %v8451 = vsel %vm2581, %v8450, %v8449
        %v8452 = vrot.slane %v8434, 4
        %v8453 = vsel %vm2584, %v8452, %v8451
        %v8454 = vrot.slane %v8435, 3
        %v8455 = vsel %vm2587, %v8454, %v8453
        %v8456 = vrot.slane %v8436, 2
        %v8457 = vsel %vm2590, %v8456, %v8455
        %v8458 = vrot.slane %v8437, 1
        %v8459 = vsel %vm2593, %v8458, %v8457
        %v8460 = vrot.slane %v8439, 7
        %v8461 = vsel %vm2575, %v8460, %v8438
        %v8462 = vrot.slane %v8440, 6
        %v8463 = vsel %vm2578, %v8462, %v8461
        %v8464 = vrot.slane %v8441, 5
        %v8465 = vsel %vm2581, %v8464, %v8463
        %v8466 = vrot.slane %v8442, 4
        %v8467 = vsel %vm2584, %v8466, %v8465
        %v8468 = vrot.slane %v8443, 3
        %v8469 = vsel %vm2587, %v8468, %v8467
        %v8470 = vrot.slane %v8444, 2
        %v8471 = vsel %vm2590, %v8470, %v8469
        %v8472 = vrot.slane %v8445, 1
        %v8473 = vsel %vm2593, %v8472, %v8471
        %v8474 = vpack.c.b16 %v8473, %v8459
        %v8479 = vunpack.c.l.b16 %v8410
        %v8480 = vunpack.c.l.b16 %v8411
        %v8481 = vunpack.c.l.b16 %v8412
        %v8482 = vunpack.c.l.b16 %v8413
        %v8483 = vpack.c.b16 %v8480, %v8479
        %v8484 = vpack.c.b16 %v8482, %v8481
        %v8488 = vsel %vm7082, %v8474, 0
        %8490 = vmatprep.subr.bf16.mxu0 0
        %8491 = vmatpush1.bf16.msra.mxu0 %v8483
        %8492 = vmatprep.subr.bf16.mxu0 0
        %8493 = vmatpush1.bf16.msra.mxu0 %v8484
        %8494 = vmatprep.subr.bf16.mxu0 0
        %8495 = vmatpush1.bf16.msra.mxu0 0
        %8496 = vmatprep.subr.bf16.mxu0 0
        %8497 = vmatpush1.bf16.msra.mxu0 0
        %8498 = vmatprep.subr.bf16.mxu0 0
        %8499 = vmatpush1.bf16.msra.mxu0 0
        %8500 = vmatprep.subr.bf16.mxu0 0
        %8501 = vmatpush1.bf16.msra.mxu0 0
        %8502 = vmatprep.subr.bf16.mxu0 0
        %8503 = vmatpush1.bf16.msra.mxu0 0
        %8504 = vmatprep.subr.bf16.mxu0 0
        %8505 = vmatpush1.bf16.msra.mxu0 0
        %8506 = vmatprep.subr.bf16.mxu0 0
        %8507 = vmatpush1.bf16.msra.mxu0 0
        %8508 = vmatprep.subr.bf16.mxu0 0
        %8509 = vmatpush1.bf16.msra.mxu0 0
        %8510 = vmatprep.subr.bf16.mxu0 0
        %8511 = vmatpush1.bf16.msra.mxu0 0
        %8512 = vmatprep.subr.bf16.mxu0 0
        %8513 = vmatpush1.bf16.msra.mxu0 0
        %8514 = vmatprep.subr.bf16.mxu0 0
        %8515 = vmatpush1.bf16.msra.mxu0 0
        %8516 = vmatprep.subr.bf16.mxu0 0
        %8517 = vmatpush1.bf16.msra.mxu0 0
        %8518 = vmatprep.subr.bf16.mxu0 0
        %8519 = vmatpush1.bf16.msra.mxu0 0
        %8520 = vmatprep.subr.bf16.mxu0 0
        %8521 = vmatpush1.bf16.msra.mxu0 0
        %8522 = vmatprep.mubr.bf16.mxu0 0
        %8523 = vmatmul.mubr.bf16.gmra.mrb[0].mxu0 %v8488
        %v8524 = vpop.f32.mrb[0].mxu0
        %v8525 = vadd.f32 0.0, %v8524
        %v8526 = vpop.f32.mrb[0].mxu0
        %v8527 = vpop.f32.mrb[0].mxu0
        %v8528 = vadd.f32 0.0, %v8527
        %v8529 = vpop.f32.mrb[0].mxu0
        %8530 = vdwg.mxu0
        %v8531 = vadd.f32 %v8374, %v8525
        %v8532 = vadd.f32 %v8375, %v8528
        %s8533 = scalar_lea.vmem [#allocation5], 12
        %v8534 = vld [vmem:[%s8533] sm:$0x1]
        %v8535 = vld [vmem:[%s8533 + $0x1] sm:$0x1]
        %v8536 = vld [vmem:[%s8533 + $0x2] sm:$0x1]
        %v8537 = vld [vmem:[%s8533 + $0x3] sm:$0x1]
        %v8538 = vld [vmem:[%s8533 + $0x6] sm:$0x1]
        %v8539 = vld [vmem:[%s8533 + $0x7] sm:$0x1]
        %v8540 = vld [vmem:[%s8533 + $0x8] sm:$0x1]
        %v8541 = vld [vmem:[%s8533 + $0x9] sm:$0x1]
        %v8542 = vld [vmem:[%s8533 + $0xc] sm:$0x1]
        %v8543 = vld [vmem:[%s8533 + $0xd] sm:$0x1]
        %v8544 = vld [vmem:[%s8533 + $0xe] sm:$0x1]
        %v8545 = vld [vmem:[%s8533 + $0xf] sm:$0x1]
        %v8546 = vld [vmem:[%s8533 + $0x12] sm:$0x1]
        %v8547 = vld [vmem:[%s8533 + $0x13] sm:$0x1]
        %v8548 = vld [vmem:[%s8533 + $0x14] sm:$0x1]
        %v8549 = vld [vmem:[%s8533 + $0x15] sm:$0x1]
        %v8550 = vpack.c.bf16 %v8534, %v8534
        %v8551 = vpack.c.bf16 %v8535, %v8535
        %v8552 = vpack.c.bf16 %v8536, %v8536
        %v8553 = vpack.c.bf16 %v8537, %v8537
        %v8554 = vpack.c.bf16 %v8538, %v8538
        %v8555 = vpack.c.bf16 %v8539, %v8539
        %v8556 = vpack.c.bf16 %v8540, %v8540
        %v8557 = vpack.c.bf16 %v8541, %v8541
        %v8558 = vpack.c.bf16 %v8542, %v8542
        %v8559 = vpack.c.bf16 %v8543, %v8543
        %v8560 = vpack.c.bf16 %v8544, %v8544
        %v8561 = vpack.c.bf16 %v8545, %v8545
        %v8562 = vpack.c.bf16 %v8546, %v8546
        %v8563 = vpack.c.bf16 %v8547, %v8547
        %v8564 = vpack.c.bf16 %v8548, %v8548
        %v8565 = vpack.c.bf16 %v8549, %v8549
        %s8566 = scalar_lea.vmem %s5, 96
        %v8567 = vld [vmem:[%s8566] sm:$0xf]
        %v8568 = vld [vmem:[%s8566 + $0x4] sm:$0xf]
        %v8569 = vld [vmem:[%s8566 + $0x8] sm:$0xf]
        %v8570 = vld [vmem:[%s8566 + $0xc] sm:$0xf]
        %v8587 = vunpack.c.l.b16 %v8550
        %v8588 = vunpack.c.l.b16 %v8551
        %v8589 = vunpack.c.l.b16 %v8552
        %v8590 = vunpack.c.l.b16 %v8553
        %v8591 = vunpack.c.l.b16 %v8554
        %v8592 = vunpack.c.l.b16 %v8555
        %v8593 = vunpack.c.l.b16 %v8556
        %v8594 = vunpack.c.l.b16 %v8557
        %v8595 = vunpack.c.l.b16 %v8558
        %v8596 = vunpack.c.l.b16 %v8559
        %v8597 = vunpack.c.l.b16 %v8560
        %v8598 = vunpack.c.l.b16 %v8561
        %v8599 = vunpack.c.l.b16 %v8562
        %v8600 = vunpack.c.l.b16 %v8563
        %v8601 = vunpack.c.l.b16 %v8564
        %v8602 = vunpack.c.l.b16 %v8565
        %v8603 = vrot.slane %v8588, 7
        %v8604 = vsel %vm2575, %v8603, %v8587
        %v8605 = vrot.slane %v8589, 6
        %v8606 = vsel %vm2578, %v8605, %v8604
        %v8607 = vrot.slane %v8590, 5
        %v8608 = vsel %vm2581, %v8607, %v8606
        %v8609 = vrot.slane %v8591, 4
        %v8610 = vsel %vm2584, %v8609, %v8608
        %v8611 = vrot.slane %v8592, 3
        %v8612 = vsel %vm2587, %v8611, %v8610
        %v8613 = vrot.slane %v8593, 2
        %v8614 = vsel %vm2590, %v8613, %v8612
        %v8615 = vrot.slane %v8594, 1
        %v8616 = vsel %vm2593, %v8615, %v8614
        %v8617 = vrot.slane %v8596, 7
        %v8618 = vsel %vm2575, %v8617, %v8595
        %v8619 = vrot.slane %v8597, 6
        %v8620 = vsel %vm2578, %v8619, %v8618
        %v8621 = vrot.slane %v8598, 5
        %v8622 = vsel %vm2581, %v8621, %v8620
        %v8623 = vrot.slane %v8599, 4
        %v8624 = vsel %vm2584, %v8623, %v8622
        %v8625 = vrot.slane %v8600, 3
        %v8626 = vsel %vm2587, %v8625, %v8624
        %v8627 = vrot.slane %v8601, 2
        %v8628 = vsel %vm2590, %v8627, %v8626
        %v8629 = vrot.slane %v8602, 1
        %v8630 = vsel %vm2593, %v8629, %v8628
        %v8631 = vpack.c.b16 %v8630, %v8616
        %v8636 = vunpack.c.l.b16 %v8567
        %v8637 = vunpack.c.l.b16 %v8568
        %v8638 = vunpack.c.l.b16 %v8569
        %v8639 = vunpack.c.l.b16 %v8570
        %v8640 = vpack.c.b16 %v8637, %v8636
        %v8641 = vpack.c.b16 %v8639, %v8638
        %v8645 = vsel %vm7082, %v8631, 0
        %8647 = vmatprep.subr.bf16.mxu0 0
        %8648 = vmatpush1.bf16.msra.mxu0 %v8640
        %8649 = vmatprep.subr.bf16.mxu0 0
        %8650 = vmatpush1.bf16.msra.mxu0 %v8641
        %8651 = vmatprep.subr.bf16.mxu0 0
        %8652 = vmatpush1.bf16.msra.mxu0 0
        %8653 = vmatprep.subr.bf16.mxu0 0
        %8654 = vmatpush1.bf16.msra.mxu0 0
        %8655 = vmatprep.subr.bf16.mxu0 0
        %8656 = vmatpush1.bf16.msra.mxu0 0
        %8657 = vmatprep.subr.bf16.mxu0 0
        %8658 = vmatpush1.bf16.msra.mxu0 0
        %8659 = vmatprep.subr.bf16.mxu0 0
        %8660 = vmatpush1.bf16.msra.mxu0 0
        %8661 = vmatprep.subr.bf16.mxu0 0
        %8662 = vmatpush1.bf16.msra.mxu0 0
        %8663 = vmatprep.subr.bf16.mxu0 0
        %8664 = vmatpush1.bf16.msra.mxu0 0
        %8665 = vmatprep.subr.bf16.mxu0 0
        %8666 = vmatpush1.bf16.msra.mxu0 0
        %8667 = vmatprep.subr.bf16.mxu0 0
        %8668 = vmatpush1.bf16.msra.mxu0 0
        %8669 = vmatprep.subr.bf16.mxu0 0
        %8670 = vmatpush1.bf16.msra.mxu0 0
        %8671 = vmatprep.subr.bf16.mxu0 0
        %8672 = vmatpush1.bf16.msra.mxu0 0
        %8673 = vmatprep.subr.bf16.mxu0 0
        %8674 = vmatpush1.bf16.msra.mxu0 0
        %8675 = vmatprep.subr.bf16.mxu0 0
        %8676 = vmatpush1.bf16.msra.mxu0 0
        %8677 = vmatprep.subr.bf16.mxu0 0
        %8678 = vmatpush1.bf16.msra.mxu0 0
        %8679 = vmatprep.mubr.bf16.mxu0 0
        %8680 = vmatmul.mubr.bf16.gmra.mrb[0].mxu0 %v8645
        %v8681 = vpop.f32.mrb[0].mxu0
        %v8682 = vadd.f32 0.0, %v8681
        %v8683 = vpop.f32.mrb[0].mxu0
        %v8684 = vpop.f32.mrb[0].mxu0
        %v8685 = vadd.f32 0.0, %v8684
        %v8686 = vpop.f32.mrb[0].mxu0
        %8687 = vdwg.mxu0
        %v8688 = vadd.f32 %v8531, %v8682
        %v8689 = vadd.f32 %v8532, %v8685
        %s8690 = scalar_lea.vmem [#allocation5], 13
        %v8691 = vld [vmem:[%s8690] sm:$0x1]
        %v8692 = vld [vmem:[%s8690 + $0x1] sm:$0x1]
        %v8693 = vld [vmem:[%s8690 + $0x2] sm:$0x1]
        %v8694 = vld [vmem:[%s8690 + $0x3] sm:$0x1]
        %v8695 = vld [vmem:[%s8690 + $0x6] sm:$0x1]
        %v8696 = vld [vmem:[%s8690 + $0x7] sm:$0x1]
        %v8697 = vld [vmem:[%s8690 + $0x8] sm:$0x1]
        %v8698 = vld [vmem:[%s8690 + $0x9] sm:$0x1]
        %v8699 = vld [vmem:[%s8690 + $0xc] sm:$0x1]
        %v8700 = vld [vmem:[%s8690 + $0xd] sm:$0x1]
        %v8701 = vld [vmem:[%s8690 + $0xe] sm:$0x1]
        %v8702 = vld [vmem:[%s8690 + $0xf] sm:$0x1]
        %v8703 = vld [vmem:[%s8690 + $0x12] sm:$0x1]
        %v8704 = vld [vmem:[%s8690 + $0x13] sm:$0x1]
        %v8705 = vld [vmem:[%s8690 + $0x14] sm:$0x1]
        %v8706 = vld [vmem:[%s8690 + $0x15] sm:$0x1]
        %v8707 = vpack.c.bf16 %v8691, %v8691
        %v8708 = vpack.c.bf16 %v8692, %v8692
        %v8709 = vpack.c.bf16 %v8693, %v8693
        %v8710 = vpack.c.bf16 %v8694, %v8694
        %v8711 = vpack.c.bf16 %v8695, %v8695
        %v8712 = vpack.c.bf16 %v8696, %v8696
        %v8713 = vpack.c.bf16 %v8697, %v8697
        %v8714 = vpack.c.bf16 %v8698, %v8698
        %v8715 = vpack.c.bf16 %v8699, %v8699
        %v8716 = vpack.c.bf16 %v8700, %v8700
        %v8717 = vpack.c.bf16 %v8701, %v8701
        %v8718 = vpack.c.bf16 %v8702, %v8702
        %v8719 = vpack.c.bf16 %v8703, %v8703
        %v8720 = vpack.c.bf16 %v8704, %v8704
        %v8721 = vpack.c.bf16 %v8705, %v8705
        %v8722 = vpack.c.bf16 %v8706, %v8706
        %s8723 = scalar_lea.vmem %s5, 112
        %v8724 = vld [vmem:[%s8723] sm:$0xf]
        %v8725 = vld [vmem:[%s8723 + $0x4] sm:$0xf]
        %v8726 = vld [vmem:[%s8723 + $0x8] sm:$0xf]
        %v8727 = vld [vmem:[%s8723 + $0xc] sm:$0xf]
        %v8744 = vunpack.c.l.b16 %v8707
        %v8745 = vunpack.c.l.b16 %v8708
        %v8746 = vunpack.c.l.b16 %v8709
        %v8747 = vunpack.c.l.b16 %v8710
        %v8748 = vunpack.c.l.b16 %v8711
        %v8749 = vunpack.c.l.b16 %v8712
        %v8750 = vunpack.c.l.b16 %v8713
        %v8751 = vunpack.c.l.b16 %v8714
        %v8752 = vunpack.c.l.b16 %v8715
        %v8753 = vunpack.c.l.b16 %v8716
        %v8754 = vunpack.c.l.b16 %v8717
        %v8755 = vunpack.c.l.b16 %v8718
        %v8756 = vunpack.c.l.b16 %v8719
        %v8757 = vunpack.c.l.b16 %v8720
        %v8758 = vunpack.c.l.b16 %v8721
        %v8759 = vunpack.c.l.b16 %v8722
        %v8760 = vrot.slane %v8745, 7
        %v8761 = vsel %vm2575, %v8760, %v8744
        %v8762 = vrot.slane %v8746, 6
        %v8763 = vsel %vm2578, %v8762, %v8761
        %v8764 = vrot.slane %v8747, 5
        %v8765 = vsel %vm2581, %v8764, %v8763
        %v8766 = vrot.slane %v8748, 4
        %v8767 = vsel %vm2584, %v8766, %v8765
        %v8768 = vrot.slane %v8749, 3
        %v8769 = vsel %vm2587, %v8768, %v8767
        %v8770 = vrot.slane %v8750, 2
        %v8771 = vsel %vm2590, %v8770, %v8769
        %v8772 = vrot.slane %v8751, 1
        %v8773 = vsel %vm2593, %v8772, %v8771
        %v8774 = vrot.slane %v8753, 7
        %v8775 = vsel %vm2575, %v8774, %v8752
        %v8776 = vrot.slane %v8754, 6
        %v8777 = vsel %vm2578, %v8776, %v8775
        %v8778 = vrot.slane %v8755, 5
        %v8779 = vsel %vm2581, %v8778, %v8777
        %v8780 = vrot.slane %v8756, 4
        %v8781 = vsel %vm2584, %v8780, %v8779
        %v8782 = vrot.slane %v8757, 3
        %v8783 = vsel %vm2587, %v8782, %v8781
        %v8784 = vrot.slane %v8758, 2
        %v8785 = vsel %vm2590, %v8784, %v8783
        %v8786 = vrot.slane %v8759, 1
        %v8787 = vsel %vm2593, %v8786, %v8785
        %v8788 = vpack.c.b16 %v8787, %v8773
        %v8793 = vunpack.c.l.b16 %v8724
        %v8794 = vunpack.c.l.b16 %v8725
        %v8795 = vunpack.c.l.b16 %v8726
        %v8796 = vunpack.c.l.b16 %v8727
        %v8797 = vpack.c.b16 %v8794, %v8793
        %v8798 = vpack.c.b16 %v8796, %v8795
        %v8802 = vsel %vm7082, %v8788, 0
        %8804 = vmatprep.subr.bf16.mxu0 0
        %8805 = vmatpush1.bf16.msra.mxu0 %v8797
        %8806 = vmatprep.subr.bf16.mxu0 0
        %8807 = vmatpush1.bf16.msra.mxu0 %v8798
        %8808 = vmatprep.subr.bf16.mxu0 0
        %8809 = vmatpush1.bf16.msra.mxu0 0
        %8810 = vmatprep.subr.bf16.mxu0 0
        %8811 = vmatpush1.bf16.msra.mxu0 0
        %8812 = vmatprep.subr.bf16.mxu0 0
        %8813 = vmatpush1.bf16.msra.mxu0 0
        %8814 = vmatprep.subr.bf16.mxu0 0
        %8815 = vmatpush1.bf16.msra.mxu0 0
        %8816 = vmatprep.subr.bf16.mxu0 0
        %8817 = vmatpush1.bf16.msra.mxu0 0
        %8818 = vmatprep.subr.bf16.mxu0 0
        %8819 = vmatpush1.bf16.msra.mxu0 0
        %8820 = vmatprep.subr.bf16.mxu0 0
        %8821 = vmatpush1.bf16.msra.mxu0 0
        %8822 = vmatprep.subr.bf16.mxu0 0
        %8823 = vmatpush1.bf16.msra.mxu0 0
        %8824 = vmatprep.subr.bf16.mxu0 0
        %8825 = vmatpush1.bf16.msra.mxu0 0
        %8826 = vmatprep.subr.bf16.mxu0 0
        %8827 = vmatpush1.bf16.msra.mxu0 0
        %8828 = vmatprep.subr.bf16.mxu0 0
        %8829 = vmatpush1.bf16.msra.mxu0 0
        %8830 = vmatprep.subr.bf16.mxu0 0
        %8831 = vmatpush1.bf16.msra.mxu0 0
        %8832 = vmatprep.subr.bf16.mxu0 0
        %8833 = vmatpush1.bf16.msra.mxu0 0
        %8834 = vmatprep.subr.bf16.mxu0 0
        %8835 = vmatpush1.bf16.msra.mxu0 0
        %8836 = vmatprep.mubr.bf16.mxu0 0
        %8837 = vmatmul.mubr.bf16.gmra.mrb[0].mxu0 %v8802
        %v8838 = vpop.f32.mrb[0].mxu0
        %v8839 = vadd.f32 0.0, %v8838
        %v8840 = vpop.f32.mrb[0].mxu0
        %v8841 = vpop.f32.mrb[0].mxu0
        %v8842 = vadd.f32 0.0, %v8841
        %v8843 = vpop.f32.mrb[0].mxu0
        %8844 = vdwg.mxu0
        %v8845 = vadd.f32 %v8688, %v8839
        %v8846 = vadd.f32 %v8689, %v8842
        %s8847 = scalar_lea.vmem [#allocation5], 14
        %v8848 = vld [vmem:[%s8847] sm:$0x1]
        %v8849 = vld [vmem:[%s8847 + $0x1] sm:$0x1]
        %v8850 = vld [vmem:[%s8847 + $0x2] sm:$0x1]
        %v8851 = vld [vmem:[%s8847 + $0x3] sm:$0x1]
        %v8852 = vld [vmem:[%s8847 + $0x6] sm:$0x1]
        %v8853 = vld [vmem:[%s8847 + $0x7] sm:$0x1]
        %v8854 = vld [vmem:[%s8847 + $0x8] sm:$0x1]
        %v8855 = vld [vmem:[%s8847 + $0x9] sm:$0x1]
        %v8856 = vld [vmem:[%s8847 + $0xc] sm:$0x1]
        %v8857 = vld [vmem:[%s8847 + $0xd] sm:$0x1]
        %v8858 = vld [vmem:[%s8847 + $0xe] sm:$0x1]
        %v8859 = vld [vmem:[%s8847 + $0xf] sm:$0x1]
        %v8860 = vld [vmem:[%s8847 + $0x12] sm:$0x1]
        %v8861 = vld [vmem:[%s8847 + $0x13] sm:$0x1]
        %v8862 = vld [vmem:[%s8847 + $0x14] sm:$0x1]
        %v8863 = vld [vmem:[%s8847 + $0x15] sm:$0x1]
        %v8864 = vpack.c.bf16 %v8848, %v8848
        %v8865 = vpack.c.bf16 %v8849, %v8849
        %v8866 = vpack.c.bf16 %v8850, %v8850
        %v8867 = vpack.c.bf16 %v8851, %v8851
        %v8868 = vpack.c.bf16 %v8852, %v8852
        %v8869 = vpack.c.bf16 %v8853, %v8853
        %v8870 = vpack.c.bf16 %v8854, %v8854
        %v8871 = vpack.c.bf16 %v8855, %v8855
        %v8872 = vpack.c.bf16 %v8856, %v8856
        %v8873 = vpack.c.bf16 %v8857, %v8857
        %v8874 = vpack.c.bf16 %v8858, %v8858
        %v8875 = vpack.c.bf16 %v8859, %v8859
        %v8876 = vpack.c.bf16 %v8860, %v8860
        %v8877 = vpack.c.bf16 %v8861, %v8861
        %v8878 = vpack.c.bf16 %v8862, %v8862
        %v8879 = vpack.c.bf16 %v8863, %v8863
        %s8880 = scalar_lea.vmem %s5, 128
        %v8881 = vld [vmem:[%s8880] sm:$0xf]
        %v8882 = vld [vmem:[%s8880 + $0x4] sm:$0xf]
        %v8883 = vld [vmem:[%s8880 + $0x8] sm:$0xf]
        %v8884 = vld [vmem:[%s8880 + $0xc] sm:$0xf]
        %v8901 = vunpack.c.l.b16 %v8864
        %v8902 = vunpack.c.l.b16 %v8865
        %v8903 = vunpack.c.l.b16 %v8866
        %v8904 = vunpack.c.l.b16 %v8867
        %v8905 = vunpack.c.l.b16 %v8868
        %v8906 = vunpack.c.l.b16 %v8869
        %v8907 = vunpack.c.l.b16 %v8870
        %v8908 = vunpack.c.l.b16 %v8871
        %v8909 = vunpack.c.l.b16 %v8872
        %v8910 = vunpack.c.l.b16 %v8873
        %v8911 = vunpack.c.l.b16 %v8874
        %v8912 = vunpack.c.l.b16 %v8875
        %v8913 = vunpack.c.l.b16 %v8876
        %v8914 = vunpack.c.l.b16 %v8877
        %v8915 = vunpack.c.l.b16 %v8878
        %v8916 = vunpack.c.l.b16 %v8879
        %v8917 = vrot.slane %v8902, 7
        %v8918 = vsel %vm2575, %v8917, %v8901
        %v8919 = vrot.slane %v8903, 6
        %v8920 = vsel %vm2578, %v8919, %v8918
        %v8921 = vrot.slane %v8904, 5
        %v8922 = vsel %vm2581, %v8921, %v8920
        %v8923 = vrot.slane %v8905, 4
        %v8924 = vsel %vm2584, %v8923, %v8922
        %v8925 = vrot.slane %v8906, 3
        %v8926 = vsel %vm2587, %v8925, %v8924
        %v8927 = vrot.slane %v8907, 2
        %v8928 = vsel %vm2590, %v8927, %v8926
        %v8929 = vrot.slane %v8908, 1
        %v8930 = vsel %vm2593, %v8929, %v8928
        %v8931 = vrot.slane %v8910, 7
        %v8932 = vsel %vm2575, %v8931, %v8909
        %v8933 = vrot.slane %v8911, 6
        %v8934 = vsel %vm2578, %v8933, %v8932
        %v8935 = vrot.slane %v8912, 5
        %v8936 = vsel %vm2581, %v8935, %v8934
        %v8937 = vrot.slane %v8913, 4
        %v8938 = vsel %vm2584, %v8937, %v8936
        %v8939 = vrot.slane %v8914, 3
        %v8940 = vsel %vm2587, %v8939, %v8938
        %v8941 = vrot.slane %v8915, 2
        %v8942 = vsel %vm2590, %v8941, %v8940
        %v8943 = vrot.slane %v8916, 1
        %v8944 = vsel %vm2593, %v8943, %v8942
        %v8945 = vpack.c.b16 %v8944, %v8930
        %v8950 = vunpack.c.l.b16 %v8881
        %v8951 = vunpack.c.l.b16 %v8882
        %v8952 = vunpack.c.l.b16 %v8883
        %v8953 = vunpack.c.l.b16 %v8884
        %v8954 = vpack.c.b16 %v8951, %v8950
        %v8955 = vpack.c.b16 %v8953, %v8952
        %v8959 = vsel %vm7082, %v8945, 0
        %8961 = vmatprep.subr.bf16.mxu0 0
        %8962 = vmatpush1.bf16.msra.mxu0 %v8954
        %8963 = vmatprep.subr.bf16.mxu0 0
        %8964 = vmatpush1.bf16.msra.mxu0 %v8955
        %8965 = vmatprep.subr.bf16.mxu0 0
        %8966 = vmatpush1.bf16.msra.mxu0 0
        %8967 = vmatprep.subr.bf16.mxu0 0
        %8968 = vmatpush1.bf16.msra.mxu0 0
        %8969 = vmatprep.subr.bf16.mxu0 0
        %8970 = vmatpush1.bf16.msra.mxu0 0
        %8971 = vmatprep.subr.bf16.mxu0 0
        %8972 = vmatpush1.bf16.msra.mxu0 0
        %8973 = vmatprep.subr.bf16.mxu0 0
        %8974 = vmatpush1.bf16.msra.mxu0 0
        %8975 = vmatprep.subr.bf16.mxu0 0
        %8976 = vmatpush1.bf16.msra.mxu0 0
        %8977 = vmatprep.subr.bf16.mxu0 0
        %8978 = vmatpush1.bf16.msra.mxu0 0
        %8979 = vmatprep.subr.bf16.mxu0 0
        %8980 = vmatpush1.bf16.msra.mxu0 0
        %8981 = vmatprep.subr.bf16.mxu0 0
        %8982 = vmatpush1.bf16.msra.mxu0 0
        %8983 = vmatprep.subr.bf16.mxu0 0
        %8984 = vmatpush1.bf16.msra.mxu0 0
        %8985 = vmatprep.subr.bf16.mxu0 0
        %8986 = vmatpush1.bf16.msra.mxu0 0
        %8987 = vmatprep.subr.bf16.mxu0 0
        %8988 = vmatpush1.bf16.msra.mxu0 0
        %8989 = vmatprep.subr.bf16.mxu0 0
        %8990 = vmatpush1.bf16.msra.mxu0 0
        %8991 = vmatprep.subr.bf16.mxu0 0
        %8992 = vmatpush1.bf16.msra.mxu0 0
        %8993 = vmatprep.mubr.bf16.mxu0 0
        %8994 = vmatmul.mubr.bf16.gmra.mrb[0].mxu0 %v8959
        %v8995 = vpop.f32.mrb[0].mxu0
        %v8996 = vadd.f32 0.0, %v8995
        %v8997 = vpop.f32.mrb[0].mxu0
        %v8998 = vpop.f32.mrb[0].mxu0
        %v8999 = vadd.f32 0.0, %v8998
        %v9000 = vpop.f32.mrb[0].mxu0
        %9001 = vdwg.mxu0
        %v9002 = vadd.f32 %v8845, %v8996
        %v9003 = vadd.f32 %v8846, %v8999
        %v9004 = vld [vmem:[%s6] sm:$0x1]
        %v9006 = vlaneseq
        %v9007 = vshrl.u32 %v9006, 7
        %v9008 = vsub.s32 0, %v9007
        %v9009 = vrot.slane %v9004, %v9008
        %v9011 = vadd.f32 %v9002, %v9009
        %v9012 = vadd.f32 %v9003, %v9009
        %v9013 = vsel %vm7082, %v9011, 0.0
        %9014 = vadd.xlane.f32.xlu0 %v9013
        %v9015 = vpop.xlane.xlu0 %9014
        %v9016 = vsel %vm7082, %v9012, 0.0
        %9017 = vadd.xlane.f32.xlu0 %v9016
        %v9018 = vpop.xlane.xlu0 %9017
        %v9019 = vrcp.pop 32.0
        %v9020 = vmul.f32 %v9015, %v9019
        %v9021 = vmul.f32 %v9018, %v9019
        %v9022 = vsub.f32 %v9011, %v9020
        %v9023 = vsub.f32 %v9012, %v9021
        %v9024 = vmul.f32 %v9022, %v9022
        %v9025 = vmul.f32 %v9023, %v9023
        %v9026 = vsel %vm7082, %v9024, 0.0
        %9027 = vadd.xlane.f32.xlu0 %v9026
        %v9028 = vpop.xlane.xlu0 %9027
        %v9029 = vsel %vm7082, %v9025, 0.0
        %9030 = vadd.xlane.f32.xlu0 %v9029
        %v9031 = vpop.xlane.xlu0 %9030
        %v9032 = vmul.f32 %v9028, %v9019
        %v9033 = vmul.f32 %v9031, %v9019
        %v9034 = vadd.f32 %v9032, 1e-05
        %v9035 = vadd.f32 %v9033, 1e-05
        %v9036 = vrsqrt.pop %v9034
        %v9037 = vrsqrt.pop %v9035
        %v9038 = vmul.f32 %v9022, %v9036
        %v9039 = vmul.f32 %v9023, %v9037
        %v9040 = vld [vmem:[%s7] sm:$0x1]
        %v9042 = vlaneseq
        %v9043 = vshrl.u32 %v9042, 7
        %v9044 = vsub.s32 0, %v9043
        %v9045 = vrot.slane %v9040, %v9044
        %v9047 = vmul.f32 %v9038, %v9045
        %v9048 = vmul.f32 %v9039, %v9045
        %v9049 = vld [vmem:[%s8] sm:$0x1]
        %v9051 = vlaneseq
        %v9052 = vshrl.u32 %v9051, 7
        %v9053 = vsub.s32 0, %v9052
        %v9054 = vrot.slane %v9049, %v9053
        %v9056 = vadd.f32 %v9047, %v9054
        %v9057 = vadd.f32 %v9048, %v9054
        %9058 = vst.msk [vmem:[%s440] sm:$0xff] %vm7082, %v9056
        %9059 = vst.msk [vmem:[%s440 + $0x8] sm:$0xff] %vm7082, %v9057
        %s9060 = sand.u32 %s236, 1
        %s9061 = scalar_lea.sflag [#allocation7], %s9060
        %s9062 = sand.u32 %s236, 1
        %s9063 = smul.addr %s9062, 16
        %s9064 = scalar_lea.vmem [#allocation6], %s9063
        %s9065 = sand.u32 %s34, 1
        %s9066 = scalar_lea.sflag [#allocation9], %s9065
        %s9067 = sand.u32 %s262, 1
        %s9068 = smul.addr %s9067, 64
        %s9069 = scalar_lea.vmem [#allocation8], %s9068
        %s9070 = sand.u32 %s34, 1
        %s9071 = scalar_lea.sflag [#allocation9], %s9070
        %s9072 = sand.u32 %s288, 1
        %s9073 = smul.addr %s9072, 16
        %s9074 = scalar_lea.vmem [#allocation10], %s9073
        %p9075 = scmp.lt.s32.totalorder %s34, 1
        %s9076 = scalar_select %p9075, %s34, 1
        %s9077 = smul.addr %s9076, 32
        %s9078 = smul.addr %s9077, 8
        %s9079 = scalar_lea.vmem %s12, %s9078
        %s9080 = sand.u32 %s340, 1
        %s9081 = scalar_lea.sflag [#allocation12], %s9080
        %s9082 = sand.u32 %s340, 1
        %s9083 = smul.addr %s9082, 64
        %s9084 = scalar_lea.vmem [#allocation11], %s9083
        // Predicated region
        $region57: #{basic_layer_forward.1} parent=55 // pred_check
          %p9085 = pneg %p246
        $region58: #{basic_layer_forward.1} parent=55 // pred_check_branch
          %9087 = sbr.rel (%p9085) target = $region60
        $region59: #{basic_layer_forward.1} parent=55 // pred_region
          %s9089 = ssub.s32 256, 256
          %9090 = vsyncadd %s9061, %s9089
          %s9091 = smul.addr %s34, 2
          %s9092 = smul.addr %s9091, 128
          %s9093 = scalar_lea.hbm %s9, %s9092
          %s9094 = sshll.u32 %s9064, 4
          %s9095 = int_to_ptr.vmem [resolvable:$true] %s9094
          %9100 = dma.vmem_to_hbm [thread:$0]  %s9095, 256, %s9093, %s9061, 128, 128, 8
        $region60: #{basic_layer_forward.1} parent=55 // pred_fallthru
          _
        // Predicated region
        $region61: #{basic_layer_forward.1} parent=55 // pred_check
          %p9101 = pneg %p272
        $region62: #{basic_layer_forward.1} parent=55 // pred_check_branch
          %9103 = sbr.rel (%p9101) target = $region64
        $region63: #{basic_layer_forward.1} parent=55 // pred_region
          %s9105 = ssub.s32 1024, 1024
          %9106 = vsyncadd %s9066, %s9105
          %s9107 = smul.addr %s34, 8
          %s9108 = smul.addr %s9107, 128
          %s9109 = scalar_lea.hbm %s10, %s9108
          %s9110 = sshll.u32 %s9069, 4
          %s9111 = int_to_ptr.vmem [resolvable:$true] %s9110
          %9116 = dma.vmem_to_hbm [thread:$0]  %s9111, 1024, %s9109, %s9066, 128, 128, 8
        $region64: #{basic_layer_forward.1} parent=55 // pred_fallthru
          _
        // Predicated region
        $region65: #{basic_layer_forward.1} parent=55 // pred_check
          %p9117 = pneg %p298
        $region66: #{basic_layer_forward.1} parent=55 // pred_check_branch
          %9119 = sbr.rel (%p9117) target = $region68
        $region67: #{basic_layer_forward.1} parent=55 // pred_region
          %s9121 = ssub.s32 256, 256
          %9122 = vsyncadd %s9071, %s9121
          %s9123 = smul.addr %s34, 4
          %s9124 = smul.addr %s9123, 64
          %s9125 = scalar_lea.hbm %s11, %s9124
          %s9126 = sshll.u32 %s9074, 4
          %s9127 = int_to_ptr.vmem [resolvable:$true] %s9126
          %9132 = dma.vmem_to_hbm [thread:$0]  %s9127, 256, %s9125, %s9071, 64, 64, 4
        $region68: #{basic_layer_forward.1} parent=55 // pred_fallthru
          _
        // Predicated region
        $region69: #{basic_layer_forward.1} parent=55 // pred_check
          %p9133 = pneg %p324
        $region70: #{basic_layer_forward.1} parent=55 // pred_check_branch
          %9135 = sbr.rel (%p9133) target = $region72
        $region71: #{basic_layer_forward.1} parent=55 // pred_region
          _
        $region72: #{basic_layer_forward.1} parent=55 // pred_fallthru
          _
        // Predicated region
        $region73: #{basic_layer_forward.1} parent=55 // pred_check
          %p9136 = pneg %p350
        $region74: #{basic_layer_forward.1} parent=55 // pred_check_branch
          %9138 = sbr.rel (%p9136) target = $region76
        $region75: #{basic_layer_forward.1} parent=55 // pred_region
          %s9140 = ssub.s32 1024, 1024
          %9141 = vsyncadd %s9081, %s9140
          %s9142 = smul.addr %s34, 8
          %s9143 = smul.addr %s9142, 128
          %s9144 = scalar_lea.hbm %s13, %s9143
          %s9145 = sshll.u32 %s9084, 4
          %s9146 = int_to_ptr.vmem [resolvable:$true] %s9145
          %9151 = dma.vmem_to_hbm [thread:$0]  %s9146, 1024, %s9144, %s9081, 128, 128, 8
        $region76: #{basic_layer_forward.1} parent=55 // pred_fallthru
          _
      $region56: #{basic_layer_forward.1} parent=5 // pred_fallthru
        _
      %p9152 = scmp.le.s32.totalorder 2, %s29
      // Predicated region
      $region77: #{basic_layer_forward.1} parent=5 // pred_check
        %p9153 = pneg %p9152
      $region78: #{basic_layer_forward.1} parent=5 // pred_check_branch
        %9155 = sbr.rel (%p9153) target = $region80
      $region79: #{basic_layer_forward.1} parent=5 // pred_region
        %s9156 = ssub.s32 %s29, 2
        // Predicated region
        $region81: #{basic_layer_forward.1} parent=79 // pred_check
          %p9157 = pneg %p252
        $region82: #{basic_layer_forward.1} parent=79 // pred_check_branch
          %9159 = sbr.rel (%p9157) target = $region84
        $region83: #{basic_layer_forward.1} parent=79 // pred_region
          %s9160 = sand.u32 %s237, 1
          %s9161 = scalar_lea.sflag [#allocation7], %s9160
          %s9162 = sand.u32 %s237, 1
          %s9163 = smul.addr %s9162, 16
          %s9164 = scalar_lea.vmem [#allocation6], %s9163
          %9165 = dma.done %s9161, 256
        $region84: #{basic_layer_forward.1} parent=79 // pred_fallthru
          _
        // Predicated region
        $region85: #{basic_layer_forward.1} parent=79 // pred_check
          %p9166 = pneg %p278
        $region86: #{basic_layer_forward.1} parent=79 // pred_check_branch
          %9168 = sbr.rel (%p9166) target = $region88
        $region87: #{basic_layer_forward.1} parent=79 // pred_region
          %s9169 = sand.u32 %s35, 1
          %s9170 = scalar_lea.sflag [#allocation9], %s9169
          %s9171 = sand.u32 %s263, 1
          %s9172 = smul.addr %s9171, 64
          %s9173 = scalar_lea.vmem [#allocation8], %s9172
          %9174 = dma.done %s9170, 1024
        $region88: #{basic_layer_forward.1} parent=79 // pred_fallthru
          _
        // Predicated region
        $region89: #{basic_layer_forward.1} parent=79 // pred_check
          %p9175 = pneg %p304
        $region90: #{basic_layer_forward.1} parent=79 // pred_check_branch
          %9177 = sbr.rel (%p9175) target = $region92
        $region91: #{basic_layer_forward.1} parent=79 // pred_region
          %s9178 = sand.u32 %s35, 1
          %s9179 = scalar_lea.sflag [#allocation9], %s9178
          %s9180 = sand.u32 %s289, 1
          %s9181 = smul.addr %s9180, 16
          %s9182 = scalar_lea.vmem [#allocation10], %s9181
          %9183 = dma.done %s9179, 256
        $region92: #{basic_layer_forward.1} parent=79 // pred_fallthru
          _
        // Predicated region
        $region93: #{basic_layer_forward.1} parent=79 // pred_check
          %p9184 = pneg %p330
        $region94: #{basic_layer_forward.1} parent=79 // pred_check_branch
          %9186 = sbr.rel (%p9184) target = $region96
        $region95: #{basic_layer_forward.1} parent=79 // pred_region
          %p9187 = scmp.lt.s32.totalorder %s35, 1
          %s9188 = scalar_select %p9187, %s35, 1
          %s9189 = smul.addr %s9188, 32
          %s9190 = smul.addr %s9189, 8
          %s9191 = scalar_lea.vmem %s12, %s9190
        $region96: #{basic_layer_forward.1} parent=79 // pred_fallthru
          _
        // Predicated region
        $region97: #{basic_layer_forward.1} parent=79 // pred_check
          %p9192 = pneg %p356
        $region98: #{basic_layer_forward.1} parent=79 // pred_check_branch
          %9194 = sbr.rel (%p9192) target = $region100
        $region99: #{basic_layer_forward.1} parent=79 // pred_region
          %s9195 = sand.u32 %s341, 1
          %s9196 = scalar_lea.sflag [#allocation12], %s9195
          %s9197 = sand.u32 %s341, 1
          %s9198 = smul.addr %s9197, 64
          %s9199 = scalar_lea.vmem [#allocation11], %s9198
          %9200 = dma.done %s9196, 1024
        $region100: #{basic_layer_forward.1} parent=79 // pred_fallthru
          _
      $region80: #{basic_layer_forward.1} parent=5 // pred_fallthru
        _
    $region6: #{basic_layer_forward.1} parent=1 // loop_footer
      %s33 = sadd.s32 1, %s29
    $region7: #{basic_layer_forward.1} parent=1 // loop_footer_branch
      %28 = sbr.rel target = $region3
    $region8: #{basic_layer_forward.1} parent=1 // loop_exit
      _
    %9201 = vsyncpa [#allocation7], 1
    %s9202 = scalar_lea.sflag [#allocation7], 1
    %9203 = vsyncpa %s9202, 1
    %9204 = vsyncpa [#allocation9], 1
    %s9205 = scalar_lea.sflag [#allocation9], 1
    %9206 = vsyncpa %s9205, 1
    %9207 = vsyncpa [#allocation12], 1
    %s9208 = scalar_lea.sflag [#allocation12], 1
    %9209 = vsyncpa %s9208, 1

</llo_original>
